<compile_context>
chip_gen: v7x
topology: tpu7x:2x2x1
jax: 0.10.0
libtpu: 0.0.40
codegen_flags: <defaults>
</compile_context>

<pallas_src>
import functools

import jax
import jax.numpy as jnp
from jax.experimental import pallas as pl
from jax.experimental.pallas import tpu as pltpu


# ------------------------- fused Tokenlearner kernel -------------------------
def _tokenlearner_kernel(x_ref, g_ref, b_ref, *rest, H, W, eps, n_conv):
    # rest = (w_0, ..., w_{n_conv-1}, o_ref); each w_i is (9*Cin_i, T) in VMEM.
    w_refs = rest[:n_conv]
    o_ref = rest[n_conv]

    HW = H * W
    PAD = W + 1                                             # zero rows on each side

    x = x_ref[0].astype(jnp.float32)                        # (HW, C) original input

    # ---- LayerNorm over channels (VPU/EUP) ----
    mean = jnp.mean(x, axis=-1, keepdims=True)
    var = jnp.mean(jnp.square(x - mean), axis=-1, keepdims=True)
    sel = (x - mean) * jax.lax.rsqrt(var + eps)
    sel = sel * g_ref[0].astype(jnp.float32) + b_ref[0].astype(jnp.float32)

    # ---- border masks for horizontal taps (computed once, reused by all convs) ----
    col = jax.lax.broadcasted_iota(jnp.int32, (HW, 1), 0) % W
    left_mask = (col != 0).astype(jnp.float32)              # kills dx=-1 wrap at j==0
    right_mask = (col != (W - 1)).astype(jnp.float32)       # kills dx=+1 wrap at j==W-1

    # ---- conv stack: each 3x3 conv == one im2col matmul (K = 9*Cin) ----
    h = sel                                                 # (HW, Cin) flat feature map
    for li in range(n_conv):
        cin = h.shape[-1]
        zpad = jnp.zeros((PAD, cin), jnp.float32)
        hp = jnp.concatenate([zpad, h, zpad], axis=0)       # (HW + 2*PAD, cin)
        taps = []
        for dy in (-1, 0, 1):
            for dx in (-1, 0, 1):
                start = PAD + dy * W + dx                   # constant row offset per tap
                t = hp[start:start + HW, :]                 # contiguous row slice
                if dx == -1:
                    t = t * left_mask
                elif dx == 1:
                    t = t * right_mask
                taps.append(t)
        patches = jnp.concatenate(taps, axis=-1)            # (HW, 9*cin) im2col buffer
        w = w_refs[li][...].astype(jnp.float32)             # (9*cin, T)
        h = jnp.dot(patches, w, preferred_element_type=jnp.float32)   # (HW, T) on MXU
        if li < n_conv - 1:
            h = jnp.maximum(h, 0.0)                         # ReLU (Identity after last)

    # ---- sigmoid + weighted mean over (H, W) against the ORIGINAL input x ----
    s = jax.nn.sigmoid(h)                                   # (HW, T)
    # out[t, c] = (1/HW) * sum_hw s[hw, t] * x[hw, c]
    out = jax.lax.dot_general(s, x, (((0,), (0,)), ((), ())),
                              preferred_element_type=jnp.float32)     # (T, C)
    o_ref[0] = (out * (1.0 / HW)).astype(o_ref.dtype)


def tokenlearner_forward(x_nchw, params, eps=1e-5):
    """Equivalent of Tokenlearner.forward; x_nchw: (B, C, H, W) -> (B, num_tokens, C)."""
    B, C, H, W = x_nchw.shape
    x_flat = jnp.transpose(x_nchw, (0, 2, 3, 1)).reshape(B, H * W, C)   # glue: NCHW->flat

    conv_ws = [w.reshape(9 * w.shape[2], w.shape[3]) for w in params["conv_w"]]
    n_conv = len(conv_ws)
    T = conv_ws[0].shape[-1]

    kernel = functools.partial(_tokenlearner_kernel, H=H, W=W, eps=eps, n_conv=n_conv)
    return pl.pallas_call(
        kernel,
        out_shape=jax.ShapeDtypeStruct((B, T, C), jnp.float32),
        grid=(B,),
        in_specs=[
            pl.BlockSpec((1, H * W, C), lambda b: (b, 0, 0)),
            pl.BlockSpec((1, C), lambda b: (0, 0)),
            pl.BlockSpec((1, C), lambda b: (0, 0)),
        ] + [pl.BlockSpec(w.shape, lambda b: (0, 0)) for w in conv_ws],
        out_specs=pl.BlockSpec((1, T, C), lambda b: (b, 0, 0)),
        compiler_params=pltpu.CompilerParams(dimension_semantics=("parallel",)),
    )(x_flat, params["ln_gamma"], params["ln_beta"], *conv_ws)


# --------------------------------- params -------------------------------------
def init_tokenlearner_params(key, in_channels, num_tokens, num_conv=4):
    keys = jax.random.split(key, num_conv + 2)
    params = {
        "ln_gamma": 1.0 + 0.1 * jax.random.normal(keys[0], (1, in_channels), jnp.float32),
        "ln_beta": 0.1 * jax.random.normal(keys[1], (1, in_channels), jnp.float32),
        "conv_w": [],
    }
    for i in range(num_conv):
        cin = in_channels if i == 0 else num_tokens
        scale = 1.0 / jnp.sqrt(9.0 * cin)
        w = scale * jax.random.normal(keys[2 + i], (3, 3, cin, num_tokens), jnp.float32)
        params["conv_w"].append(w)                          # HWIO
    return params


# ------------------------------ pure-JAX reference ----------------------------
def tokenlearner_reference(x_nchw, params):
    B, C, H, W = x_nchw.shape
    x_nhwc = jnp.transpose(x_nchw, (0, 2, 3, 1)).astype(jnp.float32)
    mean = jnp.mean(x_nhwc, axis=-1, keepdims=True)
    var = jnp.mean((x_nhwc - mean) ** 2, axis=-1, keepdims=True)
    sel = (x_nhwc - mean) / jnp.sqrt(var + 1e-5)
    sel = sel * params["ln_gamma"][0] + params["ln_beta"][0]
    h = sel
    n_conv = len(params["conv_w"])
    for i, w in enumerate(params["conv_w"]):
        h = jax.lax.conv_general_dilated(
            h, w, window_strides=(1, 1), padding="SAME",
            dimension_numbers=("NHWC", "HWIO", "NHWC"),
            precision=jax.lax.Precision.HIGHEST)
        if i < n_conv - 1:
            h = jax.nn.relu(h)
    s = jax.nn.sigmoid(h)                                   # (B, H, W, T)
    return jnp.einsum("bhwt,bhwc->btc", s, x_nhwc,
                      precision=jax.lax.Precision.HIGHEST) / (H * W)


if __name__ == "__main__":
    B, C, H, W = 2, 8, 16, 16
    num_tokens, num_conv = 8, 4

    key = jax.random.PRNGKey(0)
    kx, kp = jax.random.split(key)
    x = jax.random.normal(kx, (B, C, H, W), jnp.float32)
    params = init_tokenlearner_params(kp, C, num_tokens, num_conv)

    out = tokenlearner_forward(x, params)
    out = jax.block_until_ready(out)
    assert out.shape == (B, num_tokens, C), out.shape

    ref = jax.block_until_ready(tokenlearner_reference(x, params))
    assert jnp.allclose(out, ref, rtol=5e-3, atol=5e-3), (
        f"max abs err {jnp.max(jnp.abs(out - ref))}")

    print("KERNEL_OK")
</pallas_src>

<mosaic_0001>
module attributes {stable_mosaic.version = 11 : i64} {
  func.func @_tokenlearner_kernel(%arg0: i32, %arg1: memref<1x256x8xf32, #tpu.memory_space<vmem>>, %arg2: memref<1x8xf32, #tpu.memory_space<vmem>>, %arg3: memref<1x8xf32, #tpu.memory_space<vmem>>, %arg4: memref<72x8xf32, #tpu.memory_space<vmem>>, %arg5: memref<72x8xf32, #tpu.memory_space<vmem>>, %arg6: memref<72x8xf32, #tpu.memory_space<vmem>>, %arg7: memref<72x8xf32, #tpu.memory_space<vmem>>, %arg8: memref<1x8x8xf32, #tpu.memory_space<vmem>>) attributes {dimension_semantics = [#tpu.dimension_semantics<parallel>], iteration_bounds = array<i64: 2>, scalar_prefetch = 0 : i64, scratch_operands = 0 : i64, tpu.core_type = #tpu.core_type<tc>, window_params = [{transform_indices = @transform_0, window_bounds = array<i64: 1, 256, 8>}, {pipeline_mode = #tpu.pipeline_mode<synchronous>, transform_indices = @transform_1, window_bounds = array<i64: 1, 8>}, {pipeline_mode = #tpu.pipeline_mode<synchronous>, transform_indices = @transform_2, window_bounds = array<i64: 1, 8>}, {pipeline_mode = #tpu.pipeline_mode<synchronous>, transform_indices = @transform_3, window_bounds = array<i64: 72, 8>}, {pipeline_mode = #tpu.pipeline_mode<synchronous>, transform_indices = @transform_4, window_bounds = array<i64: 72, 8>}, {pipeline_mode = #tpu.pipeline_mode<synchronous>, transform_indices = @transform_5, window_bounds = array<i64: 72, 8>}, {pipeline_mode = #tpu.pipeline_mode<synchronous>, transform_indices = @transform_6, window_bounds = array<i64: 72, 8>}, {transform_indices = @transform_7, window_bounds = array<i64: 1, 8, 8>}]} {
    %c0 = arith.constant 0 : index
    %c0_0 = arith.constant 0 : index
    %c0_1 = arith.constant 0 : index
    %0 = vector.load %arg1[%c0, %c0_0, %c0_1] : memref<1x256x8xf32, #tpu.memory_space<vmem>>, vector<1x256x8xf32>
    %1 = vector.shape_cast %0 : vector<1x256x8xf32> to vector<256x8xf32>
    %cst = arith.constant dense<0.000000e+00> : vector<256xf32>
    %2 = vector.multi_reduction <add>, %1, %cst [1] : vector<256x8xf32> to vector<256xf32>
    %3 = vector.shape_cast %2 : vector<256xf32> to vector<256x1xf32>
    %cst_2 = arith.constant 8.000000e+00 : f32
    %4 = vector.broadcast %cst_2 : f32 to vector<256x1xf32>
    %5 = arith.divf %3, %4 : vector<256x1xf32>
    %6 = vector.broadcast %5 : vector<256x1xf32> to vector<256x8xf32>
    %7 = arith.subf %1, %6 : vector<256x8xf32>
    %8 = arith.mulf %7, %7 : vector<256x8xf32>
    %cst_3 = arith.constant dense<0.000000e+00> : vector<256xf32>
    %9 = vector.multi_reduction <add>, %8, %cst_3 [1] : vector<256x8xf32> to vector<256xf32>
    %10 = vector.shape_cast %9 : vector<256xf32> to vector<256x1xf32>
    %cst_4 = arith.constant 8.000000e+00 : f32
    %11 = vector.broadcast %cst_4 : f32 to vector<256x1xf32>
    %12 = arith.divf %10, %11 : vector<256x1xf32>
    %13 = vector.broadcast %5 : vector<256x1xf32> to vector<256x8xf32>
    %14 = arith.subf %1, %13 : vector<256x8xf32>
    %cst_5 = arith.constant 9.99999974E-6 : f32
    %15 = vector.broadcast %cst_5 : f32 to vector<256x1xf32>
    %16 = arith.addf %12, %15 : vector<256x1xf32>
    %17 = math.rsqrt %16 : vector<256x1xf32>
    %18 = vector.broadcast %17 : vector<256x1xf32> to vector<256x8xf32>
    %19 = arith.mulf %14, %18 : vector<256x8xf32>
    %c0_6 = arith.constant 0 : index
    %c0_7 = arith.constant 0 : index
    %20 = vector.load %arg2[%c0_6, %c0_7] : memref<1x8xf32, #tpu.memory_space<vmem>>, vector<1x8xf32>
    %21 = vector.shape_cast %20 : vector<1x8xf32> to vector<8xf32>
    %22 = vector.shape_cast %21 : vector<8xf32> to vector<1x8xf32>
    %23 = vector.broadcast %22 : vector<1x8xf32> to vector<256x8xf32>
    %24 = arith.mulf %19, %23 : vector<256x8xf32>
    %c0_8 = arith.constant 0 : index
    %c0_9 = arith.constant 0 : index
    %25 = vector.load %arg3[%c0_8, %c0_9] : memref<1x8xf32, #tpu.memory_space<vmem>>, vector<1x8xf32>
    %26 = vector.shape_cast %25 : vector<1x8xf32> to vector<8xf32>
    %27 = vector.shape_cast %26 : vector<8xf32> to vector<1x8xf32>
    %28 = vector.broadcast %27 : vector<1x8xf32> to vector<256x8xf32>
    %29 = arith.addf %24, %28 : vector<256x8xf32>
    %30 = tpu.iota {dimensions = array<i32: 0>} : vector<256x1xi32>
    %c16_i32 = arith.constant 16 : i32
    %c0_i32 = arith.constant 0 : i32
    %31 = arith.cmpi eq, %c16_i32, %c0_i32 : i32
    %c1_i32 = arith.constant 1 : i32
    %32 = arith.select %31, %c1_i32, %c16_i32 : i32
    %33 = vector.broadcast %32 : i32 to vector<256x1xi32>
    %34 = arith.remsi %30, %33 : vector<256x1xi32>
    %c0_i32_10 = arith.constant 0 : i32
    %35 = vector.broadcast %c0_i32_10 : i32 to vector<256x1xi32>
    %36 = arith.cmpi ne, %34, %35 : vector<256x1xi32>
    %c0_i32_11 = arith.constant 0 : i32
    %37 = vector.broadcast %c0_i32_11 : i32 to vector<256x1xi32>
    %38 = arith.cmpi slt, %34, %37 : vector<256x1xi32>
    %c0_i32_12 = arith.constant 0 : i32
    %39 = arith.cmpi slt, %32, %c0_i32_12 : i32
    %40 = vector.broadcast %39 : i1 to vector<256x1xi1>
    %41 = vector.broadcast %40 : vector<256x1xi1> to vector<256x1xi1>
    %42 = arith.xori %38, %41 : vector<256x1xi1>
    %43 = arith.andi %42, %36 : vector<256x1xi1>
    %44 = vector.broadcast %32 : i32 to vector<256x1xi32>
    %45 = arith.addi %34, %44 : vector<256x1xi32>
    %46 = arith.select %43, %45, %34 : vector<256x1xi1>, vector<256x1xi32>
    %c0_i32_13 = arith.constant 0 : i32
    %47 = vector.broadcast %c0_i32_13 : i32 to vector<256x1xi32>
    %48 = arith.cmpi ne, %46, %47 : vector<256x1xi32>
    %49 = arith.extui %48 : vector<256x1xi1> to vector<256x1xi32>
    %50 = arith.sitofp %49 : vector<256x1xi32> to vector<256x1xf32>
    %c15_i32 = arith.constant 15 : i32
    %51 = vector.broadcast %c15_i32 : i32 to vector<256x1xi32>
    %52 = arith.cmpi ne, %46, %51 : vector<256x1xi32>
    %53 = arith.extui %52 : vector<256x1xi1> to vector<256x1xi32>
    %54 = arith.sitofp %53 : vector<256x1xi32> to vector<256x1xf32>
    %cst_14 = arith.constant 0.000000e+00 : f32
    %55 = vector.broadcast %cst_14 : f32 to vector<17x8xf32>
    %56 = tpu.concatenate %55, %29, %55 in 0 : vector<17x8xf32>, vector<256x8xf32>, vector<17x8xf32> -> vector<290x8xf32>
    %57 = vector.extract_strided_slice %56 {offsets = [0, 0], sizes = [256, 8], strides = [1, 1]} : vector<290x8xf32> to vector<256x8xf32>
    %58 = vector.broadcast %50 : vector<256x1xf32> to vector<256x8xf32>
    %59 = arith.mulf %57, %58 : vector<256x8xf32>
    %60 = vector.extract_strided_slice %56 {offsets = [1, 0], sizes = [256, 8], strides = [1, 1]} : vector<290x8xf32> to vector<256x8xf32>
    %61 = vector.extract_strided_slice %56 {offsets = [2, 0], sizes = [256, 8], strides = [1, 1]} : vector<290x8xf32> to vector<256x8xf32>
    %62 = vector.broadcast %54 : vector<256x1xf32> to vector<256x8xf32>
    %63 = arith.mulf %61, %62 : vector<256x8xf32>
    %64 = vector.extract_strided_slice %56 {offsets = [16, 0], sizes = [256, 8], strides = [1, 1]} : vector<290x8xf32> to vector<256x8xf32>
    %65 = vector.broadcast %50 : vector<256x1xf32> to vector<256x8xf32>
    %66 = arith.mulf %64, %65 : vector<256x8xf32>
    %67 = vector.extract_strided_slice %56 {offsets = [17, 0], sizes = [256, 8], strides = [1, 1]} : vector<290x8xf32> to vector<256x8xf32>
    %68 = vector.extract_strided_slice %56 {offsets = [18, 0], sizes = [256, 8], strides = [1, 1]} : vector<290x8xf32> to vector<256x8xf32>
    %69 = vector.broadcast %54 : vector<256x1xf32> to vector<256x8xf32>
    %70 = arith.mulf %68, %69 : vector<256x8xf32>
    %71 = vector.extract_strided_slice %56 {offsets = [32, 0], sizes = [256, 8], strides = [1, 1]} : vector<290x8xf32> to vector<256x8xf32>
    %72 = vector.broadcast %50 : vector<256x1xf32> to vector<256x8xf32>
    %73 = arith.mulf %71, %72 : vector<256x8xf32>
    %74 = vector.extract_strided_slice %56 {offsets = [33, 0], sizes = [256, 8], strides = [1, 1]} : vector<290x8xf32> to vector<256x8xf32>
    %75 = vector.extract_strided_slice %56 {offsets = [34, 0], sizes = [256, 8], strides = [1, 1]} : vector<290x8xf32> to vector<256x8xf32>
    %76 = vector.broadcast %54 : vector<256x1xf32> to vector<256x8xf32>
    %77 = arith.mulf %75, %76 : vector<256x8xf32>
    %78 = tpu.concatenate %59, %60, %63, %66, %67, %70, %73, %74, %77 in 1 : vector<256x8xf32>, vector<256x8xf32>, vector<256x8xf32>, vector<256x8xf32>, vector<256x8xf32>, vector<256x8xf32>, vector<256x8xf32>, vector<256x8xf32>, vector<256x8xf32> -> vector<256x72xf32>
    %c0_15 = arith.constant 0 : index
    %c0_16 = arith.constant 0 : index
    %79 = vector.load %arg4[%c0_15, %c0_16] : memref<72x8xf32, #tpu.memory_space<vmem>>, vector<72x8xf32>
    %cst_17 = arith.constant dense<0.000000e+00> : vector<256x8xf32>
    %80 = tpu.matmul %78, %79, %cst_17 {dimension_numbers = #tpu.dot_dimension_numbers<[1], [0], [0], [1], [0, 0, 1, 1], [], []>} : vector<256x72xf32>, vector<72x8xf32>, vector<256x8xf32> -> vector<256x8xf32>
    %cst_18 = arith.constant 0.000000e+00 : f32
    %81 = vector.broadcast %cst_18 : f32 to vector<256x8xf32>
    %82 = arith.maximumf %80, %81 : vector<256x8xf32>
    %cst_19 = arith.constant 0.000000e+00 : f32
    %83 = vector.broadcast %cst_19 : f32 to vector<17x8xf32>
    %84 = tpu.concatenate %83, %82, %83 in 0 : vector<17x8xf32>, vector<256x8xf32>, vector<17x8xf32> -> vector<290x8xf32>
    %85 = vector.extract_strided_slice %84 {offsets = [0, 0], sizes = [256, 8], strides = [1, 1]} : vector<290x8xf32> to vector<256x8xf32>
    %86 = vector.broadcast %50 : vector<256x1xf32> to vector<256x8xf32>
    %87 = arith.mulf %85, %86 : vector<256x8xf32>
    %88 = vector.extract_strided_slice %84 {offsets = [1, 0], sizes = [256, 8], strides = [1, 1]} : vector<290x8xf32> to vector<256x8xf32>
    %89 = vector.extract_strided_slice %84 {offsets = [2, 0], sizes = [256, 8], strides = [1, 1]} : vector<290x8xf32> to vector<256x8xf32>
    %90 = vector.broadcast %54 : vector<256x1xf32> to vector<256x8xf32>
    %91 = arith.mulf %89, %90 : vector<256x8xf32>
    %92 = vector.extract_strided_slice %84 {offsets = [16, 0], sizes = [256, 8], strides = [1, 1]} : vector<290x8xf32> to vector<256x8xf32>
    %93 = vector.broadcast %50 : vector<256x1xf32> to vector<256x8xf32>
    %94 = arith.mulf %92, %93 : vector<256x8xf32>
    %95 = vector.extract_strided_slice %84 {offsets = [17, 0], sizes = [256, 8], strides = [1, 1]} : vector<290x8xf32> to vector<256x8xf32>
    %96 = vector.extract_strided_slice %84 {offsets = [18, 0], sizes = [256, 8], strides = [1, 1]} : vector<290x8xf32> to vector<256x8xf32>
    %97 = vector.broadcast %54 : vector<256x1xf32> to vector<256x8xf32>
    %98 = arith.mulf %96, %97 : vector<256x8xf32>
    %99 = vector.extract_strided_slice %84 {offsets = [32, 0], sizes = [256, 8], strides = [1, 1]} : vector<290x8xf32> to vector<256x8xf32>
    %100 = vector.broadcast %50 : vector<256x1xf32> to vector<256x8xf32>
    %101 = arith.mulf %99, %100 : vector<256x8xf32>
    %102 = vector.extract_strided_slice %84 {offsets = [33, 0], sizes = [256, 8], strides = [1, 1]} : vector<290x8xf32> to vector<256x8xf32>
    %103 = vector.extract_strided_slice %84 {offsets = [34, 0], sizes = [256, 8], strides = [1, 1]} : vector<290x8xf32> to vector<256x8xf32>
    %104 = vector.broadcast %54 : vector<256x1xf32> to vector<256x8xf32>
    %105 = arith.mulf %103, %104 : vector<256x8xf32>
    %106 = tpu.concatenate %87, %88, %91, %94, %95, %98, %101, %102, %105 in 1 : vector<256x8xf32>, vector<256x8xf32>, vector<256x8xf32>, vector<256x8xf32>, vector<256x8xf32>, vector<256x8xf32>, vector<256x8xf32>, vector<256x8xf32>, vector<256x8xf32> -> vector<256x72xf32>
    %c0_20 = arith.constant 0 : index
    %c0_21 = arith.constant 0 : index
    %107 = vector.load %arg5[%c0_20, %c0_21] : memref<72x8xf32, #tpu.memory_space<vmem>>, vector<72x8xf32>
    %cst_22 = arith.constant dense<0.000000e+00> : vector<256x8xf32>
    %108 = tpu.matmul %106, %107, %cst_22 {dimension_numbers = #tpu.dot_dimension_numbers<[1], [0], [0], [1], [0, 0, 1, 1], [], []>} : vector<256x72xf32>, vector<72x8xf32>, vector<256x8xf32> -> vector<256x8xf32>
    %cst_23 = arith.constant 0.000000e+00 : f32
    %109 = vector.broadcast %cst_23 : f32 to vector<256x8xf32>
    %110 = arith.maximumf %108, %109 : vector<256x8xf32>
    %cst_24 = arith.constant 0.000000e+00 : f32
    %111 = vector.broadcast %cst_24 : f32 to vector<17x8xf32>
    %112 = tpu.concatenate %111, %110, %111 in 0 : vector<17x8xf32>, vector<256x8xf32>, vector<17x8xf32> -> vector<290x8xf32>
    %113 = vector.extract_strided_slice %112 {offsets = [0, 0], sizes = [256, 8], strides = [1, 1]} : vector<290x8xf32> to vector<256x8xf32>
    %114 = vector.broadcast %50 : vector<256x1xf32> to vector<256x8xf32>
    %115 = arith.mulf %113, %114 : vector<256x8xf32>
    %116 = vector.extract_strided_slice %112 {offsets = [1, 0], sizes = [256, 8], strides = [1, 1]} : vector<290x8xf32> to vector<256x8xf32>
    %117 = vector.extract_strided_slice %112 {offsets = [2, 0], sizes = [256, 8], strides = [1, 1]} : vector<290x8xf32> to vector<256x8xf32>
    %118 = vector.broadcast %54 : vector<256x1xf32> to vector<256x8xf32>
    %119 = arith.mulf %117, %118 : vector<256x8xf32>
    %120 = vector.extract_strided_slice %112 {offsets = [16, 0], sizes = [256, 8], strides = [1, 1]} : vector<290x8xf32> to vector<256x8xf32>
    %121 = vector.broadcast %50 : vector<256x1xf32> to vector<256x8xf32>
    %122 = arith.mulf %120, %121 : vector<256x8xf32>
    %123 = vector.extract_strided_slice %112 {offsets = [17, 0], sizes = [256, 8], strides = [1, 1]} : vector<290x8xf32> to vector<256x8xf32>
    %124 = vector.extract_strided_slice %112 {offsets = [18, 0], sizes = [256, 8], strides = [1, 1]} : vector<290x8xf32> to vector<256x8xf32>
    %125 = vector.broadcast %54 : vector<256x1xf32> to vector<256x8xf32>
    %126 = arith.mulf %124, %125 : vector<256x8xf32>
    %127 = vector.extract_strided_slice %112 {offsets = [32, 0], sizes = [256, 8], strides = [1, 1]} : vector<290x8xf32> to vector<256x8xf32>
    %128 = vector.broadcast %50 : vector<256x1xf32> to vector<256x8xf32>
    %129 = arith.mulf %127, %128 : vector<256x8xf32>
    %130 = vector.extract_strided_slice %112 {offsets = [33, 0], sizes = [256, 8], strides = [1, 1]} : vector<290x8xf32> to vector<256x8xf32>
    %131 = vector.extract_strided_slice %112 {offsets = [34, 0], sizes = [256, 8], strides = [1, 1]} : vector<290x8xf32> to vector<256x8xf32>
    %132 = vector.broadcast %54 : vector<256x1xf32> to vector<256x8xf32>
    %133 = arith.mulf %131, %132 : vector<256x8xf32>
    %134 = tpu.concatenate %115, %116, %119, %122, %123, %126, %129, %130, %133 in 1 : vector<256x8xf32>, vector<256x8xf32>, vector<256x8xf32>, vector<256x8xf32>, vector<256x8xf32>, vector<256x8xf32>, vector<256x8xf32>, vector<256x8xf32>, vector<256x8xf32> -> vector<256x72xf32>
    %c0_25 = arith.constant 0 : index
    %c0_26 = arith.constant 0 : index
    %135 = vector.load %arg6[%c0_25, %c0_26] : memref<72x8xf32, #tpu.memory_space<vmem>>, vector<72x8xf32>
    %cst_27 = arith.constant dense<0.000000e+00> : vector<256x8xf32>
    %136 = tpu.matmul %134, %135, %cst_27 {dimension_numbers = #tpu.dot_dimension_numbers<[1], [0], [0], [1], [0, 0, 1, 1], [], []>} : vector<256x72xf32>, vector<72x8xf32>, vector<256x8xf32> -> vector<256x8xf32>
    %cst_28 = arith.constant 0.000000e+00 : f32
    %137 = vector.broadcast %cst_28 : f32 to vector<256x8xf32>
    %138 = arith.maximumf %136, %137 : vector<256x8xf32>
    %cst_29 = arith.constant 0.000000e+00 : f32
    %139 = vector.broadcast %cst_29 : f32 to vector<17x8xf32>
    %140 = tpu.concatenate %139, %138, %139 in 0 : vector<17x8xf32>, vector<256x8xf32>, vector<17x8xf32> -> vector<290x8xf32>
    %141 = vector.extract_strided_slice %140 {offsets = [0, 0], sizes = [256, 8], strides = [1, 1]} : vector<290x8xf32> to vector<256x8xf32>
    %142 = vector.broadcast %50 : vector<256x1xf32> to vector<256x8xf32>
    %143 = arith.mulf %141, %142 : vector<256x8xf32>
    %144 = vector.extract_strided_slice %140 {offsets = [1, 0], sizes = [256, 8], strides = [1, 1]} : vector<290x8xf32> to vector<256x8xf32>
    %145 = vector.extract_strided_slice %140 {offsets = [2, 0], sizes = [256, 8], strides = [1, 1]} : vector<290x8xf32> to vector<256x8xf32>
    %146 = vector.broadcast %54 : vector<256x1xf32> to vector<256x8xf32>
    %147 = arith.mulf %145, %146 : vector<256x8xf32>
    %148 = vector.extract_strided_slice %140 {offsets = [16, 0], sizes = [256, 8], strides = [1, 1]} : vector<290x8xf32> to vector<256x8xf32>
    %149 = vector.broadcast %50 : vector<256x1xf32> to vector<256x8xf32>
    %150 = arith.mulf %148, %149 : vector<256x8xf32>
    %151 = vector.extract_strided_slice %140 {offsets = [17, 0], sizes = [256, 8], strides = [1, 1]} : vector<290x8xf32> to vector<256x8xf32>
    %152 = vector.extract_strided_slice %140 {offsets = [18, 0], sizes = [256, 8], strides = [1, 1]} : vector<290x8xf32> to vector<256x8xf32>
    %153 = vector.broadcast %54 : vector<256x1xf32> to vector<256x8xf32>
    %154 = arith.mulf %152, %153 : vector<256x8xf32>
    %155 = vector.extract_strided_slice %140 {offsets = [32, 0], sizes = [256, 8], strides = [1, 1]} : vector<290x8xf32> to vector<256x8xf32>
    %156 = vector.broadcast %50 : vector<256x1xf32> to vector<256x8xf32>
    %157 = arith.mulf %155, %156 : vector<256x8xf32>
    %158 = vector.extract_strided_slice %140 {offsets = [33, 0], sizes = [256, 8], strides = [1, 1]} : vector<290x8xf32> to vector<256x8xf32>
    %159 = vector.extract_strided_slice %140 {offsets = [34, 0], sizes = [256, 8], strides = [1, 1]} : vector<290x8xf32> to vector<256x8xf32>
    %160 = vector.broadcast %54 : vector<256x1xf32> to vector<256x8xf32>
    %161 = arith.mulf %159, %160 : vector<256x8xf32>
    %162 = tpu.concatenate %143, %144, %147, %150, %151, %154, %157, %158, %161 in 1 : vector<256x8xf32>, vector<256x8xf32>, vector<256x8xf32>, vector<256x8xf32>, vector<256x8xf32>, vector<256x8xf32>, vector<256x8xf32>, vector<256x8xf32>, vector<256x8xf32> -> vector<256x72xf32>
    %c0_30 = arith.constant 0 : index
    %c0_31 = arith.constant 0 : index
    %163 = vector.load %arg7[%c0_30, %c0_31] : memref<72x8xf32, #tpu.memory_space<vmem>>, vector<72x8xf32>
    %cst_32 = arith.constant dense<0.000000e+00> : vector<256x8xf32>
    %164 = tpu.matmul %162, %163, %cst_32 {dimension_numbers = #tpu.dot_dimension_numbers<[1], [0], [0], [1], [0, 0, 1, 1], [], []>} : vector<256x72xf32>, vector<72x8xf32>, vector<256x8xf32> -> vector<256x8xf32>
    %165 = arith.negf %164 : vector<256x8xf32>
    %166 = math.exp %165 : vector<256x8xf32>
    %cst_33 = arith.constant 1.000000e+00 : f32
    %167 = vector.broadcast %cst_33 : f32 to vector<256x8xf32>
    %168 = arith.addf %167, %166 : vector<256x8xf32>
    %169 = arith.divf %167, %168 : vector<256x8xf32>
    %cst_34 = arith.constant dense<0.000000e+00> : vector<8x8xf32>
    %170 = tpu.matmul %169, %1, %cst_34 {dimension_numbers = #tpu.dot_dimension_numbers<[0], [0], [1], [1], [0, 1, 1, 1], [], []>} : vector<256x8xf32>, vector<256x8xf32>, vector<8x8xf32> -> vector<8x8xf32>
    %cst_35 = arith.constant 3.906250e-03 : f32
    %171 = vector.broadcast %cst_35 : f32 to vector<8x8xf32>
    %172 = arith.mulf %170, %171 : vector<8x8xf32>
    %c0_36 = arith.constant 0 : index
    %c0_37 = arith.constant 0 : index
    %c0_38 = arith.constant 0 : index
    %173 = vector.load %arg8[%c0_36, %c0_37, %c0_38] : memref<1x8x8xf32, #tpu.memory_space<vmem>>, vector<1x8x8xf32>
    %174 = vector.shape_cast %173 : vector<1x8x8xf32> to vector<8x8xf32>
    %175 = vector.shape_cast %172 : vector<8x8xf32> to vector<1x8x8xf32>
    tpu.vector_store %arg8[%c0_36, %c0_37, %c0_38], %175 {strides = array<i32>} : memref<1x8x8xf32, #tpu.memory_space<vmem>>, vector<1x8x8xf32>,
    return
  }
  func.func @transform_0(%arg0: i32) -> (i32, i32, i32) {
    %c0_i32 = arith.constant 0 : i32
    %c0_i32_0 = arith.constant 0 : i32
    %c0_i32_1 = arith.constant 0 : i32
    return %arg0, %c0_i32, %c0_i32_0 : i32, i32, i32
  }
  func.func @transform_1(%arg0: i32) -> (i32, i32) {
    %c0_i32 = arith.constant 0 : i32
    %c0_i32_0 = arith.constant 0 : i32
    %c0_i32_1 = arith.constant 0 : i32
    return %c0_i32, %c0_i32_0 : i32, i32
  }
  func.func @transform_2(%arg0: i32) -> (i32, i32) {
    %c0_i32 = arith.constant 0 : i32
    %c0_i32_0 = arith.constant 0 : i32
    %c0_i32_1 = arith.constant 0 : i32
    return %c0_i32, %c0_i32_0 : i32, i32
  }
  func.func @transform_3(%arg0: i32) -> (i32, i32) {
    %c0_i32 = arith.constant 0 : i32
    %c0_i32_0 = arith.constant 0 : i32
    %c0_i32_1 = arith.constant 0 : i32
    return %c0_i32, %c0_i32_0 : i32, i32
  }
  func.func @transform_4(%arg0: i32) -> (i32, i32) {
    %c0_i32 = arith.constant 0 : i32
    %c0_i32_0 = arith.constant 0 : i32
    %c0_i32_1 = arith.constant 0 : i32
    return %c0_i32, %c0_i32_0 : i32, i32
  }
  func.func @transform_5(%arg0: i32) -> (i32, i32) {
    %c0_i32 = arith.constant 0 : i32
    %c0_i32_0 = arith.constant 0 : i32
    %c0_i32_1 = arith.constant 0 : i32
    return %c0_i32, %c0_i32_0 : i32, i32
  }
  func.func @transform_6(%arg0: i32) -> (i32, i32) {
    %c0_i32 = arith.constant 0 : i32
    %c0_i32_0 = arith.constant 0 : i32
    %c0_i32_1 = arith.constant 0 : i32
    return %c0_i32, %c0_i32_0 : i32, i32
  }
  func.func @transform_7(%arg0: i32) -> (i32, i32, i32) {
    %c0_i32 = arith.constant 0 : i32
    %c0_i32_0 = arith.constant 0 : i32
    %c0_i32_1 = arith.constant 0 : i32
    return %arg0, %c0_i32, %c0_i32_0 : i32, i32, i32
  }
}

</mosaic_0001>

<llo_original>
// kernel: tpu_custom_call.1
$region0: #{tpu_custom_call.1}
  #allocation0 [shape = 'u32[]', space=smem, size = 0x4, offset = 0x4, fixed_abs, tag = 'smem constant byte address 0x4 - core index']
  #allocation1 [shape = 'u32[144,128]{1,0:T(1,128)}', space=vmem, size = 0x12000, scoped, tag = 'internal scratch']
  %s0 = inlined_call_operand.vmem [shape: f32[2,256,8], index: 0, kind: input, shape index: {}]
  %s1 = inlined_call_operand.vmem [shape: f32[1,8], index: 1, kind: input, shape index: {}]
  %s2 = inlined_call_operand.vmem [shape: f32[1,8], index: 2, kind: input, shape index: {}]
  %s3 = inlined_call_operand.vmem [shape: f32[72,8], index: 3, kind: input, shape index: {}]
  %s4 = inlined_call_operand.vmem [shape: f32[72,8], index: 4, kind: input, shape index: {}]
  %s5 = inlined_call_operand.vmem [shape: f32[72,8], index: 5, kind: input, shape index: {}]
  %s6 = inlined_call_operand.vmem [shape: f32[72,8], index: 6, kind: input, shape index: {}]
  %s7 = inlined_call_operand.hbm [shape: f32[2,8,8], index: 7, kind: output, shape index: {}]
  %s8 = sld [smem:[#allocation0]]
  $region61: #{tpu_custom_call.1} parent=0
    _
  %s10 = ssub.s32 1, %s8
  %s11 = scalar_select 0, %s10, %s8
  $region1: #{tpu_custom_call.1} parent=0
    #allocation2 [shape = 'u8[8192]{0}', space=vmem, size = 0x2000, scoped, tag = 'output window, operand 0']
    #allocation3 [shape = 's32[2]{0}', space=sflag, size = 0x8, scoped, tag = 'scoped memory for tpu_custom_call.1']
    %12 = vsyncpa [#allocation3], 0
    %s13 = scalar_lea.sflag [#allocation3], 1
    %14 = vsyncpa %s13, 0
    loop: start=0, step=1, limit=4
    $region2: #{tpu_custom_call.1} parent=1 // loop_pre_header
      _
    $region3: #{tpu_custom_call.1} parent=1 // loop_header
      %s16 = sphi 0, %s20
      %p17 = scmp.ge.s32.totalorder %s16, 4
      %s26 = sphi 0, %s28
      %s29 = sphi 0, %s26
      %s30 = sphi 0, %s29
      %s46 = sphi 0, %s30
      %s50 = sphi 0, %s50
      %s52 = sphi 0, %s50
      %s53 = sphi 0, %s52
      %s67 = sphi 0, %s53
      %s71 = sphi 0, %s71
      %s73 = sphi 0, %s71
      %s74 = sphi 0, %s73
      %s88 = sphi 0, %s74
      %s92 = sphi 0, %s92
      %s94 = sphi 0, %s92
      %s95 = sphi 0, %s94
      %s109 = sphi 0, %s95
      %s113 = sphi 0, %s113
      %s115 = sphi 0, %s113
      %s116 = sphi 0, %s115
      %s130 = sphi 0, %s116
      %s134 = sphi 0, %s134
      %s136 = sphi 0, %s134
      %s137 = sphi 0, %s136
      %s151 = sphi 0, %s137
      %s155 = sphi 0, %s155
      %s157 = sphi 0, %s155
      %s158 = sphi 0, %s157
      %s172 = sphi 0, %s158
      %s178 = sphi 0, %s180
      %s181 = sphi 0, %s178
      %s182 = sphi 0, %s181
      %s198 = sphi 0, %s182
    $region4: #{tpu_custom_call.1} parent=1 // loop_header_branch
      %19 = sbr.rel (%p17) target = $region8
    $region5: #{tpu_custom_call.1} parent=1 // loop_body
      %s21 = ssub.s32 %s16, 1
      %s22 = ssub.s32 %s16, 2
      %s23 = sadd.s32 %s16, 1
      %s24 = ssub.s32 %s16, %s23
      %p25 = scmp.eq.s32.totalorder %s24, 0
      %s27 = sadd.s32 %s26, 1
      %s28 = scalar_select %p25, %s26, %s27
      %p31 = pneg %p25
      %p32 = scmp.eq.s32.totalorder %s16, 1
      %p33 = por %p31, %p32
      %p34 = scmp.ne.s32.totalorder %s26, %s29
      %p35 = scmp.eq.s32.totalorder %s16, 0
      %p36 = por %p34, %p35
      %p37 = scmp.ne.s32.totalorder %s26, %s29
      %p38 = scmp.eq.s32.totalorder %s21, 1
      %p39 = por %p37, %p38
      %p40 = scmp.ne.s32.totalorder %s29, %s30
      %p41 = scmp.eq.s32.totalorder %s21, 0
      %p42 = por %p40, %p41
      %p43 = scmp.ne.s32.totalorder %s29, %s30
      %p44 = scmp.eq.s32.totalorder %s22, 1
      %p45 = por %p43, %p44
      %p47 = scmp.ne.s32.totalorder %s30, %s46
      %p48 = scmp.eq.s32.totalorder %s22, 0
      %p49 = por %p47, %p48
      %s51 = sadd.s32 %s50, 1
      %p54 = scmp.eq.s32.totalorder %s16, 1
      %p55 = scmp.ne.s32.totalorder %s50, %s52
      %p56 = scmp.eq.s32.totalorder %s16, 0
      %p57 = por %p55, %p56
      %p58 = scmp.ne.s32.totalorder %s50, %s52
      %p59 = scmp.eq.s32.totalorder %s21, 1
      %p60 = por %p58, %p59
      %p61 = scmp.ne.s32.totalorder %s52, %s53
      %p62 = scmp.eq.s32.totalorder %s21, 0
      %p63 = por %p61, %p62
      %p64 = scmp.ne.s32.totalorder %s52, %s53
      %p65 = scmp.eq.s32.totalorder %s22, 1
      %p66 = por %p64, %p65
      %p68 = scmp.ne.s32.totalorder %s53, %s67
      %p69 = scmp.eq.s32.totalorder %s22, 0
      %p70 = por %p68, %p69
      %s72 = sadd.s32 %s71, 1
      %p75 = scmp.eq.s32.totalorder %s16, 1
      %p76 = scmp.ne.s32.totalorder %s71, %s73
      %p77 = scmp.eq.s32.totalorder %s16, 0
      %p78 = por %p76, %p77
      %p79 = scmp.ne.s32.totalorder %s71, %s73
      %p80 = scmp.eq.s32.totalorder %s21, 1
      %p81 = por %p79, %p80
      %p82 = scmp.ne.s32.totalorder %s73, %s74
      %p83 = scmp.eq.s32.totalorder %s21, 0
      %p84 = por %p82, %p83
      %p85 = scmp.ne.s32.totalorder %s73, %s74
      %p86 = scmp.eq.s32.totalorder %s22, 1
      %p87 = por %p85, %p86
      %p89 = scmp.ne.s32.totalorder %s74, %s88
      %p90 = scmp.eq.s32.totalorder %s22, 0
      %p91 = por %p89, %p90
      %s93 = sadd.s32 %s92, 1
      %p96 = scmp.eq.s32.totalorder %s16, 1
      %p97 = scmp.ne.s32.totalorder %s92, %s94
      %p98 = scmp.eq.s32.totalorder %s16, 0
      %p99 = por %p97, %p98
      %p100 = scmp.ne.s32.totalorder %s92, %s94
      %p101 = scmp.eq.s32.totalorder %s21, 1
      %p102 = por %p100, %p101
      %p103 = scmp.ne.s32.totalorder %s94, %s95
      %p104 = scmp.eq.s32.totalorder %s21, 0
      %p105 = por %p103, %p104
      %p106 = scmp.ne.s32.totalorder %s94, %s95
      %p107 = scmp.eq.s32.totalorder %s22, 1
      %p108 = por %p106, %p107
      %p110 = scmp.ne.s32.totalorder %s95, %s109
      %p111 = scmp.eq.s32.totalorder %s22, 0
      %p112 = por %p110, %p111
      %s114 = sadd.s32 %s113, 1
      %p117 = scmp.eq.s32.totalorder %s16, 1
      %p118 = scmp.ne.s32.totalorder %s113, %s115
      %p119 = scmp.eq.s32.totalorder %s16, 0
      %p120 = por %p118, %p119
      %p121 = scmp.ne.s32.totalorder %s113, %s115
      %p122 = scmp.eq.s32.totalorder %s21, 1
      %p123 = por %p121, %p122
      %p124 = scmp.ne.s32.totalorder %s115, %s116
      %p125 = scmp.eq.s32.totalorder %s21, 0
      %p126 = por %p124, %p125
      %p127 = scmp.ne.s32.totalorder %s115, %s116
      %p128 = scmp.eq.s32.totalorder %s22, 1
      %p129 = por %p127, %p128
      %p131 = scmp.ne.s32.totalorder %s116, %s130
      %p132 = scmp.eq.s32.totalorder %s22, 0
      %p133 = por %p131, %p132
      %s135 = sadd.s32 %s134, 1
      %p138 = scmp.eq.s32.totalorder %s16, 1
      %p139 = scmp.ne.s32.totalorder %s134, %s136
      %p140 = scmp.eq.s32.totalorder %s16, 0
      %p141 = por %p139, %p140
      %p142 = scmp.ne.s32.totalorder %s134, %s136
      %p143 = scmp.eq.s32.totalorder %s21, 1
      %p144 = por %p142, %p143
      %p145 = scmp.ne.s32.totalorder %s136, %s137
      %p146 = scmp.eq.s32.totalorder %s21, 0
      %p147 = por %p145, %p146
      %p148 = scmp.ne.s32.totalorder %s136, %s137
      %p149 = scmp.eq.s32.totalorder %s22, 1
      %p150 = por %p148, %p149
      %p152 = scmp.ne.s32.totalorder %s137, %s151
      %p153 = scmp.eq.s32.totalorder %s22, 0
      %p154 = por %p152, %p153
      %s156 = sadd.s32 %s155, 1
      %p159 = scmp.eq.s32.totalorder %s16, 1
      %p160 = scmp.ne.s32.totalorder %s155, %s157
      %p161 = scmp.eq.s32.totalorder %s16, 0
      %p162 = por %p160, %p161
      %p163 = scmp.ne.s32.totalorder %s155, %s157
      %p164 = scmp.eq.s32.totalorder %s21, 1
      %p165 = por %p163, %p164
      %p166 = scmp.ne.s32.totalorder %s157, %s158
      %p167 = scmp.eq.s32.totalorder %s21, 0
      %p168 = por %p166, %p167
      %p169 = scmp.ne.s32.totalorder %s157, %s158
      %p170 = scmp.eq.s32.totalorder %s22, 1
      %p171 = por %p169, %p170
      %p173 = scmp.ne.s32.totalorder %s158, %s172
      %p174 = scmp.eq.s32.totalorder %s22, 0
      %p175 = por %p173, %p174
      %s176 = ssub.s32 %s16, %s23
      %p177 = scmp.eq.s32.totalorder %s176, 0
      %s179 = sadd.s32 %s178, 1
      %s180 = scalar_select %p177, %s178, %s179
      %p183 = pneg %p177
      %p184 = scmp.eq.s32.totalorder %s16, 1
      %p185 = por %p183, %p184
      %p186 = scmp.ne.s32.totalorder %s178, %s181
      %p187 = scmp.eq.s32.totalorder %s16, 0
      %p188 = por %p186, %p187
      %p189 = scmp.ne.s32.totalorder %s178, %s181
      %p190 = scmp.eq.s32.totalorder %s21, 1
      %p191 = por %p189, %p190
      %p192 = scmp.ne.s32.totalorder %s181, %s182
      %p193 = scmp.eq.s32.totalorder %s21, 0
      %p194 = por %p192, %p193
      %p195 = scmp.ne.s32.totalorder %s181, %s182
      %p196 = scmp.eq.s32.totalorder %s22, 1
      %p197 = por %p195, %p196
      %p199 = scmp.ne.s32.totalorder %s182, %s198
      %p200 = scmp.eq.s32.totalorder %s22, 0
      %p201 = por %p199, %p200
      %p202 = scmp.le.s32.totalorder 1, %s16
      %p203 = scmp.lt.s32.totalorder %s16, 3
      %p204 = pnand %p202, %p203
      %p205 = pneg %p204
      // Predicated region
      $region9: #{tpu_custom_call.1} parent=5 // pred_check
        _
      $region10: #{tpu_custom_call.1} parent=5 // pred_check_branch
        %207 = sbr.rel (%p204) target = $region12
      $region11: #{tpu_custom_call.1} parent=5 // pred_region
        %s208 = ssub.s32 %s16, 1
        // Predicated region
        $region13: #{tpu_custom_call.1} parent=11 // pred_check
          %p209 = pneg %p63
        $region14: #{tpu_custom_call.1} parent=11 // pred_check_branch
          %211 = sbr.rel (%p209) target = $region16
        $region15: #{tpu_custom_call.1} parent=11 // pred_region
          _
        $region16: #{tpu_custom_call.1} parent=11 // pred_fallthru
          _
        // Predicated region
        $region17: #{tpu_custom_call.1} parent=11 // pred_check
          %p212 = pneg %p84
        $region18: #{tpu_custom_call.1} parent=11 // pred_check_branch
          %214 = sbr.rel (%p212) target = $region20
        $region19: #{tpu_custom_call.1} parent=11 // pred_region
          _
        $region20: #{tpu_custom_call.1} parent=11 // pred_fallthru
          _
        // Predicated region
        $region21: #{tpu_custom_call.1} parent=11 // pred_check
          %p215 = pneg %p105
        $region22: #{tpu_custom_call.1} parent=11 // pred_check_branch
          %217 = sbr.rel (%p215) target = $region24
        $region23: #{tpu_custom_call.1} parent=11 // pred_region
          _
        $region24: #{tpu_custom_call.1} parent=11 // pred_fallthru
          _
        // Predicated region
        $region25: #{tpu_custom_call.1} parent=11 // pred_check
          %p218 = pneg %p126
        $region26: #{tpu_custom_call.1} parent=11 // pred_check_branch
          %220 = sbr.rel (%p218) target = $region28
        $region27: #{tpu_custom_call.1} parent=11 // pred_region
          _
        $region28: #{tpu_custom_call.1} parent=11 // pred_fallthru
          _
        // Predicated region
        $region29: #{tpu_custom_call.1} parent=11 // pred_check
          %p221 = pneg %p147
        $region30: #{tpu_custom_call.1} parent=11 // pred_check_branch
          %223 = sbr.rel (%p221) target = $region32
        $region31: #{tpu_custom_call.1} parent=11 // pred_region
          _
        $region32: #{tpu_custom_call.1} parent=11 // pred_fallthru
          _
        // Predicated region
        $region33: #{tpu_custom_call.1} parent=11 // pred_check
          %p224 = pneg %p168
        $region34: #{tpu_custom_call.1} parent=11 // pred_check_branch
          %226 = sbr.rel (%p224) target = $region36
        $region35: #{tpu_custom_call.1} parent=11 // pred_region
          _
        $region36: #{tpu_custom_call.1} parent=11 // pred_fallthru
          _
      $region12: #{tpu_custom_call.1} parent=5 // pred_fallthru
        _
      %p227 = scmp.lt.s32.totalorder %s16, 2
      // Predicated region
      $region37: #{tpu_custom_call.1} parent=5 // pred_check
        %p228 = pneg %p227
      $region38: #{tpu_custom_call.1} parent=5 // pred_check_branch
        %230 = sbr.rel (%p228) target = $region40
      $region39: #{tpu_custom_call.1} parent=5 // pred_region
        // Predicated region
        $region41: #{tpu_custom_call.1} parent=39 // pred_check
          %p231 = pneg %p36
        $region42: #{tpu_custom_call.1} parent=39 // pred_check_branch
          %233 = sbr.rel (%p231) target = $region44
        $region43: #{tpu_custom_call.1} parent=39 // pred_region
          %p234 = scmp.lt.s32.totalorder %s16, 1
          %s235 = scalar_select %p234, %s16, 1
          %s236 = smul.addr %s235, 32
          %s237 = smul.addr %s236, 8
          %s238 = scalar_lea.vmem %s0, %s237
        $region44: #{tpu_custom_call.1} parent=39 // pred_fallthru
          _
      $region40: #{tpu_custom_call.1} parent=5 // pred_fallthru
        _
      %p239 = scmp.le.s32.totalorder 1, %s16
      %p240 = scmp.lt.s32.totalorder %s16, 3
      %p241 = pnand %p239, %p240
      %p242 = pneg %p241
      // Predicated region
      $region45: #{tpu_custom_call.1} parent=5 // pred_check
        _
      $region46: #{tpu_custom_call.1} parent=5 // pred_check_branch
        %244 = sbr.rel (%p241) target = $region48
      $region47: #{tpu_custom_call.1} parent=5 // pred_region
        %s245 = ssub.s32 %s16, 1
        %p246 = scmp.lt.s32.totalorder %s21, 1
        %s247 = scalar_select %p246, %s21, 1
        %s248 = smul.addr %s247, 32
        %s249 = smul.addr %s248, 8
        %s250 = scalar_lea.vmem %s0, %s249
        %p251 = pneg %p42
        %p252 = pneg %p39
        %p253 = pneg %p63
        %p254 = pneg %p60
        %p255 = pneg %p84
        %p256 = pneg %p81
        %p257 = pneg %p105
        %p258 = pneg %p102
        %p259 = pneg %p126
        %p260 = pneg %p123
        %p261 = pneg %p147
        %p262 = pneg %p144
        %p263 = pneg %p168
        %p264 = pneg %p165
        %p265 = pneg %p194
        %p266 = pneg %p191
        %s267 = sand.u32 %s181, 1
        %s268 = scalar_lea.sflag [#allocation3], %s267
        %s269 = sand.u32 %s181, 1
        %s270 = smul.addr %s269, 8
        %s271 = scalar_lea.vmem [#allocation2], %s270
        %p272 = scmp.lt.s32.totalorder %s21, 1
        %s273 = scalar_select %p272, %s21, 1
        %s274 = smul.addr %s273, 32
        %s275 = smul.addr %s274, 8
        %s276 = scalar_lea.vmem %s0, %s275
        %v277 = vld [vmem:[%s276] sm:$0xff]
        %v278 = vld [vmem:[%s276 + $0x8] sm:$0xff]
        %v279 = vld [vmem:[%s276 + $0x10] sm:$0xff]
        %v280 = vld [vmem:[%s276 + $0x18] sm:$0xff]
        %v281 = vld [vmem:[%s276 + $0x20] sm:$0xff]
        %v282 = vld [vmem:[%s276 + $0x28] sm:$0xff]
        %v283 = vld [vmem:[%s276 + $0x30] sm:$0xff]
        %v284 = vld [vmem:[%s276 + $0x38] sm:$0xff]
        %v285 = vld [vmem:[%s276 + $0x40] sm:$0xff]
        %v286 = vld [vmem:[%s276 + $0x48] sm:$0xff]
        %v287 = vld [vmem:[%s276 + $0x50] sm:$0xff]
        %v288 = vld [vmem:[%s276 + $0x58] sm:$0xff]
        %v289 = vld [vmem:[%s276 + $0x60] sm:$0xff]
        %v290 = vld [vmem:[%s276 + $0x68] sm:$0xff]
        %v291 = vld [vmem:[%s276 + $0x70] sm:$0xff]
        %v292 = vld [vmem:[%s276 + $0x78] sm:$0xff]
        %v293 = vld [vmem:[%s276 + $0x80] sm:$0xff]
        %v294 = vld [vmem:[%s276 + $0x88] sm:$0xff]
        %v295 = vld [vmem:[%s276 + $0x90] sm:$0xff]
        %v296 = vld [vmem:[%s276 + $0x98] sm:$0xff]
        %v297 = vld [vmem:[%s276 + $0xa0] sm:$0xff]
        %v298 = vld [vmem:[%s276 + $0xa8] sm:$0xff]
        %v299 = vld [vmem:[%s276 + $0xb0] sm:$0xff]
        %v300 = vld [vmem:[%s276 + $0xb8] sm:$0xff]
        %v301 = vld [vmem:[%s276 + $0xc0] sm:$0xff]
        %v302 = vld [vmem:[%s276 + $0xc8] sm:$0xff]
        %v303 = vld [vmem:[%s276 + $0xd0] sm:$0xff]
        %v304 = vld [vmem:[%s276 + $0xd8] sm:$0xff]
        %v305 = vld [vmem:[%s276 + $0xe0] sm:$0xff]
        %v306 = vld [vmem:[%s276 + $0xe8] sm:$0xff]
        %v307 = vld [vmem:[%s276 + $0xf0] sm:$0xff]
        %v308 = vld [vmem:[%s276 + $0xf8] sm:$0xff]
        %vm309 = vcmask 64512
        %v310 = vsel %vm309, %v277, 0.0
        %311 = vadd.xlane.f32.xlu0 %v310
        %v312 = vpop.xlane.xlu0 %311
        %v313 = vsel %vm309, %v278, 0.0
        %314 = vadd.xlane.f32.xlu0 %v313
        %v315 = vpop.xlane.xlu0 %314
        %v316 = vsel %vm309, %v279, 0.0
        %317 = vadd.xlane.f32.xlu0 %v316
        %v318 = vpop.xlane.xlu0 %317
        %v319 = vsel %vm309, %v280, 0.0
        %320 = vadd.xlane.f32.xlu0 %v319
        %v321 = vpop.xlane.xlu0 %320
        %v322 = vsel %vm309, %v281, 0.0
        %323 = vadd.xlane.f32.xlu0 %v322
        %v324 = vpop.xlane.xlu0 %323
        %v325 = vsel %vm309, %v282, 0.0
        %326 = vadd.xlane.f32.xlu0 %v325
        %v327 = vpop.xlane.xlu0 %326
        %v328 = vsel %vm309, %v283, 0.0
        %329 = vadd.xlane.f32.xlu0 %v328
        %v330 = vpop.xlane.xlu0 %329
        %v331 = vsel %vm309, %v284, 0.0
        %332 = vadd.xlane.f32.xlu0 %v331
        %v333 = vpop.xlane.xlu0 %332
        %v334 = vsel %vm309, %v285, 0.0
        %335 = vadd.xlane.f32.xlu0 %v334
        %v336 = vpop.xlane.xlu0 %335
        %v337 = vsel %vm309, %v286, 0.0
        %338 = vadd.xlane.f32.xlu0 %v337
        %v339 = vpop.xlane.xlu0 %338
        %v340 = vsel %vm309, %v287, 0.0
        %341 = vadd.xlane.f32.xlu0 %v340
        %v342 = vpop.xlane.xlu0 %341
        %v343 = vsel %vm309, %v288, 0.0
        %344 = vadd.xlane.f32.xlu0 %v343
        %v345 = vpop.xlane.xlu0 %344
        %v346 = vsel %vm309, %v289, 0.0
        %347 = vadd.xlane.f32.xlu0 %v346
        %v348 = vpop.xlane.xlu0 %347
        %v349 = vsel %vm309, %v290, 0.0
        %350 = vadd.xlane.f32.xlu0 %v349
        %v351 = vpop.xlane.xlu0 %350
        %v352 = vsel %vm309, %v291, 0.0
        %353 = vadd.xlane.f32.xlu0 %v352
        %v354 = vpop.xlane.xlu0 %353
        %v355 = vsel %vm309, %v292, 0.0
        %356 = vadd.xlane.f32.xlu0 %v355
        %v357 = vpop.xlane.xlu0 %356
        %v358 = vsel %vm309, %v293, 0.0
        %359 = vadd.xlane.f32.xlu0 %v358
        %v360 = vpop.xlane.xlu0 %359
        %v361 = vsel %vm309, %v294, 0.0
        %362 = vadd.xlane.f32.xlu0 %v361
        %v363 = vpop.xlane.xlu0 %362
        %v364 = vsel %vm309, %v295, 0.0
        %365 = vadd.xlane.f32.xlu0 %v364
        %v366 = vpop.xlane.xlu0 %365
        %v367 = vsel %vm309, %v296, 0.0
        %368 = vadd.xlane.f32.xlu0 %v367
        %v369 = vpop.xlane.xlu0 %368
        %v370 = vsel %vm309, %v297, 0.0
        %371 = vadd.xlane.f32.xlu0 %v370
        %v372 = vpop.xlane.xlu0 %371
        %v373 = vsel %vm309, %v298, 0.0
        %374 = vadd.xlane.f32.xlu0 %v373
        %v375 = vpop.xlane.xlu0 %374
        %v376 = vsel %vm309, %v299, 0.0
        %377 = vadd.xlane.f32.xlu0 %v376
        %v378 = vpop.xlane.xlu0 %377
        %v379 = vsel %vm309, %v300, 0.0
        %380 = vadd.xlane.f32.xlu0 %v379
        %v381 = vpop.xlane.xlu0 %380
        %v382 = vsel %vm309, %v301, 0.0
        %383 = vadd.xlane.f32.xlu0 %v382
        %v384 = vpop.xlane.xlu0 %383
        %v385 = vsel %vm309, %v302, 0.0
        %386 = vadd.xlane.f32.xlu0 %v385
        %v387 = vpop.xlane.xlu0 %386
        %v388 = vsel %vm309, %v303, 0.0
        %389 = vadd.xlane.f32.xlu0 %v388
        %v390 = vpop.xlane.xlu0 %389
        %v391 = vsel %vm309, %v304, 0.0
        %392 = vadd.xlane.f32.xlu0 %v391
        %v393 = vpop.xlane.xlu0 %392
        %v394 = vsel %vm309, %v305, 0.0
        %395 = vadd.xlane.f32.xlu0 %v394
        %v396 = vpop.xlane.xlu0 %395
        %v397 = vsel %vm309, %v306, 0.0
        %398 = vadd.xlane.f32.xlu0 %v397
        %v399 = vpop.xlane.xlu0 %398
        %v400 = vsel %vm309, %v307, 0.0
        %401 = vadd.xlane.f32.xlu0 %v400
        %v402 = vpop.xlane.xlu0 %401
        %v403 = vsel %vm309, %v308, 0.0
        %404 = vadd.xlane.f32.xlu0 %v403
        %v405 = vpop.xlane.xlu0 %404
        %v406 = vrcp.pop 8.0
        %v407 = vmul.f32 %v312, %v406
        %v408 = vmul.f32 %v315, %v406
        %v409 = vmul.f32 %v318, %v406
        %v410 = vmul.f32 %v321, %v406
        %v411 = vmul.f32 %v324, %v406
        %v412 = vmul.f32 %v327, %v406
        %v413 = vmul.f32 %v330, %v406
        %v414 = vmul.f32 %v333, %v406
        %v415 = vmul.f32 %v336, %v406
        %v416 = vmul.f32 %v339, %v406
        %v417 = vmul.f32 %v342, %v406
        %v418 = vmul.f32 %v345, %v406
        %v419 = vmul.f32 %v348, %v406
        %v420 = vmul.f32 %v351, %v406
        %v421 = vmul.f32 %v354, %v406
        %v422 = vmul.f32 %v357, %v406
        %v423 = vmul.f32 %v360, %v406
        %v424 = vmul.f32 %v363, %v406
        %v425 = vmul.f32 %v366, %v406
        %v426 = vmul.f32 %v369, %v406
        %v427 = vmul.f32 %v372, %v406
        %v428 = vmul.f32 %v375, %v406
        %v429 = vmul.f32 %v378, %v406
        %v430 = vmul.f32 %v381, %v406
        %v431 = vmul.f32 %v384, %v406
        %v432 = vmul.f32 %v387, %v406
        %v433 = vmul.f32 %v390, %v406
        %v434 = vmul.f32 %v393, %v406
        %v435 = vmul.f32 %v396, %v406
        %v436 = vmul.f32 %v399, %v406
        %v437 = vmul.f32 %v402, %v406
        %v438 = vmul.f32 %v405, %v406
        %v439 = vsub.f32 %v277, %v407
        %v440 = vsub.f32 %v278, %v408
        %v441 = vsub.f32 %v279, %v409
        %v442 = vsub.f32 %v280, %v410
        %v443 = vsub.f32 %v281, %v411
        %v444 = vsub.f32 %v282, %v412
        %v445 = vsub.f32 %v283, %v413
        %v446 = vsub.f32 %v284, %v414
        %v447 = vsub.f32 %v285, %v415
        %v448 = vsub.f32 %v286, %v416
        %v449 = vsub.f32 %v287, %v417
        %v450 = vsub.f32 %v288, %v418
        %v451 = vsub.f32 %v289, %v419
        %v452 = vsub.f32 %v290, %v420
        %v453 = vsub.f32 %v291, %v421
        %v454 = vsub.f32 %v292, %v422
        %v455 = vsub.f32 %v293, %v423
        %v456 = vsub.f32 %v294, %v424
        %v457 = vsub.f32 %v295, %v425
        %v458 = vsub.f32 %v296, %v426
        %v459 = vsub.f32 %v297, %v427
        %v460 = vsub.f32 %v298, %v428
        %v461 = vsub.f32 %v299, %v429
        %v462 = vsub.f32 %v300, %v430
        %v463 = vsub.f32 %v301, %v431
        %v464 = vsub.f32 %v302, %v432
        %v465 = vsub.f32 %v303, %v433
        %v466 = vsub.f32 %v304, %v434
        %v467 = vsub.f32 %v305, %v435
        %v468 = vsub.f32 %v306, %v436
        %v469 = vsub.f32 %v307, %v437
        %v470 = vsub.f32 %v308, %v438
        %v471 = vmul.f32 %v439, %v439
        %v472 = vmul.f32 %v440, %v440
        %v473 = vmul.f32 %v441, %v441
        %v474 = vmul.f32 %v442, %v442
        %v475 = vmul.f32 %v443, %v443
        %v476 = vmul.f32 %v444, %v444
        %v477 = vmul.f32 %v445, %v445
        %v478 = vmul.f32 %v446, %v446
        %v479 = vmul.f32 %v447, %v447
        %v480 = vmul.f32 %v448, %v448
        %v481 = vmul.f32 %v449, %v449
        %v482 = vmul.f32 %v450, %v450
        %v483 = vmul.f32 %v451, %v451
        %v484 = vmul.f32 %v452, %v452
        %v485 = vmul.f32 %v453, %v453
        %v486 = vmul.f32 %v454, %v454
        %v487 = vmul.f32 %v455, %v455
        %v488 = vmul.f32 %v456, %v456
        %v489 = vmul.f32 %v457, %v457
        %v490 = vmul.f32 %v458, %v458
        %v491 = vmul.f32 %v459, %v459
        %v492 = vmul.f32 %v460, %v460
        %v493 = vmul.f32 %v461, %v461
        %v494 = vmul.f32 %v462, %v462
        %v495 = vmul.f32 %v463, %v463
        %v496 = vmul.f32 %v464, %v464
        %v497 = vmul.f32 %v465, %v465
        %v498 = vmul.f32 %v466, %v466
        %v499 = vmul.f32 %v467, %v467
        %v500 = vmul.f32 %v468, %v468
        %v501 = vmul.f32 %v469, %v469
        %v502 = vmul.f32 %v470, %v470
        %v503 = vsel %vm309, %v471, 0.0
        %504 = vadd.xlane.f32.xlu0 %v503
        %v505 = vpop.xlane.xlu0 %504
        %v506 = vsel %vm309, %v472, 0.0
        %507 = vadd.xlane.f32.xlu0 %v506
        %v508 = vpop.xlane.xlu0 %507
        %v509 = vsel %vm309, %v473, 0.0
        %510 = vadd.xlane.f32.xlu0 %v509
        %v511 = vpop.xlane.xlu0 %510
        %v512 = vsel %vm309, %v474, 0.0
        %513 = vadd.xlane.f32.xlu0 %v512
        %v514 = vpop.xlane.xlu0 %513
        %v515 = vsel %vm309, %v475, 0.0
        %516 = vadd.xlane.f32.xlu0 %v515
        %v517 = vpop.xlane.xlu0 %516
        %v518 = vsel %vm309, %v476, 0.0
        %519 = vadd.xlane.f32.xlu0 %v518
        %v520 = vpop.xlane.xlu0 %519
        %v521 = vsel %vm309, %v477, 0.0
        %522 = vadd.xlane.f32.xlu0 %v521
        %v523 = vpop.xlane.xlu0 %522
        %v524 = vsel %vm309, %v478, 0.0
        %525 = vadd.xlane.f32.xlu0 %v524
        %v526 = vpop.xlane.xlu0 %525
        %v527 = vsel %vm309, %v479, 0.0
        %528 = vadd.xlane.f32.xlu0 %v527
        %v529 = vpop.xlane.xlu0 %528
        %v530 = vsel %vm309, %v480, 0.0
        %531 = vadd.xlane.f32.xlu0 %v530
        %v532 = vpop.xlane.xlu0 %531
        %v533 = vsel %vm309, %v481, 0.0
        %534 = vadd.xlane.f32.xlu0 %v533
        %v535 = vpop.xlane.xlu0 %534
        %v536 = vsel %vm309, %v482, 0.0
        %537 = vadd.xlane.f32.xlu0 %v536
        %v538 = vpop.xlane.xlu0 %537
        %v539 = vsel %vm309, %v483, 0.0
        %540 = vadd.xlane.f32.xlu0 %v539
        %v541 = vpop.xlane.xlu0 %540
        %v542 = vsel %vm309, %v484, 0.0
        %543 = vadd.xlane.f32.xlu0 %v542
        %v544 = vpop.xlane.xlu0 %543
        %v545 = vsel %vm309, %v485, 0.0
        %546 = vadd.xlane.f32.xlu0 %v545
        %v547 = vpop.xlane.xlu0 %546
        %v548 = vsel %vm309, %v486, 0.0
        %549 = vadd.xlane.f32.xlu0 %v548
        %v550 = vpop.xlane.xlu0 %549
        %v551 = vsel %vm309, %v487, 0.0
        %552 = vadd.xlane.f32.xlu0 %v551
        %v553 = vpop.xlane.xlu0 %552
        %v554 = vsel %vm309, %v488, 0.0
        %555 = vadd.xlane.f32.xlu0 %v554
        %v556 = vpop.xlane.xlu0 %555
        %v557 = vsel %vm309, %v489, 0.0
        %558 = vadd.xlane.f32.xlu0 %v557
        %v559 = vpop.xlane.xlu0 %558
        %v560 = vsel %vm309, %v490, 0.0
        %561 = vadd.xlane.f32.xlu0 %v560
        %v562 = vpop.xlane.xlu0 %561
        %v563 = vsel %vm309, %v491, 0.0
        %564 = vadd.xlane.f32.xlu0 %v563
        %v565 = vpop.xlane.xlu0 %564
        %v566 = vsel %vm309, %v492, 0.0
        %567 = vadd.xlane.f32.xlu0 %v566
        %v568 = vpop.xlane.xlu0 %567
        %v569 = vsel %vm309, %v493, 0.0
        %570 = vadd.xlane.f32.xlu0 %v569
        %v571 = vpop.xlane.xlu0 %570
        %v572 = vsel %vm309, %v494, 0.0
        %573 = vadd.xlane.f32.xlu0 %v572
        %v574 = vpop.xlane.xlu0 %573
        %v575 = vsel %vm309, %v495, 0.0
        %576 = vadd.xlane.f32.xlu0 %v575
        %v577 = vpop.xlane.xlu0 %576
        %v578 = vsel %vm309, %v496, 0.0
        %579 = vadd.xlane.f32.xlu0 %v578
        %v580 = vpop.xlane.xlu0 %579
        %v581 = vsel %vm309, %v497, 0.0
        %582 = vadd.xlane.f32.xlu0 %v581
        %v583 = vpop.xlane.xlu0 %582
        %v584 = vsel %vm309, %v498, 0.0
        %585 = vadd.xlane.f32.xlu0 %v584
        %v586 = vpop.xlane.xlu0 %585
        %v587 = vsel %vm309, %v499, 0.0
        %588 = vadd.xlane.f32.xlu0 %v587
        %v589 = vpop.xlane.xlu0 %588
        %v590 = vsel %vm309, %v500, 0.0
        %591 = vadd.xlane.f32.xlu0 %v590
        %v592 = vpop.xlane.xlu0 %591
        %v593 = vsel %vm309, %v501, 0.0
        %594 = vadd.xlane.f32.xlu0 %v593
        %v595 = vpop.xlane.xlu0 %594
        %v596 = vsel %vm309, %v502, 0.0
        %597 = vadd.xlane.f32.xlu0 %v596
        %v598 = vpop.xlane.xlu0 %597
        %v599 = vmul.f32 %v505, %v406
        %v600 = vmul.f32 %v508, %v406
        %v601 = vmul.f32 %v511, %v406
        %v602 = vmul.f32 %v514, %v406
        %v603 = vmul.f32 %v517, %v406
        %v604 = vmul.f32 %v520, %v406
        %v605 = vmul.f32 %v523, %v406
        %v606 = vmul.f32 %v526, %v406
        %v607 = vmul.f32 %v529, %v406
        %v608 = vmul.f32 %v532, %v406
        %v609 = vmul.f32 %v535, %v406
        %v610 = vmul.f32 %v538, %v406
        %v611 = vmul.f32 %v541, %v406
        %v612 = vmul.f32 %v544, %v406
        %v613 = vmul.f32 %v547, %v406
        %v614 = vmul.f32 %v550, %v406
        %v615 = vmul.f32 %v553, %v406
        %v616 = vmul.f32 %v556, %v406
        %v617 = vmul.f32 %v559, %v406
        %v618 = vmul.f32 %v562, %v406
        %v619 = vmul.f32 %v565, %v406
        %v620 = vmul.f32 %v568, %v406
        %v621 = vmul.f32 %v571, %v406
        %v622 = vmul.f32 %v574, %v406
        %v623 = vmul.f32 %v577, %v406
        %v624 = vmul.f32 %v580, %v406
        %v625 = vmul.f32 %v583, %v406
        %v626 = vmul.f32 %v586, %v406
        %v627 = vmul.f32 %v589, %v406
        %v628 = vmul.f32 %v592, %v406
        %v629 = vmul.f32 %v595, %v406
        %v630 = vmul.f32 %v598, %v406
        %v631 = vadd.f32 %v599, 1e-05
        %v632 = vadd.f32 %v600, 1e-05
        %v633 = vadd.f32 %v601, 1e-05
        %v634 = vadd.f32 %v602, 1e-05
        %v635 = vadd.f32 %v603, 1e-05
        %v636 = vadd.f32 %v604, 1e-05
        %v637 = vadd.f32 %v605, 1e-05
        %v638 = vadd.f32 %v606, 1e-05
        %v639 = vadd.f32 %v607, 1e-05
        %v640 = vadd.f32 %v608, 1e-05
        %v641 = vadd.f32 %v609, 1e-05
        %v642 = vadd.f32 %v610, 1e-05
        %v643 = vadd.f32 %v611, 1e-05
        %v644 = vadd.f32 %v612, 1e-05
        %v645 = vadd.f32 %v613, 1e-05
        %v646 = vadd.f32 %v614, 1e-05
        %v647 = vadd.f32 %v615, 1e-05
        %v648 = vadd.f32 %v616, 1e-05
        %v649 = vadd.f32 %v617, 1e-05
        %v650 = vadd.f32 %v618, 1e-05
        %v651 = vadd.f32 %v619, 1e-05
        %v652 = vadd.f32 %v620, 1e-05
        %v653 = vadd.f32 %v621, 1e-05
        %v654 = vadd.f32 %v622, 1e-05
        %v655 = vadd.f32 %v623, 1e-05
        %v656 = vadd.f32 %v624, 1e-05
        %v657 = vadd.f32 %v625, 1e-05
        %v658 = vadd.f32 %v626, 1e-05
        %v659 = vadd.f32 %v627, 1e-05
        %v660 = vadd.f32 %v628, 1e-05
        %v661 = vadd.f32 %v629, 1e-05
        %v662 = vadd.f32 %v630, 1e-05
        %v663 = vrsqrt.pop %v631
        %v664 = vrsqrt.pop %v632
        %v665 = vrsqrt.pop %v633
        %v666 = vrsqrt.pop %v634
        %v667 = vrsqrt.pop %v635
        %v668 = vrsqrt.pop %v636
        %v669 = vrsqrt.pop %v637
        %v670 = vrsqrt.pop %v638
        %v671 = vrsqrt.pop %v639
        %v672 = vrsqrt.pop %v640
        %v673 = vrsqrt.pop %v641
        %v674 = vrsqrt.pop %v642
        %v675 = vrsqrt.pop %v643
        %v676 = vrsqrt.pop %v644
        %v677 = vrsqrt.pop %v645
        %v678 = vrsqrt.pop %v646
        %v679 = vrsqrt.pop %v647
        %v680 = vrsqrt.pop %v648
        %v681 = vrsqrt.pop %v649
        %v682 = vrsqrt.pop %v650
        %v683 = vrsqrt.pop %v651
        %v684 = vrsqrt.pop %v652
        %v685 = vrsqrt.pop %v653
        %v686 = vrsqrt.pop %v654
        %v687 = vrsqrt.pop %v655
        %v688 = vrsqrt.pop %v656
        %v689 = vrsqrt.pop %v657
        %v690 = vrsqrt.pop %v658
        %v691 = vrsqrt.pop %v659
        %v692 = vrsqrt.pop %v660
        %v693 = vrsqrt.pop %v661
        %v694 = vrsqrt.pop %v662
        %v695 = vmul.f32 %v439, %v663
        %v696 = vmul.f32 %v440, %v664
        %v697 = vmul.f32 %v441, %v665
        %v698 = vmul.f32 %v442, %v666
        %v699 = vmul.f32 %v443, %v667
        %v700 = vmul.f32 %v444, %v668
        %v701 = vmul.f32 %v445, %v669
        %v702 = vmul.f32 %v446, %v670
        %v703 = vmul.f32 %v447, %v671
        %v704 = vmul.f32 %v448, %v672
        %v705 = vmul.f32 %v449, %v673
        %v706 = vmul.f32 %v450, %v674
        %v707 = vmul.f32 %v451, %v675
        %v708 = vmul.f32 %v452, %v676
        %v709 = vmul.f32 %v453, %v677
        %v710 = vmul.f32 %v454, %v678
        %v711 = vmul.f32 %v455, %v679
        %v712 = vmul.f32 %v456, %v680
        %v713 = vmul.f32 %v457, %v681
        %v714 = vmul.f32 %v458, %v682
        %v715 = vmul.f32 %v459, %v683
        %v716 = vmul.f32 %v460, %v684
        %v717 = vmul.f32 %v461, %v685
        %v718 = vmul.f32 %v462, %v686
        %v719 = vmul.f32 %v463, %v687
        %v720 = vmul.f32 %v464, %v688
        %v721 = vmul.f32 %v465, %v689
        %v722 = vmul.f32 %v466, %v690
        %v723 = vmul.f32 %v467, %v691
        %v724 = vmul.f32 %v468, %v692
        %v725 = vmul.f32 %v469, %v693
        %v726 = vmul.f32 %v470, %v694
        %v727 = vld [vmem:[%s1] sm:$0x1]
        %v729 = vlaneseq
        %v730 = vshrl.u32 %v729, 7
        %v731 = vsub.s32 0, %v730
        %v732 = vrot.slane %v727, %v731
        %v734 = vmul.f32 %v695, %v732
        %v735 = vmul.f32 %v696, %v732
        %v736 = vmul.f32 %v697, %v732
        %v737 = vmul.f32 %v698, %v732
        %v738 = vmul.f32 %v699, %v732
        %v739 = vmul.f32 %v700, %v732
        %v740 = vmul.f32 %v701, %v732
        %v741 = vmul.f32 %v702, %v732
        %v742 = vmul.f32 %v703, %v732
        %v743 = vmul.f32 %v704, %v732
        %v744 = vmul.f32 %v705, %v732
        %v745 = vmul.f32 %v706, %v732
        %v746 = vmul.f32 %v707, %v732
        %v747 = vmul.f32 %v708, %v732
        %v748 = vmul.f32 %v709, %v732
        %v749 = vmul.f32 %v710, %v732
        %v750 = vmul.f32 %v711, %v732
        %v751 = vmul.f32 %v712, %v732
        %v752 = vmul.f32 %v713, %v732
        %v753 = vmul.f32 %v714, %v732
        %v754 = vmul.f32 %v715, %v732
        %v755 = vmul.f32 %v716, %v732
        %v756 = vmul.f32 %v717, %v732
        %v757 = vmul.f32 %v718, %v732
        %v758 = vmul.f32 %v719, %v732
        %v759 = vmul.f32 %v720, %v732
        %v760 = vmul.f32 %v721, %v732
        %v761 = vmul.f32 %v722, %v732
        %v762 = vmul.f32 %v723, %v732
        %v763 = vmul.f32 %v724, %v732
        %v764 = vmul.f32 %v725, %v732
        %v765 = vmul.f32 %v726, %v732
        %v766 = vld [vmem:[%s2] sm:$0x1]
        %v768 = vlaneseq
        %v769 = vshrl.u32 %v768, 7
        %v770 = vsub.s32 0, %v769
        %v771 = vrot.slane %v766, %v770
        %v773 = vadd.f32 %v734, %v771
        %v774 = vadd.f32 %v735, %v771
        %v775 = vadd.f32 %v736, %v771
        %v776 = vadd.f32 %v737, %v771
        %v777 = vadd.f32 %v738, %v771
        %v778 = vadd.f32 %v739, %v771
        %v779 = vadd.f32 %v740, %v771
        %v780 = vadd.f32 %v741, %v771
        %v781 = vadd.f32 %v742, %v771
        %v782 = vadd.f32 %v743, %v771
        %v783 = vadd.f32 %v744, %v771
        %v784 = vadd.f32 %v745, %v771
        %v785 = vadd.f32 %v746, %v771
        %v786 = vadd.f32 %v747, %v771
        %v787 = vadd.f32 %v748, %v771
        %v788 = vadd.f32 %v749, %v771
        %v789 = vadd.f32 %v750, %v771
        %v790 = vadd.f32 %v751, %v771
        %v791 = vadd.f32 %v752, %v771
        %v792 = vadd.f32 %v753, %v771
        %v793 = vadd.f32 %v754, %v771
        %v794 = vadd.f32 %v755, %v771
        %v795 = vadd.f32 %v756, %v771
        %v796 = vadd.f32 %v757, %v771
        %v797 = vadd.f32 %v758, %v771
        %v798 = vadd.f32 %v759, %v771
        %v799 = vadd.f32 %v760, %v771
        %v800 = vadd.f32 %v761, %v771
        %v801 = vadd.f32 %v762, %v771
        %v802 = vadd.f32 %v763, %v771
        %v803 = vadd.f32 %v764, %v771
        %v804 = vadd.f32 %v765, %v771
        %v805 = vlaneseq
        %v806 = vshrl.u32 %v805, 7
        %v807 = vadd.s32 %v806, 8
        %v808 = vadd.s32 %v806, 16
        %v809 = vadd.s32 %v806, 24
        %v810 = vadd.s32 %v806, 32
        %v811 = vadd.s32 %v806, 40
        %v812 = vadd.s32 %v806, 48
        %v813 = vadd.s32 %v806, 56
        %v814 = vadd.s32 %v806, 64
        %v815 = vadd.s32 %v806, 72
        %v816 = vadd.s32 %v806, 80
        %v817 = vadd.s32 %v806, 88
        %v818 = vadd.s32 %v806, 96
        %v819 = vadd.s32 %v806, 104
        %v820 = vadd.s32 %v806, 112
        %v821 = vadd.s32 %v806, 120
        %v822 = vadd.s32 %v806, 128
        %v823 = vadd.s32 %v806, 136
        %v824 = vadd.s32 %v806, 144
        %v825 = vadd.s32 %v806, 152
        %v826 = vadd.s32 %v806, 160
        %v827 = vadd.s32 %v806, 168
        %v828 = vadd.s32 %v806, 176
        %v829 = vadd.s32 %v806, 184
        %v830 = vadd.s32 %v806, 192
        %v831 = vadd.s32 %v806, 200
        %v832 = vadd.s32 %v806, 208
        %v833 = vadd.s32 %v806, 216
        %v834 = vadd.s32 %v806, 224
        %v835 = vadd.s32 %v806, 232
        %v836 = vadd.s32 %v806, 240
        %v837 = vadd.s32 %v806, 248
        %vm838 = vcmp.lt.s32.totalorder %v806, 0
        %v839 = vsub.s32 0, %v806
        %v840 = vsel %vm838, %v839, %v806
        %v841 = vshrl.u32 %v840, 4
        %v842 = vand.u32 %v840, 15
        %v843 = vsub.s32 0, %v842
        %v844 = vsel %vm838, %v843, %v842
        %vm845 = vcmp.lt.s32.totalorder %v807, 0
        %v846 = vsub.s32 0, %v807
        %v847 = vsel %vm845, %v846, %v807
        %v848 = vshrl.u32 %v847, 4
        %v849 = vand.u32 %v847, 15
        %v850 = vsub.s32 0, %v849
        %v851 = vsel %vm845, %v850, %v849
        %vm852 = vcmp.lt.s32.totalorder %v808, 0
        %v853 = vsub.s32 0, %v808
        %v854 = vsel %vm852, %v853, %v808
        %v855 = vshrl.u32 %v854, 4
        %v856 = vand.u32 %v854, 15
        %v857 = vsub.s32 0, %v856
        %v858 = vsel %vm852, %v857, %v856
        %vm859 = vcmp.lt.s32.totalorder %v809, 0
        %v860 = vsub.s32 0, %v809
        %v861 = vsel %vm859, %v860, %v809
        %v862 = vshrl.u32 %v861, 4
        %v863 = vand.u32 %v861, 15
        %v864 = vsub.s32 0, %v863
        %v865 = vsel %vm859, %v864, %v863
        %vm866 = vcmp.lt.s32.totalorder %v810, 0
        %v867 = vsub.s32 0, %v810
        %v868 = vsel %vm866, %v867, %v810
        %v869 = vshrl.u32 %v868, 4
        %v870 = vand.u32 %v868, 15
        %v871 = vsub.s32 0, %v870
        %v872 = vsel %vm866, %v871, %v870
        %vm873 = vcmp.lt.s32.totalorder %v811, 0
        %v874 = vsub.s32 0, %v811
        %v875 = vsel %vm873, %v874, %v811
        %v876 = vshrl.u32 %v875, 4
        %v877 = vand.u32 %v875, 15
        %v878 = vsub.s32 0, %v877
        %v879 = vsel %vm873, %v878, %v877
        %vm880 = vcmp.lt.s32.totalorder %v812, 0
        %v881 = vsub.s32 0, %v812
        %v882 = vsel %vm880, %v881, %v812
        %v883 = vshrl.u32 %v882, 4
        %v884 = vand.u32 %v882, 15
        %v885 = vsub.s32 0, %v884
        %v886 = vsel %vm880, %v885, %v884
        %vm887 = vcmp.lt.s32.totalorder %v813, 0
        %v888 = vsub.s32 0, %v813
        %v889 = vsel %vm887, %v888, %v813
        %v890 = vshrl.u32 %v889, 4
        %v891 = vand.u32 %v889, 15
        %v892 = vsub.s32 0, %v891
        %v893 = vsel %vm887, %v892, %v891
        %vm894 = vcmp.lt.s32.totalorder %v814, 0
        %v895 = vsub.s32 0, %v814
        %v896 = vsel %vm894, %v895, %v814
        %v897 = vshrl.u32 %v896, 4
        %v898 = vand.u32 %v896, 15
        %v899 = vsub.s32 0, %v898
        %v900 = vsel %vm894, %v899, %v898
        %vm901 = vcmp.lt.s32.totalorder %v815, 0
        %v902 = vsub.s32 0, %v815
        %v903 = vsel %vm901, %v902, %v815
        %v904 = vshrl.u32 %v903, 4
        %v905 = vand.u32 %v903, 15
        %v906 = vsub.s32 0, %v905
        %v907 = vsel %vm901, %v906, %v905
        %vm908 = vcmp.lt.s32.totalorder %v816, 0
        %v909 = vsub.s32 0, %v816
        %v910 = vsel %vm908, %v909, %v816
        %v911 = vshrl.u32 %v910, 4
        %v912 = vand.u32 %v910, 15
        %v913 = vsub.s32 0, %v912
        %v914 = vsel %vm908, %v913, %v912
        %vm915 = vcmp.lt.s32.totalorder %v817, 0
        %v916 = vsub.s32 0, %v817
        %v917 = vsel %vm915, %v916, %v817
        %v918 = vshrl.u32 %v917, 4
        %v919 = vand.u32 %v917, 15
        %v920 = vsub.s32 0, %v919
        %v921 = vsel %vm915, %v920, %v919
        %vm922 = vcmp.lt.s32.totalorder %v818, 0
        %v923 = vsub.s32 0, %v818
        %v924 = vsel %vm922, %v923, %v818
        %v925 = vshrl.u32 %v924, 4
        %v926 = vand.u32 %v924, 15
        %v927 = vsub.s32 0, %v926
        %v928 = vsel %vm922, %v927, %v926
        %vm929 = vcmp.lt.s32.totalorder %v819, 0
        %v930 = vsub.s32 0, %v819
        %v931 = vsel %vm929, %v930, %v819
        %v932 = vshrl.u32 %v931, 4
        %v933 = vand.u32 %v931, 15
        %v934 = vsub.s32 0, %v933
        %v935 = vsel %vm929, %v934, %v933
        %vm936 = vcmp.lt.s32.totalorder %v820, 0
        %v937 = vsub.s32 0, %v820
        %v938 = vsel %vm936, %v937, %v820
        %v939 = vshrl.u32 %v938, 4
        %v940 = vand.u32 %v938, 15
        %v941 = vsub.s32 0, %v940
        %v942 = vsel %vm936, %v941, %v940
        %vm943 = vcmp.lt.s32.totalorder %v821, 0
        %v944 = vsub.s32 0, %v821
        %v945 = vsel %vm943, %v944, %v821
        %v946 = vshrl.u32 %v945, 4
        %v947 = vand.u32 %v945, 15
        %v948 = vsub.s32 0, %v947
        %v949 = vsel %vm943, %v948, %v947
        %vm950 = vcmp.lt.s32.totalorder %v822, 0
        %v951 = vsub.s32 0, %v822
        %v952 = vsel %vm950, %v951, %v822
        %v953 = vshrl.u32 %v952, 4
        %v954 = vand.u32 %v952, 15
        %v955 = vsub.s32 0, %v954
        %v956 = vsel %vm950, %v955, %v954
        %vm957 = vcmp.lt.s32.totalorder %v823, 0
        %v958 = vsub.s32 0, %v823
        %v959 = vsel %vm957, %v958, %v823
        %v960 = vshrl.u32 %v959, 4
        %v961 = vand.u32 %v959, 15
        %v962 = vsub.s32 0, %v961
        %v963 = vsel %vm957, %v962, %v961
        %vm964 = vcmp.lt.s32.totalorder %v824, 0
        %v965 = vsub.s32 0, %v824
        %v966 = vsel %vm964, %v965, %v824
        %v967 = vshrl.u32 %v966, 4
        %v968 = vand.u32 %v966, 15
        %v969 = vsub.s32 0, %v968
        %v970 = vsel %vm964, %v969, %v968
        %vm971 = vcmp.lt.s32.totalorder %v825, 0
        %v972 = vsub.s32 0, %v825
        %v973 = vsel %vm971, %v972, %v825
        %v974 = vshrl.u32 %v973, 4
        %v975 = vand.u32 %v973, 15
        %v976 = vsub.s32 0, %v975
        %v977 = vsel %vm971, %v976, %v975
        %vm978 = vcmp.lt.s32.totalorder %v826, 0
        %v979 = vsub.s32 0, %v826
        %v980 = vsel %vm978, %v979, %v826
        %v981 = vshrl.u32 %v980, 4
        %v982 = vand.u32 %v980, 15
        %v983 = vsub.s32 0, %v982
        %v984 = vsel %vm978, %v983, %v982
        %vm985 = vcmp.lt.s32.totalorder %v827, 0
        %v986 = vsub.s32 0, %v827
        %v987 = vsel %vm985, %v986, %v827
        %v988 = vshrl.u32 %v987, 4
        %v989 = vand.u32 %v987, 15
        %v990 = vsub.s32 0, %v989
        %v991 = vsel %vm985, %v990, %v989
        %vm992 = vcmp.lt.s32.totalorder %v828, 0
        %v993 = vsub.s32 0, %v828
        %v994 = vsel %vm992, %v993, %v828
        %v995 = vshrl.u32 %v994, 4
        %v996 = vand.u32 %v994, 15
        %v997 = vsub.s32 0, %v996
        %v998 = vsel %vm992, %v997, %v996
        %vm999 = vcmp.lt.s32.totalorder %v829, 0
        %v1000 = vsub.s32 0, %v829
        %v1001 = vsel %vm999, %v1000, %v829
        %v1002 = vshrl.u32 %v1001, 4
        %v1003 = vand.u32 %v1001, 15
        %v1004 = vsub.s32 0, %v1003
        %v1005 = vsel %vm999, %v1004, %v1003
        %vm1006 = vcmp.lt.s32.totalorder %v830, 0
        %v1007 = vsub.s32 0, %v830
        %v1008 = vsel %vm1006, %v1007, %v830
        %v1009 = vshrl.u32 %v1008, 4
        %v1010 = vand.u32 %v1008, 15
        %v1011 = vsub.s32 0, %v1010
        %v1012 = vsel %vm1006, %v1011, %v1010
        %vm1013 = vcmp.lt.s32.totalorder %v831, 0
        %v1014 = vsub.s32 0, %v831
        %v1015 = vsel %vm1013, %v1014, %v831
        %v1016 = vshrl.u32 %v1015, 4
        %v1017 = vand.u32 %v1015, 15
        %v1018 = vsub.s32 0, %v1017
        %v1019 = vsel %vm1013, %v1018, %v1017
        %vm1020 = vcmp.lt.s32.totalorder %v832, 0
        %v1021 = vsub.s32 0, %v832
        %v1022 = vsel %vm1020, %v1021, %v832
        %v1023 = vshrl.u32 %v1022, 4
        %v1024 = vand.u32 %v1022, 15
        %v1025 = vsub.s32 0, %v1024
        %v1026 = vsel %vm1020, %v1025, %v1024
        %vm1027 = vcmp.lt.s32.totalorder %v833, 0
        %v1028 = vsub.s32 0, %v833
        %v1029 = vsel %vm1027, %v1028, %v833
        %v1030 = vshrl.u32 %v1029, 4
        %v1031 = vand.u32 %v1029, 15
        %v1032 = vsub.s32 0, %v1031
        %v1033 = vsel %vm1027, %v1032, %v1031
        %vm1034 = vcmp.lt.s32.totalorder %v834, 0
        %v1035 = vsub.s32 0, %v834
        %v1036 = vsel %vm1034, %v1035, %v834
        %v1037 = vshrl.u32 %v1036, 4
        %v1038 = vand.u32 %v1036, 15
        %v1039 = vsub.s32 0, %v1038
        %v1040 = vsel %vm1034, %v1039, %v1038
        %vm1041 = vcmp.lt.s32.totalorder %v835, 0
        %v1042 = vsub.s32 0, %v835
        %v1043 = vsel %vm1041, %v1042, %v835
        %v1044 = vshrl.u32 %v1043, 4
        %v1045 = vand.u32 %v1043, 15
        %v1046 = vsub.s32 0, %v1045
        %v1047 = vsel %vm1041, %v1046, %v1045
        %vm1048 = vcmp.lt.s32.totalorder %v836, 0
        %v1049 = vsub.s32 0, %v836
        %v1050 = vsel %vm1048, %v1049, %v836
        %v1051 = vshrl.u32 %v1050, 4
        %v1052 = vand.u32 %v1050, 15
        %v1053 = vsub.s32 0, %v1052
        %v1054 = vsel %vm1048, %v1053, %v1052
        %vm1055 = vcmp.lt.s32.totalorder %v837, 0
        %v1056 = vsub.s32 0, %v837
        %v1057 = vsel %vm1055, %v1056, %v837
        %v1058 = vshrl.u32 %v1057, 4
        %v1059 = vand.u32 %v1057, 15
        %v1060 = vsub.s32 0, %v1059
        %v1061 = vsel %vm1055, %v1060, %v1059
        %vm1062 = vcmp.ne.s32.totalorder %v844, 0
        %vm1063 = vcmp.ne.s32.totalorder %v851, 0
        %vm1064 = vcmp.ne.s32.totalorder %v858, 0
        %vm1065 = vcmp.ne.s32.totalorder %v865, 0
        %vm1066 = vcmp.ne.s32.totalorder %v872, 0
        %vm1067 = vcmp.ne.s32.totalorder %v879, 0
        %vm1068 = vcmp.ne.s32.totalorder %v886, 0
        %vm1069 = vcmp.ne.s32.totalorder %v893, 0
        %vm1070 = vcmp.ne.s32.totalorder %v900, 0
        %vm1071 = vcmp.ne.s32.totalorder %v907, 0
        %vm1072 = vcmp.ne.s32.totalorder %v914, 0
        %vm1073 = vcmp.ne.s32.totalorder %v921, 0
        %vm1074 = vcmp.ne.s32.totalorder %v928, 0
        %vm1075 = vcmp.ne.s32.totalorder %v935, 0
        %vm1076 = vcmp.ne.s32.totalorder %v942, 0
        %vm1077 = vcmp.ne.s32.totalorder %v949, 0
        %vm1078 = vcmp.ne.s32.totalorder %v956, 0
        %vm1079 = vcmp.ne.s32.totalorder %v963, 0
        %vm1080 = vcmp.ne.s32.totalorder %v970, 0
        %vm1081 = vcmp.ne.s32.totalorder %v977, 0
        %vm1082 = vcmp.ne.s32.totalorder %v984, 0
        %vm1083 = vcmp.ne.s32.totalorder %v991, 0
        %vm1084 = vcmp.ne.s32.totalorder %v998, 0
        %vm1085 = vcmp.ne.s32.totalorder %v1005, 0
        %vm1086 = vcmp.ne.s32.totalorder %v1012, 0
        %vm1087 = vcmp.ne.s32.totalorder %v1019, 0
        %vm1088 = vcmp.ne.s32.totalorder %v1026, 0
        %vm1089 = vcmp.ne.s32.totalorder %v1033, 0
        %vm1090 = vcmp.ne.s32.totalorder %v1040, 0
        %vm1091 = vcmp.ne.s32.totalorder %v1047, 0
        %vm1092 = vcmp.ne.s32.totalorder %v1054, 0
        %vm1093 = vcmp.ne.s32.totalorder %v1061, 0
        %vm1094 = vcmp.lt.s32.totalorder %v844, 0
        %vm1095 = vcmp.lt.s32.totalorder %v851, 0
        %vm1096 = vcmp.lt.s32.totalorder %v858, 0
        %vm1097 = vcmp.lt.s32.totalorder %v865, 0
        %vm1098 = vcmp.lt.s32.totalorder %v872, 0
        %vm1099 = vcmp.lt.s32.totalorder %v879, 0
        %vm1100 = vcmp.lt.s32.totalorder %v886, 0
        %vm1101 = vcmp.lt.s32.totalorder %v893, 0
        %vm1102 = vcmp.lt.s32.totalorder %v900, 0
        %vm1103 = vcmp.lt.s32.totalorder %v907, 0
        %vm1104 = vcmp.lt.s32.totalorder %v914, 0
        %vm1105 = vcmp.lt.s32.totalorder %v921, 0
        %vm1106 = vcmp.lt.s32.totalorder %v928, 0
        %vm1107 = vcmp.lt.s32.totalorder %v935, 0
        %vm1108 = vcmp.lt.s32.totalorder %v942, 0
        %vm1109 = vcmp.lt.s32.totalorder %v949, 0
        %vm1110 = vcmp.lt.s32.totalorder %v956, 0
        %vm1111 = vcmp.lt.s32.totalorder %v963, 0
        %vm1112 = vcmp.lt.s32.totalorder %v970, 0
        %vm1113 = vcmp.lt.s32.totalorder %v977, 0
        %vm1114 = vcmp.lt.s32.totalorder %v984, 0
        %vm1115 = vcmp.lt.s32.totalorder %v991, 0
        %vm1116 = vcmp.lt.s32.totalorder %v998, 0
        %vm1117 = vcmp.lt.s32.totalorder %v1005, 0
        %vm1118 = vcmp.lt.s32.totalorder %v1012, 0
        %vm1119 = vcmp.lt.s32.totalorder %v1019, 0
        %vm1120 = vcmp.lt.s32.totalorder %v1026, 0
        %vm1121 = vcmp.lt.s32.totalorder %v1033, 0
        %vm1122 = vcmp.lt.s32.totalorder %v1040, 0
        %vm1123 = vcmp.lt.s32.totalorder %v1047, 0
        %vm1124 = vcmp.lt.s32.totalorder %v1054, 0
        %vm1125 = vcmp.lt.s32.totalorder %v1061, 0
        %vm1126 = vmand %vm1094, %vm1062
        %vm1127 = vmand %vm1095, %vm1063
        %vm1128 = vmand %vm1096, %vm1064
        %vm1129 = vmand %vm1097, %vm1065
        %vm1130 = vmand %vm1098, %vm1066
        %vm1131 = vmand %vm1099, %vm1067
        %vm1132 = vmand %vm1100, %vm1068
        %vm1133 = vmand %vm1101, %vm1069
        %vm1134 = vmand %vm1102, %vm1070
        %vm1135 = vmand %vm1103, %vm1071
        %vm1136 = vmand %vm1104, %vm1072
        %vm1137 = vmand %vm1105, %vm1073
        %vm1138 = vmand %vm1106, %vm1074
        %vm1139 = vmand %vm1107, %vm1075
        %vm1140 = vmand %vm1108, %vm1076
        %vm1141 = vmand %vm1109, %vm1077
        %vm1142 = vmand %vm1110, %vm1078
        %vm1143 = vmand %vm1111, %vm1079
        %vm1144 = vmand %vm1112, %vm1080
        %vm1145 = vmand %vm1113, %vm1081
        %vm1146 = vmand %vm1114, %vm1082
        %vm1147 = vmand %vm1115, %vm1083
        %vm1148 = vmand %vm1116, %vm1084
        %vm1149 = vmand %vm1117, %vm1085
        %vm1150 = vmand %vm1118, %vm1086
        %vm1151 = vmand %vm1119, %vm1087
        %vm1152 = vmand %vm1120, %vm1088
        %vm1153 = vmand %vm1121, %vm1089
        %vm1154 = vmand %vm1122, %vm1090
        %vm1155 = vmand %vm1123, %vm1091
        %vm1156 = vmand %vm1124, %vm1092
        %vm1157 = vmand %vm1125, %vm1093
        %v1158 = vadd.s32 %v844, 16
        %v1159 = vadd.s32 %v851, 16
        %v1160 = vadd.s32 %v858, 16
        %v1161 = vadd.s32 %v865, 16
        %v1162 = vadd.s32 %v872, 16
        %v1163 = vadd.s32 %v879, 16
        %v1164 = vadd.s32 %v886, 16
        %v1165 = vadd.s32 %v893, 16
        %v1166 = vadd.s32 %v900, 16
        %v1167 = vadd.s32 %v907, 16
        %v1168 = vadd.s32 %v914, 16
        %v1169 = vadd.s32 %v921, 16
        %v1170 = vadd.s32 %v928, 16
        %v1171 = vadd.s32 %v935, 16
        %v1172 = vadd.s32 %v942, 16
        %v1173 = vadd.s32 %v949, 16
        %v1174 = vadd.s32 %v956, 16
        %v1175 = vadd.s32 %v963, 16
        %v1176 = vadd.s32 %v970, 16
        %v1177 = vadd.s32 %v977, 16
        %v1178 = vadd.s32 %v984, 16
        %v1179 = vadd.s32 %v991, 16
        %v1180 = vadd.s32 %v998, 16
        %v1181 = vadd.s32 %v1005, 16
        %v1182 = vadd.s32 %v1012, 16
        %v1183 = vadd.s32 %v1019, 16
        %v1184 = vadd.s32 %v1026, 16
        %v1185 = vadd.s32 %v1033, 16
        %v1186 = vadd.s32 %v1040, 16
        %v1187 = vadd.s32 %v1047, 16
        %v1188 = vadd.s32 %v1054, 16
        %v1189 = vadd.s32 %v1061, 16
        %v1190 = vsel %vm1126, %v1158, %v844
        %v1191 = vsel %vm1127, %v1159, %v851
        %v1192 = vsel %vm1128, %v1160, %v858
        %v1193 = vsel %vm1129, %v1161, %v865
        %v1194 = vsel %vm1130, %v1162, %v872
        %v1195 = vsel %vm1131, %v1163, %v879
        %v1196 = vsel %vm1132, %v1164, %v886
        %v1197 = vsel %vm1133, %v1165, %v893
        %v1198 = vsel %vm1134, %v1166, %v900
        %v1199 = vsel %vm1135, %v1167, %v907
        %v1200 = vsel %vm1136, %v1168, %v914
        %v1201 = vsel %vm1137, %v1169, %v921
        %v1202 = vsel %vm1138, %v1170, %v928
        %v1203 = vsel %vm1139, %v1171, %v935
        %v1204 = vsel %vm1140, %v1172, %v942
        %v1205 = vsel %vm1141, %v1173, %v949
        %v1206 = vsel %vm1142, %v1174, %v956
        %v1207 = vsel %vm1143, %v1175, %v963
        %v1208 = vsel %vm1144, %v1176, %v970
        %v1209 = vsel %vm1145, %v1177, %v977
        %v1210 = vsel %vm1146, %v1178, %v984
        %v1211 = vsel %vm1147, %v1179, %v991
        %v1212 = vsel %vm1148, %v1180, %v998
        %v1213 = vsel %vm1149, %v1181, %v1005
        %v1214 = vsel %vm1150, %v1182, %v1012
        %v1215 = vsel %vm1151, %v1183, %v1019
        %v1216 = vsel %vm1152, %v1184, %v1026
        %v1217 = vsel %vm1153, %v1185, %v1033
        %v1218 = vsel %vm1154, %v1186, %v1040
        %v1219 = vsel %vm1155, %v1187, %v1047
        %v1220 = vsel %vm1156, %v1188, %v1054
        %v1221 = vsel %vm1157, %v1189, %v1061
        %vm1222 = vcmp.ne.s32.totalorder %v1190, 0
        %vm1223 = vcmp.ne.s32.totalorder %v1191, 0
        %vm1224 = vcmp.ne.s32.totalorder %v1192, 0
        %vm1225 = vcmp.ne.s32.totalorder %v1193, 0
        %vm1226 = vcmp.ne.s32.totalorder %v1194, 0
        %vm1227 = vcmp.ne.s32.totalorder %v1195, 0
        %vm1228 = vcmp.ne.s32.totalorder %v1196, 0
        %vm1229 = vcmp.ne.s32.totalorder %v1197, 0
        %vm1230 = vcmp.ne.s32.totalorder %v1198, 0
        %vm1231 = vcmp.ne.s32.totalorder %v1199, 0
        %vm1232 = vcmp.ne.s32.totalorder %v1200, 0
        %vm1233 = vcmp.ne.s32.totalorder %v1201, 0
        %vm1234 = vcmp.ne.s32.totalorder %v1202, 0
        %vm1235 = vcmp.ne.s32.totalorder %v1203, 0
        %vm1236 = vcmp.ne.s32.totalorder %v1204, 0
        %vm1237 = vcmp.ne.s32.totalorder %v1205, 0
        %vm1238 = vcmp.ne.s32.totalorder %v1206, 0
        %vm1239 = vcmp.ne.s32.totalorder %v1207, 0
        %vm1240 = vcmp.ne.s32.totalorder %v1208, 0
        %vm1241 = vcmp.ne.s32.totalorder %v1209, 0
        %vm1242 = vcmp.ne.s32.totalorder %v1210, 0
        %vm1243 = vcmp.ne.s32.totalorder %v1211, 0
        %vm1244 = vcmp.ne.s32.totalorder %v1212, 0
        %vm1245 = vcmp.ne.s32.totalorder %v1213, 0
        %vm1246 = vcmp.ne.s32.totalorder %v1214, 0
        %vm1247 = vcmp.ne.s32.totalorder %v1215, 0
        %vm1248 = vcmp.ne.s32.totalorder %v1216, 0
        %vm1249 = vcmp.ne.s32.totalorder %v1217, 0
        %vm1250 = vcmp.ne.s32.totalorder %v1218, 0
        %vm1251 = vcmp.ne.s32.totalorder %v1219, 0
        %vm1252 = vcmp.ne.s32.totalorder %v1220, 0
        %vm1253 = vcmp.ne.s32.totalorder %v1221, 0
        %v1254 = vsel %vm1222, 1, 0
        %v1255 = vsel %vm1223, 1, 0
        %v1256 = vsel %vm1224, 1, 0
        %v1257 = vsel %vm1225, 1, 0
        %v1258 = vsel %vm1226, 1, 0
        %v1259 = vsel %vm1227, 1, 0
        %v1260 = vsel %vm1228, 1, 0
        %v1261 = vsel %vm1229, 1, 0
        %v1262 = vsel %vm1230, 1, 0
        %v1263 = vsel %vm1231, 1, 0
        %v1264 = vsel %vm1232, 1, 0
        %v1265 = vsel %vm1233, 1, 0
        %v1266 = vsel %vm1234, 1, 0
        %v1267 = vsel %vm1235, 1, 0
        %v1268 = vsel %vm1236, 1, 0
        %v1269 = vsel %vm1237, 1, 0
        %v1270 = vsel %vm1238, 1, 0
        %v1271 = vsel %vm1239, 1, 0
        %v1272 = vsel %vm1240, 1, 0
        %v1273 = vsel %vm1241, 1, 0
        %v1274 = vsel %vm1242, 1, 0
        %v1275 = vsel %vm1243, 1, 0
        %v1276 = vsel %vm1244, 1, 0
        %v1277 = vsel %vm1245, 1, 0
        %v1278 = vsel %vm1246, 1, 0
        %v1279 = vsel %vm1247, 1, 0
        %v1280 = vsel %vm1248, 1, 0
        %v1281 = vsel %vm1249, 1, 0
        %v1282 = vsel %vm1250, 1, 0
        %v1283 = vsel %vm1251, 1, 0
        %v1284 = vsel %vm1252, 1, 0
        %v1285 = vsel %vm1253, 1, 0
        %v1286 = vcvt.s32.f32 %v1254
        %v1287 = vcvt.s32.f32 %v1255
        %v1288 = vcvt.s32.f32 %v1256
        %v1289 = vcvt.s32.f32 %v1257
        %v1290 = vcvt.s32.f32 %v1258
        %v1291 = vcvt.s32.f32 %v1259
        %v1292 = vcvt.s32.f32 %v1260
        %v1293 = vcvt.s32.f32 %v1261
        %v1294 = vcvt.s32.f32 %v1262
        %v1295 = vcvt.s32.f32 %v1263
        %v1296 = vcvt.s32.f32 %v1264
        %v1297 = vcvt.s32.f32 %v1265
        %v1298 = vcvt.s32.f32 %v1266
        %v1299 = vcvt.s32.f32 %v1267
        %v1300 = vcvt.s32.f32 %v1268
        %v1301 = vcvt.s32.f32 %v1269
        %v1302 = vcvt.s32.f32 %v1270
        %v1303 = vcvt.s32.f32 %v1271
        %v1304 = vcvt.s32.f32 %v1272
        %v1305 = vcvt.s32.f32 %v1273
        %v1306 = vcvt.s32.f32 %v1274
        %v1307 = vcvt.s32.f32 %v1275
        %v1308 = vcvt.s32.f32 %v1276
        %v1309 = vcvt.s32.f32 %v1277
        %v1310 = vcvt.s32.f32 %v1278
        %v1311 = vcvt.s32.f32 %v1279
        %v1312 = vcvt.s32.f32 %v1280
        %v1313 = vcvt.s32.f32 %v1281
        %v1314 = vcvt.s32.f32 %v1282
        %v1315 = vcvt.s32.f32 %v1283
        %v1316 = vcvt.s32.f32 %v1284
        %v1317 = vcvt.s32.f32 %v1285
        %vm1318 = vcmp.ne.s32.totalorder %v1190, 15
        %vm1319 = vcmp.ne.s32.totalorder %v1191, 15
        %vm1320 = vcmp.ne.s32.totalorder %v1192, 15
        %vm1321 = vcmp.ne.s32.totalorder %v1193, 15
        %vm1322 = vcmp.ne.s32.totalorder %v1194, 15
        %vm1323 = vcmp.ne.s32.totalorder %v1195, 15
        %vm1324 = vcmp.ne.s32.totalorder %v1196, 15
        %vm1325 = vcmp.ne.s32.totalorder %v1197, 15
        %vm1326 = vcmp.ne.s32.totalorder %v1198, 15
        %vm1327 = vcmp.ne.s32.totalorder %v1199, 15
        %vm1328 = vcmp.ne.s32.totalorder %v1200, 15
        %vm1329 = vcmp.ne.s32.totalorder %v1201, 15
        %vm1330 = vcmp.ne.s32.totalorder %v1202, 15
        %vm1331 = vcmp.ne.s32.totalorder %v1203, 15
        %vm1332 = vcmp.ne.s32.totalorder %v1204, 15
        %vm1333 = vcmp.ne.s32.totalorder %v1205, 15
        %vm1334 = vcmp.ne.s32.totalorder %v1206, 15
        %vm1335 = vcmp.ne.s32.totalorder %v1207, 15
        %vm1336 = vcmp.ne.s32.totalorder %v1208, 15
        %vm1337 = vcmp.ne.s32.totalorder %v1209, 15
        %vm1338 = vcmp.ne.s32.totalorder %v1210, 15
        %vm1339 = vcmp.ne.s32.totalorder %v1211, 15
        %vm1340 = vcmp.ne.s32.totalorder %v1212, 15
        %vm1341 = vcmp.ne.s32.totalorder %v1213, 15
        %vm1342 = vcmp.ne.s32.totalorder %v1214, 15
        %vm1343 = vcmp.ne.s32.totalorder %v1215, 15
        %vm1344 = vcmp.ne.s32.totalorder %v1216, 15
        %vm1345 = vcmp.ne.s32.totalorder %v1217, 15
        %vm1346 = vcmp.ne.s32.totalorder %v1218, 15
        %vm1347 = vcmp.ne.s32.totalorder %v1219, 15
        %vm1348 = vcmp.ne.s32.totalorder %v1220, 15
        %vm1349 = vcmp.ne.s32.totalorder %v1221, 15
        %v1350 = vsel %vm1318, 1, 0
        %v1351 = vsel %vm1319, 1, 0
        %v1352 = vsel %vm1320, 1, 0
        %v1353 = vsel %vm1321, 1, 0
        %v1354 = vsel %vm1322, 1, 0
        %v1355 = vsel %vm1323, 1, 0
        %v1356 = vsel %vm1324, 1, 0
        %v1357 = vsel %vm1325, 1, 0
        %v1358 = vsel %vm1326, 1, 0
        %v1359 = vsel %vm1327, 1, 0
        %v1360 = vsel %vm1328, 1, 0
        %v1361 = vsel %vm1329, 1, 0
        %v1362 = vsel %vm1330, 1, 0
        %v1363 = vsel %vm1331, 1, 0
        %v1364 = vsel %vm1332, 1, 0
        %v1365 = vsel %vm1333, 1, 0
        %v1366 = vsel %vm1334, 1, 0
        %v1367 = vsel %vm1335, 1, 0
        %v1368 = vsel %vm1336, 1, 0
        %v1369 = vsel %vm1337, 1, 0
        %v1370 = vsel %vm1338, 1, 0
        %v1371 = vsel %vm1339, 1, 0
        %v1372 = vsel %vm1340, 1, 0
        %v1373 = vsel %vm1341, 1, 0
        %v1374 = vsel %vm1342, 1, 0
        %v1375 = vsel %vm1343, 1, 0
        %v1376 = vsel %vm1344, 1, 0
        %v1377 = vsel %vm1345, 1, 0
        %v1378 = vsel %vm1346, 1, 0
        %v1379 = vsel %vm1347, 1, 0
        %v1380 = vsel %vm1348, 1, 0
        %v1381 = vsel %vm1349, 1, 0
        %v1382 = vcvt.s32.f32 %v1350
        %v1383 = vcvt.s32.f32 %v1351
        %v1384 = vcvt.s32.f32 %v1352
        %v1385 = vcvt.s32.f32 %v1353
        %v1386 = vcvt.s32.f32 %v1354
        %v1387 = vcvt.s32.f32 %v1355
        %v1388 = vcvt.s32.f32 %v1356
        %v1389 = vcvt.s32.f32 %v1357
        %v1390 = vcvt.s32.f32 %v1358
        %v1391 = vcvt.s32.f32 %v1359
        %v1392 = vcvt.s32.f32 %v1360
        %v1393 = vcvt.s32.f32 %v1361
        %v1394 = vcvt.s32.f32 %v1362
        %v1395 = vcvt.s32.f32 %v1363
        %v1396 = vcvt.s32.f32 %v1364
        %v1397 = vcvt.s32.f32 %v1365
        %v1398 = vcvt.s32.f32 %v1366
        %v1399 = vcvt.s32.f32 %v1367
        %v1400 = vcvt.s32.f32 %v1368
        %v1401 = vcvt.s32.f32 %v1369
        %v1402 = vcvt.s32.f32 %v1370
        %v1403 = vcvt.s32.f32 %v1371
        %v1404 = vcvt.s32.f32 %v1372
        %v1405 = vcvt.s32.f32 %v1373
        %v1406 = vcvt.s32.f32 %v1374
        %v1407 = vcvt.s32.f32 %v1375
        %v1408 = vcvt.s32.f32 %v1376
        %v1409 = vcvt.s32.f32 %v1377
        %v1410 = vcvt.s32.f32 %v1378
        %v1411 = vcvt.s32.f32 %v1379
        %v1412 = vcvt.s32.f32 %v1380
        %v1413 = vcvt.s32.f32 %v1381
        %vm1446 = vcmask 1040384
        %v1447 = vrot.slane %v773, 7
        %v1448 = vrot.slane %v774, 7
        %v1449 = vsel %vm1446, %v1447, %v1448
        %v1450 = vrot.slane %v775, 7
        %v1451 = vsel %vm1446, %v1448, %v1450
        %v1452 = vrot.slane %v776, 7
        %v1453 = vsel %vm1446, %v1450, %v1452
        %v1454 = vrot.slane %v777, 7
        %v1455 = vsel %vm1446, %v1452, %v1454
        %v1456 = vrot.slane %v778, 7
        %v1457 = vsel %vm1446, %v1454, %v1456
        %v1458 = vrot.slane %v779, 7
        %v1459 = vsel %vm1446, %v1456, %v1458
        %v1460 = vrot.slane %v780, 7
        %v1461 = vsel %vm1446, %v1458, %v1460
        %v1462 = vrot.slane %v781, 7
        %v1463 = vsel %vm1446, %v1460, %v1462
        %v1464 = vrot.slane %v782, 7
        %v1465 = vsel %vm1446, %v1462, %v1464
        %v1466 = vrot.slane %v783, 7
        %v1467 = vsel %vm1446, %v1464, %v1466
        %v1468 = vrot.slane %v784, 7
        %v1469 = vsel %vm1446, %v1466, %v1468
        %v1470 = vrot.slane %v785, 7
        %v1471 = vsel %vm1446, %v1468, %v1470
        %v1472 = vrot.slane %v786, 7
        %v1473 = vsel %vm1446, %v1470, %v1472
        %v1474 = vrot.slane %v787, 7
        %v1475 = vsel %vm1446, %v1472, %v1474
        %v1476 = vrot.slane %v788, 7
        %v1477 = vsel %vm1446, %v1474, %v1476
        %v1478 = vrot.slane %v789, 7
        %v1479 = vsel %vm1446, %v1476, %v1478
        %v1480 = vrot.slane %v790, 7
        %v1481 = vsel %vm1446, %v1478, %v1480
        %v1482 = vrot.slane %v791, 7
        %v1483 = vsel %vm1446, %v1480, %v1482
        %v1484 = vrot.slane %v792, 7
        %v1485 = vsel %vm1446, %v1482, %v1484
        %v1486 = vrot.slane %v793, 7
        %v1487 = vsel %vm1446, %v1484, %v1486
        %v1488 = vrot.slane %v794, 7
        %v1489 = vsel %vm1446, %v1486, %v1488
        %v1490 = vrot.slane %v795, 7
        %v1491 = vsel %vm1446, %v1488, %v1490
        %v1492 = vrot.slane %v796, 7
        %v1493 = vsel %vm1446, %v1490, %v1492
        %v1494 = vrot.slane %v797, 7
        %v1495 = vsel %vm1446, %v1492, %v1494
        %v1496 = vrot.slane %v798, 7
        %v1497 = vsel %vm1446, %v1494, %v1496
        %v1498 = vrot.slane %v799, 7
        %v1499 = vsel %vm1446, %v1496, %v1498
        %v1500 = vrot.slane %v800, 7
        %v1501 = vsel %vm1446, %v1498, %v1500
        %v1502 = vrot.slane %v801, 7
        %v1503 = vsel %vm1446, %v1500, %v1502
        %v1504 = vrot.slane %v802, 7
        %v1505 = vsel %vm1446, %v1502, %v1504
        %v1506 = vrot.slane %v803, 7
        %v1507 = vsel %vm1446, %v1504, %v1506
        %v1508 = vrot.slane %v804, 7
        %v1509 = vsel %vm1446, %v1506, %v1508
        %v1543 = vsel %vm1446, 0.0, %v1447
        %v1544 = vsel %vm1446, %v1508, 0.0
        %v1545 = vmul.f32 %v1286, 0.0
        %v1546 = vmul.f32 %v1287, 0.0
        %v1547 = vmul.f32 %v1543, %v1288
        %v1548 = vmul.f32 %v1449, %v1289
        %v1549 = vmul.f32 %v1451, %v1290
        %v1550 = vmul.f32 %v1453, %v1291
        %v1551 = vmul.f32 %v1455, %v1292
        %v1552 = vmul.f32 %v1457, %v1293
        %v1553 = vmul.f32 %v1459, %v1294
        %v1554 = vmul.f32 %v1461, %v1295
        %v1555 = vmul.f32 %v1463, %v1296
        %v1556 = vmul.f32 %v1465, %v1297
        %v1557 = vmul.f32 %v1467, %v1298
        %v1558 = vmul.f32 %v1469, %v1299
        %v1559 = vmul.f32 %v1471, %v1300
        %v1560 = vmul.f32 %v1473, %v1301
        %v1561 = vmul.f32 %v1475, %v1302
        %v1562 = vmul.f32 %v1477, %v1303
        %v1563 = vmul.f32 %v1479, %v1304
        %v1564 = vmul.f32 %v1481, %v1305
        %v1565 = vmul.f32 %v1483, %v1306
        %v1566 = vmul.f32 %v1485, %v1307
        %v1567 = vmul.f32 %v1487, %v1308
        %v1568 = vmul.f32 %v1489, %v1309
        %v1569 = vmul.f32 %v1491, %v1310
        %v1570 = vmul.f32 %v1493, %v1311
        %v1571 = vmul.f32 %v1495, %v1312
        %v1572 = vmul.f32 %v1497, %v1313
        %v1573 = vmul.f32 %v1499, %v1314
        %v1574 = vmul.f32 %v1501, %v1315
        %v1575 = vmul.f32 %v1503, %v1316
        %v1576 = vmul.f32 %v1505, %v1317
        %vm1609 = vcmask 1041408
        %v1610 = vrot.slane %v1382, 6
        %v1611 = vrot.slane %v1383, 6
        %v1612 = vsel %vm1609, %v1610, %v1611
        %v1613 = vrot.slane %v1384, 6
        %v1614 = vsel %vm1609, %v1611, %v1613
        %v1615 = vrot.slane %v1385, 6
        %v1616 = vsel %vm1609, %v1613, %v1615
        %v1617 = vrot.slane %v1386, 6
        %v1618 = vsel %vm1609, %v1615, %v1617
        %v1619 = vrot.slane %v1387, 6
        %v1620 = vsel %vm1609, %v1617, %v1619
        %v1621 = vrot.slane %v1388, 6
        %v1622 = vsel %vm1609, %v1619, %v1621
        %v1623 = vrot.slane %v1389, 6
        %v1624 = vsel %vm1609, %v1621, %v1623
        %v1625 = vrot.slane %v1390, 6
        %v1626 = vsel %vm1609, %v1623, %v1625
        %v1627 = vrot.slane %v1391, 6
        %v1628 = vsel %vm1609, %v1625, %v1627
        %v1629 = vrot.slane %v1392, 6
        %v1630 = vsel %vm1609, %v1627, %v1629
        %v1631 = vrot.slane %v1393, 6
        %v1632 = vsel %vm1609, %v1629, %v1631
        %v1633 = vrot.slane %v1394, 6
        %v1634 = vsel %vm1609, %v1631, %v1633
        %v1635 = vrot.slane %v1395, 6
        %v1636 = vsel %vm1609, %v1633, %v1635
        %v1637 = vrot.slane %v1396, 6
        %v1638 = vsel %vm1609, %v1635, %v1637
        %v1639 = vrot.slane %v1397, 6
        %v1640 = vsel %vm1609, %v1637, %v1639
        %v1641 = vrot.slane %v1398, 6
        %v1642 = vsel %vm1609, %v1639, %v1641
        %v1643 = vrot.slane %v1399, 6
        %v1644 = vsel %vm1609, %v1641, %v1643
        %v1645 = vrot.slane %v1400, 6
        %v1646 = vsel %vm1609, %v1643, %v1645
        %v1647 = vrot.slane %v1401, 6
        %v1648 = vsel %vm1609, %v1645, %v1647
        %v1649 = vrot.slane %v1402, 6
        %v1650 = vsel %vm1609, %v1647, %v1649
        %v1651 = vrot.slane %v1403, 6
        %v1652 = vsel %vm1609, %v1649, %v1651
        %v1653 = vrot.slane %v1404, 6
        %v1654 = vsel %vm1609, %v1651, %v1653
        %v1655 = vrot.slane %v1405, 6
        %v1656 = vsel %vm1609, %v1653, %v1655
        %v1657 = vrot.slane %v1406, 6
        %v1658 = vsel %vm1609, %v1655, %v1657
        %v1659 = vrot.slane %v1407, 6
        %v1660 = vsel %vm1609, %v1657, %v1659
        %v1661 = vrot.slane %v1408, 6
        %v1662 = vsel %vm1609, %v1659, %v1661
        %v1663 = vrot.slane %v1409, 6
        %v1664 = vsel %vm1609, %v1661, %v1663
        %v1665 = vrot.slane %v1410, 6
        %v1666 = vsel %vm1609, %v1663, %v1665
        %v1667 = vrot.slane %v1411, 6
        %v1668 = vsel %vm1609, %v1665, %v1667
        %v1669 = vrot.slane %v1412, 6
        %v1670 = vsel %vm1609, %v1667, %v1669
        %v1671 = vrot.slane %v1413, 6
        %v1672 = vsel %vm1609, %v1669, %v1671
        %v1706 = vmul.f32 %v1610, 0.0
        %v1707 = vmul.f32 %v1612, 0.0
        %v1708 = vmul.f32 %v1543, %v1614
        %v1709 = vmul.f32 %v1449, %v1616
        %v1710 = vmul.f32 %v1451, %v1618
        %v1711 = vmul.f32 %v1453, %v1620
        %v1712 = vmul.f32 %v1455, %v1622
        %v1713 = vmul.f32 %v1457, %v1624
        %v1714 = vmul.f32 %v1459, %v1626
        %v1715 = vmul.f32 %v1461, %v1628
        %v1716 = vmul.f32 %v1463, %v1630
        %v1717 = vmul.f32 %v1465, %v1632
        %v1718 = vmul.f32 %v1467, %v1634
        %v1719 = vmul.f32 %v1469, %v1636
        %v1720 = vmul.f32 %v1471, %v1638
        %v1721 = vmul.f32 %v1473, %v1640
        %v1722 = vmul.f32 %v1475, %v1642
        %v1723 = vmul.f32 %v1477, %v1644
        %v1724 = vmul.f32 %v1479, %v1646
        %v1725 = vmul.f32 %v1481, %v1648
        %v1726 = vmul.f32 %v1483, %v1650
        %v1727 = vmul.f32 %v1485, %v1652
        %v1728 = vmul.f32 %v1487, %v1654
        %v1729 = vmul.f32 %v1489, %v1656
        %v1730 = vmul.f32 %v1491, %v1658
        %v1731 = vmul.f32 %v1493, %v1660
        %v1732 = vmul.f32 %v1495, %v1662
        %v1733 = vmul.f32 %v1497, %v1664
        %v1734 = vmul.f32 %v1499, %v1666
        %v1735 = vmul.f32 %v1501, %v1668
        %v1736 = vmul.f32 %v1503, %v1670
        %v1737 = vmul.f32 %v1505, %v1672
        %v1738 = vmul.f32 %v1507, %v1671
        %v1739 = vmul.f32 %v1543, %v1286
        %v1740 = vmul.f32 %v1449, %v1287
        %v1741 = vmul.f32 %v1451, %v1288
        %v1742 = vmul.f32 %v1453, %v1289
        %v1743 = vmul.f32 %v1455, %v1290
        %v1744 = vmul.f32 %v1457, %v1291
        %v1745 = vmul.f32 %v1459, %v1292
        %v1746 = vmul.f32 %v1461, %v1293
        %v1747 = vmul.f32 %v1463, %v1294
        %v1748 = vmul.f32 %v1465, %v1295
        %v1749 = vmul.f32 %v1467, %v1296
        %v1750 = vmul.f32 %v1469, %v1297
        %v1751 = vmul.f32 %v1471, %v1298
        %v1752 = vmul.f32 %v1473, %v1299
        %v1753 = vmul.f32 %v1475, %v1300
        %v1754 = vmul.f32 %v1477, %v1301
        %v1755 = vmul.f32 %v1479, %v1302
        %v1756 = vmul.f32 %v1481, %v1303
        %v1757 = vmul.f32 %v1483, %v1304
        %v1758 = vmul.f32 %v1485, %v1305
        %v1759 = vmul.f32 %v1487, %v1306
        %v1760 = vmul.f32 %v1489, %v1307
        %v1761 = vmul.f32 %v1491, %v1308
        %v1762 = vmul.f32 %v1493, %v1309
        %v1763 = vmul.f32 %v1495, %v1310
        %v1764 = vmul.f32 %v1497, %v1311
        %v1765 = vmul.f32 %v1499, %v1312
        %v1766 = vmul.f32 %v1501, %v1313
        %v1767 = vmul.f32 %v1503, %v1314
        %v1768 = vmul.f32 %v1505, %v1315
        %v1769 = vmul.f32 %v1507, %v1316
        %v1770 = vmul.f32 %v1509, %v1317
        %v1771 = vmul.f32 %v1543, %v1610
        %v1772 = vmul.f32 %v1449, %v1612
        %v1773 = vmul.f32 %v1451, %v1614
        %v1774 = vmul.f32 %v1453, %v1616
        %v1775 = vmul.f32 %v1455, %v1618
        %v1776 = vmul.f32 %v1457, %v1620
        %v1777 = vmul.f32 %v1459, %v1622
        %v1778 = vmul.f32 %v1461, %v1624
        %v1779 = vmul.f32 %v1463, %v1626
        %v1780 = vmul.f32 %v1465, %v1628
        %v1781 = vmul.f32 %v1467, %v1630
        %v1782 = vmul.f32 %v1469, %v1632
        %v1783 = vmul.f32 %v1471, %v1634
        %v1784 = vmul.f32 %v1473, %v1636
        %v1785 = vmul.f32 %v1475, %v1638
        %v1786 = vmul.f32 %v1477, %v1640
        %v1787 = vmul.f32 %v1479, %v1642
        %v1788 = vmul.f32 %v1481, %v1644
        %v1789 = vmul.f32 %v1483, %v1646
        %v1790 = vmul.f32 %v1485, %v1648
        %v1791 = vmul.f32 %v1487, %v1650
        %v1792 = vmul.f32 %v1489, %v1652
        %v1793 = vmul.f32 %v1491, %v1654
        %v1794 = vmul.f32 %v1493, %v1656
        %v1795 = vmul.f32 %v1495, %v1658
        %v1796 = vmul.f32 %v1497, %v1660
        %v1797 = vmul.f32 %v1499, %v1662
        %v1798 = vmul.f32 %v1501, %v1664
        %v1799 = vmul.f32 %v1503, %v1666
        %v1800 = vmul.f32 %v1505, %v1668
        %v1801 = vmul.f32 %v1507, %v1670
        %v1802 = vmul.f32 %v1509, %v1672
        %v1803 = vmul.f32 %v1544, %v1671
        %v1804 = vmul.f32 %v1451, %v1286
        %v1805 = vmul.f32 %v1453, %v1287
        %v1806 = vmul.f32 %v1455, %v1288
        %v1807 = vmul.f32 %v1457, %v1289
        %v1808 = vmul.f32 %v1459, %v1290
        %v1809 = vmul.f32 %v1461, %v1291
        %v1810 = vmul.f32 %v1463, %v1292
        %v1811 = vmul.f32 %v1465, %v1293
        %v1812 = vmul.f32 %v1467, %v1294
        %v1813 = vmul.f32 %v1469, %v1295
        %v1814 = vmul.f32 %v1471, %v1296
        %v1815 = vmul.f32 %v1473, %v1297
        %v1816 = vmul.f32 %v1475, %v1298
        %v1817 = vmul.f32 %v1477, %v1299
        %v1818 = vmul.f32 %v1479, %v1300
        %v1819 = vmul.f32 %v1481, %v1301
        %v1820 = vmul.f32 %v1483, %v1302
        %v1821 = vmul.f32 %v1485, %v1303
        %v1822 = vmul.f32 %v1487, %v1304
        %v1823 = vmul.f32 %v1489, %v1305
        %v1824 = vmul.f32 %v1491, %v1306
        %v1825 = vmul.f32 %v1493, %v1307
        %v1826 = vmul.f32 %v1495, %v1308
        %v1827 = vmul.f32 %v1497, %v1309
        %v1828 = vmul.f32 %v1499, %v1310
        %v1829 = vmul.f32 %v1501, %v1311
        %v1830 = vmul.f32 %v1503, %v1312
        %v1831 = vmul.f32 %v1505, %v1313
        %v1832 = vmul.f32 %v1507, %v1314
        %v1833 = vmul.f32 %v1509, %v1315
        %v1834 = vmul.f32 %v1544, %v1316
        %v1835 = vmul.f32 %v1317, 0.0
        %v1836 = vmul.f32 %v1451, %v1610
        %v1837 = vmul.f32 %v1453, %v1612
        %v1838 = vmul.f32 %v1455, %v1614
        %v1839 = vmul.f32 %v1457, %v1616
        %v1840 = vmul.f32 %v1459, %v1618
        %v1841 = vmul.f32 %v1461, %v1620
        %v1842 = vmul.f32 %v1463, %v1622
        %v1843 = vmul.f32 %v1465, %v1624
        %v1844 = vmul.f32 %v1467, %v1626
        %v1845 = vmul.f32 %v1469, %v1628
        %v1846 = vmul.f32 %v1471, %v1630
        %v1847 = vmul.f32 %v1473, %v1632
        %v1848 = vmul.f32 %v1475, %v1634
        %v1849 = vmul.f32 %v1477, %v1636
        %v1850 = vmul.f32 %v1479, %v1638
        %v1851 = vmul.f32 %v1481, %v1640
        %v1852 = vmul.f32 %v1483, %v1642
        %v1853 = vmul.f32 %v1485, %v1644
        %v1854 = vmul.f32 %v1487, %v1646
        %v1855 = vmul.f32 %v1489, %v1648
        %v1856 = vmul.f32 %v1491, %v1650
        %v1857 = vmul.f32 %v1493, %v1652
        %v1858 = vmul.f32 %v1495, %v1654
        %v1859 = vmul.f32 %v1497, %v1656
        %v1860 = vmul.f32 %v1499, %v1658
        %v1861 = vmul.f32 %v1501, %v1660
        %v1862 = vmul.f32 %v1503, %v1662
        %v1863 = vmul.f32 %v1505, %v1664
        %v1864 = vmul.f32 %v1507, %v1666
        %v1865 = vmul.f32 %v1509, %v1668
        %v1866 = vmul.f32 %v1544, %v1670
        %v1867 = vmul.f32 %v1672, 0.0
        %v1868 = vmul.f32 %v1671, 0.0
        %vm1871 = vcmask 1046528
        %v1872 = vrot.slane 0.0, 1
        %v1873 = vsel %vm1871, %v1872, %v1872
        %v1874 = vrot.slane %v1543, 1
        %v1875 = vsel %vm1871, %v1872, %v1874
        %v1876 = vrot.slane %v1449, 1
        %v1877 = vsel %vm1871, %v1874, %v1876
        %v1878 = vrot.slane %v1451, 1
        %v1879 = vsel %vm1871, %v1876, %v1878
        %v1880 = vrot.slane %v1453, 1
        %v1881 = vsel %vm1871, %v1878, %v1880
        %v1882 = vrot.slane %v1455, 1
        %v1883 = vsel %vm1871, %v1880, %v1882
        %v1884 = vrot.slane %v1457, 1
        %v1885 = vsel %vm1871, %v1882, %v1884
        %v1886 = vrot.slane %v1459, 1
        %v1887 = vsel %vm1871, %v1884, %v1886
        %v1888 = vrot.slane %v1461, 1
        %v1889 = vsel %vm1871, %v1886, %v1888
        %v1890 = vrot.slane %v1463, 1
        %v1891 = vsel %vm1871, %v1888, %v1890
        %v1892 = vrot.slane %v1465, 1
        %v1893 = vsel %vm1871, %v1890, %v1892
        %v1894 = vrot.slane %v1467, 1
        %v1895 = vsel %vm1871, %v1892, %v1894
        %v1896 = vrot.slane %v1469, 1
        %v1897 = vsel %vm1871, %v1894, %v1896
        %v1898 = vrot.slane %v1471, 1
        %v1899 = vsel %vm1871, %v1896, %v1898
        %v1900 = vrot.slane %v1473, 1
        %v1901 = vsel %vm1871, %v1898, %v1900
        %v1902 = vrot.slane %v1475, 1
        %v1903 = vsel %vm1871, %v1900, %v1902
        %v1904 = vrot.slane %v1477, 1
        %v1905 = vsel %vm1871, %v1902, %v1904
        %v1906 = vrot.slane %v1479, 1
        %v1907 = vsel %vm1871, %v1904, %v1906
        %v1908 = vrot.slane %v1481, 1
        %v1909 = vsel %vm1871, %v1906, %v1908
        %v1910 = vrot.slane %v1483, 1
        %v1911 = vsel %vm1871, %v1908, %v1910
        %v1912 = vrot.slane %v1485, 1
        %v1913 = vsel %vm1871, %v1910, %v1912
        %v1914 = vrot.slane %v1487, 1
        %v1915 = vsel %vm1871, %v1912, %v1914
        %v1916 = vrot.slane %v1489, 1
        %v1917 = vsel %vm1871, %v1914, %v1916
        %v1918 = vrot.slane %v1491, 1
        %v1919 = vsel %vm1871, %v1916, %v1918
        %v1920 = vrot.slane %v1493, 1
        %v1921 = vsel %vm1871, %v1918, %v1920
        %v1922 = vrot.slane %v1495, 1
        %v1923 = vsel %vm1871, %v1920, %v1922
        %v1924 = vrot.slane %v1497, 1
        %v1925 = vsel %vm1871, %v1922, %v1924
        %v1926 = vrot.slane %v1499, 1
        %v1927 = vsel %vm1871, %v1924, %v1926
        %v1928 = vrot.slane %v1501, 1
        %v1929 = vsel %vm1871, %v1926, %v1928
        %v1930 = vrot.slane %v1503, 1
        %v1931 = vsel %vm1871, %v1928, %v1930
        %v1932 = vrot.slane %v1505, 1
        %v1933 = vsel %vm1871, %v1930, %v1932
        %v1934 = vrot.slane %v1507, 1
        %v1935 = vsel %vm1871, %v1932, %v1934
        %1936 = vrot.lane.b32.xlu0 %v1873, 8
        %v1937 = vpop.permute.xlu0 %1936
        %1938 = vrot.lane.b32.xlu0 %v1875, 8
        %v1939 = vpop.permute.xlu0 %1938
        %1940 = vrot.lane.b32.xlu0 %v1877, 8
        %v1941 = vpop.permute.xlu0 %1940
        %1942 = vrot.lane.b32.xlu0 %v1879, 8
        %v1943 = vpop.permute.xlu0 %1942
        %1944 = vrot.lane.b32.xlu0 %v1881, 8
        %v1945 = vpop.permute.xlu0 %1944
        %1946 = vrot.lane.b32.xlu0 %v1883, 8
        %v1947 = vpop.permute.xlu0 %1946
        %1948 = vrot.lane.b32.xlu0 %v1885, 8
        %v1949 = vpop.permute.xlu0 %1948
        %1950 = vrot.lane.b32.xlu0 %v1887, 8
        %v1951 = vpop.permute.xlu0 %1950
        %1952 = vrot.lane.b32.xlu0 %v1889, 8
        %v1953 = vpop.permute.xlu0 %1952
        %1954 = vrot.lane.b32.xlu0 %v1891, 8
        %v1955 = vpop.permute.xlu0 %1954
        %1956 = vrot.lane.b32.xlu0 %v1893, 8
        %v1957 = vpop.permute.xlu0 %1956
        %1958 = vrot.lane.b32.xlu0 %v1895, 8
        %v1959 = vpop.permute.xlu0 %1958
        %1960 = vrot.lane.b32.xlu0 %v1897, 8
        %v1961 = vpop.permute.xlu0 %1960
        %1962 = vrot.lane.b32.xlu0 %v1899, 8
        %v1963 = vpop.permute.xlu0 %1962
        %1964 = vrot.lane.b32.xlu0 %v1901, 8
        %v1965 = vpop.permute.xlu0 %1964
        %1966 = vrot.lane.b32.xlu0 %v1903, 8
        %v1967 = vpop.permute.xlu0 %1966
        %1968 = vrot.lane.b32.xlu0 %v1905, 8
        %v1969 = vpop.permute.xlu0 %1968
        %1970 = vrot.lane.b32.xlu0 %v1907, 8
        %v1971 = vpop.permute.xlu0 %1970
        %1972 = vrot.lane.b32.xlu0 %v1909, 8
        %v1973 = vpop.permute.xlu0 %1972
        %1974 = vrot.lane.b32.xlu0 %v1911, 8
        %v1975 = vpop.permute.xlu0 %1974
        %1976 = vrot.lane.b32.xlu0 %v1913, 8
        %v1977 = vpop.permute.xlu0 %1976
        %1978 = vrot.lane.b32.xlu0 %v1915, 8
        %v1979 = vpop.permute.xlu0 %1978
        %1980 = vrot.lane.b32.xlu0 %v1917, 8
        %v1981 = vpop.permute.xlu0 %1980
        %1982 = vrot.lane.b32.xlu0 %v1919, 8
        %v1983 = vpop.permute.xlu0 %1982
        %1984 = vrot.lane.b32.xlu0 %v1921, 8
        %v1985 = vpop.permute.xlu0 %1984
        %1986 = vrot.lane.b32.xlu0 %v1923, 8
        %v1987 = vpop.permute.xlu0 %1986
        %1988 = vrot.lane.b32.xlu0 %v1925, 8
        %v1989 = vpop.permute.xlu0 %1988
        %1990 = vrot.lane.b32.xlu0 %v1927, 8
        %v1991 = vpop.permute.xlu0 %1990
        %1992 = vrot.lane.b32.xlu0 %v1929, 8
        %v1993 = vpop.permute.xlu0 %1992
        %1994 = vrot.lane.b32.xlu0 %v1931, 8
        %v1995 = vpop.permute.xlu0 %1994
        %1996 = vrot.lane.b32.xlu0 %v1933, 8
        %v1997 = vpop.permute.xlu0 %1996
        %1998 = vrot.lane.b32.xlu0 %v1935, 8
        %v1999 = vpop.permute.xlu0 %1998
        %vm2065 = vcmask 1045504
        %v2066 = vrot.slane %v1706, 2
        %v2067 = vrot.slane %v1707, 2
        %v2068 = vsel %vm2065, %v2066, %v2067
        %v2069 = vrot.slane %v1708, 2
        %v2070 = vsel %vm2065, %v2067, %v2069
        %v2071 = vrot.slane %v1709, 2
        %v2072 = vsel %vm2065, %v2069, %v2071
        %v2073 = vrot.slane %v1710, 2
        %v2074 = vsel %vm2065, %v2071, %v2073
        %v2075 = vrot.slane %v1711, 2
        %v2076 = vsel %vm2065, %v2073, %v2075
        %v2077 = vrot.slane %v1712, 2
        %v2078 = vsel %vm2065, %v2075, %v2077
        %v2079 = vrot.slane %v1713, 2
        %v2080 = vsel %vm2065, %v2077, %v2079
        %v2081 = vrot.slane %v1714, 2
        %v2082 = vsel %vm2065, %v2079, %v2081
        %v2083 = vrot.slane %v1715, 2
        %v2084 = vsel %vm2065, %v2081, %v2083
        %v2085 = vrot.slane %v1716, 2
        %v2086 = vsel %vm2065, %v2083, %v2085
        %v2087 = vrot.slane %v1717, 2
        %v2088 = vsel %vm2065, %v2085, %v2087
        %v2089 = vrot.slane %v1718, 2
        %v2090 = vsel %vm2065, %v2087, %v2089
        %v2091 = vrot.slane %v1719, 2
        %v2092 = vsel %vm2065, %v2089, %v2091
        %v2093 = vrot.slane %v1720, 2
        %v2094 = vsel %vm2065, %v2091, %v2093
        %v2095 = vrot.slane %v1721, 2
        %v2096 = vsel %vm2065, %v2093, %v2095
        %v2097 = vrot.slane %v1722, 2
        %v2098 = vsel %vm2065, %v2095, %v2097
        %v2099 = vrot.slane %v1723, 2
        %v2100 = vsel %vm2065, %v2097, %v2099
        %v2101 = vrot.slane %v1724, 2
        %v2102 = vsel %vm2065, %v2099, %v2101
        %v2103 = vrot.slane %v1725, 2
        %v2104 = vsel %vm2065, %v2101, %v2103
        %v2105 = vrot.slane %v1726, 2
        %v2106 = vsel %vm2065, %v2103, %v2105
        %v2107 = vrot.slane %v1727, 2
        %v2108 = vsel %vm2065, %v2105, %v2107
        %v2109 = vrot.slane %v1728, 2
        %v2110 = vsel %vm2065, %v2107, %v2109
        %v2111 = vrot.slane %v1729, 2
        %v2112 = vsel %vm2065, %v2109, %v2111
        %v2113 = vrot.slane %v1730, 2
        %v2114 = vsel %vm2065, %v2111, %v2113
        %v2115 = vrot.slane %v1731, 2
        %v2116 = vsel %vm2065, %v2113, %v2115
        %v2117 = vrot.slane %v1732, 2
        %v2118 = vsel %vm2065, %v2115, %v2117
        %v2119 = vrot.slane %v1733, 2
        %v2120 = vsel %vm2065, %v2117, %v2119
        %v2121 = vrot.slane %v1734, 2
        %v2122 = vsel %vm2065, %v2119, %v2121
        %v2123 = vrot.slane %v1735, 2
        %v2124 = vsel %vm2065, %v2121, %v2123
        %v2125 = vrot.slane %v1736, 2
        %v2126 = vsel %vm2065, %v2123, %v2125
        %v2127 = vrot.slane %v1737, 2
        %v2128 = vsel %vm2065, %v2125, %v2127
        %v2129 = vrot.slane %v1738, 2
        %v2130 = vsel %vm2065, %v2127, %v2129
        %2131 = vrot.lane.b32.xlu0 %v2068, 16
        %v2132 = vpop.permute.xlu0 %2131
        %2133 = vrot.lane.b32.xlu0 %v2070, 16
        %v2134 = vpop.permute.xlu0 %2133
        %2135 = vrot.lane.b32.xlu0 %v2072, 16
        %v2136 = vpop.permute.xlu0 %2135
        %2137 = vrot.lane.b32.xlu0 %v2074, 16
        %v2138 = vpop.permute.xlu0 %2137
        %2139 = vrot.lane.b32.xlu0 %v2076, 16
        %v2140 = vpop.permute.xlu0 %2139
        %2141 = vrot.lane.b32.xlu0 %v2078, 16
        %v2142 = vpop.permute.xlu0 %2141
        %2143 = vrot.lane.b32.xlu0 %v2080, 16
        %v2144 = vpop.permute.xlu0 %2143
        %2145 = vrot.lane.b32.xlu0 %v2082, 16
        %v2146 = vpop.permute.xlu0 %2145
        %2147 = vrot.lane.b32.xlu0 %v2084, 16
        %v2148 = vpop.permute.xlu0 %2147
        %2149 = vrot.lane.b32.xlu0 %v2086, 16
        %v2150 = vpop.permute.xlu0 %2149
        %2151 = vrot.lane.b32.xlu0 %v2088, 16
        %v2152 = vpop.permute.xlu0 %2151
        %2153 = vrot.lane.b32.xlu0 %v2090, 16
        %v2154 = vpop.permute.xlu0 %2153
        %2155 = vrot.lane.b32.xlu0 %v2092, 16
        %v2156 = vpop.permute.xlu0 %2155
        %2157 = vrot.lane.b32.xlu0 %v2094, 16
        %v2158 = vpop.permute.xlu0 %2157
        %2159 = vrot.lane.b32.xlu0 %v2096, 16
        %v2160 = vpop.permute.xlu0 %2159
        %2161 = vrot.lane.b32.xlu0 %v2098, 16
        %v2162 = vpop.permute.xlu0 %2161
        %2163 = vrot.lane.b32.xlu0 %v2100, 16
        %v2164 = vpop.permute.xlu0 %2163
        %2165 = vrot.lane.b32.xlu0 %v2102, 16
        %v2166 = vpop.permute.xlu0 %2165
        %2167 = vrot.lane.b32.xlu0 %v2104, 16
        %v2168 = vpop.permute.xlu0 %2167
        %2169 = vrot.lane.b32.xlu0 %v2106, 16
        %v2170 = vpop.permute.xlu0 %2169
        %2171 = vrot.lane.b32.xlu0 %v2108, 16
        %v2172 = vpop.permute.xlu0 %2171
        %2173 = vrot.lane.b32.xlu0 %v2110, 16
        %v2174 = vpop.permute.xlu0 %2173
        %2175 = vrot.lane.b32.xlu0 %v2112, 16
        %v2176 = vpop.permute.xlu0 %2175
        %2177 = vrot.lane.b32.xlu0 %v2114, 16
        %v2178 = vpop.permute.xlu0 %2177
        %2179 = vrot.lane.b32.xlu0 %v2116, 16
        %v2180 = vpop.permute.xlu0 %2179
        %2181 = vrot.lane.b32.xlu0 %v2118, 16
        %v2182 = vpop.permute.xlu0 %2181
        %2183 = vrot.lane.b32.xlu0 %v2120, 16
        %v2184 = vpop.permute.xlu0 %2183
        %2185 = vrot.lane.b32.xlu0 %v2122, 16
        %v2186 = vpop.permute.xlu0 %2185
        %2187 = vrot.lane.b32.xlu0 %v2124, 16
        %v2188 = vpop.permute.xlu0 %2187
        %2189 = vrot.lane.b32.xlu0 %v2126, 16
        %v2190 = vpop.permute.xlu0 %2189
        %2191 = vrot.lane.b32.xlu0 %v2128, 16
        %v2192 = vpop.permute.xlu0 %2191
        %2193 = vrot.lane.b32.xlu0 %v2130, 16
        %v2194 = vpop.permute.xlu0 %2193
        %2259 = vrot.lane.b32.xlu0 %v1739, 24
        %v2260 = vpop.permute.xlu0 %2259
        %2261 = vrot.lane.b32.xlu0 %v1740, 24
        %v2262 = vpop.permute.xlu0 %2261
        %2263 = vrot.lane.b32.xlu0 %v1741, 24
        %v2264 = vpop.permute.xlu0 %2263
        %2265 = vrot.lane.b32.xlu0 %v1742, 24
        %v2266 = vpop.permute.xlu0 %2265
        %2267 = vrot.lane.b32.xlu0 %v1743, 24
        %v2268 = vpop.permute.xlu0 %2267
        %2269 = vrot.lane.b32.xlu0 %v1744, 24
        %v2270 = vpop.permute.xlu0 %2269
        %2271 = vrot.lane.b32.xlu0 %v1745, 24
        %v2272 = vpop.permute.xlu0 %2271
        %2273 = vrot.lane.b32.xlu0 %v1746, 24
        %v2274 = vpop.permute.xlu0 %2273
        %2275 = vrot.lane.b32.xlu0 %v1747, 24
        %v2276 = vpop.permute.xlu0 %2275
        %2277 = vrot.lane.b32.xlu0 %v1748, 24
        %v2278 = vpop.permute.xlu0 %2277
        %2279 = vrot.lane.b32.xlu0 %v1749, 24
        %v2280 = vpop.permute.xlu0 %2279
        %2281 = vrot.lane.b32.xlu0 %v1750, 24
        %v2282 = vpop.permute.xlu0 %2281
        %2283 = vrot.lane.b32.xlu0 %v1751, 24
        %v2284 = vpop.permute.xlu0 %2283
        %2285 = vrot.lane.b32.xlu0 %v1752, 24
        %v2286 = vpop.permute.xlu0 %2285
        %2287 = vrot.lane.b32.xlu0 %v1753, 24
        %v2288 = vpop.permute.xlu0 %2287
        %2289 = vrot.lane.b32.xlu0 %v1754, 24
        %v2290 = vpop.permute.xlu0 %2289
        %2291 = vrot.lane.b32.xlu0 %v1755, 24
        %v2292 = vpop.permute.xlu0 %2291
        %2293 = vrot.lane.b32.xlu0 %v1756, 24
        %v2294 = vpop.permute.xlu0 %2293
        %2295 = vrot.lane.b32.xlu0 %v1757, 24
        %v2296 = vpop.permute.xlu0 %2295
        %2297 = vrot.lane.b32.xlu0 %v1758, 24
        %v2298 = vpop.permute.xlu0 %2297
        %2299 = vrot.lane.b32.xlu0 %v1759, 24
        %v2300 = vpop.permute.xlu0 %2299
        %2301 = vrot.lane.b32.xlu0 %v1760, 24
        %v2302 = vpop.permute.xlu0 %2301
        %2303 = vrot.lane.b32.xlu0 %v1761, 24
        %v2304 = vpop.permute.xlu0 %2303
        %2305 = vrot.lane.b32.xlu0 %v1762, 24
        %v2306 = vpop.permute.xlu0 %2305
        %2307 = vrot.lane.b32.xlu0 %v1763, 24
        %v2308 = vpop.permute.xlu0 %2307
        %2309 = vrot.lane.b32.xlu0 %v1764, 24
        %v2310 = vpop.permute.xlu0 %2309
        %2311 = vrot.lane.b32.xlu0 %v1765, 24
        %v2312 = vpop.permute.xlu0 %2311
        %2313 = vrot.lane.b32.xlu0 %v1766, 24
        %v2314 = vpop.permute.xlu0 %2313
        %2315 = vrot.lane.b32.xlu0 %v1767, 24
        %v2316 = vpop.permute.xlu0 %2315
        %2317 = vrot.lane.b32.xlu0 %v1768, 24
        %v2318 = vpop.permute.xlu0 %2317
        %2319 = vrot.lane.b32.xlu0 %v1769, 24
        %v2320 = vpop.permute.xlu0 %2319
        %2321 = vrot.lane.b32.xlu0 %v1770, 24
        %v2322 = vpop.permute.xlu0 %2321
        %v2356 = vrot.slane %v1509, 1
        %v2357 = vsel %vm1871, %v1934, %v2356
        %v2358 = vrot.slane %v1544, 1
        %v2359 = vsel %vm1871, %v2356, %v2358
        %2360 = vrot.lane.b32.xlu0 %v1877, 32
        %v2361 = vpop.permute.xlu0 %2360
        %2362 = vrot.lane.b32.xlu0 %v1879, 32
        %v2363 = vpop.permute.xlu0 %2362
        %2364 = vrot.lane.b32.xlu0 %v1881, 32
        %v2365 = vpop.permute.xlu0 %2364
        %2366 = vrot.lane.b32.xlu0 %v1883, 32
        %v2367 = vpop.permute.xlu0 %2366
        %2368 = vrot.lane.b32.xlu0 %v1885, 32
        %v2369 = vpop.permute.xlu0 %2368
        %2370 = vrot.lane.b32.xlu0 %v1887, 32
        %v2371 = vpop.permute.xlu0 %2370
        %2372 = vrot.lane.b32.xlu0 %v1889, 32
        %v2373 = vpop.permute.xlu0 %2372
        %2374 = vrot.lane.b32.xlu0 %v1891, 32
        %v2375 = vpop.permute.xlu0 %2374
        %2376 = vrot.lane.b32.xlu0 %v1893, 32
        %v2377 = vpop.permute.xlu0 %2376
        %2378 = vrot.lane.b32.xlu0 %v1895, 32
        %v2379 = vpop.permute.xlu0 %2378
        %2380 = vrot.lane.b32.xlu0 %v1897, 32
        %v2381 = vpop.permute.xlu0 %2380
        %2382 = vrot.lane.b32.xlu0 %v1899, 32
        %v2383 = vpop.permute.xlu0 %2382
        %2384 = vrot.lane.b32.xlu0 %v1901, 32
        %v2385 = vpop.permute.xlu0 %2384
        %2386 = vrot.lane.b32.xlu0 %v1903, 32
        %v2387 = vpop.permute.xlu0 %2386
        %2388 = vrot.lane.b32.xlu0 %v1905, 32
        %v2389 = vpop.permute.xlu0 %2388
        %2390 = vrot.lane.b32.xlu0 %v1907, 32
        %v2391 = vpop.permute.xlu0 %2390
        %2392 = vrot.lane.b32.xlu0 %v1909, 32
        %v2393 = vpop.permute.xlu0 %2392
        %2394 = vrot.lane.b32.xlu0 %v1911, 32
        %v2395 = vpop.permute.xlu0 %2394
        %2396 = vrot.lane.b32.xlu0 %v1913, 32
        %v2397 = vpop.permute.xlu0 %2396
        %2398 = vrot.lane.b32.xlu0 %v1915, 32
        %v2399 = vpop.permute.xlu0 %2398
        %2400 = vrot.lane.b32.xlu0 %v1917, 32
        %v2401 = vpop.permute.xlu0 %2400
        %2402 = vrot.lane.b32.xlu0 %v1919, 32
        %v2403 = vpop.permute.xlu0 %2402
        %2404 = vrot.lane.b32.xlu0 %v1921, 32
        %v2405 = vpop.permute.xlu0 %2404
        %2406 = vrot.lane.b32.xlu0 %v1923, 32
        %v2407 = vpop.permute.xlu0 %2406
        %2408 = vrot.lane.b32.xlu0 %v1925, 32
        %v2409 = vpop.permute.xlu0 %2408
        %2410 = vrot.lane.b32.xlu0 %v1927, 32
        %v2411 = vpop.permute.xlu0 %2410
        %2412 = vrot.lane.b32.xlu0 %v1929, 32
        %v2413 = vpop.permute.xlu0 %2412
        %2414 = vrot.lane.b32.xlu0 %v1931, 32
        %v2415 = vpop.permute.xlu0 %2414
        %2416 = vrot.lane.b32.xlu0 %v1933, 32
        %v2417 = vpop.permute.xlu0 %2416
        %2418 = vrot.lane.b32.xlu0 %v1935, 32
        %v2419 = vpop.permute.xlu0 %2418
        %2420 = vrot.lane.b32.xlu0 %v2357, 32
        %v2421 = vpop.permute.xlu0 %2420
        %2422 = vrot.lane.b32.xlu0 %v2359, 32
        %v2423 = vpop.permute.xlu0 %2422
        %v2489 = vrot.slane %v1771, 2
        %v2490 = vrot.slane %v1772, 2
        %v2491 = vsel %vm2065, %v2489, %v2490
        %v2492 = vrot.slane %v1773, 2
        %v2493 = vsel %vm2065, %v2490, %v2492
        %v2494 = vrot.slane %v1774, 2
        %v2495 = vsel %vm2065, %v2492, %v2494
        %v2496 = vrot.slane %v1775, 2
        %v2497 = vsel %vm2065, %v2494, %v2496
        %v2498 = vrot.slane %v1776, 2
        %v2499 = vsel %vm2065, %v2496, %v2498
        %v2500 = vrot.slane %v1777, 2
        %v2501 = vsel %vm2065, %v2498, %v2500
        %v2502 = vrot.slane %v1778, 2
        %v2503 = vsel %vm2065, %v2500, %v2502
        %v2504 = vrot.slane %v1779, 2
        %v2505 = vsel %vm2065, %v2502, %v2504
        %v2506 = vrot.slane %v1780, 2
        %v2507 = vsel %vm2065, %v2504, %v2506
        %v2508 = vrot.slane %v1781, 2
        %v2509 = vsel %vm2065, %v2506, %v2508
        %v2510 = vrot.slane %v1782, 2
        %v2511 = vsel %vm2065, %v2508, %v2510
        %v2512 = vrot.slane %v1783, 2
        %v2513 = vsel %vm2065, %v2510, %v2512
        %v2514 = vrot.slane %v1784, 2
        %v2515 = vsel %vm2065, %v2512, %v2514
        %v2516 = vrot.slane %v1785, 2
        %v2517 = vsel %vm2065, %v2514, %v2516
        %v2518 = vrot.slane %v1786, 2
        %v2519 = vsel %vm2065, %v2516, %v2518
        %v2520 = vrot.slane %v1787, 2
        %v2521 = vsel %vm2065, %v2518, %v2520
        %v2522 = vrot.slane %v1788, 2
        %v2523 = vsel %vm2065, %v2520, %v2522
        %v2524 = vrot.slane %v1789, 2
        %v2525 = vsel %vm2065, %v2522, %v2524
        %v2526 = vrot.slane %v1790, 2
        %v2527 = vsel %vm2065, %v2524, %v2526
        %v2528 = vrot.slane %v1791, 2
        %v2529 = vsel %vm2065, %v2526, %v2528
        %v2530 = vrot.slane %v1792, 2
        %v2531 = vsel %vm2065, %v2528, %v2530
        %v2532 = vrot.slane %v1793, 2
        %v2533 = vsel %vm2065, %v2530, %v2532
        %v2534 = vrot.slane %v1794, 2
        %v2535 = vsel %vm2065, %v2532, %v2534
        %v2536 = vrot.slane %v1795, 2
        %v2537 = vsel %vm2065, %v2534, %v2536
        %v2538 = vrot.slane %v1796, 2
        %v2539 = vsel %vm2065, %v2536, %v2538
        %v2540 = vrot.slane %v1797, 2
        %v2541 = vsel %vm2065, %v2538, %v2540
        %v2542 = vrot.slane %v1798, 2
        %v2543 = vsel %vm2065, %v2540, %v2542
        %v2544 = vrot.slane %v1799, 2
        %v2545 = vsel %vm2065, %v2542, %v2544
        %v2546 = vrot.slane %v1800, 2
        %v2547 = vsel %vm2065, %v2544, %v2546
        %v2548 = vrot.slane %v1801, 2
        %v2549 = vsel %vm2065, %v2546, %v2548
        %v2550 = vrot.slane %v1802, 2
        %v2551 = vsel %vm2065, %v2548, %v2550
        %v2552 = vrot.slane %v1803, 2
        %v2553 = vsel %vm2065, %v2550, %v2552
        %2554 = vrot.lane.b32.xlu0 %v2491, 40
        %v2555 = vpop.permute.xlu0 %2554
        %2556 = vrot.lane.b32.xlu0 %v2493, 40
        %v2557 = vpop.permute.xlu0 %2556
        %2558 = vrot.lane.b32.xlu0 %v2495, 40
        %v2559 = vpop.permute.xlu0 %2558
        %2560 = vrot.lane.b32.xlu0 %v2497, 40
        %v2561 = vpop.permute.xlu0 %2560
        %2562 = vrot.lane.b32.xlu0 %v2499, 40
        %v2563 = vpop.permute.xlu0 %2562
        %2564 = vrot.lane.b32.xlu0 %v2501, 40
        %v2565 = vpop.permute.xlu0 %2564
        %2566 = vrot.lane.b32.xlu0 %v2503, 40
        %v2567 = vpop.permute.xlu0 %2566
        %2568 = vrot.lane.b32.xlu0 %v2505, 40
        %v2569 = vpop.permute.xlu0 %2568
        %2570 = vrot.lane.b32.xlu0 %v2507, 40
        %v2571 = vpop.permute.xlu0 %2570
        %2572 = vrot.lane.b32.xlu0 %v2509, 40
        %v2573 = vpop.permute.xlu0 %2572
        %2574 = vrot.lane.b32.xlu0 %v2511, 40
        %v2575 = vpop.permute.xlu0 %2574
        %2576 = vrot.lane.b32.xlu0 %v2513, 40
        %v2577 = vpop.permute.xlu0 %2576
        %2578 = vrot.lane.b32.xlu0 %v2515, 40
        %v2579 = vpop.permute.xlu0 %2578
        %2580 = vrot.lane.b32.xlu0 %v2517, 40
        %v2581 = vpop.permute.xlu0 %2580
        %2582 = vrot.lane.b32.xlu0 %v2519, 40
        %v2583 = vpop.permute.xlu0 %2582
        %2584 = vrot.lane.b32.xlu0 %v2521, 40
        %v2585 = vpop.permute.xlu0 %2584
        %2586 = vrot.lane.b32.xlu0 %v2523, 40
        %v2587 = vpop.permute.xlu0 %2586
        %2588 = vrot.lane.b32.xlu0 %v2525, 40
        %v2589 = vpop.permute.xlu0 %2588
        %2590 = vrot.lane.b32.xlu0 %v2527, 40
        %v2591 = vpop.permute.xlu0 %2590
        %2592 = vrot.lane.b32.xlu0 %v2529, 40
        %v2593 = vpop.permute.xlu0 %2592
        %2594 = vrot.lane.b32.xlu0 %v2531, 40
        %v2595 = vpop.permute.xlu0 %2594
        %2596 = vrot.lane.b32.xlu0 %v2533, 40
        %v2597 = vpop.permute.xlu0 %2596
        %2598 = vrot.lane.b32.xlu0 %v2535, 40
        %v2599 = vpop.permute.xlu0 %2598
        %2600 = vrot.lane.b32.xlu0 %v2537, 40
        %v2601 = vpop.permute.xlu0 %2600
        %2602 = vrot.lane.b32.xlu0 %v2539, 40
        %v2603 = vpop.permute.xlu0 %2602
        %2604 = vrot.lane.b32.xlu0 %v2541, 40
        %v2605 = vpop.permute.xlu0 %2604
        %2606 = vrot.lane.b32.xlu0 %v2543, 40
        %v2607 = vpop.permute.xlu0 %2606
        %2608 = vrot.lane.b32.xlu0 %v2545, 40
        %v2609 = vpop.permute.xlu0 %2608
        %2610 = vrot.lane.b32.xlu0 %v2547, 40
        %v2611 = vpop.permute.xlu0 %2610
        %2612 = vrot.lane.b32.xlu0 %v2549, 40
        %v2613 = vpop.permute.xlu0 %2612
        %2614 = vrot.lane.b32.xlu0 %v2551, 40
        %v2615 = vpop.permute.xlu0 %2614
        %2616 = vrot.lane.b32.xlu0 %v2553, 40
        %v2617 = vpop.permute.xlu0 %2616
        %2682 = vrot.lane.b32.xlu0 %v1804, 48
        %v2683 = vpop.permute.xlu0 %2682
        %2684 = vrot.lane.b32.xlu0 %v1805, 48
        %v2685 = vpop.permute.xlu0 %2684
        %2686 = vrot.lane.b32.xlu0 %v1806, 48
        %v2687 = vpop.permute.xlu0 %2686
        %2688 = vrot.lane.b32.xlu0 %v1807, 48
        %v2689 = vpop.permute.xlu0 %2688
        %2690 = vrot.lane.b32.xlu0 %v1808, 48
        %v2691 = vpop.permute.xlu0 %2690
        %2692 = vrot.lane.b32.xlu0 %v1809, 48
        %v2693 = vpop.permute.xlu0 %2692
        %2694 = vrot.lane.b32.xlu0 %v1810, 48
        %v2695 = vpop.permute.xlu0 %2694
        %2696 = vrot.lane.b32.xlu0 %v1811, 48
        %v2697 = vpop.permute.xlu0 %2696
        %2698 = vrot.lane.b32.xlu0 %v1812, 48
        %v2699 = vpop.permute.xlu0 %2698
        %2700 = vrot.lane.b32.xlu0 %v1813, 48
        %v2701 = vpop.permute.xlu0 %2700
        %2702 = vrot.lane.b32.xlu0 %v1814, 48
        %v2703 = vpop.permute.xlu0 %2702
        %2704 = vrot.lane.b32.xlu0 %v1815, 48
        %v2705 = vpop.permute.xlu0 %2704
        %2706 = vrot.lane.b32.xlu0 %v1816, 48
        %v2707 = vpop.permute.xlu0 %2706
        %2708 = vrot.lane.b32.xlu0 %v1817, 48
        %v2709 = vpop.permute.xlu0 %2708
        %2710 = vrot.lane.b32.xlu0 %v1818, 48
        %v2711 = vpop.permute.xlu0 %2710
        %2712 = vrot.lane.b32.xlu0 %v1819, 48
        %v2713 = vpop.permute.xlu0 %2712
        %2714 = vrot.lane.b32.xlu0 %v1820, 48
        %v2715 = vpop.permute.xlu0 %2714
        %2716 = vrot.lane.b32.xlu0 %v1821, 48
        %v2717 = vpop.permute.xlu0 %2716
        %2718 = vrot.lane.b32.xlu0 %v1822, 48
        %v2719 = vpop.permute.xlu0 %2718
        %2720 = vrot.lane.b32.xlu0 %v1823, 48
        %v2721 = vpop.permute.xlu0 %2720
        %2722 = vrot.lane.b32.xlu0 %v1824, 48
        %v2723 = vpop.permute.xlu0 %2722
        %2724 = vrot.lane.b32.xlu0 %v1825, 48
        %v2725 = vpop.permute.xlu0 %2724
        %2726 = vrot.lane.b32.xlu0 %v1826, 48
        %v2727 = vpop.permute.xlu0 %2726
        %2728 = vrot.lane.b32.xlu0 %v1827, 48
        %v2729 = vpop.permute.xlu0 %2728
        %2730 = vrot.lane.b32.xlu0 %v1828, 48
        %v2731 = vpop.permute.xlu0 %2730
        %2732 = vrot.lane.b32.xlu0 %v1829, 48
        %v2733 = vpop.permute.xlu0 %2732
        %2734 = vrot.lane.b32.xlu0 %v1830, 48
        %v2735 = vpop.permute.xlu0 %2734
        %2736 = vrot.lane.b32.xlu0 %v1831, 48
        %v2737 = vpop.permute.xlu0 %2736
        %2738 = vrot.lane.b32.xlu0 %v1832, 48
        %v2739 = vpop.permute.xlu0 %2738
        %2740 = vrot.lane.b32.xlu0 %v1833, 48
        %v2741 = vpop.permute.xlu0 %2740
        %2742 = vrot.lane.b32.xlu0 %v1834, 48
        %v2743 = vpop.permute.xlu0 %2742
        %2744 = vrot.lane.b32.xlu0 %v1835, 48
        %v2745 = vpop.permute.xlu0 %2744
        %v2778 = vsel %vm1871, %v2358, %v1872
        %2779 = vrot.lane.b32.xlu0 %v1881, 56
        %v2780 = vpop.permute.xlu0 %2779
        %2781 = vrot.lane.b32.xlu0 %v1883, 56
        %v2782 = vpop.permute.xlu0 %2781
        %2783 = vrot.lane.b32.xlu0 %v1885, 56
        %v2784 = vpop.permute.xlu0 %2783
        %2785 = vrot.lane.b32.xlu0 %v1887, 56
        %v2786 = vpop.permute.xlu0 %2785
        %2787 = vrot.lane.b32.xlu0 %v1889, 56
        %v2788 = vpop.permute.xlu0 %2787
        %2789 = vrot.lane.b32.xlu0 %v1891, 56
        %v2790 = vpop.permute.xlu0 %2789
        %2791 = vrot.lane.b32.xlu0 %v1893, 56
        %v2792 = vpop.permute.xlu0 %2791
        %2793 = vrot.lane.b32.xlu0 %v1895, 56
        %v2794 = vpop.permute.xlu0 %2793
        %2795 = vrot.lane.b32.xlu0 %v1897, 56
        %v2796 = vpop.permute.xlu0 %2795
        %2797 = vrot.lane.b32.xlu0 %v1899, 56
        %v2798 = vpop.permute.xlu0 %2797
        %2799 = vrot.lane.b32.xlu0 %v1901, 56
        %v2800 = vpop.permute.xlu0 %2799
        %2801 = vrot.lane.b32.xlu0 %v1903, 56
        %v2802 = vpop.permute.xlu0 %2801
        %2803 = vrot.lane.b32.xlu0 %v1905, 56
        %v2804 = vpop.permute.xlu0 %2803
        %2805 = vrot.lane.b32.xlu0 %v1907, 56
        %v2806 = vpop.permute.xlu0 %2805
        %2807 = vrot.lane.b32.xlu0 %v1909, 56
        %v2808 = vpop.permute.xlu0 %2807
        %2809 = vrot.lane.b32.xlu0 %v1911, 56
        %v2810 = vpop.permute.xlu0 %2809
        %2811 = vrot.lane.b32.xlu0 %v1913, 56
        %v2812 = vpop.permute.xlu0 %2811
        %2813 = vrot.lane.b32.xlu0 %v1915, 56
        %v2814 = vpop.permute.xlu0 %2813
        %2815 = vrot.lane.b32.xlu0 %v1917, 56
        %v2816 = vpop.permute.xlu0 %2815
        %2817 = vrot.lane.b32.xlu0 %v1919, 56
        %v2818 = vpop.permute.xlu0 %2817
        %2819 = vrot.lane.b32.xlu0 %v1921, 56
        %v2820 = vpop.permute.xlu0 %2819
        %2821 = vrot.lane.b32.xlu0 %v1923, 56
        %v2822 = vpop.permute.xlu0 %2821
        %2823 = vrot.lane.b32.xlu0 %v1925, 56
        %v2824 = vpop.permute.xlu0 %2823
        %2825 = vrot.lane.b32.xlu0 %v1927, 56
        %v2826 = vpop.permute.xlu0 %2825
        %2827 = vrot.lane.b32.xlu0 %v1929, 56
        %v2828 = vpop.permute.xlu0 %2827
        %2829 = vrot.lane.b32.xlu0 %v1931, 56
        %v2830 = vpop.permute.xlu0 %2829
        %2831 = vrot.lane.b32.xlu0 %v1933, 56
        %v2832 = vpop.permute.xlu0 %2831
        %2833 = vrot.lane.b32.xlu0 %v1935, 56
        %v2834 = vpop.permute.xlu0 %2833
        %2835 = vrot.lane.b32.xlu0 %v2357, 56
        %v2836 = vpop.permute.xlu0 %2835
        %2837 = vrot.lane.b32.xlu0 %v2359, 56
        %v2838 = vpop.permute.xlu0 %2837
        %2839 = vrot.lane.b32.xlu0 %v2778, 56
        %v2840 = vpop.permute.xlu0 %2839
        %2841 = vrot.lane.b32.xlu0 %v1873, 56
        %v2842 = vpop.permute.xlu0 %2841
        %v2908 = vrot.slane %v1836, 2
        %v2909 = vrot.slane %v1837, 2
        %v2910 = vsel %vm2065, %v2908, %v2909
        %v2911 = vrot.slane %v1838, 2
        %v2912 = vsel %vm2065, %v2909, %v2911
        %v2913 = vrot.slane %v1839, 2
        %v2914 = vsel %vm2065, %v2911, %v2913
        %v2915 = vrot.slane %v1840, 2
        %v2916 = vsel %vm2065, %v2913, %v2915
        %v2917 = vrot.slane %v1841, 2
        %v2918 = vsel %vm2065, %v2915, %v2917
        %v2919 = vrot.slane %v1842, 2
        %v2920 = vsel %vm2065, %v2917, %v2919
        %v2921 = vrot.slane %v1843, 2
        %v2922 = vsel %vm2065, %v2919, %v2921
        %v2923 = vrot.slane %v1844, 2
        %v2924 = vsel %vm2065, %v2921, %v2923
        %v2925 = vrot.slane %v1845, 2
        %v2926 = vsel %vm2065, %v2923, %v2925
        %v2927 = vrot.slane %v1846, 2
        %v2928 = vsel %vm2065, %v2925, %v2927
        %v2929 = vrot.slane %v1847, 2
        %v2930 = vsel %vm2065, %v2927, %v2929
        %v2931 = vrot.slane %v1848, 2
        %v2932 = vsel %vm2065, %v2929, %v2931
        %v2933 = vrot.slane %v1849, 2
        %v2934 = vsel %vm2065, %v2931, %v2933
        %v2935 = vrot.slane %v1850, 2
        %v2936 = vsel %vm2065, %v2933, %v2935
        %v2937 = vrot.slane %v1851, 2
        %v2938 = vsel %vm2065, %v2935, %v2937
        %v2939 = vrot.slane %v1852, 2
        %v2940 = vsel %vm2065, %v2937, %v2939
        %v2941 = vrot.slane %v1853, 2
        %v2942 = vsel %vm2065, %v2939, %v2941
        %v2943 = vrot.slane %v1854, 2
        %v2944 = vsel %vm2065, %v2941, %v2943
        %v2945 = vrot.slane %v1855, 2
        %v2946 = vsel %vm2065, %v2943, %v2945
        %v2947 = vrot.slane %v1856, 2
        %v2948 = vsel %vm2065, %v2945, %v2947
        %v2949 = vrot.slane %v1857, 2
        %v2950 = vsel %vm2065, %v2947, %v2949
        %v2951 = vrot.slane %v1858, 2
        %v2952 = vsel %vm2065, %v2949, %v2951
        %v2953 = vrot.slane %v1859, 2
        %v2954 = vsel %vm2065, %v2951, %v2953
        %v2955 = vrot.slane %v1860, 2
        %v2956 = vsel %vm2065, %v2953, %v2955
        %v2957 = vrot.slane %v1861, 2
        %v2958 = vsel %vm2065, %v2955, %v2957
        %v2959 = vrot.slane %v1862, 2
        %v2960 = vsel %vm2065, %v2957, %v2959
        %v2961 = vrot.slane %v1863, 2
        %v2962 = vsel %vm2065, %v2959, %v2961
        %v2963 = vrot.slane %v1864, 2
        %v2964 = vsel %vm2065, %v2961, %v2963
        %v2965 = vrot.slane %v1865, 2
        %v2966 = vsel %vm2065, %v2963, %v2965
        %v2967 = vrot.slane %v1866, 2
        %v2968 = vsel %vm2065, %v2965, %v2967
        %v2969 = vrot.slane %v1867, 2
        %v2970 = vsel %vm2065, %v2967, %v2969
        %v2971 = vrot.slane %v1868, 2
        %v2972 = vsel %vm2065, %v2969, %v2971
        %2973 = vrot.lane.b32.xlu0 %v2910, 64
        %v2974 = vpop.permute.xlu0 %2973
        %2975 = vrot.lane.b32.xlu0 %v2912, 64
        %v2976 = vpop.permute.xlu0 %2975
        %2977 = vrot.lane.b32.xlu0 %v2914, 64
        %v2978 = vpop.permute.xlu0 %2977
        %2979 = vrot.lane.b32.xlu0 %v2916, 64
        %v2980 = vpop.permute.xlu0 %2979
        %2981 = vrot.lane.b32.xlu0 %v2918, 64
        %v2982 = vpop.permute.xlu0 %2981
        %2983 = vrot.lane.b32.xlu0 %v2920, 64
        %v2984 = vpop.permute.xlu0 %2983
        %2985 = vrot.lane.b32.xlu0 %v2922, 64
        %v2986 = vpop.permute.xlu0 %2985
        %2987 = vrot.lane.b32.xlu0 %v2924, 64
        %v2988 = vpop.permute.xlu0 %2987
        %2989 = vrot.lane.b32.xlu0 %v2926, 64
        %v2990 = vpop.permute.xlu0 %2989
        %2991 = vrot.lane.b32.xlu0 %v2928, 64
        %v2992 = vpop.permute.xlu0 %2991
        %2993 = vrot.lane.b32.xlu0 %v2930, 64
        %v2994 = vpop.permute.xlu0 %2993
        %2995 = vrot.lane.b32.xlu0 %v2932, 64
        %v2996 = vpop.permute.xlu0 %2995
        %2997 = vrot.lane.b32.xlu0 %v2934, 64
        %v2998 = vpop.permute.xlu0 %2997
        %2999 = vrot.lane.b32.xlu0 %v2936, 64
        %v3000 = vpop.permute.xlu0 %2999
        %3001 = vrot.lane.b32.xlu0 %v2938, 64
        %v3002 = vpop.permute.xlu0 %3001
        %3003 = vrot.lane.b32.xlu0 %v2940, 64
        %v3004 = vpop.permute.xlu0 %3003
        %3005 = vrot.lane.b32.xlu0 %v2942, 64
        %v3006 = vpop.permute.xlu0 %3005
        %3007 = vrot.lane.b32.xlu0 %v2944, 64
        %v3008 = vpop.permute.xlu0 %3007
        %3009 = vrot.lane.b32.xlu0 %v2946, 64
        %v3010 = vpop.permute.xlu0 %3009
        %3011 = vrot.lane.b32.xlu0 %v2948, 64
        %v3012 = vpop.permute.xlu0 %3011
        %3013 = vrot.lane.b32.xlu0 %v2950, 64
        %v3014 = vpop.permute.xlu0 %3013
        %3015 = vrot.lane.b32.xlu0 %v2952, 64
        %v3016 = vpop.permute.xlu0 %3015
        %3017 = vrot.lane.b32.xlu0 %v2954, 64
        %v3018 = vpop.permute.xlu0 %3017
        %3019 = vrot.lane.b32.xlu0 %v2956, 64
        %v3020 = vpop.permute.xlu0 %3019
        %3021 = vrot.lane.b32.xlu0 %v2958, 64
        %v3022 = vpop.permute.xlu0 %3021
        %3023 = vrot.lane.b32.xlu0 %v2960, 64
        %v3024 = vpop.permute.xlu0 %3023
        %3025 = vrot.lane.b32.xlu0 %v2962, 64
        %v3026 = vpop.permute.xlu0 %3025
        %3027 = vrot.lane.b32.xlu0 %v2964, 64
        %v3028 = vpop.permute.xlu0 %3027
        %3029 = vrot.lane.b32.xlu0 %v2966, 64
        %v3030 = vpop.permute.xlu0 %3029
        %3031 = vrot.lane.b32.xlu0 %v2968, 64
        %v3032 = vpop.permute.xlu0 %3031
        %3033 = vrot.lane.b32.xlu0 %v2970, 64
        %v3034 = vpop.permute.xlu0 %3033
        %3035 = vrot.lane.b32.xlu0 %v2972, 64
        %v3036 = vpop.permute.xlu0 %3035
        %v3069 = vsel %vm309, %v1545, %v1937
        %v3070 = vsel %vm309, %v1546, %v1939
        %v3071 = vsel %vm309, %v1547, %v1941
        %v3072 = vsel %vm309, %v1548, %v1943
        %v3073 = vsel %vm309, %v1549, %v1945
        %v3074 = vsel %vm309, %v1550, %v1947
        %v3075 = vsel %vm309, %v1551, %v1949
        %v3076 = vsel %vm309, %v1552, %v1951
        %v3077 = vsel %vm309, %v1553, %v1953
        %v3078 = vsel %vm309, %v1554, %v1955
        %v3079 = vsel %vm309, %v1555, %v1957
        %v3080 = vsel %vm309, %v1556, %v1959
        %v3081 = vsel %vm309, %v1557, %v1961
        %v3082 = vsel %vm309, %v1558, %v1963
        %v3083 = vsel %vm309, %v1559, %v1965
        %v3084 = vsel %vm309, %v1560, %v1967
        %v3085 = vsel %vm309, %v1561, %v1969
        %v3086 = vsel %vm309, %v1562, %v1971
        %v3087 = vsel %vm309, %v1563, %v1973
        %v3088 = vsel %vm309, %v1564, %v1975
        %v3089 = vsel %vm309, %v1565, %v1977
        %v3090 = vsel %vm309, %v1566, %v1979
        %v3091 = vsel %vm309, %v1567, %v1981
        %v3092 = vsel %vm309, %v1568, %v1983
        %v3093 = vsel %vm309, %v1569, %v1985
        %v3094 = vsel %vm309, %v1570, %v1987
        %v3095 = vsel %vm309, %v1571, %v1989
        %v3096 = vsel %vm309, %v1572, %v1991
        %v3097 = vsel %vm309, %v1573, %v1993
        %v3098 = vsel %vm309, %v1574, %v1995
        %v3099 = vsel %vm309, %v1575, %v1997
        %v3100 = vsel %vm309, %v1576, %v1999
        %vm3101 = vcmask 130048
        %v3102 = vsel %vm3101, %v3069, %v2132
        %v3103 = vsel %vm3101, %v3070, %v2134
        %v3104 = vsel %vm3101, %v3071, %v2136
        %v3105 = vsel %vm3101, %v3072, %v2138
        %v3106 = vsel %vm3101, %v3073, %v2140
        %v3107 = vsel %vm3101, %v3074, %v2142
        %v3108 = vsel %vm3101, %v3075, %v2144
        %v3109 = vsel %vm3101, %v3076, %v2146
        %v3110 = vsel %vm3101, %v3077, %v2148
        %v3111 = vsel %vm3101, %v3078, %v2150
        %v3112 = vsel %vm3101, %v3079, %v2152
        %v3113 = vsel %vm3101, %v3080, %v2154
        %v3114 = vsel %vm3101, %v3081, %v2156
        %v3115 = vsel %vm3101, %v3082, %v2158
        %v3116 = vsel %vm3101, %v3083, %v2160
        %v3117 = vsel %vm3101, %v3084, %v2162
        %v3118 = vsel %vm3101, %v3085, %v2164
        %v3119 = vsel %vm3101, %v3086, %v2166
        %v3120 = vsel %vm3101, %v3087, %v2168
        %v3121 = vsel %vm3101, %v3088, %v2170
        %v3122 = vsel %vm3101, %v3089, %v2172
        %v3123 = vsel %vm3101, %v3090, %v2174
        %v3124 = vsel %vm3101, %v3091, %v2176
        %v3125 = vsel %vm3101, %v3092, %v2178
        %v3126 = vsel %vm3101, %v3093, %v2180
        %v3127 = vsel %vm3101, %v3094, %v2182
        %v3128 = vsel %vm3101, %v3095, %v2184
        %v3129 = vsel %vm3101, %v3096, %v2186
        %v3130 = vsel %vm3101, %v3097, %v2188
        %v3131 = vsel %vm3101, %v3098, %v2190
        %v3132 = vsel %vm3101, %v3099, %v2192
        %v3133 = vsel %vm3101, %v3100, %v2194
        %vm3134 = vcmask 195584
        %v3135 = vsel %vm3134, %v3102, %v2260
        %v3136 = vsel %vm3134, %v3103, %v2262
        %v3137 = vsel %vm3134, %v3104, %v2264
        %v3138 = vsel %vm3134, %v3105, %v2266
        %v3139 = vsel %vm3134, %v3106, %v2268
        %v3140 = vsel %vm3134, %v3107, %v2270
        %v3141 = vsel %vm3134, %v3108, %v2272
        %v3142 = vsel %vm3134, %v3109, %v2274
        %v3143 = vsel %vm3134, %v3110, %v2276
        %v3144 = vsel %vm3134, %v3111, %v2278
        %v3145 = vsel %vm3134, %v3112, %v2280
        %v3146 = vsel %vm3134, %v3113, %v2282
        %v3147 = vsel %vm3134, %v3114, %v2284
        %v3148 = vsel %vm3134, %v3115, %v2286
        %v3149 = vsel %vm3134, %v3116, %v2288
        %v3150 = vsel %vm3134, %v3117, %v2290
        %v3151 = vsel %vm3134, %v3118, %v2292
        %v3152 = vsel %vm3134, %v3119, %v2294
        %v3153 = vsel %vm3134, %v3120, %v2296
        %v3154 = vsel %vm3134, %v3121, %v2298
        %v3155 = vsel %vm3134, %v3122, %v2300
        %v3156 = vsel %vm3134, %v3123, %v2302
        %v3157 = vsel %vm3134, %v3124, %v2304
        %v3158 = vsel %vm3134, %v3125, %v2306
        %v3159 = vsel %vm3134, %v3126, %v2308
        %v3160 = vsel %vm3134, %v3127, %v2310
        %v3161 = vsel %vm3134, %v3128, %v2312
        %v3162 = vsel %vm3134, %v3129, %v2314
        %v3163 = vsel %vm3134, %v3130, %v2316
        %v3164 = vsel %vm3134, %v3131, %v2318
        %v3165 = vsel %vm3134, %v3132, %v2320
        %v3166 = vsel %vm3134, %v3133, %v2322
        %vm3167 = vcmask 261120
        %v3168 = vsel %vm3167, %v3135, %v2361
        %v3169 = vsel %vm3167, %v3136, %v2363
        %v3170 = vsel %vm3167, %v3137, %v2365
        %v3171 = vsel %vm3167, %v3138, %v2367
        %v3172 = vsel %vm3167, %v3139, %v2369
        %v3173 = vsel %vm3167, %v3140, %v2371
        %v3174 = vsel %vm3167, %v3141, %v2373
        %v3175 = vsel %vm3167, %v3142, %v2375
        %v3176 = vsel %vm3167, %v3143, %v2377
        %v3177 = vsel %vm3167, %v3144, %v2379
        %v3178 = vsel %vm3167, %v3145, %v2381
        %v3179 = vsel %vm3167, %v3146, %v2383
        %v3180 = vsel %vm3167, %v3147, %v2385
        %v3181 = vsel %vm3167, %v3148, %v2387
        %v3182 = vsel %vm3167, %v3149, %v2389
        %v3183 = vsel %vm3167, %v3150, %v2391
        %v3184 = vsel %vm3167, %v3151, %v2393
        %v3185 = vsel %vm3167, %v3152, %v2395
        %v3186 = vsel %vm3167, %v3153, %v2397
        %v3187 = vsel %vm3167, %v3154, %v2399
        %v3188 = vsel %vm3167, %v3155, %v2401
        %v3189 = vsel %vm3167, %v3156, %v2403
        %v3190 = vsel %vm3167, %v3157, %v2405
        %v3191 = vsel %vm3167, %v3158, %v2407
        %v3192 = vsel %vm3167, %v3159, %v2409
        %v3193 = vsel %vm3167, %v3160, %v2411
        %v3194 = vsel %vm3167, %v3161, %v2413
        %v3195 = vsel %vm3167, %v3162, %v2415
        %v3196 = vsel %vm3167, %v3163, %v2417
        %v3197 = vsel %vm3167, %v3164, %v2419
        %v3198 = vsel %vm3167, %v3165, %v2421
        %v3199 = vsel %vm3167, %v3166, %v2423
        %vm3200 = vcmask 326656
        %v3201 = vsel %vm3200, %v3168, %v2555
        %v3202 = vsel %vm3200, %v3169, %v2557
        %v3203 = vsel %vm3200, %v3170, %v2559
        %v3204 = vsel %vm3200, %v3171, %v2561
        %v3205 = vsel %vm3200, %v3172, %v2563
        %v3206 = vsel %vm3200, %v3173, %v2565
        %v3207 = vsel %vm3200, %v3174, %v2567
        %v3208 = vsel %vm3200, %v3175, %v2569
        %v3209 = vsel %vm3200, %v3176, %v2571
        %v3210 = vsel %vm3200, %v3177, %v2573
        %v3211 = vsel %vm3200, %v3178, %v2575
        %v3212 = vsel %vm3200, %v3179, %v2577
        %v3213 = vsel %vm3200, %v3180, %v2579
        %v3214 = vsel %vm3200, %v3181, %v2581
        %v3215 = vsel %vm3200, %v3182, %v2583
        %v3216 = vsel %vm3200, %v3183, %v2585
        %v3217 = vsel %vm3200, %v3184, %v2587
        %v3218 = vsel %vm3200, %v3185, %v2589
        %v3219 = vsel %vm3200, %v3186, %v2591
        %v3220 = vsel %vm3200, %v3187, %v2593
        %v3221 = vsel %vm3200, %v3188, %v2595
        %v3222 = vsel %vm3200, %v3189, %v2597
        %v3223 = vsel %vm3200, %v3190, %v2599
        %v3224 = vsel %vm3200, %v3191, %v2601
        %v3225 = vsel %vm3200, %v3192, %v2603
        %v3226 = vsel %vm3200, %v3193, %v2605
        %v3227 = vsel %vm3200, %v3194, %v2607
        %v3228 = vsel %vm3200, %v3195, %v2609
        %v3229 = vsel %vm3200, %v3196, %v2611
        %v3230 = vsel %vm3200, %v3197, %v2613
        %v3231 = vsel %vm3200, %v3198, %v2615
        %v3232 = vsel %vm3200, %v3199, %v2617
        %vm3233 = vcmask 392192
        %v3234 = vsel %vm3233, %v3201, %v2683
        %v3235 = vsel %vm3233, %v3202, %v2685
        %v3236 = vsel %vm3233, %v3203, %v2687
        %v3237 = vsel %vm3233, %v3204, %v2689
        %v3238 = vsel %vm3233, %v3205, %v2691
        %v3239 = vsel %vm3233, %v3206, %v2693
        %v3240 = vsel %vm3233, %v3207, %v2695
        %v3241 = vsel %vm3233, %v3208, %v2697
        %v3242 = vsel %vm3233, %v3209, %v2699
        %v3243 = vsel %vm3233, %v3210, %v2701
        %v3244 = vsel %vm3233, %v3211, %v2703
        %v3245 = vsel %vm3233, %v3212, %v2705
        %v3246 = vsel %vm3233, %v3213, %v2707
        %v3247 = vsel %vm3233, %v3214, %v2709
        %v3248 = vsel %vm3233, %v3215, %v2711
        %v3249 = vsel %vm3233, %v3216, %v2713
        %v3250 = vsel %vm3233, %v3217, %v2715
        %v3251 = vsel %vm3233, %v3218, %v2717
        %v3252 = vsel %vm3233, %v3219, %v2719
        %v3253 = vsel %vm3233, %v3220, %v2721
        %v3254 = vsel %vm3233, %v3221, %v2723
        %v3255 = vsel %vm3233, %v3222, %v2725
        %v3256 = vsel %vm3233, %v3223, %v2727
        %v3257 = vsel %vm3233, %v3224, %v2729
        %v3258 = vsel %vm3233, %v3225, %v2731
        %v3259 = vsel %vm3233, %v3226, %v2733
        %v3260 = vsel %vm3233, %v3227, %v2735
        %v3261 = vsel %vm3233, %v3228, %v2737
        %v3262 = vsel %vm3233, %v3229, %v2739
        %v3263 = vsel %vm3233, %v3230, %v2741
        %v3264 = vsel %vm3233, %v3231, %v2743
        %v3265 = vsel %vm3233, %v3232, %v2745
        %vm3266 = vcmask 457728
        %v3267 = vsel %vm3266, %v3234, %v2780
        %v3268 = vsel %vm3266, %v3235, %v2782
        %v3269 = vsel %vm3266, %v3236, %v2784
        %v3270 = vsel %vm3266, %v3237, %v2786
        %v3271 = vsel %vm3266, %v3238, %v2788
        %v3272 = vsel %vm3266, %v3239, %v2790
        %v3273 = vsel %vm3266, %v3240, %v2792
        %v3274 = vsel %vm3266, %v3241, %v2794
        %v3275 = vsel %vm3266, %v3242, %v2796
        %v3276 = vsel %vm3266, %v3243, %v2798
        %v3277 = vsel %vm3266, %v3244, %v2800
        %v3278 = vsel %vm3266, %v3245, %v2802
        %v3279 = vsel %vm3266, %v3246, %v2804
        %v3280 = vsel %vm3266, %v3247, %v2806
        %v3281 = vsel %vm3266, %v3248, %v2808
        %v3282 = vsel %vm3266, %v3249, %v2810
        %v3283 = vsel %vm3266, %v3250, %v2812
        %v3284 = vsel %vm3266, %v3251, %v2814
        %v3285 = vsel %vm3266, %v3252, %v2816
        %v3286 = vsel %vm3266, %v3253, %v2818
        %v3287 = vsel %vm3266, %v3254, %v2820
        %v3288 = vsel %vm3266, %v3255, %v2822
        %v3289 = vsel %vm3266, %v3256, %v2824
        %v3290 = vsel %vm3266, %v3257, %v2826
        %v3291 = vsel %vm3266, %v3258, %v2828
        %v3292 = vsel %vm3266, %v3259, %v2830
        %v3293 = vsel %vm3266, %v3260, %v2832
        %v3294 = vsel %vm3266, %v3261, %v2834
        %v3295 = vsel %vm3266, %v3262, %v2836
        %v3296 = vsel %vm3266, %v3263, %v2838
        %v3297 = vsel %vm3266, %v3264, %v2840
        %v3298 = vsel %vm3266, %v3265, %v2842
        %vm3299 = vcmask 523264
        %v3300 = vsel %vm3299, %v3267, %v2974
        %v3301 = vsel %vm3299, %v3268, %v2976
        %v3302 = vsel %vm3299, %v3269, %v2978
        %v3303 = vsel %vm3299, %v3270, %v2980
        %v3304 = vsel %vm3299, %v3271, %v2982
        %v3305 = vsel %vm3299, %v3272, %v2984
        %v3306 = vsel %vm3299, %v3273, %v2986
        %v3307 = vsel %vm3299, %v3274, %v2988
        %v3308 = vsel %vm3299, %v3275, %v2990
        %v3309 = vsel %vm3299, %v3276, %v2992
        %v3310 = vsel %vm3299, %v3277, %v2994
        %v3311 = vsel %vm3299, %v3278, %v2996
        %v3312 = vsel %vm3299, %v3279, %v2998
        %v3313 = vsel %vm3299, %v3280, %v3000
        %v3314 = vsel %vm3299, %v3281, %v3002
        %v3315 = vsel %vm3299, %v3282, %v3004
        %v3316 = vsel %vm3299, %v3283, %v3006
        %v3317 = vsel %vm3299, %v3284, %v3008
        %v3318 = vsel %vm3299, %v3285, %v3010
        %v3319 = vsel %vm3299, %v3286, %v3012
        %v3320 = vsel %vm3299, %v3287, %v3014
        %v3321 = vsel %vm3299, %v3288, %v3016
        %v3322 = vsel %vm3299, %v3289, %v3018
        %v3323 = vsel %vm3299, %v3290, %v3020
        %v3324 = vsel %vm3299, %v3291, %v3022
        %v3325 = vsel %vm3299, %v3292, %v3024
        %v3326 = vsel %vm3299, %v3293, %v3026
        %v3327 = vsel %vm3299, %v3294, %v3028
        %v3328 = vsel %vm3299, %v3295, %v3030
        %v3329 = vsel %vm3299, %v3296, %v3032
        %v3330 = vsel %vm3299, %v3297, %v3034
        %v3331 = vsel %vm3299, %v3298, %v3036
        %v3332 = vld [vmem:[%s3] sm:$0xff]
        %v3333 = vld [vmem:[%s3 + $0x8] sm:$0xff]
        %v3334 = vld [vmem:[%s3 + $0x10] sm:$0xff]
        %v3335 = vld [vmem:[%s3 + $0x18] sm:$0xff]
        %v3336 = vld [vmem:[%s3 + $0x20] sm:$0xff]
        %v3337 = vld [vmem:[%s3 + $0x28] sm:$0xff]
        %v3338 = vld [vmem:[%s3 + $0x30] sm:$0xff]
        %v3339 = vld [vmem:[%s3 + $0x38] sm:$0xff]
        %v3340 = vld [vmem:[%s3 + $0x40] sm:$0xff]
        %vm3341 = vcmask 588800
        %v3343 = vsel %vm3341, %v3300, 0
        %v3346 = vsel %vm3341, %v3301, 0
        %v3349 = vsel %vm3341, %v3302, 0
        %v3352 = vsel %vm3341, %v3303, 0
        %v3355 = vsel %vm3341, %v3304, 0
        %v3358 = vsel %vm3341, %v3305, 0
        %v3361 = vsel %vm3341, %v3306, 0
        %v3364 = vsel %vm3341, %v3307, 0
        %v3367 = vsel %vm3341, %v3308, 0
        %v3370 = vsel %vm3341, %v3309, 0
        %v3373 = vsel %vm3341, %v3310, 0
        %v3376 = vsel %vm3341, %v3311, 0
        %v3379 = vsel %vm3341, %v3312, 0
        %v3382 = vsel %vm3341, %v3313, 0
        %v3385 = vsel %vm3341, %v3314, 0
        %v3388 = vsel %vm3341, %v3315, 0
        %v3391 = vsel %vm3341, %v3316, 0
        %v3394 = vsel %vm3341, %v3317, 0
        %v3397 = vsel %vm3341, %v3318, 0
        %v3400 = vsel %vm3341, %v3319, 0
        %v3403 = vsel %vm3341, %v3320, 0
        %v3406 = vsel %vm3341, %v3321, 0
        %v3409 = vsel %vm3341, %v3322, 0
        %v3412 = vsel %vm3341, %v3323, 0
        %v3415 = vsel %vm3341, %v3324, 0
        %v3418 = vsel %vm3341, %v3325, 0
        %v3421 = vsel %vm3341, %v3326, 0
        %v3424 = vsel %vm3341, %v3327, 0
        %v3427 = vsel %vm3341, %v3328, 0
        %v3430 = vsel %vm3341, %v3329, 0
        %v3433 = vsel %vm3341, %v3330, 0
        %v3436 = vsel %vm3341, %v3331, 0
        %3438 = vmatprep.subr.mxu0 0.0
        %3439 = vmatpush1.msra.mxu0 %v3332
        %3440 = vmatprep.subr.mxu0 0.0
        %3441 = vmatpush1.msra.mxu0 %v3333
        %3442 = vmatprep.subr.mxu0 0.0
        %3443 = vmatpush1.msra.mxu0 %v3334
        %3444 = vmatprep.subr.mxu0 0.0
        %3445 = vmatpush1.msra.mxu0 %v3335
        %3446 = vmatprep.subr.mxu0 0.0
        %3447 = vmatpush1.msra.mxu0 %v3336
        %3448 = vmatprep.subr.mxu0 0.0
        %3449 = vmatpush1.msra.mxu0 %v3337
        %3450 = vmatprep.subr.mxu0 0.0
        %3451 = vmatpush1.msra.mxu0 %v3338
        %3452 = vmatprep.subr.mxu0 0.0
        %3453 = vmatpush1.msra.mxu0 %v3339
        %3454 = vmatprep.subr.mxu0 0.0
        %3455 = vmatpush1.msra.mxu0 %v3340
        %3456 = vmatprep.subr.mxu0 0.0
        %3457 = vmatpush1.msra.mxu0 0.0
        %3458 = vmatprep.subr.mxu0 0.0
        %3459 = vmatpush1.msra.mxu0 0.0
        %3460 = vmatprep.subr.mxu0 0.0
        %3461 = vmatpush1.msra.mxu0 0.0
        %3462 = vmatprep.subr.mxu0 0.0
        %3463 = vmatpush1.msra.mxu0 0.0
        %3464 = vmatprep.subr.mxu0 0.0
        %3465 = vmatpush1.msra.mxu0 0.0
        %3466 = vmatprep.subr.mxu0 0.0
        %3467 = vmatpush1.msra.mxu0 0.0
        %3468 = vmatprep.subr.mxu0 0.0
        %3469 = vmatpush1.msra.mxu0 0.0
        %3470 = vmatprep.subr.mxu0 0.0
        %3471 = vmatpush1.msra.mxu0 0.0
        %3472 = vmatprep.subr.mxu0 0.0
        %3473 = vmatpush1.msra.mxu0 0.0
        %3474 = vmatprep.subr.mxu0 0.0
        %3475 = vmatpush1.msra.mxu0 0.0
        %3476 = vmatprep.subr.mxu0 0.0
        %3477 = vmatpush1.msra.mxu0 0.0
        %3478 = vmatprep.subr.mxu0 0.0
        %3479 = vmatpush1.msra.mxu0 0.0
        %3480 = vmatprep.subr.mxu0 0.0
        %3481 = vmatpush1.msra.mxu0 0.0
        %3482 = vmatprep.subr.mxu0 0.0
        %3483 = vmatpush1.msra.mxu0 0.0
        %3484 = vmatprep.subr.mxu0 0.0
        %3485 = vmatpush1.msra.mxu0 0.0
        %3486 = vmatprep.subr.mxu0 0.0
        %3487 = vmatpush1.msra.mxu0 0.0
        %3488 = vmatprep.subr.mxu0 0.0
        %3489 = vmatpush1.msra.mxu0 0.0
        %3490 = vmatprep.subr.mxu0 0.0
        %3491 = vmatpush1.msra.mxu0 0.0
        %3492 = vmatprep.subr.mxu0 0.0
        %3493 = vmatpush1.msra.mxu0 0.0
        %3494 = vmatprep.subr.mxu0 0.0
        %3495 = vmatpush1.msra.mxu0 0.0
        %3496 = vmatprep.subr.mxu0 0.0
        %3497 = vmatpush1.msra.mxu0 0.0
        %3498 = vmatprep.subr.mxu0 0.0
        %3499 = vmatpush1.msra.mxu0 0.0
        %3500 = vmatprep.subr.mxu0 0.0
        %3501 = vmatpush1.msra.mxu0 0.0
        %3502 = vmatprep.mubr.f32.mxu0 0.0
        %3503 = vmatmul.mubr.f32.gmra.mrb[0].mxu0 %v3343
        %v3504 = vpop.f32.mrb[0].mxu0
        %v3505 = vadd.f32 0.0, %v3504
        %v3506 = vpop.f32.mrb[0].mxu0
        %3507 = vmatprep.mubr.f32.mxu0 0.0
        %3508 = vmatmul.mubr.f32.gmra.mrb[0].mxu0 %v3346
        %v3509 = vpop.f32.mrb[0].mxu0
        %v3510 = vadd.f32 0.0, %v3509
        %v3511 = vpop.f32.mrb[0].mxu0
        %3512 = vmatprep.mubr.f32.mxu0 0.0
        %3513 = vmatmul.mubr.f32.gmra.mrb[0].mxu0 %v3349
        %v3514 = vpop.f32.mrb[0].mxu0
        %v3515 = vadd.f32 0.0, %v3514
        %v3516 = vpop.f32.mrb[0].mxu0
        %3517 = vmatprep.mubr.f32.mxu0 0.0
        %3518 = vmatmul.mubr.f32.gmra.mrb[0].mxu0 %v3352
        %v3519 = vpop.f32.mrb[0].mxu0
        %v3520 = vadd.f32 0.0, %v3519
        %v3521 = vpop.f32.mrb[0].mxu0
        %3522 = vmatprep.mubr.f32.mxu0 0.0
        %3523 = vmatmul.mubr.f32.gmra.mrb[0].mxu0 %v3355
        %v3524 = vpop.f32.mrb[0].mxu0
        %v3525 = vadd.f32 0.0, %v3524
        %v3526 = vpop.f32.mrb[0].mxu0
        %3527 = vmatprep.mubr.f32.mxu0 0.0
        %3528 = vmatmul.mubr.f32.gmra.mrb[0].mxu0 %v3358
        %v3529 = vpop.f32.mrb[0].mxu0
        %v3530 = vadd.f32 0.0, %v3529
        %v3531 = vpop.f32.mrb[0].mxu0
        %3532 = vmatprep.mubr.f32.mxu0 0.0
        %3533 = vmatmul.mubr.f32.gmra.mrb[0].mxu0 %v3361
        %v3534 = vpop.f32.mrb[0].mxu0
        %v3535 = vadd.f32 0.0, %v3534
        %v3536 = vpop.f32.mrb[0].mxu0
        %3537 = vmatprep.mubr.f32.mxu0 0.0
        %3538 = vmatmul.mubr.f32.gmra.mrb[0].mxu0 %v3364
        %v3539 = vpop.f32.mrb[0].mxu0
        %v3540 = vadd.f32 0.0, %v3539
        %v3541 = vpop.f32.mrb[0].mxu0
        %3542 = vmatprep.mubr.f32.mxu0 0.0
        %3543 = vmatmul.mubr.f32.gmra.mrb[0].mxu0 %v3367
        %v3544 = vpop.f32.mrb[0].mxu0
        %v3545 = vadd.f32 0.0, %v3544
        %v3546 = vpop.f32.mrb[0].mxu0
        %3547 = vmatprep.mubr.f32.mxu0 0.0
        %3548 = vmatmul.mubr.f32.gmra.mrb[0].mxu0 %v3370
        %v3549 = vpop.f32.mrb[0].mxu0
        %v3550 = vadd.f32 0.0, %v3549
        %v3551 = vpop.f32.mrb[0].mxu0
        %3552 = vmatprep.mubr.f32.mxu0 0.0
        %3553 = vmatmul.mubr.f32.gmra.mrb[0].mxu0 %v3373
        %v3554 = vpop.f32.mrb[0].mxu0
        %v3555 = vadd.f32 0.0, %v3554
        %v3556 = vpop.f32.mrb[0].mxu0
        %3557 = vmatprep.mubr.f32.mxu0 0.0
        %3558 = vmatmul.mubr.f32.gmra.mrb[0].mxu0 %v3376
        %v3559 = vpop.f32.mrb[0].mxu0
        %v3560 = vadd.f32 0.0, %v3559
        %v3561 = vpop.f32.mrb[0].mxu0
        %3562 = vmatprep.mubr.f32.mxu0 0.0
        %3563 = vmatmul.mubr.f32.gmra.mrb[0].mxu0 %v3379
        %v3564 = vpop.f32.mrb[0].mxu0
        %v3565 = vadd.f32 0.0, %v3564
        %v3566 = vpop.f32.mrb[0].mxu0
        %3567 = vmatprep.mubr.f32.mxu0 0.0
        %3568 = vmatmul.mubr.f32.gmra.mrb[0].mxu0 %v3382
        %v3569 = vpop.f32.mrb[0].mxu0
        %v3570 = vadd.f32 0.0, %v3569
        %v3571 = vpop.f32.mrb[0].mxu0
        %3572 = vmatprep.mubr.f32.mxu0 0.0
        %3573 = vmatmul.mubr.f32.gmra.mrb[0].mxu0 %v3385
        %v3574 = vpop.f32.mrb[0].mxu0
        %v3575 = vadd.f32 0.0, %v3574
        %v3576 = vpop.f32.mrb[0].mxu0
        %3577 = vmatprep.mubr.f32.mxu0 0.0
        %3578 = vmatmul.mubr.f32.gmra.mrb[0].mxu0 %v3388
        %v3579 = vpop.f32.mrb[0].mxu0
        %v3580 = vadd.f32 0.0, %v3579
        %v3581 = vpop.f32.mrb[0].mxu0
        %3582 = vmatprep.mubr.f32.mxu0 0.0
        %3583 = vmatmul.mubr.f32.gmra.mrb[0].mxu0 %v3391
        %v3584 = vpop.f32.mrb[0].mxu0
        %v3585 = vadd.f32 0.0, %v3584
        %v3586 = vpop.f32.mrb[0].mxu0
        %3587 = vmatprep.mubr.f32.mxu0 0.0
        %3588 = vmatmul.mubr.f32.gmra.mrb[0].mxu0 %v3394
        %v3589 = vpop.f32.mrb[0].mxu0
        %v3590 = vadd.f32 0.0, %v3589
        %v3591 = vpop.f32.mrb[0].mxu0
        %3592 = vmatprep.mubr.f32.mxu0 0.0
        %3593 = vmatmul.mubr.f32.gmra.mrb[0].mxu0 %v3397
        %v3594 = vpop.f32.mrb[0].mxu0
        %v3595 = vadd.f32 0.0, %v3594
        %v3596 = vpop.f32.mrb[0].mxu0
        %3597 = vmatprep.mubr.f32.mxu0 0.0
        %3598 = vmatmul.mubr.f32.gmra.mrb[0].mxu0 %v3400
        %v3599 = vpop.f32.mrb[0].mxu0
        %v3600 = vadd.f32 0.0, %v3599
        %v3601 = vpop.f32.mrb[0].mxu0
        %3602 = vmatprep.mubr.f32.mxu0 0.0
        %3603 = vmatmul.mubr.f32.gmra.mrb[0].mxu0 %v3403
        %v3604 = vpop.f32.mrb[0].mxu0
        %v3605 = vadd.f32 0.0, %v3604
        %v3606 = vpop.f32.mrb[0].mxu0
        %3607 = vmatprep.mubr.f32.mxu0 0.0
        %3608 = vmatmul.mubr.f32.gmra.mrb[0].mxu0 %v3406
        %v3609 = vpop.f32.mrb[0].mxu0
        %v3610 = vadd.f32 0.0, %v3609
        %v3611 = vpop.f32.mrb[0].mxu0
        %3612 = vmatprep.mubr.f32.mxu0 0.0
        %3613 = vmatmul.mubr.f32.gmra.mrb[0].mxu0 %v3409
        %v3614 = vpop.f32.mrb[0].mxu0
        %v3615 = vadd.f32 0.0, %v3614
        %v3616 = vpop.f32.mrb[0].mxu0
        %3617 = vmatprep.mubr.f32.mxu0 0.0
        %3618 = vmatmul.mubr.f32.gmra.mrb[0].mxu0 %v3412
        %v3619 = vpop.f32.mrb[0].mxu0
        %v3620 = vadd.f32 0.0, %v3619
        %v3621 = vpop.f32.mrb[0].mxu0
        %3622 = vmatprep.mubr.f32.mxu0 0.0
        %3623 = vmatmul.mubr.f32.gmra.mrb[0].mxu0 %v3415
        %v3624 = vpop.f32.mrb[0].mxu0
        %v3625 = vadd.f32 0.0, %v3624
        %v3626 = vpop.f32.mrb[0].mxu0
        %3627 = vmatprep.mubr.f32.mxu0 0.0
        %3628 = vmatmul.mubr.f32.gmra.mrb[0].mxu0 %v3418
        %v3629 = vpop.f32.mrb[0].mxu0
        %v3630 = vadd.f32 0.0, %v3629
        %v3631 = vpop.f32.mrb[0].mxu0
        %3632 = vmatprep.mubr.f32.mxu0 0.0
        %3633 = vmatmul.mubr.f32.gmra.mrb[0].mxu0 %v3421
        %v3634 = vpop.f32.mrb[0].mxu0
        %v3635 = vadd.f32 0.0, %v3634
        %v3636 = vpop.f32.mrb[0].mxu0
        %3637 = vmatprep.mubr.f32.mxu0 0.0
        %3638 = vmatmul.mubr.f32.gmra.mrb[0].mxu0 %v3424
        %v3639 = vpop.f32.mrb[0].mxu0
        %v3640 = vadd.f32 0.0, %v3639
        %v3641 = vpop.f32.mrb[0].mxu0
        %3642 = vmatprep.mubr.f32.mxu0 0.0
        %3643 = vmatmul.mubr.f32.gmra.mrb[0].mxu0 %v3427
        %v3644 = vpop.f32.mrb[0].mxu0
        %v3645 = vadd.f32 0.0, %v3644
        %v3646 = vpop.f32.mrb[0].mxu0
        %3647 = vmatprep.mubr.f32.mxu0 0.0
        %3648 = vmatmul.mubr.f32.gmra.mrb[0].mxu0 %v3430
        %v3649 = vpop.f32.mrb[0].mxu0
        %v3650 = vadd.f32 0.0, %v3649
        %v3651 = vpop.f32.mrb[0].mxu0
        %3652 = vmatprep.mubr.f32.mxu0 0.0
        %3653 = vmatmul.mubr.f32.gmra.mrb[0].mxu0 %v3433
        %v3654 = vpop.f32.mrb[0].mxu0
        %v3655 = vadd.f32 0.0, %v3654
        %v3656 = vpop.f32.mrb[0].mxu0
        %3657 = vmatprep.mubr.f32.mxu0 0.0
        %3658 = vmatmul.mubr.f32.gmra.mrb[0].mxu0 %v3436
        %v3659 = vpop.f32.mrb[0].mxu0
        %v3660 = vadd.f32 0.0, %v3659
        %v3661 = vpop.f32.mrb[0].mxu0
        %3662 = vdwg.mxu0
        %v3663 = vmax.f32 %v3505, 0.0
        %v3664 = vmax.f32 %v3510, 0.0
        %v3665 = vmax.f32 %v3515, 0.0
        %v3666 = vmax.f32 %v3520, 0.0
        %v3667 = vmax.f32 %v3525, 0.0
        %v3668 = vmax.f32 %v3530, 0.0
        %v3669 = vmax.f32 %v3535, 0.0
        %v3670 = vmax.f32 %v3540, 0.0
        %v3671 = vmax.f32 %v3545, 0.0
        %v3672 = vmax.f32 %v3550, 0.0
        %v3673 = vmax.f32 %v3555, 0.0
        %v3674 = vmax.f32 %v3560, 0.0
        %v3675 = vmax.f32 %v3565, 0.0
        %v3676 = vmax.f32 %v3570, 0.0
        %v3677 = vmax.f32 %v3575, 0.0
        %v3678 = vmax.f32 %v3580, 0.0
        %v3679 = vmax.f32 %v3585, 0.0
        %v3680 = vmax.f32 %v3590, 0.0
        %v3681 = vmax.f32 %v3595, 0.0
        %v3682 = vmax.f32 %v3600, 0.0
        %v3683 = vmax.f32 %v3605, 0.0
        %v3684 = vmax.f32 %v3610, 0.0
        %v3685 = vmax.f32 %v3615, 0.0
        %v3686 = vmax.f32 %v3620, 0.0
        %v3687 = vmax.f32 %v3625, 0.0
        %v3688 = vmax.f32 %v3630, 0.0
        %v3689 = vmax.f32 %v3635, 0.0
        %v3690 = vmax.f32 %v3640, 0.0
        %v3691 = vmax.f32 %v3645, 0.0
        %v3692 = vmax.f32 %v3650, 0.0
        %v3693 = vmax.f32 %v3655, 0.0
        %v3694 = vmax.f32 %v3660, 0.0
        %v3727 = vrot.slane %v3663, 7
        %v3728 = vrot.slane %v3664, 7
        %v3729 = vsel %vm1446, %v3727, %v3728
        %v3730 = vrot.slane %v3665, 7
        %v3731 = vsel %vm1446, %v3728, %v3730
        %v3732 = vrot.slane %v3666, 7
        %v3733 = vsel %vm1446, %v3730, %v3732
        %v3734 = vrot.slane %v3667, 7
        %v3735 = vsel %vm1446, %v3732, %v3734
        %v3736 = vrot.slane %v3668, 7
        %v3737 = vsel %vm1446, %v3734, %v3736
        %v3738 = vrot.slane %v3669, 7
        %v3739 = vsel %vm1446, %v3736, %v3738
        %v3740 = vrot.slane %v3670, 7
        %v3741 = vsel %vm1446, %v3738, %v3740
        %v3742 = vrot.slane %v3671, 7
        %v3743 = vsel %vm1446, %v3740, %v3742
        %v3744 = vrot.slane %v3672, 7
        %v3745 = vsel %vm1446, %v3742, %v3744
        %v3746 = vrot.slane %v3673, 7
        %v3747 = vsel %vm1446, %v3744, %v3746
        %v3748 = vrot.slane %v3674, 7
        %v3749 = vsel %vm1446, %v3746, %v3748
        %v3750 = vrot.slane %v3675, 7
        %v3751 = vsel %vm1446, %v3748, %v3750
        %v3752 = vrot.slane %v3676, 7
        %v3753 = vsel %vm1446, %v3750, %v3752
        %v3754 = vrot.slane %v3677, 7
        %v3755 = vsel %vm1446, %v3752, %v3754
        %v3756 = vrot.slane %v3678, 7
        %v3757 = vsel %vm1446, %v3754, %v3756
        %v3758 = vrot.slane %v3679, 7
        %v3759 = vsel %vm1446, %v3756, %v3758
        %v3760 = vrot.slane %v3680, 7
        %v3761 = vsel %vm1446, %v3758, %v3760
        %v3762 = vrot.slane %v3681, 7
        %v3763 = vsel %vm1446, %v3760, %v3762
        %v3764 = vrot.slane %v3682, 7
        %v3765 = vsel %vm1446, %v3762, %v3764
        %v3766 = vrot.slane %v3683, 7
        %v3767 = vsel %vm1446, %v3764, %v3766
        %v3768 = vrot.slane %v3684, 7
        %v3769 = vsel %vm1446, %v3766, %v3768
        %v3770 = vrot.slane %v3685, 7
        %v3771 = vsel %vm1446, %v3768, %v3770
        %v3772 = vrot.slane %v3686, 7
        %v3773 = vsel %vm1446, %v3770, %v3772
        %v3774 = vrot.slane %v3687, 7
        %v3775 = vsel %vm1446, %v3772, %v3774
        %v3776 = vrot.slane %v3688, 7
        %v3777 = vsel %vm1446, %v3774, %v3776
        %v3778 = vrot.slane %v3689, 7
        %v3779 = vsel %vm1446, %v3776, %v3778
        %v3780 = vrot.slane %v3690, 7
        %v3781 = vsel %vm1446, %v3778, %v3780
        %v3782 = vrot.slane %v3691, 7
        %v3783 = vsel %vm1446, %v3780, %v3782
        %v3784 = vrot.slane %v3692, 7
        %v3785 = vsel %vm1446, %v3782, %v3784
        %v3786 = vrot.slane %v3693, 7
        %v3787 = vsel %vm1446, %v3784, %v3786
        %v3788 = vrot.slane %v3694, 7
        %v3789 = vsel %vm1446, %v3786, %v3788
        %v3823 = vsel %vm1446, 0.0, %v3727
        %v3824 = vsel %vm1446, %v3788, 0.0
        %v3825 = vmul.f32 %v3823, %v1288
        %v3826 = vmul.f32 %v3729, %v1289
        %v3827 = vmul.f32 %v3731, %v1290
        %v3828 = vmul.f32 %v3733, %v1291
        %v3829 = vmul.f32 %v3735, %v1292
        %v3830 = vmul.f32 %v3737, %v1293
        %v3831 = vmul.f32 %v3739, %v1294
        %v3832 = vmul.f32 %v3741, %v1295
        %v3833 = vmul.f32 %v3743, %v1296
        %v3834 = vmul.f32 %v3745, %v1297
        %v3835 = vmul.f32 %v3747, %v1298
        %v3836 = vmul.f32 %v3749, %v1299
        %v3837 = vmul.f32 %v3751, %v1300
        %v3838 = vmul.f32 %v3753, %v1301
        %v3839 = vmul.f32 %v3755, %v1302
        %v3840 = vmul.f32 %v3757, %v1303
        %v3841 = vmul.f32 %v3759, %v1304
        %v3842 = vmul.f32 %v3761, %v1305
        %v3843 = vmul.f32 %v3763, %v1306
        %v3844 = vmul.f32 %v3765, %v1307
        %v3845 = vmul.f32 %v3767, %v1308
        %v3846 = vmul.f32 %v3769, %v1309
        %v3847 = vmul.f32 %v3771, %v1310
        %v3848 = vmul.f32 %v3773, %v1311
        %v3849 = vmul.f32 %v3775, %v1312
        %v3850 = vmul.f32 %v3777, %v1313
        %v3851 = vmul.f32 %v3779, %v1314
        %v3852 = vmul.f32 %v3781, %v1315
        %v3853 = vmul.f32 %v3783, %v1316
        %v3854 = vmul.f32 %v3785, %v1317
        %v3855 = vmul.f32 %v3823, %v1614
        %v3856 = vmul.f32 %v3729, %v1616
        %v3857 = vmul.f32 %v3731, %v1618
        %v3858 = vmul.f32 %v3733, %v1620
        %v3859 = vmul.f32 %v3735, %v1622
        %v3860 = vmul.f32 %v3737, %v1624
        %v3861 = vmul.f32 %v3739, %v1626
        %v3862 = vmul.f32 %v3741, %v1628
        %v3863 = vmul.f32 %v3743, %v1630
        %v3864 = vmul.f32 %v3745, %v1632
        %v3865 = vmul.f32 %v3747, %v1634
        %v3866 = vmul.f32 %v3749, %v1636
        %v3867 = vmul.f32 %v3751, %v1638
        %v3868 = vmul.f32 %v3753, %v1640
        %v3869 = vmul.f32 %v3755, %v1642
        %v3870 = vmul.f32 %v3757, %v1644
        %v3871 = vmul.f32 %v3759, %v1646
        %v3872 = vmul.f32 %v3761, %v1648
        %v3873 = vmul.f32 %v3763, %v1650
        %v3874 = vmul.f32 %v3765, %v1652
        %v3875 = vmul.f32 %v3767, %v1654
        %v3876 = vmul.f32 %v3769, %v1656
        %v3877 = vmul.f32 %v3771, %v1658
        %v3878 = vmul.f32 %v3773, %v1660
        %v3879 = vmul.f32 %v3775, %v1662
        %v3880 = vmul.f32 %v3777, %v1664
        %v3881 = vmul.f32 %v3779, %v1666
        %v3882 = vmul.f32 %v3781, %v1668
        %v3883 = vmul.f32 %v3783, %v1670
        %v3884 = vmul.f32 %v3785, %v1672
        %v3885 = vmul.f32 %v3787, %v1671
        %v3886 = vmul.f32 %v3823, %v1286
        %v3887 = vmul.f32 %v3729, %v1287
        %v3888 = vmul.f32 %v3731, %v1288
        %v3889 = vmul.f32 %v3733, %v1289
        %v3890 = vmul.f32 %v3735, %v1290
        %v3891 = vmul.f32 %v3737, %v1291
        %v3892 = vmul.f32 %v3739, %v1292
        %v3893 = vmul.f32 %v3741, %v1293
        %v3894 = vmul.f32 %v3743, %v1294
        %v3895 = vmul.f32 %v3745, %v1295
        %v3896 = vmul.f32 %v3747, %v1296
        %v3897 = vmul.f32 %v3749, %v1297
        %v3898 = vmul.f32 %v3751, %v1298
        %v3899 = vmul.f32 %v3753, %v1299
        %v3900 = vmul.f32 %v3755, %v1300
        %v3901 = vmul.f32 %v3757, %v1301
        %v3902 = vmul.f32 %v3759, %v1302
        %v3903 = vmul.f32 %v3761, %v1303
        %v3904 = vmul.f32 %v3763, %v1304
        %v3905 = vmul.f32 %v3765, %v1305
        %v3906 = vmul.f32 %v3767, %v1306
        %v3907 = vmul.f32 %v3769, %v1307
        %v3908 = vmul.f32 %v3771, %v1308
        %v3909 = vmul.f32 %v3773, %v1309
        %v3910 = vmul.f32 %v3775, %v1310
        %v3911 = vmul.f32 %v3777, %v1311
        %v3912 = vmul.f32 %v3779, %v1312
        %v3913 = vmul.f32 %v3781, %v1313
        %v3914 = vmul.f32 %v3783, %v1314
        %v3915 = vmul.f32 %v3785, %v1315
        %v3916 = vmul.f32 %v3787, %v1316
        %v3917 = vmul.f32 %v3789, %v1317
        %v3918 = vmul.f32 %v3823, %v1610
        %v3919 = vmul.f32 %v3729, %v1612
        %v3920 = vmul.f32 %v3731, %v1614
        %v3921 = vmul.f32 %v3733, %v1616
        %v3922 = vmul.f32 %v3735, %v1618
        %v3923 = vmul.f32 %v3737, %v1620
        %v3924 = vmul.f32 %v3739, %v1622
        %v3925 = vmul.f32 %v3741, %v1624
        %v3926 = vmul.f32 %v3743, %v1626
        %v3927 = vmul.f32 %v3745, %v1628
        %v3928 = vmul.f32 %v3747, %v1630
        %v3929 = vmul.f32 %v3749, %v1632
        %v3930 = vmul.f32 %v3751, %v1634
        %v3931 = vmul.f32 %v3753, %v1636
        %v3932 = vmul.f32 %v3755, %v1638
        %v3933 = vmul.f32 %v3757, %v1640
        %v3934 = vmul.f32 %v3759, %v1642
        %v3935 = vmul.f32 %v3761, %v1644
        %v3936 = vmul.f32 %v3763, %v1646
        %v3937 = vmul.f32 %v3765, %v1648
        %v3938 = vmul.f32 %v3767, %v1650
        %v3939 = vmul.f32 %v3769, %v1652
        %v3940 = vmul.f32 %v3771, %v1654
        %v3941 = vmul.f32 %v3773, %v1656
        %v3942 = vmul.f32 %v3775, %v1658
        %v3943 = vmul.f32 %v3777, %v1660
        %v3944 = vmul.f32 %v3779, %v1662
        %v3945 = vmul.f32 %v3781, %v1664
        %v3946 = vmul.f32 %v3783, %v1666
        %v3947 = vmul.f32 %v3785, %v1668
        %v3948 = vmul.f32 %v3787, %v1670
        %v3949 = vmul.f32 %v3789, %v1672
        %v3950 = vmul.f32 %v3824, %v1671
        %v3951 = vmul.f32 %v3731, %v1286
        %v3952 = vmul.f32 %v3733, %v1287
        %v3953 = vmul.f32 %v3735, %v1288
        %v3954 = vmul.f32 %v3737, %v1289
        %v3955 = vmul.f32 %v3739, %v1290
        %v3956 = vmul.f32 %v3741, %v1291
        %v3957 = vmul.f32 %v3743, %v1292
        %v3958 = vmul.f32 %v3745, %v1293
        %v3959 = vmul.f32 %v3747, %v1294
        %v3960 = vmul.f32 %v3749, %v1295
        %v3961 = vmul.f32 %v3751, %v1296
        %v3962 = vmul.f32 %v3753, %v1297
        %v3963 = vmul.f32 %v3755, %v1298
        %v3964 = vmul.f32 %v3757, %v1299
        %v3965 = vmul.f32 %v3759, %v1300
        %v3966 = vmul.f32 %v3761, %v1301
        %v3967 = vmul.f32 %v3763, %v1302
        %v3968 = vmul.f32 %v3765, %v1303
        %v3969 = vmul.f32 %v3767, %v1304
        %v3970 = vmul.f32 %v3769, %v1305
        %v3971 = vmul.f32 %v3771, %v1306
        %v3972 = vmul.f32 %v3773, %v1307
        %v3973 = vmul.f32 %v3775, %v1308
        %v3974 = vmul.f32 %v3777, %v1309
        %v3975 = vmul.f32 %v3779, %v1310
        %v3976 = vmul.f32 %v3781, %v1311
        %v3977 = vmul.f32 %v3783, %v1312
        %v3978 = vmul.f32 %v3785, %v1313
        %v3979 = vmul.f32 %v3787, %v1314
        %v3980 = vmul.f32 %v3789, %v1315
        %v3981 = vmul.f32 %v3824, %v1316
        %v3982 = vmul.f32 %v3731, %v1610
        %v3983 = vmul.f32 %v3733, %v1612
        %v3984 = vmul.f32 %v3735, %v1614
        %v3985 = vmul.f32 %v3737, %v1616
        %v3986 = vmul.f32 %v3739, %v1618
        %v3987 = vmul.f32 %v3741, %v1620
        %v3988 = vmul.f32 %v3743, %v1622
        %v3989 = vmul.f32 %v3745, %v1624
        %v3990 = vmul.f32 %v3747, %v1626
        %v3991 = vmul.f32 %v3749, %v1628
        %v3992 = vmul.f32 %v3751, %v1630
        %v3993 = vmul.f32 %v3753, %v1632
        %v3994 = vmul.f32 %v3755, %v1634
        %v3995 = vmul.f32 %v3757, %v1636
        %v3996 = vmul.f32 %v3759, %v1638
        %v3997 = vmul.f32 %v3761, %v1640
        %v3998 = vmul.f32 %v3763, %v1642
        %v3999 = vmul.f32 %v3765, %v1644
        %v4000 = vmul.f32 %v3767, %v1646
        %v4001 = vmul.f32 %v3769, %v1648
        %v4002 = vmul.f32 %v3771, %v1650
        %v4003 = vmul.f32 %v3773, %v1652
        %v4004 = vmul.f32 %v3775, %v1654
        %v4005 = vmul.f32 %v3777, %v1656
        %v4006 = vmul.f32 %v3779, %v1658
        %v4007 = vmul.f32 %v3781, %v1660
        %v4008 = vmul.f32 %v3783, %v1662
        %v4009 = vmul.f32 %v3785, %v1664
        %v4010 = vmul.f32 %v3787, %v1666
        %v4011 = vmul.f32 %v3789, %v1668
        %v4012 = vmul.f32 %v3824, %v1670
        %v4014 = vrot.slane %v3823, 1
        %v4015 = vsel %vm1871, %v1872, %v4014
        %v4016 = vrot.slane %v3729, 1
        %v4017 = vsel %vm1871, %v4014, %v4016
        %v4018 = vrot.slane %v3731, 1
        %v4019 = vsel %vm1871, %v4016, %v4018
        %v4020 = vrot.slane %v3733, 1
        %v4021 = vsel %vm1871, %v4018, %v4020
        %v4022 = vrot.slane %v3735, 1
        %v4023 = vsel %vm1871, %v4020, %v4022
        %v4024 = vrot.slane %v3737, 1
        %v4025 = vsel %vm1871, %v4022, %v4024
        %v4026 = vrot.slane %v3739, 1
        %v4027 = vsel %vm1871, %v4024, %v4026
        %v4028 = vrot.slane %v3741, 1
        %v4029 = vsel %vm1871, %v4026, %v4028
        %v4030 = vrot.slane %v3743, 1
        %v4031 = vsel %vm1871, %v4028, %v4030
        %v4032 = vrot.slane %v3745, 1
        %v4033 = vsel %vm1871, %v4030, %v4032
        %v4034 = vrot.slane %v3747, 1
        %v4035 = vsel %vm1871, %v4032, %v4034
        %v4036 = vrot.slane %v3749, 1
        %v4037 = vsel %vm1871, %v4034, %v4036
        %v4038 = vrot.slane %v3751, 1
        %v4039 = vsel %vm1871, %v4036, %v4038
        %v4040 = vrot.slane %v3753, 1
        %v4041 = vsel %vm1871, %v4038, %v4040
        %v4042 = vrot.slane %v3755, 1
        %v4043 = vsel %vm1871, %v4040, %v4042
        %v4044 = vrot.slane %v3757, 1
        %v4045 = vsel %vm1871, %v4042, %v4044
        %v4046 = vrot.slane %v3759, 1
        %v4047 = vsel %vm1871, %v4044, %v4046
        %v4048 = vrot.slane %v3761, 1
        %v4049 = vsel %vm1871, %v4046, %v4048
        %v4050 = vrot.slane %v3763, 1
        %v4051 = vsel %vm1871, %v4048, %v4050
        %v4052 = vrot.slane %v3765, 1
        %v4053 = vsel %vm1871, %v4050, %v4052
        %v4054 = vrot.slane %v3767, 1
        %v4055 = vsel %vm1871, %v4052, %v4054
        %v4056 = vrot.slane %v3769, 1
        %v4057 = vsel %vm1871, %v4054, %v4056
        %v4058 = vrot.slane %v3771, 1
        %v4059 = vsel %vm1871, %v4056, %v4058
        %v4060 = vrot.slane %v3773, 1
        %v4061 = vsel %vm1871, %v4058, %v4060
        %v4062 = vrot.slane %v3775, 1
        %v4063 = vsel %vm1871, %v4060, %v4062
        %v4064 = vrot.slane %v3777, 1
        %v4065 = vsel %vm1871, %v4062, %v4064
        %v4066 = vrot.slane %v3779, 1
        %v4067 = vsel %vm1871, %v4064, %v4066
        %v4068 = vrot.slane %v3781, 1
        %v4069 = vsel %vm1871, %v4066, %v4068
        %v4070 = vrot.slane %v3783, 1
        %v4071 = vsel %vm1871, %v4068, %v4070
        %v4072 = vrot.slane %v3785, 1
        %v4073 = vsel %vm1871, %v4070, %v4072
        %v4074 = vrot.slane %v3787, 1
        %v4075 = vsel %vm1871, %v4072, %v4074
        %4076 = vrot.lane.b32.xlu0 %v4015, 8
        %v4077 = vpop.permute.xlu0 %4076
        %4078 = vrot.lane.b32.xlu0 %v4017, 8
        %v4079 = vpop.permute.xlu0 %4078
        %4080 = vrot.lane.b32.xlu0 %v4019, 8
        %v4081 = vpop.permute.xlu0 %4080
        %4082 = vrot.lane.b32.xlu0 %v4021, 8
        %v4083 = vpop.permute.xlu0 %4082
        %4084 = vrot.lane.b32.xlu0 %v4023, 8
        %v4085 = vpop.permute.xlu0 %4084
        %4086 = vrot.lane.b32.xlu0 %v4025, 8
        %v4087 = vpop.permute.xlu0 %4086
        %4088 = vrot.lane.b32.xlu0 %v4027, 8
        %v4089 = vpop.permute.xlu0 %4088
        %4090 = vrot.lane.b32.xlu0 %v4029, 8
        %v4091 = vpop.permute.xlu0 %4090
        %4092 = vrot.lane.b32.xlu0 %v4031, 8
        %v4093 = vpop.permute.xlu0 %4092
        %4094 = vrot.lane.b32.xlu0 %v4033, 8
        %v4095 = vpop.permute.xlu0 %4094
        %4096 = vrot.lane.b32.xlu0 %v4035, 8
        %v4097 = vpop.permute.xlu0 %4096
        %4098 = vrot.lane.b32.xlu0 %v4037, 8
        %v4099 = vpop.permute.xlu0 %4098
        %4100 = vrot.lane.b32.xlu0 %v4039, 8
        %v4101 = vpop.permute.xlu0 %4100
        %4102 = vrot.lane.b32.xlu0 %v4041, 8
        %v4103 = vpop.permute.xlu0 %4102
        %4104 = vrot.lane.b32.xlu0 %v4043, 8
        %v4105 = vpop.permute.xlu0 %4104
        %4106 = vrot.lane.b32.xlu0 %v4045, 8
        %v4107 = vpop.permute.xlu0 %4106
        %4108 = vrot.lane.b32.xlu0 %v4047, 8
        %v4109 = vpop.permute.xlu0 %4108
        %4110 = vrot.lane.b32.xlu0 %v4049, 8
        %v4111 = vpop.permute.xlu0 %4110
        %4112 = vrot.lane.b32.xlu0 %v4051, 8
        %v4113 = vpop.permute.xlu0 %4112
        %4114 = vrot.lane.b32.xlu0 %v4053, 8
        %v4115 = vpop.permute.xlu0 %4114
        %4116 = vrot.lane.b32.xlu0 %v4055, 8
        %v4117 = vpop.permute.xlu0 %4116
        %4118 = vrot.lane.b32.xlu0 %v4057, 8
        %v4119 = vpop.permute.xlu0 %4118
        %4120 = vrot.lane.b32.xlu0 %v4059, 8
        %v4121 = vpop.permute.xlu0 %4120
        %4122 = vrot.lane.b32.xlu0 %v4061, 8
        %v4123 = vpop.permute.xlu0 %4122
        %4124 = vrot.lane.b32.xlu0 %v4063, 8
        %v4125 = vpop.permute.xlu0 %4124
        %4126 = vrot.lane.b32.xlu0 %v4065, 8
        %v4127 = vpop.permute.xlu0 %4126
        %4128 = vrot.lane.b32.xlu0 %v4067, 8
        %v4129 = vpop.permute.xlu0 %4128
        %4130 = vrot.lane.b32.xlu0 %v4069, 8
        %v4131 = vpop.permute.xlu0 %4130
        %4132 = vrot.lane.b32.xlu0 %v4071, 8
        %v4133 = vpop.permute.xlu0 %4132
        %4134 = vrot.lane.b32.xlu0 %v4073, 8
        %v4135 = vpop.permute.xlu0 %4134
        %4136 = vrot.lane.b32.xlu0 %v4075, 8
        %v4137 = vpop.permute.xlu0 %4136
        %v4200 = vrot.slane %v3855, 2
        %v4201 = vsel %vm2065, %v2067, %v4200
        %v4202 = vrot.slane %v3856, 2
        %v4203 = vsel %vm2065, %v4200, %v4202
        %v4204 = vrot.slane %v3857, 2
        %v4205 = vsel %vm2065, %v4202, %v4204
        %v4206 = vrot.slane %v3858, 2
        %v4207 = vsel %vm2065, %v4204, %v4206
        %v4208 = vrot.slane %v3859, 2
        %v4209 = vsel %vm2065, %v4206, %v4208
        %v4210 = vrot.slane %v3860, 2
        %v4211 = vsel %vm2065, %v4208, %v4210
        %v4212 = vrot.slane %v3861, 2
        %v4213 = vsel %vm2065, %v4210, %v4212
        %v4214 = vrot.slane %v3862, 2
        %v4215 = vsel %vm2065, %v4212, %v4214
        %v4216 = vrot.slane %v3863, 2
        %v4217 = vsel %vm2065, %v4214, %v4216
        %v4218 = vrot.slane %v3864, 2
        %v4219 = vsel %vm2065, %v4216, %v4218
        %v4220 = vrot.slane %v3865, 2
        %v4221 = vsel %vm2065, %v4218, %v4220
        %v4222 = vrot.slane %v3866, 2
        %v4223 = vsel %vm2065, %v4220, %v4222
        %v4224 = vrot.slane %v3867, 2
        %v4225 = vsel %vm2065, %v4222, %v4224
        %v4226 = vrot.slane %v3868, 2
        %v4227 = vsel %vm2065, %v4224, %v4226
        %v4228 = vrot.slane %v3869, 2
        %v4229 = vsel %vm2065, %v4226, %v4228
        %v4230 = vrot.slane %v3870, 2
        %v4231 = vsel %vm2065, %v4228, %v4230
        %v4232 = vrot.slane %v3871, 2
        %v4233 = vsel %vm2065, %v4230, %v4232
        %v4234 = vrot.slane %v3872, 2
        %v4235 = vsel %vm2065, %v4232, %v4234
        %v4236 = vrot.slane %v3873, 2
        %v4237 = vsel %vm2065, %v4234, %v4236
        %v4238 = vrot.slane %v3874, 2
        %v4239 = vsel %vm2065, %v4236, %v4238
        %v4240 = vrot.slane %v3875, 2
        %v4241 = vsel %vm2065, %v4238, %v4240
        %v4242 = vrot.slane %v3876, 2
        %v4243 = vsel %vm2065, %v4240, %v4242
        %v4244 = vrot.slane %v3877, 2
        %v4245 = vsel %vm2065, %v4242, %v4244
        %v4246 = vrot.slane %v3878, 2
        %v4247 = vsel %vm2065, %v4244, %v4246
        %v4248 = vrot.slane %v3879, 2
        %v4249 = vsel %vm2065, %v4246, %v4248
        %v4250 = vrot.slane %v3880, 2
        %v4251 = vsel %vm2065, %v4248, %v4250
        %v4252 = vrot.slane %v3881, 2
        %v4253 = vsel %vm2065, %v4250, %v4252
        %v4254 = vrot.slane %v3882, 2
        %v4255 = vsel %vm2065, %v4252, %v4254
        %v4256 = vrot.slane %v3883, 2
        %v4257 = vsel %vm2065, %v4254, %v4256
        %v4258 = vrot.slane %v3884, 2
        %v4259 = vsel %vm2065, %v4256, %v4258
        %v4260 = vrot.slane %v3885, 2
        %v4261 = vsel %vm2065, %v4258, %v4260
        %4262 = vrot.lane.b32.xlu0 %v4201, 16
        %v4263 = vpop.permute.xlu0 %4262
        %4264 = vrot.lane.b32.xlu0 %v4203, 16
        %v4265 = vpop.permute.xlu0 %4264
        %4266 = vrot.lane.b32.xlu0 %v4205, 16
        %v4267 = vpop.permute.xlu0 %4266
        %4268 = vrot.lane.b32.xlu0 %v4207, 16
        %v4269 = vpop.permute.xlu0 %4268
        %4270 = vrot.lane.b32.xlu0 %v4209, 16
        %v4271 = vpop.permute.xlu0 %4270
        %4272 = vrot.lane.b32.xlu0 %v4211, 16
        %v4273 = vpop.permute.xlu0 %4272
        %4274 = vrot.lane.b32.xlu0 %v4213, 16
        %v4275 = vpop.permute.xlu0 %4274
        %4276 = vrot.lane.b32.xlu0 %v4215, 16
        %v4277 = vpop.permute.xlu0 %4276
        %4278 = vrot.lane.b32.xlu0 %v4217, 16
        %v4279 = vpop.permute.xlu0 %4278
        %4280 = vrot.lane.b32.xlu0 %v4219, 16
        %v4281 = vpop.permute.xlu0 %4280
        %4282 = vrot.lane.b32.xlu0 %v4221, 16
        %v4283 = vpop.permute.xlu0 %4282
        %4284 = vrot.lane.b32.xlu0 %v4223, 16
        %v4285 = vpop.permute.xlu0 %4284
        %4286 = vrot.lane.b32.xlu0 %v4225, 16
        %v4287 = vpop.permute.xlu0 %4286
        %4288 = vrot.lane.b32.xlu0 %v4227, 16
        %v4289 = vpop.permute.xlu0 %4288
        %4290 = vrot.lane.b32.xlu0 %v4229, 16
        %v4291 = vpop.permute.xlu0 %4290
        %4292 = vrot.lane.b32.xlu0 %v4231, 16
        %v4293 = vpop.permute.xlu0 %4292
        %4294 = vrot.lane.b32.xlu0 %v4233, 16
        %v4295 = vpop.permute.xlu0 %4294
        %4296 = vrot.lane.b32.xlu0 %v4235, 16
        %v4297 = vpop.permute.xlu0 %4296
        %4298 = vrot.lane.b32.xlu0 %v4237, 16
        %v4299 = vpop.permute.xlu0 %4298
        %4300 = vrot.lane.b32.xlu0 %v4239, 16
        %v4301 = vpop.permute.xlu0 %4300
        %4302 = vrot.lane.b32.xlu0 %v4241, 16
        %v4303 = vpop.permute.xlu0 %4302
        %4304 = vrot.lane.b32.xlu0 %v4243, 16
        %v4305 = vpop.permute.xlu0 %4304
        %4306 = vrot.lane.b32.xlu0 %v4245, 16
        %v4307 = vpop.permute.xlu0 %4306
        %4308 = vrot.lane.b32.xlu0 %v4247, 16
        %v4309 = vpop.permute.xlu0 %4308
        %4310 = vrot.lane.b32.xlu0 %v4249, 16
        %v4311 = vpop.permute.xlu0 %4310
        %4312 = vrot.lane.b32.xlu0 %v4251, 16
        %v4313 = vpop.permute.xlu0 %4312
        %4314 = vrot.lane.b32.xlu0 %v4253, 16
        %v4315 = vpop.permute.xlu0 %4314
        %4316 = vrot.lane.b32.xlu0 %v4255, 16
        %v4317 = vpop.permute.xlu0 %4316
        %4318 = vrot.lane.b32.xlu0 %v4257, 16
        %v4319 = vpop.permute.xlu0 %4318
        %4320 = vrot.lane.b32.xlu0 %v4259, 16
        %v4321 = vpop.permute.xlu0 %4320
        %4322 = vrot.lane.b32.xlu0 %v4261, 16
        %v4323 = vpop.permute.xlu0 %4322
        %4387 = vrot.lane.b32.xlu0 %v3886, 24
        %v4388 = vpop.permute.xlu0 %4387
        %4389 = vrot.lane.b32.xlu0 %v3887, 24
        %v4390 = vpop.permute.xlu0 %4389
        %4391 = vrot.lane.b32.xlu0 %v3888, 24
        %v4392 = vpop.permute.xlu0 %4391
        %4393 = vrot.lane.b32.xlu0 %v3889, 24
        %v4394 = vpop.permute.xlu0 %4393
        %4395 = vrot.lane.b32.xlu0 %v3890, 24
        %v4396 = vpop.permute.xlu0 %4395
        %4397 = vrot.lane.b32.xlu0 %v3891, 24
        %v4398 = vpop.permute.xlu0 %4397
        %4399 = vrot.lane.b32.xlu0 %v3892, 24
        %v4400 = vpop.permute.xlu0 %4399
        %4401 = vrot.lane.b32.xlu0 %v3893, 24
        %v4402 = vpop.permute.xlu0 %4401
        %4403 = vrot.lane.b32.xlu0 %v3894, 24
        %v4404 = vpop.permute.xlu0 %4403
        %4405 = vrot.lane.b32.xlu0 %v3895, 24
        %v4406 = vpop.permute.xlu0 %4405
        %4407 = vrot.lane.b32.xlu0 %v3896, 24
        %v4408 = vpop.permute.xlu0 %4407
        %4409 = vrot.lane.b32.xlu0 %v3897, 24
        %v4410 = vpop.permute.xlu0 %4409
        %4411 = vrot.lane.b32.xlu0 %v3898, 24
        %v4412 = vpop.permute.xlu0 %4411
        %4413 = vrot.lane.b32.xlu0 %v3899, 24
        %v4414 = vpop.permute.xlu0 %4413
        %4415 = vrot.lane.b32.xlu0 %v3900, 24
        %v4416 = vpop.permute.xlu0 %4415
        %4417 = vrot.lane.b32.xlu0 %v3901, 24
        %v4418 = vpop.permute.xlu0 %4417
        %4419 = vrot.lane.b32.xlu0 %v3902, 24
        %v4420 = vpop.permute.xlu0 %4419
        %4421 = vrot.lane.b32.xlu0 %v3903, 24
        %v4422 = vpop.permute.xlu0 %4421
        %4423 = vrot.lane.b32.xlu0 %v3904, 24
        %v4424 = vpop.permute.xlu0 %4423
        %4425 = vrot.lane.b32.xlu0 %v3905, 24
        %v4426 = vpop.permute.xlu0 %4425
        %4427 = vrot.lane.b32.xlu0 %v3906, 24
        %v4428 = vpop.permute.xlu0 %4427
        %4429 = vrot.lane.b32.xlu0 %v3907, 24
        %v4430 = vpop.permute.xlu0 %4429
        %4431 = vrot.lane.b32.xlu0 %v3908, 24
        %v4432 = vpop.permute.xlu0 %4431
        %4433 = vrot.lane.b32.xlu0 %v3909, 24
        %v4434 = vpop.permute.xlu0 %4433
        %4435 = vrot.lane.b32.xlu0 %v3910, 24
        %v4436 = vpop.permute.xlu0 %4435
        %4437 = vrot.lane.b32.xlu0 %v3911, 24
        %v4438 = vpop.permute.xlu0 %4437
        %4439 = vrot.lane.b32.xlu0 %v3912, 24
        %v4440 = vpop.permute.xlu0 %4439
        %4441 = vrot.lane.b32.xlu0 %v3913, 24
        %v4442 = vpop.permute.xlu0 %4441
        %4443 = vrot.lane.b32.xlu0 %v3914, 24
        %v4444 = vpop.permute.xlu0 %4443
        %4445 = vrot.lane.b32.xlu0 %v3915, 24
        %v4446 = vpop.permute.xlu0 %4445
        %4447 = vrot.lane.b32.xlu0 %v3916, 24
        %v4448 = vpop.permute.xlu0 %4447
        %4449 = vrot.lane.b32.xlu0 %v3917, 24
        %v4450 = vpop.permute.xlu0 %4449
        %v4484 = vrot.slane %v3789, 1
        %v4485 = vsel %vm1871, %v4074, %v4484
        %v4486 = vrot.slane %v3824, 1
        %v4487 = vsel %vm1871, %v4484, %v4486
        %4488 = vrot.lane.b32.xlu0 %v4017, 32
        %v4489 = vpop.permute.xlu0 %4488
        %4490 = vrot.lane.b32.xlu0 %v4019, 32
        %v4491 = vpop.permute.xlu0 %4490
        %4492 = vrot.lane.b32.xlu0 %v4021, 32
        %v4493 = vpop.permute.xlu0 %4492
        %4494 = vrot.lane.b32.xlu0 %v4023, 32
        %v4495 = vpop.permute.xlu0 %4494
        %4496 = vrot.lane.b32.xlu0 %v4025, 32
        %v4497 = vpop.permute.xlu0 %4496
        %4498 = vrot.lane.b32.xlu0 %v4027, 32
        %v4499 = vpop.permute.xlu0 %4498
        %4500 = vrot.lane.b32.xlu0 %v4029, 32
        %v4501 = vpop.permute.xlu0 %4500
        %4502 = vrot.lane.b32.xlu0 %v4031, 32
        %v4503 = vpop.permute.xlu0 %4502
        %4504 = vrot.lane.b32.xlu0 %v4033, 32
        %v4505 = vpop.permute.xlu0 %4504
        %4506 = vrot.lane.b32.xlu0 %v4035, 32
        %v4507 = vpop.permute.xlu0 %4506
        %4508 = vrot.lane.b32.xlu0 %v4037, 32
        %v4509 = vpop.permute.xlu0 %4508
        %4510 = vrot.lane.b32.xlu0 %v4039, 32
        %v4511 = vpop.permute.xlu0 %4510
        %4512 = vrot.lane.b32.xlu0 %v4041, 32
        %v4513 = vpop.permute.xlu0 %4512
        %4514 = vrot.lane.b32.xlu0 %v4043, 32
        %v4515 = vpop.permute.xlu0 %4514
        %4516 = vrot.lane.b32.xlu0 %v4045, 32
        %v4517 = vpop.permute.xlu0 %4516
        %4518 = vrot.lane.b32.xlu0 %v4047, 32
        %v4519 = vpop.permute.xlu0 %4518
        %4520 = vrot.lane.b32.xlu0 %v4049, 32
        %v4521 = vpop.permute.xlu0 %4520
        %4522 = vrot.lane.b32.xlu0 %v4051, 32
        %v4523 = vpop.permute.xlu0 %4522
        %4524 = vrot.lane.b32.xlu0 %v4053, 32
        %v4525 = vpop.permute.xlu0 %4524
        %4526 = vrot.lane.b32.xlu0 %v4055, 32
        %v4527 = vpop.permute.xlu0 %4526
        %4528 = vrot.lane.b32.xlu0 %v4057, 32
        %v4529 = vpop.permute.xlu0 %4528
        %4530 = vrot.lane.b32.xlu0 %v4059, 32
        %v4531 = vpop.permute.xlu0 %4530
        %4532 = vrot.lane.b32.xlu0 %v4061, 32
        %v4533 = vpop.permute.xlu0 %4532
        %4534 = vrot.lane.b32.xlu0 %v4063, 32
        %v4535 = vpop.permute.xlu0 %4534
        %4536 = vrot.lane.b32.xlu0 %v4065, 32
        %v4537 = vpop.permute.xlu0 %4536
        %4538 = vrot.lane.b32.xlu0 %v4067, 32
        %v4539 = vpop.permute.xlu0 %4538
        %4540 = vrot.lane.b32.xlu0 %v4069, 32
        %v4541 = vpop.permute.xlu0 %4540
        %4542 = vrot.lane.b32.xlu0 %v4071, 32
        %v4543 = vpop.permute.xlu0 %4542
        %4544 = vrot.lane.b32.xlu0 %v4073, 32
        %v4545 = vpop.permute.xlu0 %4544
        %4546 = vrot.lane.b32.xlu0 %v4075, 32
        %v4547 = vpop.permute.xlu0 %4546
        %4548 = vrot.lane.b32.xlu0 %v4485, 32
        %v4549 = vpop.permute.xlu0 %4548
        %4550 = vrot.lane.b32.xlu0 %v4487, 32
        %v4551 = vpop.permute.xlu0 %4550
        %v4617 = vrot.slane %v3918, 2
        %v4618 = vrot.slane %v3919, 2
        %v4619 = vsel %vm2065, %v4617, %v4618
        %v4620 = vrot.slane %v3920, 2
        %v4621 = vsel %vm2065, %v4618, %v4620
        %v4622 = vrot.slane %v3921, 2
        %v4623 = vsel %vm2065, %v4620, %v4622
        %v4624 = vrot.slane %v3922, 2
        %v4625 = vsel %vm2065, %v4622, %v4624
        %v4626 = vrot.slane %v3923, 2
        %v4627 = vsel %vm2065, %v4624, %v4626
        %v4628 = vrot.slane %v3924, 2
        %v4629 = vsel %vm2065, %v4626, %v4628
        %v4630 = vrot.slane %v3925, 2
        %v4631 = vsel %vm2065, %v4628, %v4630
        %v4632 = vrot.slane %v3926, 2
        %v4633 = vsel %vm2065, %v4630, %v4632
        %v4634 = vrot.slane %v3927, 2
        %v4635 = vsel %vm2065, %v4632, %v4634
        %v4636 = vrot.slane %v3928, 2
        %v4637 = vsel %vm2065, %v4634, %v4636
        %v4638 = vrot.slane %v3929, 2
        %v4639 = vsel %vm2065, %v4636, %v4638
        %v4640 = vrot.slane %v3930, 2
        %v4641 = vsel %vm2065, %v4638, %v4640
        %v4642 = vrot.slane %v3931, 2
        %v4643 = vsel %vm2065, %v4640, %v4642
        %v4644 = vrot.slane %v3932, 2
        %v4645 = vsel %vm2065, %v4642, %v4644
        %v4646 = vrot.slane %v3933, 2
        %v4647 = vsel %vm2065, %v4644, %v4646
        %v4648 = vrot.slane %v3934, 2
        %v4649 = vsel %vm2065, %v4646, %v4648
        %v4650 = vrot.slane %v3935, 2
        %v4651 = vsel %vm2065, %v4648, %v4650
        %v4652 = vrot.slane %v3936, 2
        %v4653 = vsel %vm2065, %v4650, %v4652
        %v4654 = vrot.slane %v3937, 2
        %v4655 = vsel %vm2065, %v4652, %v4654
        %v4656 = vrot.slane %v3938, 2
        %v4657 = vsel %vm2065, %v4654, %v4656
        %v4658 = vrot.slane %v3939, 2
        %v4659 = vsel %vm2065, %v4656, %v4658
        %v4660 = vrot.slane %v3940, 2
        %v4661 = vsel %vm2065, %v4658, %v4660
        %v4662 = vrot.slane %v3941, 2
        %v4663 = vsel %vm2065, %v4660, %v4662
        %v4664 = vrot.slane %v3942, 2
        %v4665 = vsel %vm2065, %v4662, %v4664
        %v4666 = vrot.slane %v3943, 2
        %v4667 = vsel %vm2065, %v4664, %v4666
        %v4668 = vrot.slane %v3944, 2
        %v4669 = vsel %vm2065, %v4666, %v4668
        %v4670 = vrot.slane %v3945, 2
        %v4671 = vsel %vm2065, %v4668, %v4670
        %v4672 = vrot.slane %v3946, 2
        %v4673 = vsel %vm2065, %v4670, %v4672
        %v4674 = vrot.slane %v3947, 2
        %v4675 = vsel %vm2065, %v4672, %v4674
        %v4676 = vrot.slane %v3948, 2
        %v4677 = vsel %vm2065, %v4674, %v4676
        %v4678 = vrot.slane %v3949, 2
        %v4679 = vsel %vm2065, %v4676, %v4678
        %v4680 = vrot.slane %v3950, 2
        %v4681 = vsel %vm2065, %v4678, %v4680
        %4682 = vrot.lane.b32.xlu0 %v4619, 40
        %v4683 = vpop.permute.xlu0 %4682
        %4684 = vrot.lane.b32.xlu0 %v4621, 40
        %v4685 = vpop.permute.xlu0 %4684
        %4686 = vrot.lane.b32.xlu0 %v4623, 40
        %v4687 = vpop.permute.xlu0 %4686
        %4688 = vrot.lane.b32.xlu0 %v4625, 40
        %v4689 = vpop.permute.xlu0 %4688
        %4690 = vrot.lane.b32.xlu0 %v4627, 40
        %v4691 = vpop.permute.xlu0 %4690
        %4692 = vrot.lane.b32.xlu0 %v4629, 40
        %v4693 = vpop.permute.xlu0 %4692
        %4694 = vrot.lane.b32.xlu0 %v4631, 40
        %v4695 = vpop.permute.xlu0 %4694
        %4696 = vrot.lane.b32.xlu0 %v4633, 40
        %v4697 = vpop.permute.xlu0 %4696
        %4698 = vrot.lane.b32.xlu0 %v4635, 40
        %v4699 = vpop.permute.xlu0 %4698
        %4700 = vrot.lane.b32.xlu0 %v4637, 40
        %v4701 = vpop.permute.xlu0 %4700
        %4702 = vrot.lane.b32.xlu0 %v4639, 40
        %v4703 = vpop.permute.xlu0 %4702
        %4704 = vrot.lane.b32.xlu0 %v4641, 40
        %v4705 = vpop.permute.xlu0 %4704
        %4706 = vrot.lane.b32.xlu0 %v4643, 40
        %v4707 = vpop.permute.xlu0 %4706
        %4708 = vrot.lane.b32.xlu0 %v4645, 40
        %v4709 = vpop.permute.xlu0 %4708
        %4710 = vrot.lane.b32.xlu0 %v4647, 40
        %v4711 = vpop.permute.xlu0 %4710
        %4712 = vrot.lane.b32.xlu0 %v4649, 40
        %v4713 = vpop.permute.xlu0 %4712
        %4714 = vrot.lane.b32.xlu0 %v4651, 40
        %v4715 = vpop.permute.xlu0 %4714
        %4716 = vrot.lane.b32.xlu0 %v4653, 40
        %v4717 = vpop.permute.xlu0 %4716
        %4718 = vrot.lane.b32.xlu0 %v4655, 40
        %v4719 = vpop.permute.xlu0 %4718
        %4720 = vrot.lane.b32.xlu0 %v4657, 40
        %v4721 = vpop.permute.xlu0 %4720
        %4722 = vrot.lane.b32.xlu0 %v4659, 40
        %v4723 = vpop.permute.xlu0 %4722
        %4724 = vrot.lane.b32.xlu0 %v4661, 40
        %v4725 = vpop.permute.xlu0 %4724
        %4726 = vrot.lane.b32.xlu0 %v4663, 40
        %v4727 = vpop.permute.xlu0 %4726
        %4728 = vrot.lane.b32.xlu0 %v4665, 40
        %v4729 = vpop.permute.xlu0 %4728
        %4730 = vrot.lane.b32.xlu0 %v4667, 40
        %v4731 = vpop.permute.xlu0 %4730
        %4732 = vrot.lane.b32.xlu0 %v4669, 40
        %v4733 = vpop.permute.xlu0 %4732
        %4734 = vrot.lane.b32.xlu0 %v4671, 40
        %v4735 = vpop.permute.xlu0 %4734
        %4736 = vrot.lane.b32.xlu0 %v4673, 40
        %v4737 = vpop.permute.xlu0 %4736
        %4738 = vrot.lane.b32.xlu0 %v4675, 40
        %v4739 = vpop.permute.xlu0 %4738
        %4740 = vrot.lane.b32.xlu0 %v4677, 40
        %v4741 = vpop.permute.xlu0 %4740
        %4742 = vrot.lane.b32.xlu0 %v4679, 40
        %v4743 = vpop.permute.xlu0 %4742
        %4744 = vrot.lane.b32.xlu0 %v4681, 40
        %v4745 = vpop.permute.xlu0 %4744
        %4809 = vrot.lane.b32.xlu0 %v3951, 48
        %v4810 = vpop.permute.xlu0 %4809
        %4811 = vrot.lane.b32.xlu0 %v3952, 48
        %v4812 = vpop.permute.xlu0 %4811
        %4813 = vrot.lane.b32.xlu0 %v3953, 48
        %v4814 = vpop.permute.xlu0 %4813
        %4815 = vrot.lane.b32.xlu0 %v3954, 48
        %v4816 = vpop.permute.xlu0 %4815
        %4817 = vrot.lane.b32.xlu0 %v3955, 48
        %v4818 = vpop.permute.xlu0 %4817
        %4819 = vrot.lane.b32.xlu0 %v3956, 48
        %v4820 = vpop.permute.xlu0 %4819
        %4821 = vrot.lane.b32.xlu0 %v3957, 48
        %v4822 = vpop.permute.xlu0 %4821
        %4823 = vrot.lane.b32.xlu0 %v3958, 48
        %v4824 = vpop.permute.xlu0 %4823
        %4825 = vrot.lane.b32.xlu0 %v3959, 48
        %v4826 = vpop.permute.xlu0 %4825
        %4827 = vrot.lane.b32.xlu0 %v3960, 48
        %v4828 = vpop.permute.xlu0 %4827
        %4829 = vrot.lane.b32.xlu0 %v3961, 48
        %v4830 = vpop.permute.xlu0 %4829
        %4831 = vrot.lane.b32.xlu0 %v3962, 48
        %v4832 = vpop.permute.xlu0 %4831
        %4833 = vrot.lane.b32.xlu0 %v3963, 48
        %v4834 = vpop.permute.xlu0 %4833
        %4835 = vrot.lane.b32.xlu0 %v3964, 48
        %v4836 = vpop.permute.xlu0 %4835
        %4837 = vrot.lane.b32.xlu0 %v3965, 48
        %v4838 = vpop.permute.xlu0 %4837
        %4839 = vrot.lane.b32.xlu0 %v3966, 48
        %v4840 = vpop.permute.xlu0 %4839
        %4841 = vrot.lane.b32.xlu0 %v3967, 48
        %v4842 = vpop.permute.xlu0 %4841
        %4843 = vrot.lane.b32.xlu0 %v3968, 48
        %v4844 = vpop.permute.xlu0 %4843
        %4845 = vrot.lane.b32.xlu0 %v3969, 48
        %v4846 = vpop.permute.xlu0 %4845
        %4847 = vrot.lane.b32.xlu0 %v3970, 48
        %v4848 = vpop.permute.xlu0 %4847
        %4849 = vrot.lane.b32.xlu0 %v3971, 48
        %v4850 = vpop.permute.xlu0 %4849
        %4851 = vrot.lane.b32.xlu0 %v3972, 48
        %v4852 = vpop.permute.xlu0 %4851
        %4853 = vrot.lane.b32.xlu0 %v3973, 48
        %v4854 = vpop.permute.xlu0 %4853
        %4855 = vrot.lane.b32.xlu0 %v3974, 48
        %v4856 = vpop.permute.xlu0 %4855
        %4857 = vrot.lane.b32.xlu0 %v3975, 48
        %v4858 = vpop.permute.xlu0 %4857
        %4859 = vrot.lane.b32.xlu0 %v3976, 48
        %v4860 = vpop.permute.xlu0 %4859
        %4861 = vrot.lane.b32.xlu0 %v3977, 48
        %v4862 = vpop.permute.xlu0 %4861
        %4863 = vrot.lane.b32.xlu0 %v3978, 48
        %v4864 = vpop.permute.xlu0 %4863
        %4865 = vrot.lane.b32.xlu0 %v3979, 48
        %v4866 = vpop.permute.xlu0 %4865
        %4867 = vrot.lane.b32.xlu0 %v3980, 48
        %v4868 = vpop.permute.xlu0 %4867
        %4869 = vrot.lane.b32.xlu0 %v3981, 48
        %v4870 = vpop.permute.xlu0 %4869
        %v4902 = vsel %vm1871, %v4486, %v1872
        %4903 = vrot.lane.b32.xlu0 %v4021, 56
        %v4904 = vpop.permute.xlu0 %4903
        %4905 = vrot.lane.b32.xlu0 %v4023, 56
        %v4906 = vpop.permute.xlu0 %4905
        %4907 = vrot.lane.b32.xlu0 %v4025, 56
        %v4908 = vpop.permute.xlu0 %4907
        %4909 = vrot.lane.b32.xlu0 %v4027, 56
        %v4910 = vpop.permute.xlu0 %4909
        %4911 = vrot.lane.b32.xlu0 %v4029, 56
        %v4912 = vpop.permute.xlu0 %4911
        %4913 = vrot.lane.b32.xlu0 %v4031, 56
        %v4914 = vpop.permute.xlu0 %4913
        %4915 = vrot.lane.b32.xlu0 %v4033, 56
        %v4916 = vpop.permute.xlu0 %4915
        %4917 = vrot.lane.b32.xlu0 %v4035, 56
        %v4918 = vpop.permute.xlu0 %4917
        %4919 = vrot.lane.b32.xlu0 %v4037, 56
        %v4920 = vpop.permute.xlu0 %4919
        %4921 = vrot.lane.b32.xlu0 %v4039, 56
        %v4922 = vpop.permute.xlu0 %4921
        %4923 = vrot.lane.b32.xlu0 %v4041, 56
        %v4924 = vpop.permute.xlu0 %4923
        %4925 = vrot.lane.b32.xlu0 %v4043, 56
        %v4926 = vpop.permute.xlu0 %4925
        %4927 = vrot.lane.b32.xlu0 %v4045, 56
        %v4928 = vpop.permute.xlu0 %4927
        %4929 = vrot.lane.b32.xlu0 %v4047, 56
        %v4930 = vpop.permute.xlu0 %4929
        %4931 = vrot.lane.b32.xlu0 %v4049, 56
        %v4932 = vpop.permute.xlu0 %4931
        %4933 = vrot.lane.b32.xlu0 %v4051, 56
        %v4934 = vpop.permute.xlu0 %4933
        %4935 = vrot.lane.b32.xlu0 %v4053, 56
        %v4936 = vpop.permute.xlu0 %4935
        %4937 = vrot.lane.b32.xlu0 %v4055, 56
        %v4938 = vpop.permute.xlu0 %4937
        %4939 = vrot.lane.b32.xlu0 %v4057, 56
        %v4940 = vpop.permute.xlu0 %4939
        %4941 = vrot.lane.b32.xlu0 %v4059, 56
        %v4942 = vpop.permute.xlu0 %4941
        %4943 = vrot.lane.b32.xlu0 %v4061, 56
        %v4944 = vpop.permute.xlu0 %4943
        %4945 = vrot.lane.b32.xlu0 %v4063, 56
        %v4946 = vpop.permute.xlu0 %4945
        %4947 = vrot.lane.b32.xlu0 %v4065, 56
        %v4948 = vpop.permute.xlu0 %4947
        %4949 = vrot.lane.b32.xlu0 %v4067, 56
        %v4950 = vpop.permute.xlu0 %4949
        %4951 = vrot.lane.b32.xlu0 %v4069, 56
        %v4952 = vpop.permute.xlu0 %4951
        %4953 = vrot.lane.b32.xlu0 %v4071, 56
        %v4954 = vpop.permute.xlu0 %4953
        %4955 = vrot.lane.b32.xlu0 %v4073, 56
        %v4956 = vpop.permute.xlu0 %4955
        %4957 = vrot.lane.b32.xlu0 %v4075, 56
        %v4958 = vpop.permute.xlu0 %4957
        %4959 = vrot.lane.b32.xlu0 %v4485, 56
        %v4960 = vpop.permute.xlu0 %4959
        %4961 = vrot.lane.b32.xlu0 %v4487, 56
        %v4962 = vpop.permute.xlu0 %4961
        %4963 = vrot.lane.b32.xlu0 %v4902, 56
        %v4964 = vpop.permute.xlu0 %4963
        %v5027 = vrot.slane %v3982, 2
        %v5028 = vrot.slane %v3983, 2
        %v5029 = vsel %vm2065, %v5027, %v5028
        %v5030 = vrot.slane %v3984, 2
        %v5031 = vsel %vm2065, %v5028, %v5030
        %v5032 = vrot.slane %v3985, 2
        %v5033 = vsel %vm2065, %v5030, %v5032
        %v5034 = vrot.slane %v3986, 2
        %v5035 = vsel %vm2065, %v5032, %v5034
        %v5036 = vrot.slane %v3987, 2
        %v5037 = vsel %vm2065, %v5034, %v5036
        %v5038 = vrot.slane %v3988, 2
        %v5039 = vsel %vm2065, %v5036, %v5038
        %v5040 = vrot.slane %v3989, 2
        %v5041 = vsel %vm2065, %v5038, %v5040
        %v5042 = vrot.slane %v3990, 2
        %v5043 = vsel %vm2065, %v5040, %v5042
        %v5044 = vrot.slane %v3991, 2
        %v5045 = vsel %vm2065, %v5042, %v5044
        %v5046 = vrot.slane %v3992, 2
        %v5047 = vsel %vm2065, %v5044, %v5046
        %v5048 = vrot.slane %v3993, 2
        %v5049 = vsel %vm2065, %v5046, %v5048
        %v5050 = vrot.slane %v3994, 2
        %v5051 = vsel %vm2065, %v5048, %v5050
        %v5052 = vrot.slane %v3995, 2
        %v5053 = vsel %vm2065, %v5050, %v5052
        %v5054 = vrot.slane %v3996, 2
        %v5055 = vsel %vm2065, %v5052, %v5054
        %v5056 = vrot.slane %v3997, 2
        %v5057 = vsel %vm2065, %v5054, %v5056
        %v5058 = vrot.slane %v3998, 2
        %v5059 = vsel %vm2065, %v5056, %v5058
        %v5060 = vrot.slane %v3999, 2
        %v5061 = vsel %vm2065, %v5058, %v5060
        %v5062 = vrot.slane %v4000, 2
        %v5063 = vsel %vm2065, %v5060, %v5062
        %v5064 = vrot.slane %v4001, 2
        %v5065 = vsel %vm2065, %v5062, %v5064
        %v5066 = vrot.slane %v4002, 2
        %v5067 = vsel %vm2065, %v5064, %v5066
        %v5068 = vrot.slane %v4003, 2
        %v5069 = vsel %vm2065, %v5066, %v5068
        %v5070 = vrot.slane %v4004, 2
        %v5071 = vsel %vm2065, %v5068, %v5070
        %v5072 = vrot.slane %v4005, 2
        %v5073 = vsel %vm2065, %v5070, %v5072
        %v5074 = vrot.slane %v4006, 2
        %v5075 = vsel %vm2065, %v5072, %v5074
        %v5076 = vrot.slane %v4007, 2
        %v5077 = vsel %vm2065, %v5074, %v5076
        %v5078 = vrot.slane %v4008, 2
        %v5079 = vsel %vm2065, %v5076, %v5078
        %v5080 = vrot.slane %v4009, 2
        %v5081 = vsel %vm2065, %v5078, %v5080
        %v5082 = vrot.slane %v4010, 2
        %v5083 = vsel %vm2065, %v5080, %v5082
        %v5084 = vrot.slane %v4011, 2
        %v5085 = vsel %vm2065, %v5082, %v5084
        %v5086 = vrot.slane %v4012, 2
        %v5087 = vsel %vm2065, %v5084, %v5086
        %v5088 = vsel %vm2065, %v5086, %v2969
        %5089 = vrot.lane.b32.xlu0 %v5029, 64
        %v5090 = vpop.permute.xlu0 %5089
        %5091 = vrot.lane.b32.xlu0 %v5031, 64
        %v5092 = vpop.permute.xlu0 %5091
        %5093 = vrot.lane.b32.xlu0 %v5033, 64
        %v5094 = vpop.permute.xlu0 %5093
        %5095 = vrot.lane.b32.xlu0 %v5035, 64
        %v5096 = vpop.permute.xlu0 %5095
        %5097 = vrot.lane.b32.xlu0 %v5037, 64
        %v5098 = vpop.permute.xlu0 %5097
        %5099 = vrot.lane.b32.xlu0 %v5039, 64
        %v5100 = vpop.permute.xlu0 %5099
        %5101 = vrot.lane.b32.xlu0 %v5041, 64
        %v5102 = vpop.permute.xlu0 %5101
        %5103 = vrot.lane.b32.xlu0 %v5043, 64
        %v5104 = vpop.permute.xlu0 %5103
        %5105 = vrot.lane.b32.xlu0 %v5045, 64
        %v5106 = vpop.permute.xlu0 %5105
        %5107 = vrot.lane.b32.xlu0 %v5047, 64
        %v5108 = vpop.permute.xlu0 %5107
        %5109 = vrot.lane.b32.xlu0 %v5049, 64
        %v5110 = vpop.permute.xlu0 %5109
        %5111 = vrot.lane.b32.xlu0 %v5051, 64
        %v5112 = vpop.permute.xlu0 %5111
        %5113 = vrot.lane.b32.xlu0 %v5053, 64
        %v5114 = vpop.permute.xlu0 %5113
        %5115 = vrot.lane.b32.xlu0 %v5055, 64
        %v5116 = vpop.permute.xlu0 %5115
        %5117 = vrot.lane.b32.xlu0 %v5057, 64
        %v5118 = vpop.permute.xlu0 %5117
        %5119 = vrot.lane.b32.xlu0 %v5059, 64
        %v5120 = vpop.permute.xlu0 %5119
        %5121 = vrot.lane.b32.xlu0 %v5061, 64
        %v5122 = vpop.permute.xlu0 %5121
        %5123 = vrot.lane.b32.xlu0 %v5063, 64
        %v5124 = vpop.permute.xlu0 %5123
        %5125 = vrot.lane.b32.xlu0 %v5065, 64
        %v5126 = vpop.permute.xlu0 %5125
        %5127 = vrot.lane.b32.xlu0 %v5067, 64
        %v5128 = vpop.permute.xlu0 %5127
        %5129 = vrot.lane.b32.xlu0 %v5069, 64
        %v5130 = vpop.permute.xlu0 %5129
        %5131 = vrot.lane.b32.xlu0 %v5071, 64
        %v5132 = vpop.permute.xlu0 %5131
        %5133 = vrot.lane.b32.xlu0 %v5073, 64
        %v5134 = vpop.permute.xlu0 %5133
        %5135 = vrot.lane.b32.xlu0 %v5075, 64
        %v5136 = vpop.permute.xlu0 %5135
        %5137 = vrot.lane.b32.xlu0 %v5077, 64
        %v5138 = vpop.permute.xlu0 %5137
        %5139 = vrot.lane.b32.xlu0 %v5079, 64
        %v5140 = vpop.permute.xlu0 %5139
        %5141 = vrot.lane.b32.xlu0 %v5081, 64
        %v5142 = vpop.permute.xlu0 %5141
        %5143 = vrot.lane.b32.xlu0 %v5083, 64
        %v5144 = vpop.permute.xlu0 %5143
        %5145 = vrot.lane.b32.xlu0 %v5085, 64
        %v5146 = vpop.permute.xlu0 %5145
        %5147 = vrot.lane.b32.xlu0 %v5087, 64
        %v5148 = vpop.permute.xlu0 %5147
        %5149 = vrot.lane.b32.xlu0 %v5088, 64
        %v5150 = vpop.permute.xlu0 %5149
        %v5182 = vsel %vm309, %v1546, %v4077
        %v5183 = vsel %vm309, %v3825, %v4079
        %v5184 = vsel %vm309, %v3826, %v4081
        %v5185 = vsel %vm309, %v3827, %v4083
        %v5186 = vsel %vm309, %v3828, %v4085
        %v5187 = vsel %vm309, %v3829, %v4087
        %v5188 = vsel %vm309, %v3830, %v4089
        %v5189 = vsel %vm309, %v3831, %v4091
        %v5190 = vsel %vm309, %v3832, %v4093
        %v5191 = vsel %vm309, %v3833, %v4095
        %v5192 = vsel %vm309, %v3834, %v4097
        %v5193 = vsel %vm309, %v3835, %v4099
        %v5194 = vsel %vm309, %v3836, %v4101
        %v5195 = vsel %vm309, %v3837, %v4103
        %v5196 = vsel %vm309, %v3838, %v4105
        %v5197 = vsel %vm309, %v3839, %v4107
        %v5198 = vsel %vm309, %v3840, %v4109
        %v5199 = vsel %vm309, %v3841, %v4111
        %v5200 = vsel %vm309, %v3842, %v4113
        %v5201 = vsel %vm309, %v3843, %v4115
        %v5202 = vsel %vm309, %v3844, %v4117
        %v5203 = vsel %vm309, %v3845, %v4119
        %v5204 = vsel %vm309, %v3846, %v4121
        %v5205 = vsel %vm309, %v3847, %v4123
        %v5206 = vsel %vm309, %v3848, %v4125
        %v5207 = vsel %vm309, %v3849, %v4127
        %v5208 = vsel %vm309, %v3850, %v4129
        %v5209 = vsel %vm309, %v3851, %v4131
        %v5210 = vsel %vm309, %v3852, %v4133
        %v5211 = vsel %vm309, %v3853, %v4135
        %v5212 = vsel %vm309, %v3854, %v4137
        %v5213 = vsel %vm3101, %v5182, %v4263
        %v5214 = vsel %vm3101, %v5183, %v4265
        %v5215 = vsel %vm3101, %v5184, %v4267
        %v5216 = vsel %vm3101, %v5185, %v4269
        %v5217 = vsel %vm3101, %v5186, %v4271
        %v5218 = vsel %vm3101, %v5187, %v4273
        %v5219 = vsel %vm3101, %v5188, %v4275
        %v5220 = vsel %vm3101, %v5189, %v4277
        %v5221 = vsel %vm3101, %v5190, %v4279
        %v5222 = vsel %vm3101, %v5191, %v4281
        %v5223 = vsel %vm3101, %v5192, %v4283
        %v5224 = vsel %vm3101, %v5193, %v4285
        %v5225 = vsel %vm3101, %v5194, %v4287
        %v5226 = vsel %vm3101, %v5195, %v4289
        %v5227 = vsel %vm3101, %v5196, %v4291
        %v5228 = vsel %vm3101, %v5197, %v4293
        %v5229 = vsel %vm3101, %v5198, %v4295
        %v5230 = vsel %vm3101, %v5199, %v4297
        %v5231 = vsel %vm3101, %v5200, %v4299
        %v5232 = vsel %vm3101, %v5201, %v4301
        %v5233 = vsel %vm3101, %v5202, %v4303
        %v5234 = vsel %vm3101, %v5203, %v4305
        %v5235 = vsel %vm3101, %v5204, %v4307
        %v5236 = vsel %vm3101, %v5205, %v4309
        %v5237 = vsel %vm3101, %v5206, %v4311
        %v5238 = vsel %vm3101, %v5207, %v4313
        %v5239 = vsel %vm3101, %v5208, %v4315
        %v5240 = vsel %vm3101, %v5209, %v4317
        %v5241 = vsel %vm3101, %v5210, %v4319
        %v5242 = vsel %vm3101, %v5211, %v4321
        %v5243 = vsel %vm3101, %v5212, %v4323
        %v5244 = vsel %vm3134, %v3102, %v4388
        %v5245 = vsel %vm3134, %v5213, %v4390
        %v5246 = vsel %vm3134, %v5214, %v4392
        %v5247 = vsel %vm3134, %v5215, %v4394
        %v5248 = vsel %vm3134, %v5216, %v4396
        %v5249 = vsel %vm3134, %v5217, %v4398
        %v5250 = vsel %vm3134, %v5218, %v4400
        %v5251 = vsel %vm3134, %v5219, %v4402
        %v5252 = vsel %vm3134, %v5220, %v4404
        %v5253 = vsel %vm3134, %v5221, %v4406
        %v5254 = vsel %vm3134, %v5222, %v4408
        %v5255 = vsel %vm3134, %v5223, %v4410
        %v5256 = vsel %vm3134, %v5224, %v4412
        %v5257 = vsel %vm3134, %v5225, %v4414
        %v5258 = vsel %vm3134, %v5226, %v4416
        %v5259 = vsel %vm3134, %v5227, %v4418
        %v5260 = vsel %vm3134, %v5228, %v4420
        %v5261 = vsel %vm3134, %v5229, %v4422
        %v5262 = vsel %vm3134, %v5230, %v4424
        %v5263 = vsel %vm3134, %v5231, %v4426
        %v5264 = vsel %vm3134, %v5232, %v4428
        %v5265 = vsel %vm3134, %v5233, %v4430
        %v5266 = vsel %vm3134, %v5234, %v4432
        %v5267 = vsel %vm3134, %v5235, %v4434
        %v5268 = vsel %vm3134, %v5236, %v4436
        %v5269 = vsel %vm3134, %v5237, %v4438
        %v5270 = vsel %vm3134, %v5238, %v4440
        %v5271 = vsel %vm3134, %v5239, %v4442
        %v5272 = vsel %vm3134, %v5240, %v4444
        %v5273 = vsel %vm3134, %v5241, %v4446
        %v5274 = vsel %vm3134, %v5242, %v4448
        %v5275 = vsel %vm3134, %v5243, %v4450
        %v5276 = vsel %vm3167, %v5244, %v4489
        %v5277 = vsel %vm3167, %v5245, %v4491
        %v5278 = vsel %vm3167, %v5246, %v4493
        %v5279 = vsel %vm3167, %v5247, %v4495
        %v5280 = vsel %vm3167, %v5248, %v4497
        %v5281 = vsel %vm3167, %v5249, %v4499
        %v5282 = vsel %vm3167, %v5250, %v4501
        %v5283 = vsel %vm3167, %v5251, %v4503
        %v5284 = vsel %vm3167, %v5252, %v4505
        %v5285 = vsel %vm3167, %v5253, %v4507
        %v5286 = vsel %vm3167, %v5254, %v4509
        %v5287 = vsel %vm3167, %v5255, %v4511
        %v5288 = vsel %vm3167, %v5256, %v4513
        %v5289 = vsel %vm3167, %v5257, %v4515
        %v5290 = vsel %vm3167, %v5258, %v4517
        %v5291 = vsel %vm3167, %v5259, %v4519
        %v5292 = vsel %vm3167, %v5260, %v4521
        %v5293 = vsel %vm3167, %v5261, %v4523
        %v5294 = vsel %vm3167, %v5262, %v4525
        %v5295 = vsel %vm3167, %v5263, %v4527
        %v5296 = vsel %vm3167, %v5264, %v4529
        %v5297 = vsel %vm3167, %v5265, %v4531
        %v5298 = vsel %vm3167, %v5266, %v4533
        %v5299 = vsel %vm3167, %v5267, %v4535
        %v5300 = vsel %vm3167, %v5268, %v4537
        %v5301 = vsel %vm3167, %v5269, %v4539
        %v5302 = vsel %vm3167, %v5270, %v4541
        %v5303 = vsel %vm3167, %v5271, %v4543
        %v5304 = vsel %vm3167, %v5272, %v4545
        %v5305 = vsel %vm3167, %v5273, %v4547
        %v5306 = vsel %vm3167, %v5274, %v4549
        %v5307 = vsel %vm3167, %v5275, %v4551
        %v5308 = vsel %vm3200, %v5276, %v4683
        %v5309 = vsel %vm3200, %v5277, %v4685
        %v5310 = vsel %vm3200, %v5278, %v4687
        %v5311 = vsel %vm3200, %v5279, %v4689
        %v5312 = vsel %vm3200, %v5280, %v4691
        %v5313 = vsel %vm3200, %v5281, %v4693
        %v5314 = vsel %vm3200, %v5282, %v4695
        %v5315 = vsel %vm3200, %v5283, %v4697
        %v5316 = vsel %vm3200, %v5284, %v4699
        %v5317 = vsel %vm3200, %v5285, %v4701
        %v5318 = vsel %vm3200, %v5286, %v4703
        %v5319 = vsel %vm3200, %v5287, %v4705
        %v5320 = vsel %vm3200, %v5288, %v4707
        %v5321 = vsel %vm3200, %v5289, %v4709
        %v5322 = vsel %vm3200, %v5290, %v4711
        %v5323 = vsel %vm3200, %v5291, %v4713
        %v5324 = vsel %vm3200, %v5292, %v4715
        %v5325 = vsel %vm3200, %v5293, %v4717
        %v5326 = vsel %vm3200, %v5294, %v4719
        %v5327 = vsel %vm3200, %v5295, %v4721
        %v5328 = vsel %vm3200, %v5296, %v4723
        %v5329 = vsel %vm3200, %v5297, %v4725
        %v5330 = vsel %vm3200, %v5298, %v4727
        %v5331 = vsel %vm3200, %v5299, %v4729
        %v5332 = vsel %vm3200, %v5300, %v4731
        %v5333 = vsel %vm3200, %v5301, %v4733
        %v5334 = vsel %vm3200, %v5302, %v4735
        %v5335 = vsel %vm3200, %v5303, %v4737
        %v5336 = vsel %vm3200, %v5304, %v4739
        %v5337 = vsel %vm3200, %v5305, %v4741
        %v5338 = vsel %vm3200, %v5306, %v4743
        %v5339 = vsel %vm3200, %v5307, %v4745
        %v5340 = vsel %vm3233, %v5308, %v4810
        %v5341 = vsel %vm3233, %v5309, %v4812
        %v5342 = vsel %vm3233, %v5310, %v4814
        %v5343 = vsel %vm3233, %v5311, %v4816
        %v5344 = vsel %vm3233, %v5312, %v4818
        %v5345 = vsel %vm3233, %v5313, %v4820
        %v5346 = vsel %vm3233, %v5314, %v4822
        %v5347 = vsel %vm3233, %v5315, %v4824
        %v5348 = vsel %vm3233, %v5316, %v4826
        %v5349 = vsel %vm3233, %v5317, %v4828
        %v5350 = vsel %vm3233, %v5318, %v4830
        %v5351 = vsel %vm3233, %v5319, %v4832
        %v5352 = vsel %vm3233, %v5320, %v4834
        %v5353 = vsel %vm3233, %v5321, %v4836
        %v5354 = vsel %vm3233, %v5322, %v4838
        %v5355 = vsel %vm3233, %v5323, %v4840
        %v5356 = vsel %vm3233, %v5324, %v4842
        %v5357 = vsel %vm3233, %v5325, %v4844
        %v5358 = vsel %vm3233, %v5326, %v4846
        %v5359 = vsel %vm3233, %v5327, %v4848
        %v5360 = vsel %vm3233, %v5328, %v4850
        %v5361 = vsel %vm3233, %v5329, %v4852
        %v5362 = vsel %vm3233, %v5330, %v4854
        %v5363 = vsel %vm3233, %v5331, %v4856
        %v5364 = vsel %vm3233, %v5332, %v4858
        %v5365 = vsel %vm3233, %v5333, %v4860
        %v5366 = vsel %vm3233, %v5334, %v4862
        %v5367 = vsel %vm3233, %v5335, %v4864
        %v5368 = vsel %vm3233, %v5336, %v4866
        %v5369 = vsel %vm3233, %v5337, %v4868
        %v5370 = vsel %vm3233, %v5338, %v4870
        %v5371 = vsel %vm3233, %v5339, %v2745
        %v5372 = vsel %vm3266, %v5340, %v4904
        %v5373 = vsel %vm3266, %v5341, %v4906
        %v5374 = vsel %vm3266, %v5342, %v4908
        %v5375 = vsel %vm3266, %v5343, %v4910
        %v5376 = vsel %vm3266, %v5344, %v4912
        %v5377 = vsel %vm3266, %v5345, %v4914
        %v5378 = vsel %vm3266, %v5346, %v4916
        %v5379 = vsel %vm3266, %v5347, %v4918
        %v5380 = vsel %vm3266, %v5348, %v4920
        %v5381 = vsel %vm3266, %v5349, %v4922
        %v5382 = vsel %vm3266, %v5350, %v4924
        %v5383 = vsel %vm3266, %v5351, %v4926
        %v5384 = vsel %vm3266, %v5352, %v4928
        %v5385 = vsel %vm3266, %v5353, %v4930
        %v5386 = vsel %vm3266, %v5354, %v4932
        %v5387 = vsel %vm3266, %v5355, %v4934
        %v5388 = vsel %vm3266, %v5356, %v4936
        %v5389 = vsel %vm3266, %v5357, %v4938
        %v5390 = vsel %vm3266, %v5358, %v4940
        %v5391 = vsel %vm3266, %v5359, %v4942
        %v5392 = vsel %vm3266, %v5360, %v4944
        %v5393 = vsel %vm3266, %v5361, %v4946
        %v5394 = vsel %vm3266, %v5362, %v4948
        %v5395 = vsel %vm3266, %v5363, %v4950
        %v5396 = vsel %vm3266, %v5364, %v4952
        %v5397 = vsel %vm3266, %v5365, %v4954
        %v5398 = vsel %vm3266, %v5366, %v4956
        %v5399 = vsel %vm3266, %v5367, %v4958
        %v5400 = vsel %vm3266, %v5368, %v4960
        %v5401 = vsel %vm3266, %v5369, %v4962
        %v5402 = vsel %vm3266, %v5370, %v4964
        %v5403 = vsel %vm3266, %v5371, %v2842
        %v5404 = vsel %vm3299, %v5372, %v5090
        %v5405 = vsel %vm3299, %v5373, %v5092
        %v5406 = vsel %vm3299, %v5374, %v5094
        %v5407 = vsel %vm3299, %v5375, %v5096
        %v5408 = vsel %vm3299, %v5376, %v5098
        %v5409 = vsel %vm3299, %v5377, %v5100
        %v5410 = vsel %vm3299, %v5378, %v5102
        %v5411 = vsel %vm3299, %v5379, %v5104
        %v5412 = vsel %vm3299, %v5380, %v5106
        %v5413 = vsel %vm3299, %v5381, %v5108
        %v5414 = vsel %vm3299, %v5382, %v5110
        %v5415 = vsel %vm3299, %v5383, %v5112
        %v5416 = vsel %vm3299, %v5384, %v5114
        %v5417 = vsel %vm3299, %v5385, %v5116
        %v5418 = vsel %vm3299, %v5386, %v5118
        %v5419 = vsel %vm3299, %v5387, %v5120
        %v5420 = vsel %vm3299, %v5388, %v5122
        %v5421 = vsel %vm3299, %v5389, %v5124
        %v5422 = vsel %vm3299, %v5390, %v5126
        %v5423 = vsel %vm3299, %v5391, %v5128
        %v5424 = vsel %vm3299, %v5392, %v5130
        %v5425 = vsel %vm3299, %v5393, %v5132
        %v5426 = vsel %vm3299, %v5394, %v5134
        %v5427 = vsel %vm3299, %v5395, %v5136
        %v5428 = vsel %vm3299, %v5396, %v5138
        %v5429 = vsel %vm3299, %v5397, %v5140
        %v5430 = vsel %vm3299, %v5398, %v5142
        %v5431 = vsel %vm3299, %v5399, %v5144
        %v5432 = vsel %vm3299, %v5400, %v5146
        %v5433 = vsel %vm3299, %v5401, %v5148
        %v5434 = vsel %vm3299, %v5402, %v5150
        %v5435 = vsel %vm3299, %v5403, %v3036
        %v5436 = vld [vmem:[%s4] sm:$0xff]
        %v5437 = vld [vmem:[%s4 + $0x8] sm:$0xff]
        %v5438 = vld [vmem:[%s4 + $0x10] sm:$0xff]
        %v5439 = vld [vmem:[%s4 + $0x18] sm:$0xff]
        %v5440 = vld [vmem:[%s4 + $0x20] sm:$0xff]
        %v5441 = vld [vmem:[%s4 + $0x28] sm:$0xff]
        %v5442 = vld [vmem:[%s4 + $0x30] sm:$0xff]
        %v5443 = vld [vmem:[%s4 + $0x38] sm:$0xff]
        %v5444 = vld [vmem:[%s4 + $0x40] sm:$0xff]
        %v5446 = vsel %vm3341, %v5404, 0
        %v5449 = vsel %vm3341, %v5405, 0
        %v5452 = vsel %vm3341, %v5406, 0
        %v5455 = vsel %vm3341, %v5407, 0
        %v5458 = vsel %vm3341, %v5408, 0
        %v5461 = vsel %vm3341, %v5409, 0
        %v5464 = vsel %vm3341, %v5410, 0
        %v5467 = vsel %vm3341, %v5411, 0
        %v5470 = vsel %vm3341, %v5412, 0
        %v5473 = vsel %vm3341, %v5413, 0
        %v5476 = vsel %vm3341, %v5414, 0
        %v5479 = vsel %vm3341, %v5415, 0
        %v5482 = vsel %vm3341, %v5416, 0
        %v5485 = vsel %vm3341, %v5417, 0
        %v5488 = vsel %vm3341, %v5418, 0
        %v5491 = vsel %vm3341, %v5419, 0
        %v5494 = vsel %vm3341, %v5420, 0
        %v5497 = vsel %vm3341, %v5421, 0
        %v5500 = vsel %vm3341, %v5422, 0
        %v5503 = vsel %vm3341, %v5423, 0
        %v5506 = vsel %vm3341, %v5424, 0
        %v5509 = vsel %vm3341, %v5425, 0
        %v5512 = vsel %vm3341, %v5426, 0
        %v5515 = vsel %vm3341, %v5427, 0
        %v5518 = vsel %vm3341, %v5428, 0
        %v5521 = vsel %vm3341, %v5429, 0
        %v5524 = vsel %vm3341, %v5430, 0
        %v5527 = vsel %vm3341, %v5431, 0
        %v5530 = vsel %vm3341, %v5432, 0
        %v5533 = vsel %vm3341, %v5433, 0
        %v5536 = vsel %vm3341, %v5434, 0
        %v5539 = vsel %vm3341, %v5435, 0
        %5541 = vmatprep.subr.mxu0 0.0
        %5542 = vmatpush1.msra.mxu0 %v5436
        %5543 = vmatprep.subr.mxu0 0.0
        %5544 = vmatpush1.msra.mxu0 %v5437
        %5545 = vmatprep.subr.mxu0 0.0
        %5546 = vmatpush1.msra.mxu0 %v5438
        %5547 = vmatprep.subr.mxu0 0.0
        %5548 = vmatpush1.msra.mxu0 %v5439
        %5549 = vmatprep.subr.mxu0 0.0
        %5550 = vmatpush1.msra.mxu0 %v5440
        %5551 = vmatprep.subr.mxu0 0.0
        %5552 = vmatpush1.msra.mxu0 %v5441
        %5553 = vmatprep.subr.mxu0 0.0
        %5554 = vmatpush1.msra.mxu0 %v5442
        %5555 = vmatprep.subr.mxu0 0.0
        %5556 = vmatpush1.msra.mxu0 %v5443
        %5557 = vmatprep.subr.mxu0 0.0
        %5558 = vmatpush1.msra.mxu0 %v5444
        %5559 = vmatprep.subr.mxu0 0.0
        %5560 = vmatpush1.msra.mxu0 0.0
        %5561 = vmatprep.subr.mxu0 0.0
        %5562 = vmatpush1.msra.mxu0 0.0
        %5563 = vmatprep.subr.mxu0 0.0
        %5564 = vmatpush1.msra.mxu0 0.0
        %5565 = vmatprep.subr.mxu0 0.0
        %5566 = vmatpush1.msra.mxu0 0.0
        %5567 = vmatprep.subr.mxu0 0.0
        %5568 = vmatpush1.msra.mxu0 0.0
        %5569 = vmatprep.subr.mxu0 0.0
        %5570 = vmatpush1.msra.mxu0 0.0
        %5571 = vmatprep.subr.mxu0 0.0
        %5572 = vmatpush1.msra.mxu0 0.0
        %5573 = vmatprep.subr.mxu0 0.0
        %5574 = vmatpush1.msra.mxu0 0.0
        %5575 = vmatprep.subr.mxu0 0.0
        %5576 = vmatpush1.msra.mxu0 0.0
        %5577 = vmatprep.subr.mxu0 0.0
        %5578 = vmatpush1.msra.mxu0 0.0
        %5579 = vmatprep.subr.mxu0 0.0
        %5580 = vmatpush1.msra.mxu0 0.0
        %5581 = vmatprep.subr.mxu0 0.0
        %5582 = vmatpush1.msra.mxu0 0.0
        %5583 = vmatprep.subr.mxu0 0.0
        %5584 = vmatpush1.msra.mxu0 0.0
        %5585 = vmatprep.subr.mxu0 0.0
        %5586 = vmatpush1.msra.mxu0 0.0
        %5587 = vmatprep.subr.mxu0 0.0
        %5588 = vmatpush1.msra.mxu0 0.0
        %5589 = vmatprep.subr.mxu0 0.0
        %5590 = vmatpush1.msra.mxu0 0.0
        %5591 = vmatprep.subr.mxu0 0.0
        %5592 = vmatpush1.msra.mxu0 0.0
        %5593 = vmatprep.subr.mxu0 0.0
        %5594 = vmatpush1.msra.mxu0 0.0
        %5595 = vmatprep.subr.mxu0 0.0
        %5596 = vmatpush1.msra.mxu0 0.0
        %5597 = vmatprep.subr.mxu0 0.0
        %5598 = vmatpush1.msra.mxu0 0.0
        %5599 = vmatprep.subr.mxu0 0.0
        %5600 = vmatpush1.msra.mxu0 0.0
        %5601 = vmatprep.subr.mxu0 0.0
        %5602 = vmatpush1.msra.mxu0 0.0
        %5603 = vmatprep.subr.mxu0 0.0
        %5604 = vmatpush1.msra.mxu0 0.0
        %5605 = vmatprep.mubr.f32.mxu0 0.0
        %5606 = vmatmul.mubr.f32.gmra.mrb[0].mxu0 %v5446
        %v5607 = vpop.f32.mrb[0].mxu0
        %v5608 = vadd.f32 0.0, %v5607
        %v5609 = vpop.f32.mrb[0].mxu0
        %5610 = vmatprep.mubr.f32.mxu0 0.0
        %5611 = vmatmul.mubr.f32.gmra.mrb[0].mxu0 %v5449
        %v5612 = vpop.f32.mrb[0].mxu0
        %v5613 = vadd.f32 0.0, %v5612
        %v5614 = vpop.f32.mrb[0].mxu0
        %5615 = vmatprep.mubr.f32.mxu0 0.0
        %5616 = vmatmul.mubr.f32.gmra.mrb[0].mxu0 %v5452
        %v5617 = vpop.f32.mrb[0].mxu0
        %v5618 = vadd.f32 0.0, %v5617
        %v5619 = vpop.f32.mrb[0].mxu0
        %5620 = vmatprep.mubr.f32.mxu0 0.0
        %5621 = vmatmul.mubr.f32.gmra.mrb[0].mxu0 %v5455
        %v5622 = vpop.f32.mrb[0].mxu0
        %v5623 = vadd.f32 0.0, %v5622
        %v5624 = vpop.f32.mrb[0].mxu0
        %5625 = vmatprep.mubr.f32.mxu0 0.0
        %5626 = vmatmul.mubr.f32.gmra.mrb[0].mxu0 %v5458
        %v5627 = vpop.f32.mrb[0].mxu0
        %v5628 = vadd.f32 0.0, %v5627
        %v5629 = vpop.f32.mrb[0].mxu0
        %5630 = vmatprep.mubr.f32.mxu0 0.0
        %5631 = vmatmul.mubr.f32.gmra.mrb[0].mxu0 %v5461
        %v5632 = vpop.f32.mrb[0].mxu0
        %v5633 = vadd.f32 0.0, %v5632
        %v5634 = vpop.f32.mrb[0].mxu0
        %5635 = vmatprep.mubr.f32.mxu0 0.0
        %5636 = vmatmul.mubr.f32.gmra.mrb[0].mxu0 %v5464
        %v5637 = vpop.f32.mrb[0].mxu0
        %v5638 = vadd.f32 0.0, %v5637
        %v5639 = vpop.f32.mrb[0].mxu0
        %5640 = vmatprep.mubr.f32.mxu0 0.0
        %5641 = vmatmul.mubr.f32.gmra.mrb[0].mxu0 %v5467
        %v5642 = vpop.f32.mrb[0].mxu0
        %v5643 = vadd.f32 0.0, %v5642
        %v5644 = vpop.f32.mrb[0].mxu0
        %5645 = vmatprep.mubr.f32.mxu0 0.0
        %5646 = vmatmul.mubr.f32.gmra.mrb[0].mxu0 %v5470
        %v5647 = vpop.f32.mrb[0].mxu0
        %v5648 = vadd.f32 0.0, %v5647
        %v5649 = vpop.f32.mrb[0].mxu0
        %5650 = vmatprep.mubr.f32.mxu0 0.0
        %5651 = vmatmul.mubr.f32.gmra.mrb[0].mxu0 %v5473
        %v5652 = vpop.f32.mrb[0].mxu0
        %v5653 = vadd.f32 0.0, %v5652
        %v5654 = vpop.f32.mrb[0].mxu0
        %5655 = vmatprep.mubr.f32.mxu0 0.0
        %5656 = vmatmul.mubr.f32.gmra.mrb[0].mxu0 %v5476
        %v5657 = vpop.f32.mrb[0].mxu0
        %v5658 = vadd.f32 0.0, %v5657
        %v5659 = vpop.f32.mrb[0].mxu0
        %5660 = vmatprep.mubr.f32.mxu0 0.0
        %5661 = vmatmul.mubr.f32.gmra.mrb[0].mxu0 %v5479
        %v5662 = vpop.f32.mrb[0].mxu0
        %v5663 = vadd.f32 0.0, %v5662
        %v5664 = vpop.f32.mrb[0].mxu0
        %5665 = vmatprep.mubr.f32.mxu0 0.0
        %5666 = vmatmul.mubr.f32.gmra.mrb[0].mxu0 %v5482
        %v5667 = vpop.f32.mrb[0].mxu0
        %v5668 = vadd.f32 0.0, %v5667
        %v5669 = vpop.f32.mrb[0].mxu0
        %5670 = vmatprep.mubr.f32.mxu0 0.0
        %5671 = vmatmul.mubr.f32.gmra.mrb[0].mxu0 %v5485
        %v5672 = vpop.f32.mrb[0].mxu0
        %v5673 = vadd.f32 0.0, %v5672
        %v5674 = vpop.f32.mrb[0].mxu0
        %5675 = vmatprep.mubr.f32.mxu0 0.0
        %5676 = vmatmul.mubr.f32.gmra.mrb[0].mxu0 %v5488
        %v5677 = vpop.f32.mrb[0].mxu0
        %v5678 = vadd.f32 0.0, %v5677
        %v5679 = vpop.f32.mrb[0].mxu0
        %5680 = vmatprep.mubr.f32.mxu0 0.0
        %5681 = vmatmul.mubr.f32.gmra.mrb[0].mxu0 %v5491
        %v5682 = vpop.f32.mrb[0].mxu0
        %v5683 = vadd.f32 0.0, %v5682
        %v5684 = vpop.f32.mrb[0].mxu0
        %5685 = vmatprep.mubr.f32.mxu0 0.0
        %5686 = vmatmul.mubr.f32.gmra.mrb[0].mxu0 %v5494
        %v5687 = vpop.f32.mrb[0].mxu0
        %v5688 = vadd.f32 0.0, %v5687
        %v5689 = vpop.f32.mrb[0].mxu0
        %5690 = vmatprep.mubr.f32.mxu0 0.0
        %5691 = vmatmul.mubr.f32.gmra.mrb[0].mxu0 %v5497
        %v5692 = vpop.f32.mrb[0].mxu0
        %v5693 = vadd.f32 0.0, %v5692
        %v5694 = vpop.f32.mrb[0].mxu0
        %5695 = vmatprep.mubr.f32.mxu0 0.0
        %5696 = vmatmul.mubr.f32.gmra.mrb[0].mxu0 %v5500
        %v5697 = vpop.f32.mrb[0].mxu0
        %v5698 = vadd.f32 0.0, %v5697
        %v5699 = vpop.f32.mrb[0].mxu0
        %5700 = vmatprep.mubr.f32.mxu0 0.0
        %5701 = vmatmul.mubr.f32.gmra.mrb[0].mxu0 %v5503
        %v5702 = vpop.f32.mrb[0].mxu0
        %v5703 = vadd.f32 0.0, %v5702
        %v5704 = vpop.f32.mrb[0].mxu0
        %5705 = vmatprep.mubr.f32.mxu0 0.0
        %5706 = vmatmul.mubr.f32.gmra.mrb[0].mxu0 %v5506
        %v5707 = vpop.f32.mrb[0].mxu0
        %v5708 = vadd.f32 0.0, %v5707
        %v5709 = vpop.f32.mrb[0].mxu0
        %5710 = vmatprep.mubr.f32.mxu0 0.0
        %5711 = vmatmul.mubr.f32.gmra.mrb[0].mxu0 %v5509
        %v5712 = vpop.f32.mrb[0].mxu0
        %v5713 = vadd.f32 0.0, %v5712
        %v5714 = vpop.f32.mrb[0].mxu0
        %5715 = vmatprep.mubr.f32.mxu0 0.0
        %5716 = vmatmul.mubr.f32.gmra.mrb[0].mxu0 %v5512
        %v5717 = vpop.f32.mrb[0].mxu0
        %v5718 = vadd.f32 0.0, %v5717
        %v5719 = vpop.f32.mrb[0].mxu0
        %5720 = vmatprep.mubr.f32.mxu0 0.0
        %5721 = vmatmul.mubr.f32.gmra.mrb[0].mxu0 %v5515
        %v5722 = vpop.f32.mrb[0].mxu0
        %v5723 = vadd.f32 0.0, %v5722
        %v5724 = vpop.f32.mrb[0].mxu0
        %5725 = vmatprep.mubr.f32.mxu0 0.0
        %5726 = vmatmul.mubr.f32.gmra.mrb[0].mxu0 %v5518
        %v5727 = vpop.f32.mrb[0].mxu0
        %v5728 = vadd.f32 0.0, %v5727
        %v5729 = vpop.f32.mrb[0].mxu0
        %5730 = vmatprep.mubr.f32.mxu0 0.0
        %5731 = vmatmul.mubr.f32.gmra.mrb[0].mxu0 %v5521
        %v5732 = vpop.f32.mrb[0].mxu0
        %v5733 = vadd.f32 0.0, %v5732
        %v5734 = vpop.f32.mrb[0].mxu0
        %5735 = vmatprep.mubr.f32.mxu0 0.0
        %5736 = vmatmul.mubr.f32.gmra.mrb[0].mxu0 %v5524
        %v5737 = vpop.f32.mrb[0].mxu0
        %v5738 = vadd.f32 0.0, %v5737
        %v5739 = vpop.f32.mrb[0].mxu0
        %5740 = vmatprep.mubr.f32.mxu0 0.0
        %5741 = vmatmul.mubr.f32.gmra.mrb[0].mxu0 %v5527
        %v5742 = vpop.f32.mrb[0].mxu0
        %v5743 = vadd.f32 0.0, %v5742
        %v5744 = vpop.f32.mrb[0].mxu0
        %5745 = vmatprep.mubr.f32.mxu0 0.0
        %5746 = vmatmul.mubr.f32.gmra.mrb[0].mxu0 %v5530
        %v5747 = vpop.f32.mrb[0].mxu0
        %v5748 = vadd.f32 0.0, %v5747
        %v5749 = vpop.f32.mrb[0].mxu0
        %5750 = vmatprep.mubr.f32.mxu0 0.0
        %5751 = vmatmul.mubr.f32.gmra.mrb[0].mxu0 %v5533
        %v5752 = vpop.f32.mrb[0].mxu0
        %v5753 = vadd.f32 0.0, %v5752
        %v5754 = vpop.f32.mrb[0].mxu0
        %5755 = vmatprep.mubr.f32.mxu0 0.0
        %5756 = vmatmul.mubr.f32.gmra.mrb[0].mxu0 %v5536
        %v5757 = vpop.f32.mrb[0].mxu0
        %v5758 = vadd.f32 0.0, %v5757
        %v5759 = vpop.f32.mrb[0].mxu0
        %5760 = vmatprep.mubr.f32.mxu0 0.0
        %5761 = vmatmul.mubr.f32.gmra.mrb[0].mxu0 %v5539
        %v5762 = vpop.f32.mrb[0].mxu0
        %v5763 = vadd.f32 0.0, %v5762
        %v5764 = vpop.f32.mrb[0].mxu0
        %5765 = vdwg.mxu0
        %v5766 = vmax.f32 %v5608, 0.0
        %v5767 = vmax.f32 %v5613, 0.0
        %v5768 = vmax.f32 %v5618, 0.0
        %v5769 = vmax.f32 %v5623, 0.0
        %v5770 = vmax.f32 %v5628, 0.0
        %v5771 = vmax.f32 %v5633, 0.0
        %v5772 = vmax.f32 %v5638, 0.0
        %v5773 = vmax.f32 %v5643, 0.0
        %v5774 = vmax.f32 %v5648, 0.0
        %v5775 = vmax.f32 %v5653, 0.0
        %v5776 = vmax.f32 %v5658, 0.0
        %v5777 = vmax.f32 %v5663, 0.0
        %v5778 = vmax.f32 %v5668, 0.0
        %v5779 = vmax.f32 %v5673, 0.0
        %v5780 = vmax.f32 %v5678, 0.0
        %v5781 = vmax.f32 %v5683, 0.0
        %v5782 = vmax.f32 %v5688, 0.0
        %v5783 = vmax.f32 %v5693, 0.0
        %v5784 = vmax.f32 %v5698, 0.0
        %v5785 = vmax.f32 %v5703, 0.0
        %v5786 = vmax.f32 %v5708, 0.0
        %v5787 = vmax.f32 %v5713, 0.0
        %v5788 = vmax.f32 %v5718, 0.0
        %v5789 = vmax.f32 %v5723, 0.0
        %v5790 = vmax.f32 %v5728, 0.0
        %v5791 = vmax.f32 %v5733, 0.0
        %v5792 = vmax.f32 %v5738, 0.0
        %v5793 = vmax.f32 %v5743, 0.0
        %v5794 = vmax.f32 %v5748, 0.0
        %v5795 = vmax.f32 %v5753, 0.0
        %v5796 = vmax.f32 %v5758, 0.0
        %v5797 = vmax.f32 %v5763, 0.0
        %v5830 = vrot.slane %v5766, 7
        %v5831 = vrot.slane %v5767, 7
        %v5832 = vsel %vm1446, %v5830, %v5831
        %v5833 = vrot.slane %v5768, 7
        %v5834 = vsel %vm1446, %v5831, %v5833
        %v5835 = vrot.slane %v5769, 7
        %v5836 = vsel %vm1446, %v5833, %v5835
        %v5837 = vrot.slane %v5770, 7
        %v5838 = vsel %vm1446, %v5835, %v5837
        %v5839 = vrot.slane %v5771, 7
        %v5840 = vsel %vm1446, %v5837, %v5839
        %v5841 = vrot.slane %v5772, 7
        %v5842 = vsel %vm1446, %v5839, %v5841
        %v5843 = vrot.slane %v5773, 7
        %v5844 = vsel %vm1446, %v5841, %v5843
        %v5845 = vrot.slane %v5774, 7
        %v5846 = vsel %vm1446, %v5843, %v5845
        %v5847 = vrot.slane %v5775, 7
        %v5848 = vsel %vm1446, %v5845, %v5847
        %v5849 = vrot.slane %v5776, 7
        %v5850 = vsel %vm1446, %v5847, %v5849
        %v5851 = vrot.slane %v5777, 7
        %v5852 = vsel %vm1446, %v5849, %v5851
        %v5853 = vrot.slane %v5778, 7
        %v5854 = vsel %vm1446, %v5851, %v5853
        %v5855 = vrot.slane %v5779, 7
        %v5856 = vsel %vm1446, %v5853, %v5855
        %v5857 = vrot.slane %v5780, 7
        %v5858 = vsel %vm1446, %v5855, %v5857
        %v5859 = vrot.slane %v5781, 7
        %v5860 = vsel %vm1446, %v5857, %v5859
        %v5861 = vrot.slane %v5782, 7
        %v5862 = vsel %vm1446, %v5859, %v5861
        %v5863 = vrot.slane %v5783, 7
        %v5864 = vsel %vm1446, %v5861, %v5863
        %v5865 = vrot.slane %v5784, 7
        %v5866 = vsel %vm1446, %v5863, %v5865
        %v5867 = vrot.slane %v5785, 7
        %v5868 = vsel %vm1446, %v5865, %v5867
        %v5869 = vrot.slane %v5786, 7
        %v5870 = vsel %vm1446, %v5867, %v5869
        %v5871 = vrot.slane %v5787, 7
        %v5872 = vsel %vm1446, %v5869, %v5871
        %v5873 = vrot.slane %v5788, 7
        %v5874 = vsel %vm1446, %v5871, %v5873
        %v5875 = vrot.slane %v5789, 7
        %v5876 = vsel %vm1446, %v5873, %v5875
        %v5877 = vrot.slane %v5790, 7
        %v5878 = vsel %vm1446, %v5875, %v5877
        %v5879 = vrot.slane %v5791, 7
        %v5880 = vsel %vm1446, %v5877, %v5879
        %v5881 = vrot.slane %v5792, 7
        %v5882 = vsel %vm1446, %v5879, %v5881
        %v5883 = vrot.slane %v5793, 7
        %v5884 = vsel %vm1446, %v5881, %v5883
        %v5885 = vrot.slane %v5794, 7
        %v5886 = vsel %vm1446, %v5883, %v5885
        %v5887 = vrot.slane %v5795, 7
        %v5888 = vsel %vm1446, %v5885, %v5887
        %v5889 = vrot.slane %v5796, 7
        %v5890 = vsel %vm1446, %v5887, %v5889
        %v5891 = vrot.slane %v5797, 7
        %v5892 = vsel %vm1446, %v5889, %v5891
        %v5926 = vsel %vm1446, 0.0, %v5830
        %v5927 = vsel %vm1446, %v5891, 0.0
        %v5928 = vmul.f32 %v5926, %v1288
        %v5929 = vmul.f32 %v5832, %v1289
        %v5930 = vmul.f32 %v5834, %v1290
        %v5931 = vmul.f32 %v5836, %v1291
        %v5932 = vmul.f32 %v5838, %v1292
        %v5933 = vmul.f32 %v5840, %v1293
        %v5934 = vmul.f32 %v5842, %v1294
        %v5935 = vmul.f32 %v5844, %v1295
        %v5936 = vmul.f32 %v5846, %v1296
        %v5937 = vmul.f32 %v5848, %v1297
        %v5938 = vmul.f32 %v5850, %v1298
        %v5939 = vmul.f32 %v5852, %v1299
        %v5940 = vmul.f32 %v5854, %v1300
        %v5941 = vmul.f32 %v5856, %v1301
        %v5942 = vmul.f32 %v5858, %v1302
        %v5943 = vmul.f32 %v5860, %v1303
        %v5944 = vmul.f32 %v5862, %v1304
        %v5945 = vmul.f32 %v5864, %v1305
        %v5946 = vmul.f32 %v5866, %v1306
        %v5947 = vmul.f32 %v5868, %v1307
        %v5948 = vmul.f32 %v5870, %v1308
        %v5949 = vmul.f32 %v5872, %v1309
        %v5950 = vmul.f32 %v5874, %v1310
        %v5951 = vmul.f32 %v5876, %v1311
        %v5952 = vmul.f32 %v5878, %v1312
        %v5953 = vmul.f32 %v5880, %v1313
        %v5954 = vmul.f32 %v5882, %v1314
        %v5955 = vmul.f32 %v5884, %v1315
        %v5956 = vmul.f32 %v5886, %v1316
        %v5957 = vmul.f32 %v5888, %v1317
        %v5958 = vmul.f32 %v5926, %v1614
        %v5959 = vmul.f32 %v5832, %v1616
        %v5960 = vmul.f32 %v5834, %v1618
        %v5961 = vmul.f32 %v5836, %v1620
        %v5962 = vmul.f32 %v5838, %v1622
        %v5963 = vmul.f32 %v5840, %v1624
        %v5964 = vmul.f32 %v5842, %v1626
        %v5965 = vmul.f32 %v5844, %v1628
        %v5966 = vmul.f32 %v5846, %v1630
        %v5967 = vmul.f32 %v5848, %v1632
        %v5968 = vmul.f32 %v5850, %v1634
        %v5969 = vmul.f32 %v5852, %v1636
        %v5970 = vmul.f32 %v5854, %v1638
        %v5971 = vmul.f32 %v5856, %v1640
        %v5972 = vmul.f32 %v5858, %v1642
        %v5973 = vmul.f32 %v5860, %v1644
        %v5974 = vmul.f32 %v5862, %v1646
        %v5975 = vmul.f32 %v5864, %v1648
        %v5976 = vmul.f32 %v5866, %v1650
        %v5977 = vmul.f32 %v5868, %v1652
        %v5978 = vmul.f32 %v5870, %v1654
        %v5979 = vmul.f32 %v5872, %v1656
        %v5980 = vmul.f32 %v5874, %v1658
        %v5981 = vmul.f32 %v5876, %v1660
        %v5982 = vmul.f32 %v5878, %v1662
        %v5983 = vmul.f32 %v5880, %v1664
        %v5984 = vmul.f32 %v5882, %v1666
        %v5985 = vmul.f32 %v5884, %v1668
        %v5986 = vmul.f32 %v5886, %v1670
        %v5987 = vmul.f32 %v5888, %v1672
        %v5988 = vmul.f32 %v5890, %v1671
        %v5989 = vmul.f32 %v5926, %v1286
        %v5990 = vmul.f32 %v5832, %v1287
        %v5991 = vmul.f32 %v5834, %v1288
        %v5992 = vmul.f32 %v5836, %v1289
        %v5993 = vmul.f32 %v5838, %v1290
        %v5994 = vmul.f32 %v5840, %v1291
        %v5995 = vmul.f32 %v5842, %v1292
        %v5996 = vmul.f32 %v5844, %v1293
        %v5997 = vmul.f32 %v5846, %v1294
        %v5998 = vmul.f32 %v5848, %v1295
        %v5999 = vmul.f32 %v5850, %v1296
        %v6000 = vmul.f32 %v5852, %v1297
        %v6001 = vmul.f32 %v5854, %v1298
        %v6002 = vmul.f32 %v5856, %v1299
        %v6003 = vmul.f32 %v5858, %v1300
        %v6004 = vmul.f32 %v5860, %v1301
        %v6005 = vmul.f32 %v5862, %v1302
        %v6006 = vmul.f32 %v5864, %v1303
        %v6007 = vmul.f32 %v5866, %v1304
        %v6008 = vmul.f32 %v5868, %v1305
        %v6009 = vmul.f32 %v5870, %v1306
        %v6010 = vmul.f32 %v5872, %v1307
        %v6011 = vmul.f32 %v5874, %v1308
        %v6012 = vmul.f32 %v5876, %v1309
        %v6013 = vmul.f32 %v5878, %v1310
        %v6014 = vmul.f32 %v5880, %v1311
        %v6015 = vmul.f32 %v5882, %v1312
        %v6016 = vmul.f32 %v5884, %v1313
        %v6017 = vmul.f32 %v5886, %v1314
        %v6018 = vmul.f32 %v5888, %v1315
        %v6019 = vmul.f32 %v5890, %v1316
        %v6020 = vmul.f32 %v5892, %v1317
        %v6021 = vmul.f32 %v5926, %v1610
        %v6022 = vmul.f32 %v5832, %v1612
        %v6023 = vmul.f32 %v5834, %v1614
        %v6024 = vmul.f32 %v5836, %v1616
        %v6025 = vmul.f32 %v5838, %v1618
        %v6026 = vmul.f32 %v5840, %v1620
        %v6027 = vmul.f32 %v5842, %v1622
        %v6028 = vmul.f32 %v5844, %v1624
        %v6029 = vmul.f32 %v5846, %v1626
        %v6030 = vmul.f32 %v5848, %v1628
        %v6031 = vmul.f32 %v5850, %v1630
        %v6032 = vmul.f32 %v5852, %v1632
        %v6033 = vmul.f32 %v5854, %v1634
        %v6034 = vmul.f32 %v5856, %v1636
        %v6035 = vmul.f32 %v5858, %v1638
        %v6036 = vmul.f32 %v5860, %v1640
        %v6037 = vmul.f32 %v5862, %v1642
        %v6038 = vmul.f32 %v5864, %v1644
        %v6039 = vmul.f32 %v5866, %v1646
        %v6040 = vmul.f32 %v5868, %v1648
        %v6041 = vmul.f32 %v5870, %v1650
        %v6042 = vmul.f32 %v5872, %v1652
        %v6043 = vmul.f32 %v5874, %v1654
        %v6044 = vmul.f32 %v5876, %v1656
        %v6045 = vmul.f32 %v5878, %v1658
        %v6046 = vmul.f32 %v5880, %v1660
        %v6047 = vmul.f32 %v5882, %v1662
        %v6048 = vmul.f32 %v5884, %v1664
        %v6049 = vmul.f32 %v5886, %v1666
        %v6050 = vmul.f32 %v5888, %v1668
        %v6051 = vmul.f32 %v5890, %v1670
        %v6052 = vmul.f32 %v5892, %v1672
        %v6053 = vmul.f32 %v5927, %v1671
        %v6054 = vmul.f32 %v5834, %v1286
        %v6055 = vmul.f32 %v5836, %v1287
        %v6056 = vmul.f32 %v5838, %v1288
        %v6057 = vmul.f32 %v5840, %v1289
        %v6058 = vmul.f32 %v5842, %v1290
        %v6059 = vmul.f32 %v5844, %v1291
        %v6060 = vmul.f32 %v5846, %v1292
        %v6061 = vmul.f32 %v5848, %v1293
        %v6062 = vmul.f32 %v5850, %v1294
        %v6063 = vmul.f32 %v5852, %v1295
        %v6064 = vmul.f32 %v5854, %v1296
        %v6065 = vmul.f32 %v5856, %v1297
        %v6066 = vmul.f32 %v5858, %v1298
        %v6067 = vmul.f32 %v5860, %v1299
        %v6068 = vmul.f32 %v5862, %v1300
        %v6069 = vmul.f32 %v5864, %v1301
        %v6070 = vmul.f32 %v5866, %v1302
        %v6071 = vmul.f32 %v5868, %v1303
        %v6072 = vmul.f32 %v5870, %v1304
        %v6073 = vmul.f32 %v5872, %v1305
        %v6074 = vmul.f32 %v5874, %v1306
        %v6075 = vmul.f32 %v5876, %v1307
        %v6076 = vmul.f32 %v5878, %v1308
        %v6077 = vmul.f32 %v5880, %v1309
        %v6078 = vmul.f32 %v5882, %v1310
        %v6079 = vmul.f32 %v5884, %v1311
        %v6080 = vmul.f32 %v5886, %v1312
        %v6081 = vmul.f32 %v5888, %v1313
        %v6082 = vmul.f32 %v5890, %v1314
        %v6083 = vmul.f32 %v5892, %v1315
        %v6084 = vmul.f32 %v5927, %v1316
        %v6085 = vmul.f32 %v5834, %v1610
        %v6086 = vmul.f32 %v5836, %v1612
        %v6087 = vmul.f32 %v5838, %v1614
        %v6088 = vmul.f32 %v5840, %v1616
        %v6089 = vmul.f32 %v5842, %v1618
        %v6090 = vmul.f32 %v5844, %v1620
        %v6091 = vmul.f32 %v5846, %v1622
        %v6092 = vmul.f32 %v5848, %v1624
        %v6093 = vmul.f32 %v5850, %v1626
        %v6094 = vmul.f32 %v5852, %v1628
        %v6095 = vmul.f32 %v5854, %v1630
        %v6096 = vmul.f32 %v5856, %v1632
        %v6097 = vmul.f32 %v5858, %v1634
        %v6098 = vmul.f32 %v5860, %v1636
        %v6099 = vmul.f32 %v5862, %v1638
        %v6100 = vmul.f32 %v5864, %v1640
        %v6101 = vmul.f32 %v5866, %v1642
        %v6102 = vmul.f32 %v5868, %v1644
        %v6103 = vmul.f32 %v5870, %v1646
        %v6104 = vmul.f32 %v5872, %v1648
        %v6105 = vmul.f32 %v5874, %v1650
        %v6106 = vmul.f32 %v5876, %v1652
        %v6107 = vmul.f32 %v5878, %v1654
        %v6108 = vmul.f32 %v5880, %v1656
        %v6109 = vmul.f32 %v5882, %v1658
        %v6110 = vmul.f32 %v5884, %v1660
        %v6111 = vmul.f32 %v5886, %v1662
        %v6112 = vmul.f32 %v5888, %v1664
        %v6113 = vmul.f32 %v5890, %v1666
        %v6114 = vmul.f32 %v5892, %v1668
        %v6115 = vmul.f32 %v5927, %v1670
        %v6117 = vrot.slane %v5926, 1
        %v6118 = vsel %vm1871, %v1872, %v6117
        %v6119 = vrot.slane %v5832, 1
        %v6120 = vsel %vm1871, %v6117, %v6119
        %v6121 = vrot.slane %v5834, 1
        %v6122 = vsel %vm1871, %v6119, %v6121
        %v6123 = vrot.slane %v5836, 1
        %v6124 = vsel %vm1871, %v6121, %v6123
        %v6125 = vrot.slane %v5838, 1
        %v6126 = vsel %vm1871, %v6123, %v6125
        %v6127 = vrot.slane %v5840, 1
        %v6128 = vsel %vm1871, %v6125, %v6127
        %v6129 = vrot.slane %v5842, 1
        %v6130 = vsel %vm1871, %v6127, %v6129
        %v6131 = vrot.slane %v5844, 1
        %v6132 = vsel %vm1871, %v6129, %v6131
        %v6133 = vrot.slane %v5846, 1
        %v6134 = vsel %vm1871, %v6131, %v6133
        %v6135 = vrot.slane %v5848, 1
        %v6136 = vsel %vm1871, %v6133, %v6135
        %v6137 = vrot.slane %v5850, 1
        %v6138 = vsel %vm1871, %v6135, %v6137
        %v6139 = vrot.slane %v5852, 1
        %v6140 = vsel %vm1871, %v6137, %v6139
        %v6141 = vrot.slane %v5854, 1
        %v6142 = vsel %vm1871, %v6139, %v6141
        %v6143 = vrot.slane %v5856, 1
        %v6144 = vsel %vm1871, %v6141, %v6143
        %v6145 = vrot.slane %v5858, 1
        %v6146 = vsel %vm1871, %v6143, %v6145
        %v6147 = vrot.slane %v5860, 1
        %v6148 = vsel %vm1871, %v6145, %v6147
        %v6149 = vrot.slane %v5862, 1
        %v6150 = vsel %vm1871, %v6147, %v6149
        %v6151 = vrot.slane %v5864, 1
        %v6152 = vsel %vm1871, %v6149, %v6151
        %v6153 = vrot.slane %v5866, 1
        %v6154 = vsel %vm1871, %v6151, %v6153
        %v6155 = vrot.slane %v5868, 1
        %v6156 = vsel %vm1871, %v6153, %v6155
        %v6157 = vrot.slane %v5870, 1
        %v6158 = vsel %vm1871, %v6155, %v6157
        %v6159 = vrot.slane %v5872, 1
        %v6160 = vsel %vm1871, %v6157, %v6159
        %v6161 = vrot.slane %v5874, 1
        %v6162 = vsel %vm1871, %v6159, %v6161
        %v6163 = vrot.slane %v5876, 1
        %v6164 = vsel %vm1871, %v6161, %v6163
        %v6165 = vrot.slane %v5878, 1
        %v6166 = vsel %vm1871, %v6163, %v6165
        %v6167 = vrot.slane %v5880, 1
        %v6168 = vsel %vm1871, %v6165, %v6167
        %v6169 = vrot.slane %v5882, 1
        %v6170 = vsel %vm1871, %v6167, %v6169
        %v6171 = vrot.slane %v5884, 1
        %v6172 = vsel %vm1871, %v6169, %v6171
        %v6173 = vrot.slane %v5886, 1
        %v6174 = vsel %vm1871, %v6171, %v6173
        %v6175 = vrot.slane %v5888, 1
        %v6176 = vsel %vm1871, %v6173, %v6175
        %v6177 = vrot.slane %v5890, 1
        %v6178 = vsel %vm1871, %v6175, %v6177
        %6179 = vrot.lane.b32.xlu0 %v6118, 8
        %v6180 = vpop.permute.xlu0 %6179
        %6181 = vrot.lane.b32.xlu0 %v6120, 8
        %v6182 = vpop.permute.xlu0 %6181
        %6183 = vrot.lane.b32.xlu0 %v6122, 8
        %v6184 = vpop.permute.xlu0 %6183
        %6185 = vrot.lane.b32.xlu0 %v6124, 8
        %v6186 = vpop.permute.xlu0 %6185
        %6187 = vrot.lane.b32.xlu0 %v6126, 8
        %v6188 = vpop.permute.xlu0 %6187
        %6189 = vrot.lane.b32.xlu0 %v6128, 8
        %v6190 = vpop.permute.xlu0 %6189
        %6191 = vrot.lane.b32.xlu0 %v6130, 8
        %v6192 = vpop.permute.xlu0 %6191
        %6193 = vrot.lane.b32.xlu0 %v6132, 8
        %v6194 = vpop.permute.xlu0 %6193
        %6195 = vrot.lane.b32.xlu0 %v6134, 8
        %v6196 = vpop.permute.xlu0 %6195
        %6197 = vrot.lane.b32.xlu0 %v6136, 8
        %v6198 = vpop.permute.xlu0 %6197
        %6199 = vrot.lane.b32.xlu0 %v6138, 8
        %v6200 = vpop.permute.xlu0 %6199
        %6201 = vrot.lane.b32.xlu0 %v6140, 8
        %v6202 = vpop.permute.xlu0 %6201
        %6203 = vrot.lane.b32.xlu0 %v6142, 8
        %v6204 = vpop.permute.xlu0 %6203
        %6205 = vrot.lane.b32.xlu0 %v6144, 8
        %v6206 = vpop.permute.xlu0 %6205
        %6207 = vrot.lane.b32.xlu0 %v6146, 8
        %v6208 = vpop.permute.xlu0 %6207
        %6209 = vrot.lane.b32.xlu0 %v6148, 8
        %v6210 = vpop.permute.xlu0 %6209
        %6211 = vrot.lane.b32.xlu0 %v6150, 8
        %v6212 = vpop.permute.xlu0 %6211
        %6213 = vrot.lane.b32.xlu0 %v6152, 8
        %v6214 = vpop.permute.xlu0 %6213
        %6215 = vrot.lane.b32.xlu0 %v6154, 8
        %v6216 = vpop.permute.xlu0 %6215
        %6217 = vrot.lane.b32.xlu0 %v6156, 8
        %v6218 = vpop.permute.xlu0 %6217
        %6219 = vrot.lane.b32.xlu0 %v6158, 8
        %v6220 = vpop.permute.xlu0 %6219
        %6221 = vrot.lane.b32.xlu0 %v6160, 8
        %v6222 = vpop.permute.xlu0 %6221
        %6223 = vrot.lane.b32.xlu0 %v6162, 8
        %v6224 = vpop.permute.xlu0 %6223
        %6225 = vrot.lane.b32.xlu0 %v6164, 8
        %v6226 = vpop.permute.xlu0 %6225
        %6227 = vrot.lane.b32.xlu0 %v6166, 8
        %v6228 = vpop.permute.xlu0 %6227
        %6229 = vrot.lane.b32.xlu0 %v6168, 8
        %v6230 = vpop.permute.xlu0 %6229
        %6231 = vrot.lane.b32.xlu0 %v6170, 8
        %v6232 = vpop.permute.xlu0 %6231
        %6233 = vrot.lane.b32.xlu0 %v6172, 8
        %v6234 = vpop.permute.xlu0 %6233
        %6235 = vrot.lane.b32.xlu0 %v6174, 8
        %v6236 = vpop.permute.xlu0 %6235
        %6237 = vrot.lane.b32.xlu0 %v6176, 8
        %v6238 = vpop.permute.xlu0 %6237
        %6239 = vrot.lane.b32.xlu0 %v6178, 8
        %v6240 = vpop.permute.xlu0 %6239
        %v6303 = vrot.slane %v5958, 2
        %v6304 = vsel %vm2065, %v2067, %v6303
        %v6305 = vrot.slane %v5959, 2
        %v6306 = vsel %vm2065, %v6303, %v6305
        %v6307 = vrot.slane %v5960, 2
        %v6308 = vsel %vm2065, %v6305, %v6307
        %v6309 = vrot.slane %v5961, 2
        %v6310 = vsel %vm2065, %v6307, %v6309
        %v6311 = vrot.slane %v5962, 2
        %v6312 = vsel %vm2065, %v6309, %v6311
        %v6313 = vrot.slane %v5963, 2
        %v6314 = vsel %vm2065, %v6311, %v6313
        %v6315 = vrot.slane %v5964, 2
        %v6316 = vsel %vm2065, %v6313, %v6315
        %v6317 = vrot.slane %v5965, 2
        %v6318 = vsel %vm2065, %v6315, %v6317
        %v6319 = vrot.slane %v5966, 2
        %v6320 = vsel %vm2065, %v6317, %v6319
        %v6321 = vrot.slane %v5967, 2
        %v6322 = vsel %vm2065, %v6319, %v6321
        %v6323 = vrot.slane %v5968, 2
        %v6324 = vsel %vm2065, %v6321, %v6323
        %v6325 = vrot.slane %v5969, 2
        %v6326 = vsel %vm2065, %v6323, %v6325
        %v6327 = vrot.slane %v5970, 2
        %v6328 = vsel %vm2065, %v6325, %v6327
        %v6329 = vrot.slane %v5971, 2
        %v6330 = vsel %vm2065, %v6327, %v6329
        %v6331 = vrot.slane %v5972, 2
        %v6332 = vsel %vm2065, %v6329, %v6331
        %v6333 = vrot.slane %v5973, 2
        %v6334 = vsel %vm2065, %v6331, %v6333
        %v6335 = vrot.slane %v5974, 2
        %v6336 = vsel %vm2065, %v6333, %v6335
        %v6337 = vrot.slane %v5975, 2
        %v6338 = vsel %vm2065, %v6335, %v6337
        %v6339 = vrot.slane %v5976, 2
        %v6340 = vsel %vm2065, %v6337, %v6339
        %v6341 = vrot.slane %v5977, 2
        %v6342 = vsel %vm2065, %v6339, %v6341
        %v6343 = vrot.slane %v5978, 2
        %v6344 = vsel %vm2065, %v6341, %v6343
        %v6345 = vrot.slane %v5979, 2
        %v6346 = vsel %vm2065, %v6343, %v6345
        %v6347 = vrot.slane %v5980, 2
        %v6348 = vsel %vm2065, %v6345, %v6347
        %v6349 = vrot.slane %v5981, 2
        %v6350 = vsel %vm2065, %v6347, %v6349
        %v6351 = vrot.slane %v5982, 2
        %v6352 = vsel %vm2065, %v6349, %v6351
        %v6353 = vrot.slane %v5983, 2
        %v6354 = vsel %vm2065, %v6351, %v6353
        %v6355 = vrot.slane %v5984, 2
        %v6356 = vsel %vm2065, %v6353, %v6355
        %v6357 = vrot.slane %v5985, 2
        %v6358 = vsel %vm2065, %v6355, %v6357
        %v6359 = vrot.slane %v5986, 2
        %v6360 = vsel %vm2065, %v6357, %v6359
        %v6361 = vrot.slane %v5987, 2
        %v6362 = vsel %vm2065, %v6359, %v6361
        %v6363 = vrot.slane %v5988, 2
        %v6364 = vsel %vm2065, %v6361, %v6363
        %6365 = vrot.lane.b32.xlu0 %v6304, 16
        %v6366 = vpop.permute.xlu0 %6365
        %6367 = vrot.lane.b32.xlu0 %v6306, 16
        %v6368 = vpop.permute.xlu0 %6367
        %6369 = vrot.lane.b32.xlu0 %v6308, 16
        %v6370 = vpop.permute.xlu0 %6369
        %6371 = vrot.lane.b32.xlu0 %v6310, 16
        %v6372 = vpop.permute.xlu0 %6371
        %6373 = vrot.lane.b32.xlu0 %v6312, 16
        %v6374 = vpop.permute.xlu0 %6373
        %6375 = vrot.lane.b32.xlu0 %v6314, 16
        %v6376 = vpop.permute.xlu0 %6375
        %6377 = vrot.lane.b32.xlu0 %v6316, 16
        %v6378 = vpop.permute.xlu0 %6377
        %6379 = vrot.lane.b32.xlu0 %v6318, 16
        %v6380 = vpop.permute.xlu0 %6379
        %6381 = vrot.lane.b32.xlu0 %v6320, 16
        %v6382 = vpop.permute.xlu0 %6381
        %6383 = vrot.lane.b32.xlu0 %v6322, 16
        %v6384 = vpop.permute.xlu0 %6383
        %6385 = vrot.lane.b32.xlu0 %v6324, 16
        %v6386 = vpop.permute.xlu0 %6385
        %6387 = vrot.lane.b32.xlu0 %v6326, 16
        %v6388 = vpop.permute.xlu0 %6387
        %6389 = vrot.lane.b32.xlu0 %v6328, 16
        %v6390 = vpop.permute.xlu0 %6389
        %6391 = vrot.lane.b32.xlu0 %v6330, 16
        %v6392 = vpop.permute.xlu0 %6391
        %6393 = vrot.lane.b32.xlu0 %v6332, 16
        %v6394 = vpop.permute.xlu0 %6393
        %6395 = vrot.lane.b32.xlu0 %v6334, 16
        %v6396 = vpop.permute.xlu0 %6395
        %6397 = vrot.lane.b32.xlu0 %v6336, 16
        %v6398 = vpop.permute.xlu0 %6397
        %6399 = vrot.lane.b32.xlu0 %v6338, 16
        %v6400 = vpop.permute.xlu0 %6399
        %6401 = vrot.lane.b32.xlu0 %v6340, 16
        %v6402 = vpop.permute.xlu0 %6401
        %6403 = vrot.lane.b32.xlu0 %v6342, 16
        %v6404 = vpop.permute.xlu0 %6403
        %6405 = vrot.lane.b32.xlu0 %v6344, 16
        %v6406 = vpop.permute.xlu0 %6405
        %6407 = vrot.lane.b32.xlu0 %v6346, 16
        %v6408 = vpop.permute.xlu0 %6407
        %6409 = vrot.lane.b32.xlu0 %v6348, 16
        %v6410 = vpop.permute.xlu0 %6409
        %6411 = vrot.lane.b32.xlu0 %v6350, 16
        %v6412 = vpop.permute.xlu0 %6411
        %6413 = vrot.lane.b32.xlu0 %v6352, 16
        %v6414 = vpop.permute.xlu0 %6413
        %6415 = vrot.lane.b32.xlu0 %v6354, 16
        %v6416 = vpop.permute.xlu0 %6415
        %6417 = vrot.lane.b32.xlu0 %v6356, 16
        %v6418 = vpop.permute.xlu0 %6417
        %6419 = vrot.lane.b32.xlu0 %v6358, 16
        %v6420 = vpop.permute.xlu0 %6419
        %6421 = vrot.lane.b32.xlu0 %v6360, 16
        %v6422 = vpop.permute.xlu0 %6421
        %6423 = vrot.lane.b32.xlu0 %v6362, 16
        %v6424 = vpop.permute.xlu0 %6423
        %6425 = vrot.lane.b32.xlu0 %v6364, 16
        %v6426 = vpop.permute.xlu0 %6425
        %6490 = vrot.lane.b32.xlu0 %v5989, 24
        %v6491 = vpop.permute.xlu0 %6490
        %6492 = vrot.lane.b32.xlu0 %v5990, 24
        %v6493 = vpop.permute.xlu0 %6492
        %6494 = vrot.lane.b32.xlu0 %v5991, 24
        %v6495 = vpop.permute.xlu0 %6494
        %6496 = vrot.lane.b32.xlu0 %v5992, 24
        %v6497 = vpop.permute.xlu0 %6496
        %6498 = vrot.lane.b32.xlu0 %v5993, 24
        %v6499 = vpop.permute.xlu0 %6498
        %6500 = vrot.lane.b32.xlu0 %v5994, 24
        %v6501 = vpop.permute.xlu0 %6500
        %6502 = vrot.lane.b32.xlu0 %v5995, 24
        %v6503 = vpop.permute.xlu0 %6502
        %6504 = vrot.lane.b32.xlu0 %v5996, 24
        %v6505 = vpop.permute.xlu0 %6504
        %6506 = vrot.lane.b32.xlu0 %v5997, 24
        %v6507 = vpop.permute.xlu0 %6506
        %6508 = vrot.lane.b32.xlu0 %v5998, 24
        %v6509 = vpop.permute.xlu0 %6508
        %6510 = vrot.lane.b32.xlu0 %v5999, 24
        %v6511 = vpop.permute.xlu0 %6510
        %6512 = vrot.lane.b32.xlu0 %v6000, 24
        %v6513 = vpop.permute.xlu0 %6512
        %6514 = vrot.lane.b32.xlu0 %v6001, 24
        %v6515 = vpop.permute.xlu0 %6514
        %6516 = vrot.lane.b32.xlu0 %v6002, 24
        %v6517 = vpop.permute.xlu0 %6516
        %6518 = vrot.lane.b32.xlu0 %v6003, 24
        %v6519 = vpop.permute.xlu0 %6518
        %6520 = vrot.lane.b32.xlu0 %v6004, 24
        %v6521 = vpop.permute.xlu0 %6520
        %6522 = vrot.lane.b32.xlu0 %v6005, 24
        %v6523 = vpop.permute.xlu0 %6522
        %6524 = vrot.lane.b32.xlu0 %v6006, 24
        %v6525 = vpop.permute.xlu0 %6524
        %6526 = vrot.lane.b32.xlu0 %v6007, 24
        %v6527 = vpop.permute.xlu0 %6526
        %6528 = vrot.lane.b32.xlu0 %v6008, 24
        %v6529 = vpop.permute.xlu0 %6528
        %6530 = vrot.lane.b32.xlu0 %v6009, 24
        %v6531 = vpop.permute.xlu0 %6530
        %6532 = vrot.lane.b32.xlu0 %v6010, 24
        %v6533 = vpop.permute.xlu0 %6532
        %6534 = vrot.lane.b32.xlu0 %v6011, 24
        %v6535 = vpop.permute.xlu0 %6534
        %6536 = vrot.lane.b32.xlu0 %v6012, 24
        %v6537 = vpop.permute.xlu0 %6536
        %6538 = vrot.lane.b32.xlu0 %v6013, 24
        %v6539 = vpop.permute.xlu0 %6538
        %6540 = vrot.lane.b32.xlu0 %v6014, 24
        %v6541 = vpop.permute.xlu0 %6540
        %6542 = vrot.lane.b32.xlu0 %v6015, 24
        %v6543 = vpop.permute.xlu0 %6542
        %6544 = vrot.lane.b32.xlu0 %v6016, 24
        %v6545 = vpop.permute.xlu0 %6544
        %6546 = vrot.lane.b32.xlu0 %v6017, 24
        %v6547 = vpop.permute.xlu0 %6546
        %6548 = vrot.lane.b32.xlu0 %v6018, 24
        %v6549 = vpop.permute.xlu0 %6548
        %6550 = vrot.lane.b32.xlu0 %v6019, 24
        %v6551 = vpop.permute.xlu0 %6550
        %6552 = vrot.lane.b32.xlu0 %v6020, 24
        %v6553 = vpop.permute.xlu0 %6552
        %v6587 = vrot.slane %v5892, 1
        %v6588 = vsel %vm1871, %v6177, %v6587
        %v6589 = vrot.slane %v5927, 1
        %v6590 = vsel %vm1871, %v6587, %v6589
        %6591 = vrot.lane.b32.xlu0 %v6120, 32
        %v6592 = vpop.permute.xlu0 %6591
        %6593 = vrot.lane.b32.xlu0 %v6122, 32
        %v6594 = vpop.permute.xlu0 %6593
        %6595 = vrot.lane.b32.xlu0 %v6124, 32
        %v6596 = vpop.permute.xlu0 %6595
        %6597 = vrot.lane.b32.xlu0 %v6126, 32
        %v6598 = vpop.permute.xlu0 %6597
        %6599 = vrot.lane.b32.xlu0 %v6128, 32
        %v6600 = vpop.permute.xlu0 %6599
        %6601 = vrot.lane.b32.xlu0 %v6130, 32
        %v6602 = vpop.permute.xlu0 %6601
        %6603 = vrot.lane.b32.xlu0 %v6132, 32
        %v6604 = vpop.permute.xlu0 %6603
        %6605 = vrot.lane.b32.xlu0 %v6134, 32
        %v6606 = vpop.permute.xlu0 %6605
        %6607 = vrot.lane.b32.xlu0 %v6136, 32
        %v6608 = vpop.permute.xlu0 %6607
        %6609 = vrot.lane.b32.xlu0 %v6138, 32
        %v6610 = vpop.permute.xlu0 %6609
        %6611 = vrot.lane.b32.xlu0 %v6140, 32
        %v6612 = vpop.permute.xlu0 %6611
        %6613 = vrot.lane.b32.xlu0 %v6142, 32
        %v6614 = vpop.permute.xlu0 %6613
        %6615 = vrot.lane.b32.xlu0 %v6144, 32
        %v6616 = vpop.permute.xlu0 %6615
        %6617 = vrot.lane.b32.xlu0 %v6146, 32
        %v6618 = vpop.permute.xlu0 %6617
        %6619 = vrot.lane.b32.xlu0 %v6148, 32
        %v6620 = vpop.permute.xlu0 %6619
        %6621 = vrot.lane.b32.xlu0 %v6150, 32
        %v6622 = vpop.permute.xlu0 %6621
        %6623 = vrot.lane.b32.xlu0 %v6152, 32
        %v6624 = vpop.permute.xlu0 %6623
        %6625 = vrot.lane.b32.xlu0 %v6154, 32
        %v6626 = vpop.permute.xlu0 %6625
        %6627 = vrot.lane.b32.xlu0 %v6156, 32
        %v6628 = vpop.permute.xlu0 %6627
        %6629 = vrot.lane.b32.xlu0 %v6158, 32
        %v6630 = vpop.permute.xlu0 %6629
        %6631 = vrot.lane.b32.xlu0 %v6160, 32
        %v6632 = vpop.permute.xlu0 %6631
        %6633 = vrot.lane.b32.xlu0 %v6162, 32
        %v6634 = vpop.permute.xlu0 %6633
        %6635 = vrot.lane.b32.xlu0 %v6164, 32
        %v6636 = vpop.permute.xlu0 %6635
        %6637 = vrot.lane.b32.xlu0 %v6166, 32
        %v6638 = vpop.permute.xlu0 %6637
        %6639 = vrot.lane.b32.xlu0 %v6168, 32
        %v6640 = vpop.permute.xlu0 %6639
        %6641 = vrot.lane.b32.xlu0 %v6170, 32
        %v6642 = vpop.permute.xlu0 %6641
        %6643 = vrot.lane.b32.xlu0 %v6172, 32
        %v6644 = vpop.permute.xlu0 %6643
        %6645 = vrot.lane.b32.xlu0 %v6174, 32
        %v6646 = vpop.permute.xlu0 %6645
        %6647 = vrot.lane.b32.xlu0 %v6176, 32
        %v6648 = vpop.permute.xlu0 %6647
        %6649 = vrot.lane.b32.xlu0 %v6178, 32
        %v6650 = vpop.permute.xlu0 %6649
        %6651 = vrot.lane.b32.xlu0 %v6588, 32
        %v6652 = vpop.permute.xlu0 %6651
        %6653 = vrot.lane.b32.xlu0 %v6590, 32
        %v6654 = vpop.permute.xlu0 %6653
        %v6720 = vrot.slane %v6021, 2
        %v6721 = vrot.slane %v6022, 2
        %v6722 = vsel %vm2065, %v6720, %v6721
        %v6723 = vrot.slane %v6023, 2
        %v6724 = vsel %vm2065, %v6721, %v6723
        %v6725 = vrot.slane %v6024, 2
        %v6726 = vsel %vm2065, %v6723, %v6725
        %v6727 = vrot.slane %v6025, 2
        %v6728 = vsel %vm2065, %v6725, %v6727
        %v6729 = vrot.slane %v6026, 2
        %v6730 = vsel %vm2065, %v6727, %v6729
        %v6731 = vrot.slane %v6027, 2
        %v6732 = vsel %vm2065, %v6729, %v6731
        %v6733 = vrot.slane %v6028, 2
        %v6734 = vsel %vm2065, %v6731, %v6733
        %v6735 = vrot.slane %v6029, 2
        %v6736 = vsel %vm2065, %v6733, %v6735
        %v6737 = vrot.slane %v6030, 2
        %v6738 = vsel %vm2065, %v6735, %v6737
        %v6739 = vrot.slane %v6031, 2
        %v6740 = vsel %vm2065, %v6737, %v6739
        %v6741 = vrot.slane %v6032, 2
        %v6742 = vsel %vm2065, %v6739, %v6741
        %v6743 = vrot.slane %v6033, 2
        %v6744 = vsel %vm2065, %v6741, %v6743
        %v6745 = vrot.slane %v6034, 2
        %v6746 = vsel %vm2065, %v6743, %v6745
        %v6747 = vrot.slane %v6035, 2
        %v6748 = vsel %vm2065, %v6745, %v6747
        %v6749 = vrot.slane %v6036, 2
        %v6750 = vsel %vm2065, %v6747, %v6749
        %v6751 = vrot.slane %v6037, 2
        %v6752 = vsel %vm2065, %v6749, %v6751
        %v6753 = vrot.slane %v6038, 2
        %v6754 = vsel %vm2065, %v6751, %v6753
        %v6755 = vrot.slane %v6039, 2
        %v6756 = vsel %vm2065, %v6753, %v6755
        %v6757 = vrot.slane %v6040, 2
        %v6758 = vsel %vm2065, %v6755, %v6757
        %v6759 = vrot.slane %v6041, 2
        %v6760 = vsel %vm2065, %v6757, %v6759
        %v6761 = vrot.slane %v6042, 2
        %v6762 = vsel %vm2065, %v6759, %v6761
        %v6763 = vrot.slane %v6043, 2
        %v6764 = vsel %vm2065, %v6761, %v6763
        %v6765 = vrot.slane %v6044, 2
        %v6766 = vsel %vm2065, %v6763, %v6765
        %v6767 = vrot.slane %v6045, 2
        %v6768 = vsel %vm2065, %v6765, %v6767
        %v6769 = vrot.slane %v6046, 2
        %v6770 = vsel %vm2065, %v6767, %v6769
        %v6771 = vrot.slane %v6047, 2
        %v6772 = vsel %vm2065, %v6769, %v6771
        %v6773 = vrot.slane %v6048, 2
        %v6774 = vsel %vm2065, %v6771, %v6773
        %v6775 = vrot.slane %v6049, 2
        %v6776 = vsel %vm2065, %v6773, %v6775
        %v6777 = vrot.slane %v6050, 2
        %v6778 = vsel %vm2065, %v6775, %v6777
        %v6779 = vrot.slane %v6051, 2
        %v6780 = vsel %vm2065, %v6777, %v6779
        %v6781 = vrot.slane %v6052, 2
        %v6782 = vsel %vm2065, %v6779, %v6781
        %v6783 = vrot.slane %v6053, 2
        %v6784 = vsel %vm2065, %v6781, %v6783
        %6785 = vrot.lane.b32.xlu0 %v6722, 40
        %v6786 = vpop.permute.xlu0 %6785
        %6787 = vrot.lane.b32.xlu0 %v6724, 40
        %v6788 = vpop.permute.xlu0 %6787
        %6789 = vrot.lane.b32.xlu0 %v6726, 40
        %v6790 = vpop.permute.xlu0 %6789
        %6791 = vrot.lane.b32.xlu0 %v6728, 40
        %v6792 = vpop.permute.xlu0 %6791
        %6793 = vrot.lane.b32.xlu0 %v6730, 40
        %v6794 = vpop.permute.xlu0 %6793
        %6795 = vrot.lane.b32.xlu0 %v6732, 40
        %v6796 = vpop.permute.xlu0 %6795
        %6797 = vrot.lane.b32.xlu0 %v6734, 40
        %v6798 = vpop.permute.xlu0 %6797
        %6799 = vrot.lane.b32.xlu0 %v6736, 40
        %v6800 = vpop.permute.xlu0 %6799
        %6801 = vrot.lane.b32.xlu0 %v6738, 40
        %v6802 = vpop.permute.xlu0 %6801
        %6803 = vrot.lane.b32.xlu0 %v6740, 40
        %v6804 = vpop.permute.xlu0 %6803
        %6805 = vrot.lane.b32.xlu0 %v6742, 40
        %v6806 = vpop.permute.xlu0 %6805
        %6807 = vrot.lane.b32.xlu0 %v6744, 40
        %v6808 = vpop.permute.xlu0 %6807
        %6809 = vrot.lane.b32.xlu0 %v6746, 40
        %v6810 = vpop.permute.xlu0 %6809
        %6811 = vrot.lane.b32.xlu0 %v6748, 40
        %v6812 = vpop.permute.xlu0 %6811
        %6813 = vrot.lane.b32.xlu0 %v6750, 40
        %v6814 = vpop.permute.xlu0 %6813
        %6815 = vrot.lane.b32.xlu0 %v6752, 40
        %v6816 = vpop.permute.xlu0 %6815
        %6817 = vrot.lane.b32.xlu0 %v6754, 40
        %v6818 = vpop.permute.xlu0 %6817
        %6819 = vrot.lane.b32.xlu0 %v6756, 40
        %v6820 = vpop.permute.xlu0 %6819
        %6821 = vrot.lane.b32.xlu0 %v6758, 40
        %v6822 = vpop.permute.xlu0 %6821
        %6823 = vrot.lane.b32.xlu0 %v6760, 40
        %v6824 = vpop.permute.xlu0 %6823
        %6825 = vrot.lane.b32.xlu0 %v6762, 40
        %v6826 = vpop.permute.xlu0 %6825
        %6827 = vrot.lane.b32.xlu0 %v6764, 40
        %v6828 = vpop.permute.xlu0 %6827
        %6829 = vrot.lane.b32.xlu0 %v6766, 40
        %v6830 = vpop.permute.xlu0 %6829
        %6831 = vrot.lane.b32.xlu0 %v6768, 40
        %v6832 = vpop.permute.xlu0 %6831
        %6833 = vrot.lane.b32.xlu0 %v6770, 40
        %v6834 = vpop.permute.xlu0 %6833
        %6835 = vrot.lane.b32.xlu0 %v6772, 40
        %v6836 = vpop.permute.xlu0 %6835
        %6837 = vrot.lane.b32.xlu0 %v6774, 40
        %v6838 = vpop.permute.xlu0 %6837
        %6839 = vrot.lane.b32.xlu0 %v6776, 40
        %v6840 = vpop.permute.xlu0 %6839
        %6841 = vrot.lane.b32.xlu0 %v6778, 40
        %v6842 = vpop.permute.xlu0 %6841
        %6843 = vrot.lane.b32.xlu0 %v6780, 40
        %v6844 = vpop.permute.xlu0 %6843
        %6845 = vrot.lane.b32.xlu0 %v6782, 40
        %v6846 = vpop.permute.xlu0 %6845
        %6847 = vrot.lane.b32.xlu0 %v6784, 40
        %v6848 = vpop.permute.xlu0 %6847
        %6912 = vrot.lane.b32.xlu0 %v6054, 48
        %v6913 = vpop.permute.xlu0 %6912
        %6914 = vrot.lane.b32.xlu0 %v6055, 48
        %v6915 = vpop.permute.xlu0 %6914
        %6916 = vrot.lane.b32.xlu0 %v6056, 48
        %v6917 = vpop.permute.xlu0 %6916
        %6918 = vrot.lane.b32.xlu0 %v6057, 48
        %v6919 = vpop.permute.xlu0 %6918
        %6920 = vrot.lane.b32.xlu0 %v6058, 48
        %v6921 = vpop.permute.xlu0 %6920
        %6922 = vrot.lane.b32.xlu0 %v6059, 48
        %v6923 = vpop.permute.xlu0 %6922
        %6924 = vrot.lane.b32.xlu0 %v6060, 48
        %v6925 = vpop.permute.xlu0 %6924
        %6926 = vrot.lane.b32.xlu0 %v6061, 48
        %v6927 = vpop.permute.xlu0 %6926
        %6928 = vrot.lane.b32.xlu0 %v6062, 48
        %v6929 = vpop.permute.xlu0 %6928
        %6930 = vrot.lane.b32.xlu0 %v6063, 48
        %v6931 = vpop.permute.xlu0 %6930
        %6932 = vrot.lane.b32.xlu0 %v6064, 48
        %v6933 = vpop.permute.xlu0 %6932
        %6934 = vrot.lane.b32.xlu0 %v6065, 48
        %v6935 = vpop.permute.xlu0 %6934
        %6936 = vrot.lane.b32.xlu0 %v6066, 48
        %v6937 = vpop.permute.xlu0 %6936
        %6938 = vrot.lane.b32.xlu0 %v6067, 48
        %v6939 = vpop.permute.xlu0 %6938
        %6940 = vrot.lane.b32.xlu0 %v6068, 48
        %v6941 = vpop.permute.xlu0 %6940
        %6942 = vrot.lane.b32.xlu0 %v6069, 48
        %v6943 = vpop.permute.xlu0 %6942
        %6944 = vrot.lane.b32.xlu0 %v6070, 48
        %v6945 = vpop.permute.xlu0 %6944
        %6946 = vrot.lane.b32.xlu0 %v6071, 48
        %v6947 = vpop.permute.xlu0 %6946
        %6948 = vrot.lane.b32.xlu0 %v6072, 48
        %v6949 = vpop.permute.xlu0 %6948
        %6950 = vrot.lane.b32.xlu0 %v6073, 48
        %v6951 = vpop.permute.xlu0 %6950
        %6952 = vrot.lane.b32.xlu0 %v6074, 48
        %v6953 = vpop.permute.xlu0 %6952
        %6954 = vrot.lane.b32.xlu0 %v6075, 48
        %v6955 = vpop.permute.xlu0 %6954
        %6956 = vrot.lane.b32.xlu0 %v6076, 48
        %v6957 = vpop.permute.xlu0 %6956
        %6958 = vrot.lane.b32.xlu0 %v6077, 48
        %v6959 = vpop.permute.xlu0 %6958
        %6960 = vrot.lane.b32.xlu0 %v6078, 48
        %v6961 = vpop.permute.xlu0 %6960
        %6962 = vrot.lane.b32.xlu0 %v6079, 48
        %v6963 = vpop.permute.xlu0 %6962
        %6964 = vrot.lane.b32.xlu0 %v6080, 48
        %v6965 = vpop.permute.xlu0 %6964
        %6966 = vrot.lane.b32.xlu0 %v6081, 48
        %v6967 = vpop.permute.xlu0 %6966
        %6968 = vrot.lane.b32.xlu0 %v6082, 48
        %v6969 = vpop.permute.xlu0 %6968
        %6970 = vrot.lane.b32.xlu0 %v6083, 48
        %v6971 = vpop.permute.xlu0 %6970
        %6972 = vrot.lane.b32.xlu0 %v6084, 48
        %v6973 = vpop.permute.xlu0 %6972
        %v7005 = vsel %vm1871, %v6589, %v1872
        %7006 = vrot.lane.b32.xlu0 %v6124, 56
        %v7007 = vpop.permute.xlu0 %7006
        %7008 = vrot.lane.b32.xlu0 %v6126, 56
        %v7009 = vpop.permute.xlu0 %7008
        %7010 = vrot.lane.b32.xlu0 %v6128, 56
        %v7011 = vpop.permute.xlu0 %7010
        %7012 = vrot.lane.b32.xlu0 %v6130, 56
        %v7013 = vpop.permute.xlu0 %7012
        %7014 = vrot.lane.b32.xlu0 %v6132, 56
        %v7015 = vpop.permute.xlu0 %7014
        %7016 = vrot.lane.b32.xlu0 %v6134, 56
        %v7017 = vpop.permute.xlu0 %7016
        %7018 = vrot.lane.b32.xlu0 %v6136, 56
        %v7019 = vpop.permute.xlu0 %7018
        %7020 = vrot.lane.b32.xlu0 %v6138, 56
        %v7021 = vpop.permute.xlu0 %7020
        %7022 = vrot.lane.b32.xlu0 %v6140, 56
        %v7023 = vpop.permute.xlu0 %7022
        %7024 = vrot.lane.b32.xlu0 %v6142, 56
        %v7025 = vpop.permute.xlu0 %7024
        %7026 = vrot.lane.b32.xlu0 %v6144, 56
        %v7027 = vpop.permute.xlu0 %7026
        %7028 = vrot.lane.b32.xlu0 %v6146, 56
        %v7029 = vpop.permute.xlu0 %7028
        %7030 = vrot.lane.b32.xlu0 %v6148, 56
        %v7031 = vpop.permute.xlu0 %7030
        %7032 = vrot.lane.b32.xlu0 %v6150, 56
        %v7033 = vpop.permute.xlu0 %7032
        %7034 = vrot.lane.b32.xlu0 %v6152, 56
        %v7035 = vpop.permute.xlu0 %7034
        %7036 = vrot.lane.b32.xlu0 %v6154, 56
        %v7037 = vpop.permute.xlu0 %7036
        %7038 = vrot.lane.b32.xlu0 %v6156, 56
        %v7039 = vpop.permute.xlu0 %7038
        %7040 = vrot.lane.b32.xlu0 %v6158, 56
        %v7041 = vpop.permute.xlu0 %7040
        %7042 = vrot.lane.b32.xlu0 %v6160, 56
        %v7043 = vpop.permute.xlu0 %7042
        %7044 = vrot.lane.b32.xlu0 %v6162, 56
        %v7045 = vpop.permute.xlu0 %7044
        %7046 = vrot.lane.b32.xlu0 %v6164, 56
        %v7047 = vpop.permute.xlu0 %7046
        %7048 = vrot.lane.b32.xlu0 %v6166, 56
        %v7049 = vpop.permute.xlu0 %7048
        %7050 = vrot.lane.b32.xlu0 %v6168, 56
        %v7051 = vpop.permute.xlu0 %7050
        %7052 = vrot.lane.b32.xlu0 %v6170, 56
        %v7053 = vpop.permute.xlu0 %7052
        %7054 = vrot.lane.b32.xlu0 %v6172, 56
        %v7055 = vpop.permute.xlu0 %7054
        %7056 = vrot.lane.b32.xlu0 %v6174, 56
        %v7057 = vpop.permute.xlu0 %7056
        %7058 = vrot.lane.b32.xlu0 %v6176, 56
        %v7059 = vpop.permute.xlu0 %7058
        %7060 = vrot.lane.b32.xlu0 %v6178, 56
        %v7061 = vpop.permute.xlu0 %7060
        %7062 = vrot.lane.b32.xlu0 %v6588, 56
        %v7063 = vpop.permute.xlu0 %7062
        %7064 = vrot.lane.b32.xlu0 %v6590, 56
        %v7065 = vpop.permute.xlu0 %7064
        %7066 = vrot.lane.b32.xlu0 %v7005, 56
        %v7067 = vpop.permute.xlu0 %7066
        %v7130 = vrot.slane %v6085, 2
        %v7131 = vrot.slane %v6086, 2
        %v7132 = vsel %vm2065, %v7130, %v7131
        %v7133 = vrot.slane %v6087, 2
        %v7134 = vsel %vm2065, %v7131, %v7133
        %v7135 = vrot.slane %v6088, 2
        %v7136 = vsel %vm2065, %v7133, %v7135
        %v7137 = vrot.slane %v6089, 2
        %v7138 = vsel %vm2065, %v7135, %v7137
        %v7139 = vrot.slane %v6090, 2
        %v7140 = vsel %vm2065, %v7137, %v7139
        %v7141 = vrot.slane %v6091, 2
        %v7142 = vsel %vm2065, %v7139, %v7141
        %v7143 = vrot.slane %v6092, 2
        %v7144 = vsel %vm2065, %v7141, %v7143
        %v7145 = vrot.slane %v6093, 2
        %v7146 = vsel %vm2065, %v7143, %v7145
        %v7147 = vrot.slane %v6094, 2
        %v7148 = vsel %vm2065, %v7145, %v7147
        %v7149 = vrot.slane %v6095, 2
        %v7150 = vsel %vm2065, %v7147, %v7149
        %v7151 = vrot.slane %v6096, 2
        %v7152 = vsel %vm2065, %v7149, %v7151
        %v7153 = vrot.slane %v6097, 2
        %v7154 = vsel %vm2065, %v7151, %v7153
        %v7155 = vrot.slane %v6098, 2
        %v7156 = vsel %vm2065, %v7153, %v7155
        %v7157 = vrot.slane %v6099, 2
        %v7158 = vsel %vm2065, %v7155, %v7157
        %v7159 = vrot.slane %v6100, 2
        %v7160 = vsel %vm2065, %v7157, %v7159
        %v7161 = vrot.slane %v6101, 2
        %v7162 = vsel %vm2065, %v7159, %v7161
        %v7163 = vrot.slane %v6102, 2
        %v7164 = vsel %vm2065, %v7161, %v7163
        %v7165 = vrot.slane %v6103, 2
        %v7166 = vsel %vm2065, %v7163, %v7165
        %v7167 = vrot.slane %v6104, 2
        %v7168 = vsel %vm2065, %v7165, %v7167
        %v7169 = vrot.slane %v6105, 2
        %v7170 = vsel %vm2065, %v7167, %v7169
        %v7171 = vrot.slane %v6106, 2
        %v7172 = vsel %vm2065, %v7169, %v7171
        %v7173 = vrot.slane %v6107, 2
        %v7174 = vsel %vm2065, %v7171, %v7173
        %v7175 = vrot.slane %v6108, 2
        %v7176 = vsel %vm2065, %v7173, %v7175
        %v7177 = vrot.slane %v6109, 2
        %v7178 = vsel %vm2065, %v7175, %v7177
        %v7179 = vrot.slane %v6110, 2
        %v7180 = vsel %vm2065, %v7177, %v7179
        %v7181 = vrot.slane %v6111, 2
        %v7182 = vsel %vm2065, %v7179, %v7181
        %v7183 = vrot.slane %v6112, 2
        %v7184 = vsel %vm2065, %v7181, %v7183
        %v7185 = vrot.slane %v6113, 2
        %v7186 = vsel %vm2065, %v7183, %v7185
        %v7187 = vrot.slane %v6114, 2
        %v7188 = vsel %vm2065, %v7185, %v7187
        %v7189 = vrot.slane %v6115, 2
        %v7190 = vsel %vm2065, %v7187, %v7189
        %v7191 = vsel %vm2065, %v7189, %v2969
        %7192 = vrot.lane.b32.xlu0 %v7132, 64
        %v7193 = vpop.permute.xlu0 %7192
        %7194 = vrot.lane.b32.xlu0 %v7134, 64
        %v7195 = vpop.permute.xlu0 %7194
        %7196 = vrot.lane.b32.xlu0 %v7136, 64
        %v7197 = vpop.permute.xlu0 %7196
        %7198 = vrot.lane.b32.xlu0 %v7138, 64
        %v7199 = vpop.permute.xlu0 %7198
        %7200 = vrot.lane.b32.xlu0 %v7140, 64
        %v7201 = vpop.permute.xlu0 %7200
        %7202 = vrot.lane.b32.xlu0 %v7142, 64
        %v7203 = vpop.permute.xlu0 %7202
        %7204 = vrot.lane.b32.xlu0 %v7144, 64
        %v7205 = vpop.permute.xlu0 %7204
        %7206 = vrot.lane.b32.xlu0 %v7146, 64
        %v7207 = vpop.permute.xlu0 %7206
        %7208 = vrot.lane.b32.xlu0 %v7148, 64
        %v7209 = vpop.permute.xlu0 %7208
        %7210 = vrot.lane.b32.xlu0 %v7150, 64
        %v7211 = vpop.permute.xlu0 %7210
        %7212 = vrot.lane.b32.xlu0 %v7152, 64
        %v7213 = vpop.permute.xlu0 %7212
        %7214 = vrot.lane.b32.xlu0 %v7154, 64
        %v7215 = vpop.permute.xlu0 %7214
        %7216 = vrot.lane.b32.xlu0 %v7156, 64
        %v7217 = vpop.permute.xlu0 %7216
        %7218 = vrot.lane.b32.xlu0 %v7158, 64
        %v7219 = vpop.permute.xlu0 %7218
        %7220 = vrot.lane.b32.xlu0 %v7160, 64
        %v7221 = vpop.permute.xlu0 %7220
        %7222 = vrot.lane.b32.xlu0 %v7162, 64
        %v7223 = vpop.permute.xlu0 %7222
        %7224 = vrot.lane.b32.xlu0 %v7164, 64
        %v7225 = vpop.permute.xlu0 %7224
        %7226 = vrot.lane.b32.xlu0 %v7166, 64
        %v7227 = vpop.permute.xlu0 %7226
        %7228 = vrot.lane.b32.xlu0 %v7168, 64
        %v7229 = vpop.permute.xlu0 %7228
        %7230 = vrot.lane.b32.xlu0 %v7170, 64
        %v7231 = vpop.permute.xlu0 %7230
        %7232 = vrot.lane.b32.xlu0 %v7172, 64
        %v7233 = vpop.permute.xlu0 %7232
        %7234 = vrot.lane.b32.xlu0 %v7174, 64
        %v7235 = vpop.permute.xlu0 %7234
        %7236 = vrot.lane.b32.xlu0 %v7176, 64
        %v7237 = vpop.permute.xlu0 %7236
        %7238 = vrot.lane.b32.xlu0 %v7178, 64
        %v7239 = vpop.permute.xlu0 %7238
        %7240 = vrot.lane.b32.xlu0 %v7180, 64
        %v7241 = vpop.permute.xlu0 %7240
        %7242 = vrot.lane.b32.xlu0 %v7182, 64
        %v7243 = vpop.permute.xlu0 %7242
        %7244 = vrot.lane.b32.xlu0 %v7184, 64
        %v7245 = vpop.permute.xlu0 %7244
        %7246 = vrot.lane.b32.xlu0 %v7186, 64
        %v7247 = vpop.permute.xlu0 %7246
        %7248 = vrot.lane.b32.xlu0 %v7188, 64
        %v7249 = vpop.permute.xlu0 %7248
        %7250 = vrot.lane.b32.xlu0 %v7190, 64
        %v7251 = vpop.permute.xlu0 %7250
        %7252 = vrot.lane.b32.xlu0 %v7191, 64
        %v7253 = vpop.permute.xlu0 %7252
        %v7285 = vsel %vm309, %v1546, %v6180
        %v7286 = vsel %vm309, %v5928, %v6182
        %v7287 = vsel %vm309, %v5929, %v6184
        %v7288 = vsel %vm309, %v5930, %v6186
        %v7289 = vsel %vm309, %v5931, %v6188
        %v7290 = vsel %vm309, %v5932, %v6190
        %v7291 = vsel %vm309, %v5933, %v6192
        %v7292 = vsel %vm309, %v5934, %v6194
        %v7293 = vsel %vm309, %v5935, %v6196
        %v7294 = vsel %vm309, %v5936, %v6198
        %v7295 = vsel %vm309, %v5937, %v6200
        %v7296 = vsel %vm309, %v5938, %v6202
        %v7297 = vsel %vm309, %v5939, %v6204
        %v7298 = vsel %vm309, %v5940, %v6206
        %v7299 = vsel %vm309, %v5941, %v6208
        %v7300 = vsel %vm309, %v5942, %v6210
        %v7301 = vsel %vm309, %v5943, %v6212
        %v7302 = vsel %vm309, %v5944, %v6214
        %v7303 = vsel %vm309, %v5945, %v6216
        %v7304 = vsel %vm309, %v5946, %v6218
        %v7305 = vsel %vm309, %v5947, %v6220
        %v7306 = vsel %vm309, %v5948, %v6222
        %v7307 = vsel %vm309, %v5949, %v6224
        %v7308 = vsel %vm309, %v5950, %v6226
        %v7309 = vsel %vm309, %v5951, %v6228
        %v7310 = vsel %vm309, %v5952, %v6230
        %v7311 = vsel %vm309, %v5953, %v6232
        %v7312 = vsel %vm309, %v5954, %v6234
        %v7313 = vsel %vm309, %v5955, %v6236
        %v7314 = vsel %vm309, %v5956, %v6238
        %v7315 = vsel %vm309, %v5957, %v6240
        %v7316 = vsel %vm3101, %v7285, %v6366
        %v7317 = vsel %vm3101, %v7286, %v6368
        %v7318 = vsel %vm3101, %v7287, %v6370
        %v7319 = vsel %vm3101, %v7288, %v6372
        %v7320 = vsel %vm3101, %v7289, %v6374
        %v7321 = vsel %vm3101, %v7290, %v6376
        %v7322 = vsel %vm3101, %v7291, %v6378
        %v7323 = vsel %vm3101, %v7292, %v6380
        %v7324 = vsel %vm3101, %v7293, %v6382
        %v7325 = vsel %vm3101, %v7294, %v6384
        %v7326 = vsel %vm3101, %v7295, %v6386
        %v7327 = vsel %vm3101, %v7296, %v6388
        %v7328 = vsel %vm3101, %v7297, %v6390
        %v7329 = vsel %vm3101, %v7298, %v6392
        %v7330 = vsel %vm3101, %v7299, %v6394
        %v7331 = vsel %vm3101, %v7300, %v6396
        %v7332 = vsel %vm3101, %v7301, %v6398
        %v7333 = vsel %vm3101, %v7302, %v6400
        %v7334 = vsel %vm3101, %v7303, %v6402
        %v7335 = vsel %vm3101, %v7304, %v6404
        %v7336 = vsel %vm3101, %v7305, %v6406
        %v7337 = vsel %vm3101, %v7306, %v6408
        %v7338 = vsel %vm3101, %v7307, %v6410
        %v7339 = vsel %vm3101, %v7308, %v6412
        %v7340 = vsel %vm3101, %v7309, %v6414
        %v7341 = vsel %vm3101, %v7310, %v6416
        %v7342 = vsel %vm3101, %v7311, %v6418
        %v7343 = vsel %vm3101, %v7312, %v6420
        %v7344 = vsel %vm3101, %v7313, %v6422
        %v7345 = vsel %vm3101, %v7314, %v6424
        %v7346 = vsel %vm3101, %v7315, %v6426
        %v7347 = vsel %vm3134, %v3102, %v6491
        %v7348 = vsel %vm3134, %v7316, %v6493
        %v7349 = vsel %vm3134, %v7317, %v6495
        %v7350 = vsel %vm3134, %v7318, %v6497
        %v7351 = vsel %vm3134, %v7319, %v6499
        %v7352 = vsel %vm3134, %v7320, %v6501
        %v7353 = vsel %vm3134, %v7321, %v6503
        %v7354 = vsel %vm3134, %v7322, %v6505
        %v7355 = vsel %vm3134, %v7323, %v6507
        %v7356 = vsel %vm3134, %v7324, %v6509
        %v7357 = vsel %vm3134, %v7325, %v6511
        %v7358 = vsel %vm3134, %v7326, %v6513
        %v7359 = vsel %vm3134, %v7327, %v6515
        %v7360 = vsel %vm3134, %v7328, %v6517
        %v7361 = vsel %vm3134, %v7329, %v6519
        %v7362 = vsel %vm3134, %v7330, %v6521
        %v7363 = vsel %vm3134, %v7331, %v6523
        %v7364 = vsel %vm3134, %v7332, %v6525
        %v7365 = vsel %vm3134, %v7333, %v6527
        %v7366 = vsel %vm3134, %v7334, %v6529
        %v7367 = vsel %vm3134, %v7335, %v6531
        %v7368 = vsel %vm3134, %v7336, %v6533
        %v7369 = vsel %vm3134, %v7337, %v6535
        %v7370 = vsel %vm3134, %v7338, %v6537
        %v7371 = vsel %vm3134, %v7339, %v6539
        %v7372 = vsel %vm3134, %v7340, %v6541
        %v7373 = vsel %vm3134, %v7341, %v6543
        %v7374 = vsel %vm3134, %v7342, %v6545
        %v7375 = vsel %vm3134, %v7343, %v6547
        %v7376 = vsel %vm3134, %v7344, %v6549
        %v7377 = vsel %vm3134, %v7345, %v6551
        %v7378 = vsel %vm3134, %v7346, %v6553
        %v7379 = vsel %vm3167, %v7347, %v6592
        %v7380 = vsel %vm3167, %v7348, %v6594
        %v7381 = vsel %vm3167, %v7349, %v6596
        %v7382 = vsel %vm3167, %v7350, %v6598
        %v7383 = vsel %vm3167, %v7351, %v6600
        %v7384 = vsel %vm3167, %v7352, %v6602
        %v7385 = vsel %vm3167, %v7353, %v6604
        %v7386 = vsel %vm3167, %v7354, %v6606
        %v7387 = vsel %vm3167, %v7355, %v6608
        %v7388 = vsel %vm3167, %v7356, %v6610
        %v7389 = vsel %vm3167, %v7357, %v6612
        %v7390 = vsel %vm3167, %v7358, %v6614
        %v7391 = vsel %vm3167, %v7359, %v6616
        %v7392 = vsel %vm3167, %v7360, %v6618
        %v7393 = vsel %vm3167, %v7361, %v6620
        %v7394 = vsel %vm3167, %v7362, %v6622
        %v7395 = vsel %vm3167, %v7363, %v6624
        %v7396 = vsel %vm3167, %v7364, %v6626
        %v7397 = vsel %vm3167, %v7365, %v6628
        %v7398 = vsel %vm3167, %v7366, %v6630
        %v7399 = vsel %vm3167, %v7367, %v6632
        %v7400 = vsel %vm3167, %v7368, %v6634
        %v7401 = vsel %vm3167, %v7369, %v6636
        %v7402 = vsel %vm3167, %v7370, %v6638
        %v7403 = vsel %vm3167, %v7371, %v6640
        %v7404 = vsel %vm3167, %v7372, %v6642
        %v7405 = vsel %vm3167, %v7373, %v6644
        %v7406 = vsel %vm3167, %v7374, %v6646
        %v7407 = vsel %vm3167, %v7375, %v6648
        %v7408 = vsel %vm3167, %v7376, %v6650
        %v7409 = vsel %vm3167, %v7377, %v6652
        %v7410 = vsel %vm3167, %v7378, %v6654
        %v7411 = vsel %vm3200, %v7379, %v6786
        %v7412 = vsel %vm3200, %v7380, %v6788
        %v7413 = vsel %vm3200, %v7381, %v6790
        %v7414 = vsel %vm3200, %v7382, %v6792
        %v7415 = vsel %vm3200, %v7383, %v6794
        %v7416 = vsel %vm3200, %v7384, %v6796
        %v7417 = vsel %vm3200, %v7385, %v6798
        %v7418 = vsel %vm3200, %v7386, %v6800
        %v7419 = vsel %vm3200, %v7387, %v6802
        %v7420 = vsel %vm3200, %v7388, %v6804
        %v7421 = vsel %vm3200, %v7389, %v6806
        %v7422 = vsel %vm3200, %v7390, %v6808
        %v7423 = vsel %vm3200, %v7391, %v6810
        %v7424 = vsel %vm3200, %v7392, %v6812
        %v7425 = vsel %vm3200, %v7393, %v6814
        %v7426 = vsel %vm3200, %v7394, %v6816
        %v7427 = vsel %vm3200, %v7395, %v6818
        %v7428 = vsel %vm3200, %v7396, %v6820
        %v7429 = vsel %vm3200, %v7397, %v6822
        %v7430 = vsel %vm3200, %v7398, %v6824
        %v7431 = vsel %vm3200, %v7399, %v6826
        %v7432 = vsel %vm3200, %v7400, %v6828
        %v7433 = vsel %vm3200, %v7401, %v6830
        %v7434 = vsel %vm3200, %v7402, %v6832
        %v7435 = vsel %vm3200, %v7403, %v6834
        %v7436 = vsel %vm3200, %v7404, %v6836
        %v7437 = vsel %vm3200, %v7405, %v6838
        %v7438 = vsel %vm3200, %v7406, %v6840
        %v7439 = vsel %vm3200, %v7407, %v6842
        %v7440 = vsel %vm3200, %v7408, %v6844
        %v7441 = vsel %vm3200, %v7409, %v6846
        %v7442 = vsel %vm3200, %v7410, %v6848
        %v7443 = vsel %vm3233, %v7411, %v6913
        %v7444 = vsel %vm3233, %v7412, %v6915
        %v7445 = vsel %vm3233, %v7413, %v6917
        %v7446 = vsel %vm3233, %v7414, %v6919
        %v7447 = vsel %vm3233, %v7415, %v6921
        %v7448 = vsel %vm3233, %v7416, %v6923
        %v7449 = vsel %vm3233, %v7417, %v6925
        %v7450 = vsel %vm3233, %v7418, %v6927
        %v7451 = vsel %vm3233, %v7419, %v6929
        %v7452 = vsel %vm3233, %v7420, %v6931
        %v7453 = vsel %vm3233, %v7421, %v6933
        %v7454 = vsel %vm3233, %v7422, %v6935
        %v7455 = vsel %vm3233, %v7423, %v6937
        %v7456 = vsel %vm3233, %v7424, %v6939
        %v7457 = vsel %vm3233, %v7425, %v6941
        %v7458 = vsel %vm3233, %v7426, %v6943
        %v7459 = vsel %vm3233, %v7427, %v6945
        %v7460 = vsel %vm3233, %v7428, %v6947
        %v7461 = vsel %vm3233, %v7429, %v6949
        %v7462 = vsel %vm3233, %v7430, %v6951
        %v7463 = vsel %vm3233, %v7431, %v6953
        %v7464 = vsel %vm3233, %v7432, %v6955
        %v7465 = vsel %vm3233, %v7433, %v6957
        %v7466 = vsel %vm3233, %v7434, %v6959
        %v7467 = vsel %vm3233, %v7435, %v6961
        %v7468 = vsel %vm3233, %v7436, %v6963
        %v7469 = vsel %vm3233, %v7437, %v6965
        %v7470 = vsel %vm3233, %v7438, %v6967
        %v7471 = vsel %vm3233, %v7439, %v6969
        %v7472 = vsel %vm3233, %v7440, %v6971
        %v7473 = vsel %vm3233, %v7441, %v6973
        %v7474 = vsel %vm3233, %v7442, %v2745
        %v7475 = vsel %vm3266, %v7443, %v7007
        %v7476 = vsel %vm3266, %v7444, %v7009
        %v7477 = vsel %vm3266, %v7445, %v7011
        %v7478 = vsel %vm3266, %v7446, %v7013
        %v7479 = vsel %vm3266, %v7447, %v7015
        %v7480 = vsel %vm3266, %v7448, %v7017
        %v7481 = vsel %vm3266, %v7449, %v7019
        %v7482 = vsel %vm3266, %v7450, %v7021
        %v7483 = vsel %vm3266, %v7451, %v7023
        %v7484 = vsel %vm3266, %v7452, %v7025
        %v7485 = vsel %vm3266, %v7453, %v7027
        %v7486 = vsel %vm3266, %v7454, %v7029
        %v7487 = vsel %vm3266, %v7455, %v7031
        %v7488 = vsel %vm3266, %v7456, %v7033
        %v7489 = vsel %vm3266, %v7457, %v7035
        %v7490 = vsel %vm3266, %v7458, %v7037
        %v7491 = vsel %vm3266, %v7459, %v7039
        %v7492 = vsel %vm3266, %v7460, %v7041
        %v7493 = vsel %vm3266, %v7461, %v7043
        %v7494 = vsel %vm3266, %v7462, %v7045
        %v7495 = vsel %vm3266, %v7463, %v7047
        %v7496 = vsel %vm3266, %v7464, %v7049
        %v7497 = vsel %vm3266, %v7465, %v7051
        %v7498 = vsel %vm3266, %v7466, %v7053
        %v7499 = vsel %vm3266, %v7467, %v7055
        %v7500 = vsel %vm3266, %v7468, %v7057
        %v7501 = vsel %vm3266, %v7469, %v7059
        %v7502 = vsel %vm3266, %v7470, %v7061
        %v7503 = vsel %vm3266, %v7471, %v7063
        %v7504 = vsel %vm3266, %v7472, %v7065
        %v7505 = vsel %vm3266, %v7473, %v7067
        %v7506 = vsel %vm3266, %v7474, %v2842
        %v7507 = vsel %vm3299, %v7475, %v7193
        %v7508 = vsel %vm3299, %v7476, %v7195
        %v7509 = vsel %vm3299, %v7477, %v7197
        %v7510 = vsel %vm3299, %v7478, %v7199
        %v7511 = vsel %vm3299, %v7479, %v7201
        %v7512 = vsel %vm3299, %v7480, %v7203
        %v7513 = vsel %vm3299, %v7481, %v7205
        %v7514 = vsel %vm3299, %v7482, %v7207
        %v7515 = vsel %vm3299, %v7483, %v7209
        %v7516 = vsel %vm3299, %v7484, %v7211
        %v7517 = vsel %vm3299, %v7485, %v7213
        %v7518 = vsel %vm3299, %v7486, %v7215
        %v7519 = vsel %vm3299, %v7487, %v7217
        %v7520 = vsel %vm3299, %v7488, %v7219
        %v7521 = vsel %vm3299, %v7489, %v7221
        %v7522 = vsel %vm3299, %v7490, %v7223
        %v7523 = vsel %vm3299, %v7491, %v7225
        %v7524 = vsel %vm3299, %v7492, %v7227
        %v7525 = vsel %vm3299, %v7493, %v7229
        %v7526 = vsel %vm3299, %v7494, %v7231
        %v7527 = vsel %vm3299, %v7495, %v7233
        %v7528 = vsel %vm3299, %v7496, %v7235
        %v7529 = vsel %vm3299, %v7497, %v7237
        %v7530 = vsel %vm3299, %v7498, %v7239
        %v7531 = vsel %vm3299, %v7499, %v7241
        %v7532 = vsel %vm3299, %v7500, %v7243
        %v7533 = vsel %vm3299, %v7501, %v7245
        %v7534 = vsel %vm3299, %v7502, %v7247
        %v7535 = vsel %vm3299, %v7503, %v7249
        %v7536 = vsel %vm3299, %v7504, %v7251
        %v7537 = vsel %vm3299, %v7505, %v7253
        %v7538 = vsel %vm3299, %v7506, %v3036
        %v7539 = vld [vmem:[%s5] sm:$0xff]
        %v7540 = vld [vmem:[%s5 + $0x8] sm:$0xff]
        %v7541 = vld [vmem:[%s5 + $0x10] sm:$0xff]
        %v7542 = vld [vmem:[%s5 + $0x18] sm:$0xff]
        %v7543 = vld [vmem:[%s5 + $0x20] sm:$0xff]
        %v7544 = vld [vmem:[%s5 + $0x28] sm:$0xff]
        %v7545 = vld [vmem:[%s5 + $0x30] sm:$0xff]
        %v7546 = vld [vmem:[%s5 + $0x38] sm:$0xff]
        %v7547 = vld [vmem:[%s5 + $0x40] sm:$0xff]
        %v7549 = vsel %vm3341, %v7507, 0
        %v7552 = vsel %vm3341, %v7508, 0
        %v7555 = vsel %vm3341, %v7509, 0
        %v7558 = vsel %vm3341, %v7510, 0
        %v7561 = vsel %vm3341, %v7511, 0
        %v7564 = vsel %vm3341, %v7512, 0
        %v7567 = vsel %vm3341, %v7513, 0
        %v7570 = vsel %vm3341, %v7514, 0
        %v7573 = vsel %vm3341, %v7515, 0
        %v7576 = vsel %vm3341, %v7516, 0
        %v7579 = vsel %vm3341, %v7517, 0
        %v7582 = vsel %vm3341, %v7518, 0
        %v7585 = vsel %vm3341, %v7519, 0
        %v7588 = vsel %vm3341, %v7520, 0
        %v7591 = vsel %vm3341, %v7521, 0
        %v7594 = vsel %vm3341, %v7522, 0
        %v7597 = vsel %vm3341, %v7523, 0
        %v7600 = vsel %vm3341, %v7524, 0
        %v7603 = vsel %vm3341, %v7525, 0
        %v7606 = vsel %vm3341, %v7526, 0
        %v7609 = vsel %vm3341, %v7527, 0
        %v7612 = vsel %vm3341, %v7528, 0
        %v7615 = vsel %vm3341, %v7529, 0
        %v7618 = vsel %vm3341, %v7530, 0
        %v7621 = vsel %vm3341, %v7531, 0
        %v7624 = vsel %vm3341, %v7532, 0
        %v7627 = vsel %vm3341, %v7533, 0
        %v7630 = vsel %vm3341, %v7534, 0
        %v7633 = vsel %vm3341, %v7535, 0
        %v7636 = vsel %vm3341, %v7536, 0
        %v7639 = vsel %vm3341, %v7537, 0
        %v7642 = vsel %vm3341, %v7538, 0
        %7644 = vmatprep.subr.mxu0 0.0
        %7645 = vmatpush1.msra.mxu0 %v7539
        %7646 = vmatprep.subr.mxu0 0.0
        %7647 = vmatpush1.msra.mxu0 %v7540
        %7648 = vmatprep.subr.mxu0 0.0
        %7649 = vmatpush1.msra.mxu0 %v7541
        %7650 = vmatprep.subr.mxu0 0.0
        %7651 = vmatpush1.msra.mxu0 %v7542
        %7652 = vmatprep.subr.mxu0 0.0
        %7653 = vmatpush1.msra.mxu0 %v7543
        %7654 = vmatprep.subr.mxu0 0.0
        %7655 = vmatpush1.msra.mxu0 %v7544
        %7656 = vmatprep.subr.mxu0 0.0
        %7657 = vmatpush1.msra.mxu0 %v7545
        %7658 = vmatprep.subr.mxu0 0.0
        %7659 = vmatpush1.msra.mxu0 %v7546
        %7660 = vmatprep.subr.mxu0 0.0
        %7661 = vmatpush1.msra.mxu0 %v7547
        %7662 = vmatprep.subr.mxu0 0.0
        %7663 = vmatpush1.msra.mxu0 0.0
        %7664 = vmatprep.subr.mxu0 0.0
        %7665 = vmatpush1.msra.mxu0 0.0
        %7666 = vmatprep.subr.mxu0 0.0
        %7667 = vmatpush1.msra.mxu0 0.0
        %7668 = vmatprep.subr.mxu0 0.0
        %7669 = vmatpush1.msra.mxu0 0.0
        %7670 = vmatprep.subr.mxu0 0.0
        %7671 = vmatpush1.msra.mxu0 0.0
        %7672 = vmatprep.subr.mxu0 0.0
        %7673 = vmatpush1.msra.mxu0 0.0
        %7674 = vmatprep.subr.mxu0 0.0
        %7675 = vmatpush1.msra.mxu0 0.0
        %7676 = vmatprep.subr.mxu0 0.0
        %7677 = vmatpush1.msra.mxu0 0.0
        %7678 = vmatprep.subr.mxu0 0.0
        %7679 = vmatpush1.msra.mxu0 0.0
        %7680 = vmatprep.subr.mxu0 0.0
        %7681 = vmatpush1.msra.mxu0 0.0
        %7682 = vmatprep.subr.mxu0 0.0
        %7683 = vmatpush1.msra.mxu0 0.0
        %7684 = vmatprep.subr.mxu0 0.0
        %7685 = vmatpush1.msra.mxu0 0.0
        %7686 = vmatprep.subr.mxu0 0.0
        %7687 = vmatpush1.msra.mxu0 0.0
        %7688 = vmatprep.subr.mxu0 0.0
        %7689 = vmatpush1.msra.mxu0 0.0
        %7690 = vmatprep.subr.mxu0 0.0
        %7691 = vmatpush1.msra.mxu0 0.0
        %7692 = vmatprep.subr.mxu0 0.0
        %7693 = vmatpush1.msra.mxu0 0.0
        %7694 = vmatprep.subr.mxu0 0.0
        %7695 = vmatpush1.msra.mxu0 0.0
        %7696 = vmatprep.subr.mxu0 0.0
        %7697 = vmatpush1.msra.mxu0 0.0
        %7698 = vmatprep.subr.mxu0 0.0
        %7699 = vmatpush1.msra.mxu0 0.0
        %7700 = vmatprep.subr.mxu0 0.0
        %7701 = vmatpush1.msra.mxu0 0.0
        %7702 = vmatprep.subr.mxu0 0.0
        %7703 = vmatpush1.msra.mxu0 0.0
        %7704 = vmatprep.subr.mxu0 0.0
        %7705 = vmatpush1.msra.mxu0 0.0
        %7706 = vmatprep.subr.mxu0 0.0
        %7707 = vmatpush1.msra.mxu0 0.0
        %7708 = vmatprep.mubr.f32.mxu0 0.0
        %7709 = vmatmul.mubr.f32.gmra.mrb[0].mxu0 %v7549
        %v7710 = vpop.f32.mrb[0].mxu0
        %v7711 = vadd.f32 0.0, %v7710
        %v7712 = vpop.f32.mrb[0].mxu0
        %7713 = vmatprep.mubr.f32.mxu0 0.0
        %7714 = vmatmul.mubr.f32.gmra.mrb[0].mxu0 %v7552
        %v7715 = vpop.f32.mrb[0].mxu0
        %v7716 = vadd.f32 0.0, %v7715
        %v7717 = vpop.f32.mrb[0].mxu0
        %7718 = vmatprep.mubr.f32.mxu0 0.0
        %7719 = vmatmul.mubr.f32.gmra.mrb[0].mxu0 %v7555
        %v7720 = vpop.f32.mrb[0].mxu0
        %v7721 = vadd.f32 0.0, %v7720
        %v7722 = vpop.f32.mrb[0].mxu0
        %7723 = vmatprep.mubr.f32.mxu0 0.0
        %7724 = vmatmul.mubr.f32.gmra.mrb[0].mxu0 %v7558
        %v7725 = vpop.f32.mrb[0].mxu0
        %v7726 = vadd.f32 0.0, %v7725
        %v7727 = vpop.f32.mrb[0].mxu0
        %7728 = vmatprep.mubr.f32.mxu0 0.0
        %7729 = vmatmul.mubr.f32.gmra.mrb[0].mxu0 %v7561
        %v7730 = vpop.f32.mrb[0].mxu0
        %v7731 = vadd.f32 0.0, %v7730
        %v7732 = vpop.f32.mrb[0].mxu0
        %7733 = vmatprep.mubr.f32.mxu0 0.0
        %7734 = vmatmul.mubr.f32.gmra.mrb[0].mxu0 %v7564
        %v7735 = vpop.f32.mrb[0].mxu0
        %v7736 = vadd.f32 0.0, %v7735
        %v7737 = vpop.f32.mrb[0].mxu0
        %7738 = vmatprep.mubr.f32.mxu0 0.0
        %7739 = vmatmul.mubr.f32.gmra.mrb[0].mxu0 %v7567
        %v7740 = vpop.f32.mrb[0].mxu0
        %v7741 = vadd.f32 0.0, %v7740
        %v7742 = vpop.f32.mrb[0].mxu0
        %7743 = vmatprep.mubr.f32.mxu0 0.0
        %7744 = vmatmul.mubr.f32.gmra.mrb[0].mxu0 %v7570
        %v7745 = vpop.f32.mrb[0].mxu0
        %v7746 = vadd.f32 0.0, %v7745
        %v7747 = vpop.f32.mrb[0].mxu0
        %7748 = vmatprep.mubr.f32.mxu0 0.0
        %7749 = vmatmul.mubr.f32.gmra.mrb[0].mxu0 %v7573
        %v7750 = vpop.f32.mrb[0].mxu0
        %v7751 = vadd.f32 0.0, %v7750
        %v7752 = vpop.f32.mrb[0].mxu0
        %7753 = vmatprep.mubr.f32.mxu0 0.0
        %7754 = vmatmul.mubr.f32.gmra.mrb[0].mxu0 %v7576
        %v7755 = vpop.f32.mrb[0].mxu0
        %v7756 = vadd.f32 0.0, %v7755
        %v7757 = vpop.f32.mrb[0].mxu0
        %7758 = vmatprep.mubr.f32.mxu0 0.0
        %7759 = vmatmul.mubr.f32.gmra.mrb[0].mxu0 %v7579
        %v7760 = vpop.f32.mrb[0].mxu0
        %v7761 = vadd.f32 0.0, %v7760
        %v7762 = vpop.f32.mrb[0].mxu0
        %7763 = vmatprep.mubr.f32.mxu0 0.0
        %7764 = vmatmul.mubr.f32.gmra.mrb[0].mxu0 %v7582
        %v7765 = vpop.f32.mrb[0].mxu0
        %v7766 = vadd.f32 0.0, %v7765
        %v7767 = vpop.f32.mrb[0].mxu0
        %7768 = vmatprep.mubr.f32.mxu0 0.0
        %7769 = vmatmul.mubr.f32.gmra.mrb[0].mxu0 %v7585
        %v7770 = vpop.f32.mrb[0].mxu0
        %v7771 = vadd.f32 0.0, %v7770
        %v7772 = vpop.f32.mrb[0].mxu0
        %7773 = vmatprep.mubr.f32.mxu0 0.0
        %7774 = vmatmul.mubr.f32.gmra.mrb[0].mxu0 %v7588
        %v7775 = vpop.f32.mrb[0].mxu0
        %v7776 = vadd.f32 0.0, %v7775
        %v7777 = vpop.f32.mrb[0].mxu0
        %7778 = vmatprep.mubr.f32.mxu0 0.0
        %7779 = vmatmul.mubr.f32.gmra.mrb[0].mxu0 %v7591
        %v7780 = vpop.f32.mrb[0].mxu0
        %v7781 = vadd.f32 0.0, %v7780
        %v7782 = vpop.f32.mrb[0].mxu0
        %7783 = vmatprep.mubr.f32.mxu0 0.0
        %7784 = vmatmul.mubr.f32.gmra.mrb[0].mxu0 %v7594
        %v7785 = vpop.f32.mrb[0].mxu0
        %v7786 = vadd.f32 0.0, %v7785
        %v7787 = vpop.f32.mrb[0].mxu0
        %7788 = vmatprep.mubr.f32.mxu0 0.0
        %7789 = vmatmul.mubr.f32.gmra.mrb[0].mxu0 %v7597
        %v7790 = vpop.f32.mrb[0].mxu0
        %v7791 = vadd.f32 0.0, %v7790
        %v7792 = vpop.f32.mrb[0].mxu0
        %7793 = vmatprep.mubr.f32.mxu0 0.0
        %7794 = vmatmul.mubr.f32.gmra.mrb[0].mxu0 %v7600
        %v7795 = vpop.f32.mrb[0].mxu0
        %v7796 = vadd.f32 0.0, %v7795
        %v7797 = vpop.f32.mrb[0].mxu0
        %7798 = vmatprep.mubr.f32.mxu0 0.0
        %7799 = vmatmul.mubr.f32.gmra.mrb[0].mxu0 %v7603
        %v7800 = vpop.f32.mrb[0].mxu0
        %v7801 = vadd.f32 0.0, %v7800
        %v7802 = vpop.f32.mrb[0].mxu0
        %7803 = vmatprep.mubr.f32.mxu0 0.0
        %7804 = vmatmul.mubr.f32.gmra.mrb[0].mxu0 %v7606
        %v7805 = vpop.f32.mrb[0].mxu0
        %v7806 = vadd.f32 0.0, %v7805
        %v7807 = vpop.f32.mrb[0].mxu0
        %7808 = vmatprep.mubr.f32.mxu0 0.0
        %7809 = vmatmul.mubr.f32.gmra.mrb[0].mxu0 %v7609
        %v7810 = vpop.f32.mrb[0].mxu0
        %v7811 = vadd.f32 0.0, %v7810
        %v7812 = vpop.f32.mrb[0].mxu0
        %7813 = vmatprep.mubr.f32.mxu0 0.0
        %7814 = vmatmul.mubr.f32.gmra.mrb[0].mxu0 %v7612
        %v7815 = vpop.f32.mrb[0].mxu0
        %v7816 = vadd.f32 0.0, %v7815
        %v7817 = vpop.f32.mrb[0].mxu0
        %7818 = vmatprep.mubr.f32.mxu0 0.0
        %7819 = vmatmul.mubr.f32.gmra.mrb[0].mxu0 %v7615
        %v7820 = vpop.f32.mrb[0].mxu0
        %v7821 = vadd.f32 0.0, %v7820
        %v7822 = vpop.f32.mrb[0].mxu0
        %7823 = vmatprep.mubr.f32.mxu0 0.0
        %7824 = vmatmul.mubr.f32.gmra.mrb[0].mxu0 %v7618
        %v7825 = vpop.f32.mrb[0].mxu0
        %v7826 = vadd.f32 0.0, %v7825
        %v7827 = vpop.f32.mrb[0].mxu0
        %7828 = vmatprep.mubr.f32.mxu0 0.0
        %7829 = vmatmul.mubr.f32.gmra.mrb[0].mxu0 %v7621
        %v7830 = vpop.f32.mrb[0].mxu0
        %v7831 = vadd.f32 0.0, %v7830
        %v7832 = vpop.f32.mrb[0].mxu0
        %7833 = vmatprep.mubr.f32.mxu0 0.0
        %7834 = vmatmul.mubr.f32.gmra.mrb[0].mxu0 %v7624
        %v7835 = vpop.f32.mrb[0].mxu0
        %v7836 = vadd.f32 0.0, %v7835
        %v7837 = vpop.f32.mrb[0].mxu0
        %7838 = vmatprep.mubr.f32.mxu0 0.0
        %7839 = vmatmul.mubr.f32.gmra.mrb[0].mxu0 %v7627
        %v7840 = vpop.f32.mrb[0].mxu0
        %v7841 = vadd.f32 0.0, %v7840
        %v7842 = vpop.f32.mrb[0].mxu0
        %7843 = vmatprep.mubr.f32.mxu0 0.0
        %7844 = vmatmul.mubr.f32.gmra.mrb[0].mxu0 %v7630
        %v7845 = vpop.f32.mrb[0].mxu0
        %v7846 = vadd.f32 0.0, %v7845
        %v7847 = vpop.f32.mrb[0].mxu0
        %7848 = vmatprep.mubr.f32.mxu0 0.0
        %7849 = vmatmul.mubr.f32.gmra.mrb[0].mxu0 %v7633
        %v7850 = vpop.f32.mrb[0].mxu0
        %v7851 = vadd.f32 0.0, %v7850
        %v7852 = vpop.f32.mrb[0].mxu0
        %7853 = vmatprep.mubr.f32.mxu0 0.0
        %7854 = vmatmul.mubr.f32.gmra.mrb[0].mxu0 %v7636
        %v7855 = vpop.f32.mrb[0].mxu0
        %v7856 = vadd.f32 0.0, %v7855
        %v7857 = vpop.f32.mrb[0].mxu0
        %7858 = vmatprep.mubr.f32.mxu0 0.0
        %7859 = vmatmul.mubr.f32.gmra.mrb[0].mxu0 %v7639
        %v7860 = vpop.f32.mrb[0].mxu0
        %v7861 = vadd.f32 0.0, %v7860
        %v7862 = vpop.f32.mrb[0].mxu0
        %7863 = vmatprep.mubr.f32.mxu0 0.0
        %7864 = vmatmul.mubr.f32.gmra.mrb[0].mxu0 %v7642
        %v7865 = vpop.f32.mrb[0].mxu0
        %v7866 = vadd.f32 0.0, %v7865
        %v7867 = vpop.f32.mrb[0].mxu0
        %7868 = vdwg.mxu0
        %v7869 = vmax.f32 %v7711, 0.0
        %v7870 = vmax.f32 %v7716, 0.0
        %v7871 = vmax.f32 %v7721, 0.0
        %v7872 = vmax.f32 %v7726, 0.0
        %v7873 = vmax.f32 %v7731, 0.0
        %v7874 = vmax.f32 %v7736, 0.0
        %v7875 = vmax.f32 %v7741, 0.0
        %v7876 = vmax.f32 %v7746, 0.0
        %v7877 = vmax.f32 %v7751, 0.0
        %v7878 = vmax.f32 %v7756, 0.0
        %v7879 = vmax.f32 %v7761, 0.0
        %v7880 = vmax.f32 %v7766, 0.0
        %v7881 = vmax.f32 %v7771, 0.0
        %v7882 = vmax.f32 %v7776, 0.0
        %v7883 = vmax.f32 %v7781, 0.0
        %v7884 = vmax.f32 %v7786, 0.0
        %v7885 = vmax.f32 %v7791, 0.0
        %v7886 = vmax.f32 %v7796, 0.0
        %v7887 = vmax.f32 %v7801, 0.0
        %v7888 = vmax.f32 %v7806, 0.0
        %v7889 = vmax.f32 %v7811, 0.0
        %v7890 = vmax.f32 %v7816, 0.0
        %v7891 = vmax.f32 %v7821, 0.0
        %v7892 = vmax.f32 %v7826, 0.0
        %v7893 = vmax.f32 %v7831, 0.0
        %v7894 = vmax.f32 %v7836, 0.0
        %v7895 = vmax.f32 %v7841, 0.0
        %v7896 = vmax.f32 %v7846, 0.0
        %v7897 = vmax.f32 %v7851, 0.0
        %v7898 = vmax.f32 %v7856, 0.0
        %v7899 = vmax.f32 %v7861, 0.0
        %v7900 = vmax.f32 %v7866, 0.0
        %v7933 = vrot.slane %v7869, 7
        %v7934 = vrot.slane %v7870, 7
        %v7935 = vsel %vm1446, %v7933, %v7934
        %v7936 = vrot.slane %v7871, 7
        %v7937 = vsel %vm1446, %v7934, %v7936
        %v7938 = vrot.slane %v7872, 7
        %v7939 = vsel %vm1446, %v7936, %v7938
        %v7940 = vrot.slane %v7873, 7
        %v7941 = vsel %vm1446, %v7938, %v7940
        %v7942 = vrot.slane %v7874, 7
        %v7943 = vsel %vm1446, %v7940, %v7942
        %v7944 = vrot.slane %v7875, 7
        %v7945 = vsel %vm1446, %v7942, %v7944
        %v7946 = vrot.slane %v7876, 7
        %v7947 = vsel %vm1446, %v7944, %v7946
        %v7948 = vrot.slane %v7877, 7
        %v7949 = vsel %vm1446, %v7946, %v7948
        %v7950 = vrot.slane %v7878, 7
        %v7951 = vsel %vm1446, %v7948, %v7950
        %v7952 = vrot.slane %v7879, 7
        %v7953 = vsel %vm1446, %v7950, %v7952
        %v7954 = vrot.slane %v7880, 7
        %v7955 = vsel %vm1446, %v7952, %v7954
        %v7956 = vrot.slane %v7881, 7
        %v7957 = vsel %vm1446, %v7954, %v7956
        %v7958 = vrot.slane %v7882, 7
        %v7959 = vsel %vm1446, %v7956, %v7958
        %v7960 = vrot.slane %v7883, 7
        %v7961 = vsel %vm1446, %v7958, %v7960
        %v7962 = vrot.slane %v7884, 7
        %v7963 = vsel %vm1446, %v7960, %v7962
        %v7964 = vrot.slane %v7885, 7
        %v7965 = vsel %vm1446, %v7962, %v7964
        %v7966 = vrot.slane %v7886, 7
        %v7967 = vsel %vm1446, %v7964, %v7966
        %v7968 = vrot.slane %v7887, 7
        %v7969 = vsel %vm1446, %v7966, %v7968
        %v7970 = vrot.slane %v7888, 7
        %v7971 = vsel %vm1446, %v7968, %v7970
        %v7972 = vrot.slane %v7889, 7
        %v7973 = vsel %vm1446, %v7970, %v7972
        %v7974 = vrot.slane %v7890, 7
        %v7975 = vsel %vm1446, %v7972, %v7974
        %v7976 = vrot.slane %v7891, 7
        %v7977 = vsel %vm1446, %v7974, %v7976
        %v7978 = vrot.slane %v7892, 7
        %v7979 = vsel %vm1446, %v7976, %v7978
        %v7980 = vrot.slane %v7893, 7
        %v7981 = vsel %vm1446, %v7978, %v7980
        %v7982 = vrot.slane %v7894, 7
        %v7983 = vsel %vm1446, %v7980, %v7982
        %v7984 = vrot.slane %v7895, 7
        %v7985 = vsel %vm1446, %v7982, %v7984
        %v7986 = vrot.slane %v7896, 7
        %v7987 = vsel %vm1446, %v7984, %v7986
        %v7988 = vrot.slane %v7897, 7
        %v7989 = vsel %vm1446, %v7986, %v7988
        %v7990 = vrot.slane %v7898, 7
        %v7991 = vsel %vm1446, %v7988, %v7990
        %v7992 = vrot.slane %v7899, 7
        %v7993 = vsel %vm1446, %v7990, %v7992
        %v7994 = vrot.slane %v7900, 7
        %v7995 = vsel %vm1446, %v7992, %v7994
        %v8029 = vsel %vm1446, 0.0, %v7933
        %v8030 = vsel %vm1446, %v7994, 0.0
        %v8031 = vmul.f32 %v8029, %v1288
        %v8032 = vmul.f32 %v7935, %v1289
        %v8033 = vmul.f32 %v7937, %v1290
        %v8034 = vmul.f32 %v7939, %v1291
        %v8035 = vmul.f32 %v7941, %v1292
        %v8036 = vmul.f32 %v7943, %v1293
        %v8037 = vmul.f32 %v7945, %v1294
        %v8038 = vmul.f32 %v7947, %v1295
        %v8039 = vmul.f32 %v7949, %v1296
        %v8040 = vmul.f32 %v7951, %v1297
        %v8041 = vmul.f32 %v7953, %v1298
        %v8042 = vmul.f32 %v7955, %v1299
        %v8043 = vmul.f32 %v7957, %v1300
        %v8044 = vmul.f32 %v7959, %v1301
        %v8045 = vmul.f32 %v7961, %v1302
        %v8046 = vmul.f32 %v7963, %v1303
        %v8047 = vmul.f32 %v7965, %v1304
        %v8048 = vmul.f32 %v7967, %v1305
        %v8049 = vmul.f32 %v7969, %v1306
        %v8050 = vmul.f32 %v7971, %v1307
        %v8051 = vmul.f32 %v7973, %v1308
        %v8052 = vmul.f32 %v7975, %v1309
        %v8053 = vmul.f32 %v7977, %v1310
        %v8054 = vmul.f32 %v7979, %v1311
        %v8055 = vmul.f32 %v7981, %v1312
        %v8056 = vmul.f32 %v7983, %v1313
        %v8057 = vmul.f32 %v7985, %v1314
        %v8058 = vmul.f32 %v7987, %v1315
        %v8059 = vmul.f32 %v7989, %v1316
        %v8060 = vmul.f32 %v7991, %v1317
        %v8061 = vmul.f32 %v8029, %v1614
        %v8062 = vmul.f32 %v7935, %v1616
        %v8063 = vmul.f32 %v7937, %v1618
        %v8064 = vmul.f32 %v7939, %v1620
        %v8065 = vmul.f32 %v7941, %v1622
        %v8066 = vmul.f32 %v7943, %v1624
        %v8067 = vmul.f32 %v7945, %v1626
        %v8068 = vmul.f32 %v7947, %v1628
        %v8069 = vmul.f32 %v7949, %v1630
        %v8070 = vmul.f32 %v7951, %v1632
        %v8071 = vmul.f32 %v7953, %v1634
        %v8072 = vmul.f32 %v7955, %v1636
        %v8073 = vmul.f32 %v7957, %v1638
        %v8074 = vmul.f32 %v7959, %v1640
        %v8075 = vmul.f32 %v7961, %v1642
        %v8076 = vmul.f32 %v7963, %v1644
        %v8077 = vmul.f32 %v7965, %v1646
        %v8078 = vmul.f32 %v7967, %v1648
        %v8079 = vmul.f32 %v7969, %v1650
        %v8080 = vmul.f32 %v7971, %v1652
        %v8081 = vmul.f32 %v7973, %v1654
        %v8082 = vmul.f32 %v7975, %v1656
        %v8083 = vmul.f32 %v7977, %v1658
        %v8084 = vmul.f32 %v7979, %v1660
        %v8085 = vmul.f32 %v7981, %v1662
        %v8086 = vmul.f32 %v7983, %v1664
        %v8087 = vmul.f32 %v7985, %v1666
        %v8088 = vmul.f32 %v7987, %v1668
        %v8089 = vmul.f32 %v7989, %v1670
        %v8090 = vmul.f32 %v7991, %v1672
        %v8091 = vmul.f32 %v7993, %v1671
        %v8092 = vmul.f32 %v8029, %v1286
        %v8093 = vmul.f32 %v7935, %v1287
        %v8094 = vmul.f32 %v7937, %v1288
        %v8095 = vmul.f32 %v7939, %v1289
        %v8096 = vmul.f32 %v7941, %v1290
        %v8097 = vmul.f32 %v7943, %v1291
        %v8098 = vmul.f32 %v7945, %v1292
        %v8099 = vmul.f32 %v7947, %v1293
        %v8100 = vmul.f32 %v7949, %v1294
        %v8101 = vmul.f32 %v7951, %v1295
        %v8102 = vmul.f32 %v7953, %v1296
        %v8103 = vmul.f32 %v7955, %v1297
        %v8104 = vmul.f32 %v7957, %v1298
        %v8105 = vmul.f32 %v7959, %v1299
        %v8106 = vmul.f32 %v7961, %v1300
        %v8107 = vmul.f32 %v7963, %v1301
        %v8108 = vmul.f32 %v7965, %v1302
        %v8109 = vmul.f32 %v7967, %v1303
        %v8110 = vmul.f32 %v7969, %v1304
        %v8111 = vmul.f32 %v7971, %v1305
        %v8112 = vmul.f32 %v7973, %v1306
        %v8113 = vmul.f32 %v7975, %v1307
        %v8114 = vmul.f32 %v7977, %v1308
        %v8115 = vmul.f32 %v7979, %v1309
        %v8116 = vmul.f32 %v7981, %v1310
        %v8117 = vmul.f32 %v7983, %v1311
        %v8118 = vmul.f32 %v7985, %v1312
        %v8119 = vmul.f32 %v7987, %v1313
        %v8120 = vmul.f32 %v7989, %v1314
        %v8121 = vmul.f32 %v7991, %v1315
        %v8122 = vmul.f32 %v7993, %v1316
        %v8123 = vmul.f32 %v7995, %v1317
        %v8124 = vmul.f32 %v8029, %v1610
        %v8125 = vmul.f32 %v7935, %v1612
        %v8126 = vmul.f32 %v7937, %v1614
        %v8127 = vmul.f32 %v7939, %v1616
        %v8128 = vmul.f32 %v7941, %v1618
        %v8129 = vmul.f32 %v7943, %v1620
        %v8130 = vmul.f32 %v7945, %v1622
        %v8131 = vmul.f32 %v7947, %v1624
        %v8132 = vmul.f32 %v7949, %v1626
        %v8133 = vmul.f32 %v7951, %v1628
        %v8134 = vmul.f32 %v7953, %v1630
        %v8135 = vmul.f32 %v7955, %v1632
        %v8136 = vmul.f32 %v7957, %v1634
        %v8137 = vmul.f32 %v7959, %v1636
        %v8138 = vmul.f32 %v7961, %v1638
        %v8139 = vmul.f32 %v7963, %v1640
        %v8140 = vmul.f32 %v7965, %v1642
        %v8141 = vmul.f32 %v7967, %v1644
        %v8142 = vmul.f32 %v7969, %v1646
        %v8143 = vmul.f32 %v7971, %v1648
        %v8144 = vmul.f32 %v7973, %v1650
        %v8145 = vmul.f32 %v7975, %v1652
        %v8146 = vmul.f32 %v7977, %v1654
        %v8147 = vmul.f32 %v7979, %v1656
        %v8148 = vmul.f32 %v7981, %v1658
        %v8149 = vmul.f32 %v7983, %v1660
        %v8150 = vmul.f32 %v7985, %v1662
        %v8151 = vmul.f32 %v7987, %v1664
        %v8152 = vmul.f32 %v7989, %v1666
        %v8153 = vmul.f32 %v7991, %v1668
        %v8154 = vmul.f32 %v7993, %v1670
        %v8155 = vmul.f32 %v7995, %v1672
        %v8156 = vmul.f32 %v8030, %v1671
        %v8157 = vmul.f32 %v7937, %v1286
        %v8158 = vmul.f32 %v7939, %v1287
        %v8159 = vmul.f32 %v7941, %v1288
        %v8160 = vmul.f32 %v7943, %v1289
        %v8161 = vmul.f32 %v7945, %v1290
        %v8162 = vmul.f32 %v7947, %v1291
        %v8163 = vmul.f32 %v7949, %v1292
        %v8164 = vmul.f32 %v7951, %v1293
        %v8165 = vmul.f32 %v7953, %v1294
        %v8166 = vmul.f32 %v7955, %v1295
        %v8167 = vmul.f32 %v7957, %v1296
        %v8168 = vmul.f32 %v7959, %v1297
        %v8169 = vmul.f32 %v7961, %v1298
        %v8170 = vmul.f32 %v7963, %v1299
        %v8171 = vmul.f32 %v7965, %v1300
        %v8172 = vmul.f32 %v7967, %v1301
        %v8173 = vmul.f32 %v7969, %v1302
        %v8174 = vmul.f32 %v7971, %v1303
        %v8175 = vmul.f32 %v7973, %v1304
        %v8176 = vmul.f32 %v7975, %v1305
        %v8177 = vmul.f32 %v7977, %v1306
        %v8178 = vmul.f32 %v7979, %v1307
        %v8179 = vmul.f32 %v7981, %v1308
        %v8180 = vmul.f32 %v7983, %v1309
        %v8181 = vmul.f32 %v7985, %v1310
        %v8182 = vmul.f32 %v7987, %v1311
        %v8183 = vmul.f32 %v7989, %v1312
        %v8184 = vmul.f32 %v7991, %v1313
        %v8185 = vmul.f32 %v7993, %v1314
        %v8186 = vmul.f32 %v7995, %v1315
        %v8187 = vmul.f32 %v8030, %v1316
        %v8188 = vmul.f32 %v7937, %v1610
        %v8189 = vmul.f32 %v7939, %v1612
        %v8190 = vmul.f32 %v7941, %v1614
        %v8191 = vmul.f32 %v7943, %v1616
        %v8192 = vmul.f32 %v7945, %v1618
        %v8193 = vmul.f32 %v7947, %v1620
        %v8194 = vmul.f32 %v7949, %v1622
        %v8195 = vmul.f32 %v7951, %v1624
        %v8196 = vmul.f32 %v7953, %v1626
        %v8197 = vmul.f32 %v7955, %v1628
        %v8198 = vmul.f32 %v7957, %v1630
        %v8199 = vmul.f32 %v7959, %v1632
        %v8200 = vmul.f32 %v7961, %v1634
        %v8201 = vmul.f32 %v7963, %v1636
        %v8202 = vmul.f32 %v7965, %v1638
        %v8203 = vmul.f32 %v7967, %v1640
        %v8204 = vmul.f32 %v7969, %v1642
        %v8205 = vmul.f32 %v7971, %v1644
        %v8206 = vmul.f32 %v7973, %v1646
        %v8207 = vmul.f32 %v7975, %v1648
        %v8208 = vmul.f32 %v7977, %v1650
        %v8209 = vmul.f32 %v7979, %v1652
        %v8210 = vmul.f32 %v7981, %v1654
        %v8211 = vmul.f32 %v7983, %v1656
        %v8212 = vmul.f32 %v7985, %v1658
        %v8213 = vmul.f32 %v7987, %v1660
        %v8214 = vmul.f32 %v7989, %v1662
        %v8215 = vmul.f32 %v7991, %v1664
        %v8216 = vmul.f32 %v7993, %v1666
        %v8217 = vmul.f32 %v7995, %v1668
        %v8218 = vmul.f32 %v8030, %v1670
        %v8220 = vrot.slane %v8029, 1
        %v8221 = vsel %vm1871, %v1872, %v8220
        %v8222 = vrot.slane %v7935, 1
        %v8223 = vsel %vm1871, %v8220, %v8222
        %v8224 = vrot.slane %v7937, 1
        %v8225 = vsel %vm1871, %v8222, %v8224
        %v8226 = vrot.slane %v7939, 1
        %v8227 = vsel %vm1871, %v8224, %v8226
        %v8228 = vrot.slane %v7941, 1
        %v8229 = vsel %vm1871, %v8226, %v8228
        %v8230 = vrot.slane %v7943, 1
        %v8231 = vsel %vm1871, %v8228, %v8230
        %v8232 = vrot.slane %v7945, 1
        %v8233 = vsel %vm1871, %v8230, %v8232
        %v8234 = vrot.slane %v7947, 1
        %v8235 = vsel %vm1871, %v8232, %v8234
        %v8236 = vrot.slane %v7949, 1
        %v8237 = vsel %vm1871, %v8234, %v8236
        %v8238 = vrot.slane %v7951, 1
        %v8239 = vsel %vm1871, %v8236, %v8238
        %v8240 = vrot.slane %v7953, 1
        %v8241 = vsel %vm1871, %v8238, %v8240
        %v8242 = vrot.slane %v7955, 1
        %v8243 = vsel %vm1871, %v8240, %v8242
        %v8244 = vrot.slane %v7957, 1
        %v8245 = vsel %vm1871, %v8242, %v8244
        %v8246 = vrot.slane %v7959, 1
        %v8247 = vsel %vm1871, %v8244, %v8246
        %v8248 = vrot.slane %v7961, 1
        %v8249 = vsel %vm1871, %v8246, %v8248
        %v8250 = vrot.slane %v7963, 1
        %v8251 = vsel %vm1871, %v8248, %v8250
        %v8252 = vrot.slane %v7965, 1
        %v8253 = vsel %vm1871, %v8250, %v8252
        %v8254 = vrot.slane %v7967, 1
        %v8255 = vsel %vm1871, %v8252, %v8254
        %v8256 = vrot.slane %v7969, 1
        %v8257 = vsel %vm1871, %v8254, %v8256
        %v8258 = vrot.slane %v7971, 1
        %v8259 = vsel %vm1871, %v8256, %v8258
        %v8260 = vrot.slane %v7973, 1
        %v8261 = vsel %vm1871, %v8258, %v8260
        %v8262 = vrot.slane %v7975, 1
        %v8263 = vsel %vm1871, %v8260, %v8262
        %v8264 = vrot.slane %v7977, 1
        %v8265 = vsel %vm1871, %v8262, %v8264
        %v8266 = vrot.slane %v7979, 1
        %v8267 = vsel %vm1871, %v8264, %v8266
        %v8268 = vrot.slane %v7981, 1
        %v8269 = vsel %vm1871, %v8266, %v8268
        %v8270 = vrot.slane %v7983, 1
        %v8271 = vsel %vm1871, %v8268, %v8270
        %v8272 = vrot.slane %v7985, 1
        %v8273 = vsel %vm1871, %v8270, %v8272
        %v8274 = vrot.slane %v7987, 1
        %v8275 = vsel %vm1871, %v8272, %v8274
        %v8276 = vrot.slane %v7989, 1
        %v8277 = vsel %vm1871, %v8274, %v8276
        %v8278 = vrot.slane %v7991, 1
        %v8279 = vsel %vm1871, %v8276, %v8278
        %v8280 = vrot.slane %v7993, 1
        %v8281 = vsel %vm1871, %v8278, %v8280
        %8282 = vrot.lane.b32.xlu0 %v8221, 8
        %v8283 = vpop.permute.xlu0 %8282
        %8284 = vrot.lane.b32.xlu0 %v8223, 8
        %v8285 = vpop.permute.xlu0 %8284
        %8286 = vrot.lane.b32.xlu0 %v8225, 8
        %v8287 = vpop.permute.xlu0 %8286
        %8288 = vrot.lane.b32.xlu0 %v8227, 8
        %v8289 = vpop.permute.xlu0 %8288
        %8290 = vrot.lane.b32.xlu0 %v8229, 8
        %v8291 = vpop.permute.xlu0 %8290
        %8292 = vrot.lane.b32.xlu0 %v8231, 8
        %v8293 = vpop.permute.xlu0 %8292
        %8294 = vrot.lane.b32.xlu0 %v8233, 8
        %v8295 = vpop.permute.xlu0 %8294
        %8296 = vrot.lane.b32.xlu0 %v8235, 8
        %v8297 = vpop.permute.xlu0 %8296
        %8298 = vrot.lane.b32.xlu0 %v8237, 8
        %v8299 = vpop.permute.xlu0 %8298
        %8300 = vrot.lane.b32.xlu0 %v8239, 8
        %v8301 = vpop.permute.xlu0 %8300
        %8302 = vrot.lane.b32.xlu0 %v8241, 8
        %v8303 = vpop.permute.xlu0 %8302
        %8304 = vrot.lane.b32.xlu0 %v8243, 8
        %v8305 = vpop.permute.xlu0 %8304
        %8306 = vrot.lane.b32.xlu0 %v8245, 8
        %v8307 = vpop.permute.xlu0 %8306
        %8308 = vrot.lane.b32.xlu0 %v8247, 8
        %v8309 = vpop.permute.xlu0 %8308
        %8310 = vrot.lane.b32.xlu0 %v8249, 8
        %v8311 = vpop.permute.xlu0 %8310
        %8312 = vrot.lane.b32.xlu0 %v8251, 8
        %v8313 = vpop.permute.xlu0 %8312
        %8314 = vrot.lane.b32.xlu0 %v8253, 8
        %v8315 = vpop.permute.xlu0 %8314
        %8316 = vrot.lane.b32.xlu0 %v8255, 8
        %v8317 = vpop.permute.xlu0 %8316
        %8318 = vrot.lane.b32.xlu0 %v8257, 8
        %v8319 = vpop.permute.xlu0 %8318
        %8320 = vrot.lane.b32.xlu0 %v8259, 8
        %v8321 = vpop.permute.xlu0 %8320
        %8322 = vrot.lane.b32.xlu0 %v8261, 8
        %v8323 = vpop.permute.xlu0 %8322
        %8324 = vrot.lane.b32.xlu0 %v8263, 8
        %v8325 = vpop.permute.xlu0 %8324
        %8326 = vrot.lane.b32.xlu0 %v8265, 8
        %v8327 = vpop.permute.xlu0 %8326
        %8328 = vrot.lane.b32.xlu0 %v8267, 8
        %v8329 = vpop.permute.xlu0 %8328
        %8330 = vrot.lane.b32.xlu0 %v8269, 8
        %v8331 = vpop.permute.xlu0 %8330
        %8332 = vrot.lane.b32.xlu0 %v8271, 8
        %v8333 = vpop.permute.xlu0 %8332
        %8334 = vrot.lane.b32.xlu0 %v8273, 8
        %v8335 = vpop.permute.xlu0 %8334
        %8336 = vrot.lane.b32.xlu0 %v8275, 8
        %v8337 = vpop.permute.xlu0 %8336
        %8338 = vrot.lane.b32.xlu0 %v8277, 8
        %v8339 = vpop.permute.xlu0 %8338
        %8340 = vrot.lane.b32.xlu0 %v8279, 8
        %v8341 = vpop.permute.xlu0 %8340
        %8342 = vrot.lane.b32.xlu0 %v8281, 8
        %v8343 = vpop.permute.xlu0 %8342
        %v8406 = vrot.slane %v8061, 2
        %v8407 = vsel %vm2065, %v2067, %v8406
        %v8408 = vrot.slane %v8062, 2
        %v8409 = vsel %vm2065, %v8406, %v8408
        %v8410 = vrot.slane %v8063, 2
        %v8411 = vsel %vm2065, %v8408, %v8410
        %v8412 = vrot.slane %v8064, 2
        %v8413 = vsel %vm2065, %v8410, %v8412
        %v8414 = vrot.slane %v8065, 2
        %v8415 = vsel %vm2065, %v8412, %v8414
        %v8416 = vrot.slane %v8066, 2
        %v8417 = vsel %vm2065, %v8414, %v8416
        %v8418 = vrot.slane %v8067, 2
        %v8419 = vsel %vm2065, %v8416, %v8418
        %v8420 = vrot.slane %v8068, 2
        %v8421 = vsel %vm2065, %v8418, %v8420
        %v8422 = vrot.slane %v8069, 2
        %v8423 = vsel %vm2065, %v8420, %v8422
        %v8424 = vrot.slane %v8070, 2
        %v8425 = vsel %vm2065, %v8422, %v8424
        %v8426 = vrot.slane %v8071, 2
        %v8427 = vsel %vm2065, %v8424, %v8426
        %v8428 = vrot.slane %v8072, 2
        %v8429 = vsel %vm2065, %v8426, %v8428
        %v8430 = vrot.slane %v8073, 2
        %v8431 = vsel %vm2065, %v8428, %v8430
        %v8432 = vrot.slane %v8074, 2
        %v8433 = vsel %vm2065, %v8430, %v8432
        %v8434 = vrot.slane %v8075, 2
        %v8435 = vsel %vm2065, %v8432, %v8434
        %v8436 = vrot.slane %v8076, 2
        %v8437 = vsel %vm2065, %v8434, %v8436
        %v8438 = vrot.slane %v8077, 2
        %v8439 = vsel %vm2065, %v8436, %v8438
        %v8440 = vrot.slane %v8078, 2
        %v8441 = vsel %vm2065, %v8438, %v8440
        %v8442 = vrot.slane %v8079, 2
        %v8443 = vsel %vm2065, %v8440, %v8442
        %v8444 = vrot.slane %v8080, 2
        %v8445 = vsel %vm2065, %v8442, %v8444
        %v8446 = vrot.slane %v8081, 2
        %v8447 = vsel %vm2065, %v8444, %v8446
        %v8448 = vrot.slane %v8082, 2
        %v8449 = vsel %vm2065, %v8446, %v8448
        %v8450 = vrot.slane %v8083, 2
        %v8451 = vsel %vm2065, %v8448, %v8450
        %v8452 = vrot.slane %v8084, 2
        %v8453 = vsel %vm2065, %v8450, %v8452
        %v8454 = vrot.slane %v8085, 2
        %v8455 = vsel %vm2065, %v8452, %v8454
        %v8456 = vrot.slane %v8086, 2
        %v8457 = vsel %vm2065, %v8454, %v8456
        %v8458 = vrot.slane %v8087, 2
        %v8459 = vsel %vm2065, %v8456, %v8458
        %v8460 = vrot.slane %v8088, 2
        %v8461 = vsel %vm2065, %v8458, %v8460
        %v8462 = vrot.slane %v8089, 2
        %v8463 = vsel %vm2065, %v8460, %v8462
        %v8464 = vrot.slane %v8090, 2
        %v8465 = vsel %vm2065, %v8462, %v8464
        %v8466 = vrot.slane %v8091, 2
        %v8467 = vsel %vm2065, %v8464, %v8466
        %8468 = vrot.lane.b32.xlu0 %v8407, 16
        %v8469 = vpop.permute.xlu0 %8468
        %8470 = vrot.lane.b32.xlu0 %v8409, 16
        %v8471 = vpop.permute.xlu0 %8470
        %8472 = vrot.lane.b32.xlu0 %v8411, 16
        %v8473 = vpop.permute.xlu0 %8472
        %8474 = vrot.lane.b32.xlu0 %v8413, 16
        %v8475 = vpop.permute.xlu0 %8474
        %8476 = vrot.lane.b32.xlu0 %v8415, 16
        %v8477 = vpop.permute.xlu0 %8476
        %8478 = vrot.lane.b32.xlu0 %v8417, 16
        %v8479 = vpop.permute.xlu0 %8478
        %8480 = vrot.lane.b32.xlu0 %v8419, 16
        %v8481 = vpop.permute.xlu0 %8480
        %8482 = vrot.lane.b32.xlu0 %v8421, 16
        %v8483 = vpop.permute.xlu0 %8482
        %8484 = vrot.lane.b32.xlu0 %v8423, 16
        %v8485 = vpop.permute.xlu0 %8484
        %8486 = vrot.lane.b32.xlu0 %v8425, 16
        %v8487 = vpop.permute.xlu0 %8486
        %8488 = vrot.lane.b32.xlu0 %v8427, 16
        %v8489 = vpop.permute.xlu0 %8488
        %8490 = vrot.lane.b32.xlu0 %v8429, 16
        %v8491 = vpop.permute.xlu0 %8490
        %8492 = vrot.lane.b32.xlu0 %v8431, 16
        %v8493 = vpop.permute.xlu0 %8492
        %8494 = vrot.lane.b32.xlu0 %v8433, 16
        %v8495 = vpop.permute.xlu0 %8494
        %8496 = vrot.lane.b32.xlu0 %v8435, 16
        %v8497 = vpop.permute.xlu0 %8496
        %8498 = vrot.lane.b32.xlu0 %v8437, 16
        %v8499 = vpop.permute.xlu0 %8498
        %8500 = vrot.lane.b32.xlu0 %v8439, 16
        %v8501 = vpop.permute.xlu0 %8500
        %8502 = vrot.lane.b32.xlu0 %v8441, 16
        %v8503 = vpop.permute.xlu0 %8502
        %8504 = vrot.lane.b32.xlu0 %v8443, 16
        %v8505 = vpop.permute.xlu0 %8504
        %8506 = vrot.lane.b32.xlu0 %v8445, 16
        %v8507 = vpop.permute.xlu0 %8506
        %8508 = vrot.lane.b32.xlu0 %v8447, 16
        %v8509 = vpop.permute.xlu0 %8508
        %8510 = vrot.lane.b32.xlu0 %v8449, 16
        %v8511 = vpop.permute.xlu0 %8510
        %8512 = vrot.lane.b32.xlu0 %v8451, 16
        %v8513 = vpop.permute.xlu0 %8512
        %8514 = vrot.lane.b32.xlu0 %v8453, 16
        %v8515 = vpop.permute.xlu0 %8514
        %8516 = vrot.lane.b32.xlu0 %v8455, 16
        %v8517 = vpop.permute.xlu0 %8516
        %8518 = vrot.lane.b32.xlu0 %v8457, 16
        %v8519 = vpop.permute.xlu0 %8518
        %8520 = vrot.lane.b32.xlu0 %v8459, 16
        %v8521 = vpop.permute.xlu0 %8520
        %8522 = vrot.lane.b32.xlu0 %v8461, 16
        %v8523 = vpop.permute.xlu0 %8522
        %8524 = vrot.lane.b32.xlu0 %v8463, 16
        %v8525 = vpop.permute.xlu0 %8524
        %8526 = vrot.lane.b32.xlu0 %v8465, 16
        %v8527 = vpop.permute.xlu0 %8526
        %8528 = vrot.lane.b32.xlu0 %v8467, 16
        %v8529 = vpop.permute.xlu0 %8528
        %8593 = vrot.lane.b32.xlu0 %v8092, 24
        %v8594 = vpop.permute.xlu0 %8593
        %8595 = vrot.lane.b32.xlu0 %v8093, 24
        %v8596 = vpop.permute.xlu0 %8595
        %8597 = vrot.lane.b32.xlu0 %v8094, 24
        %v8598 = vpop.permute.xlu0 %8597
        %8599 = vrot.lane.b32.xlu0 %v8095, 24
        %v8600 = vpop.permute.xlu0 %8599
        %8601 = vrot.lane.b32.xlu0 %v8096, 24
        %v8602 = vpop.permute.xlu0 %8601
        %8603 = vrot.lane.b32.xlu0 %v8097, 24
        %v8604 = vpop.permute.xlu0 %8603
        %8605 = vrot.lane.b32.xlu0 %v8098, 24
        %v8606 = vpop.permute.xlu0 %8605
        %8607 = vrot.lane.b32.xlu0 %v8099, 24
        %v8608 = vpop.permute.xlu0 %8607
        %8609 = vrot.lane.b32.xlu0 %v8100, 24
        %v8610 = vpop.permute.xlu0 %8609
        %8611 = vrot.lane.b32.xlu0 %v8101, 24
        %v8612 = vpop.permute.xlu0 %8611
        %8613 = vrot.lane.b32.xlu0 %v8102, 24
        %v8614 = vpop.permute.xlu0 %8613
        %8615 = vrot.lane.b32.xlu0 %v8103, 24
        %v8616 = vpop.permute.xlu0 %8615
        %8617 = vrot.lane.b32.xlu0 %v8104, 24
        %v8618 = vpop.permute.xlu0 %8617
        %8619 = vrot.lane.b32.xlu0 %v8105, 24
        %v8620 = vpop.permute.xlu0 %8619
        %8621 = vrot.lane.b32.xlu0 %v8106, 24
        %v8622 = vpop.permute.xlu0 %8621
        %8623 = vrot.lane.b32.xlu0 %v8107, 24
        %v8624 = vpop.permute.xlu0 %8623
        %8625 = vrot.lane.b32.xlu0 %v8108, 24
        %v8626 = vpop.permute.xlu0 %8625
        %8627 = vrot.lane.b32.xlu0 %v8109, 24
        %v8628 = vpop.permute.xlu0 %8627
        %8629 = vrot.lane.b32.xlu0 %v8110, 24
        %v8630 = vpop.permute.xlu0 %8629
        %8631 = vrot.lane.b32.xlu0 %v8111, 24
        %v8632 = vpop.permute.xlu0 %8631
        %8633 = vrot.lane.b32.xlu0 %v8112, 24
        %v8634 = vpop.permute.xlu0 %8633
        %8635 = vrot.lane.b32.xlu0 %v8113, 24
        %v8636 = vpop.permute.xlu0 %8635
        %8637 = vrot.lane.b32.xlu0 %v8114, 24
        %v8638 = vpop.permute.xlu0 %8637
        %8639 = vrot.lane.b32.xlu0 %v8115, 24
        %v8640 = vpop.permute.xlu0 %8639
        %8641 = vrot.lane.b32.xlu0 %v8116, 24
        %v8642 = vpop.permute.xlu0 %8641
        %8643 = vrot.lane.b32.xlu0 %v8117, 24
        %v8644 = vpop.permute.xlu0 %8643
        %8645 = vrot.lane.b32.xlu0 %v8118, 24
        %v8646 = vpop.permute.xlu0 %8645
        %8647 = vrot.lane.b32.xlu0 %v8119, 24
        %v8648 = vpop.permute.xlu0 %8647
        %8649 = vrot.lane.b32.xlu0 %v8120, 24
        %v8650 = vpop.permute.xlu0 %8649
        %8651 = vrot.lane.b32.xlu0 %v8121, 24
        %v8652 = vpop.permute.xlu0 %8651
        %8653 = vrot.lane.b32.xlu0 %v8122, 24
        %v8654 = vpop.permute.xlu0 %8653
        %8655 = vrot.lane.b32.xlu0 %v8123, 24
        %v8656 = vpop.permute.xlu0 %8655
        %v8690 = vrot.slane %v7995, 1
        %v8691 = vsel %vm1871, %v8280, %v8690
        %v8692 = vrot.slane %v8030, 1
        %v8693 = vsel %vm1871, %v8690, %v8692
        %8694 = vrot.lane.b32.xlu0 %v8223, 32
        %v8695 = vpop.permute.xlu0 %8694
        %8696 = vrot.lane.b32.xlu0 %v8225, 32
        %v8697 = vpop.permute.xlu0 %8696
        %8698 = vrot.lane.b32.xlu0 %v8227, 32
        %v8699 = vpop.permute.xlu0 %8698
        %8700 = vrot.lane.b32.xlu0 %v8229, 32
        %v8701 = vpop.permute.xlu0 %8700
        %8702 = vrot.lane.b32.xlu0 %v8231, 32
        %v8703 = vpop.permute.xlu0 %8702
        %8704 = vrot.lane.b32.xlu0 %v8233, 32
        %v8705 = vpop.permute.xlu0 %8704
        %8706 = vrot.lane.b32.xlu0 %v8235, 32
        %v8707 = vpop.permute.xlu0 %8706
        %8708 = vrot.lane.b32.xlu0 %v8237, 32
        %v8709 = vpop.permute.xlu0 %8708
        %8710 = vrot.lane.b32.xlu0 %v8239, 32
        %v8711 = vpop.permute.xlu0 %8710
        %8712 = vrot.lane.b32.xlu0 %v8241, 32
        %v8713 = vpop.permute.xlu0 %8712
        %8714 = vrot.lane.b32.xlu0 %v8243, 32
        %v8715 = vpop.permute.xlu0 %8714
        %8716 = vrot.lane.b32.xlu0 %v8245, 32
        %v8717 = vpop.permute.xlu0 %8716
        %8718 = vrot.lane.b32.xlu0 %v8247, 32
        %v8719 = vpop.permute.xlu0 %8718
        %8720 = vrot.lane.b32.xlu0 %v8249, 32
        %v8721 = vpop.permute.xlu0 %8720
        %8722 = vrot.lane.b32.xlu0 %v8251, 32
        %v8723 = vpop.permute.xlu0 %8722
        %8724 = vrot.lane.b32.xlu0 %v8253, 32
        %v8725 = vpop.permute.xlu0 %8724
        %8726 = vrot.lane.b32.xlu0 %v8255, 32
        %v8727 = vpop.permute.xlu0 %8726
        %8728 = vrot.lane.b32.xlu0 %v8257, 32
        %v8729 = vpop.permute.xlu0 %8728
        %8730 = vrot.lane.b32.xlu0 %v8259, 32
        %v8731 = vpop.permute.xlu0 %8730
        %8732 = vrot.lane.b32.xlu0 %v8261, 32
        %v8733 = vpop.permute.xlu0 %8732
        %8734 = vrot.lane.b32.xlu0 %v8263, 32
        %v8735 = vpop.permute.xlu0 %8734
        %8736 = vrot.lane.b32.xlu0 %v8265, 32
        %v8737 = vpop.permute.xlu0 %8736
        %8738 = vrot.lane.b32.xlu0 %v8267, 32
        %v8739 = vpop.permute.xlu0 %8738
        %8740 = vrot.lane.b32.xlu0 %v8269, 32
        %v8741 = vpop.permute.xlu0 %8740
        %8742 = vrot.lane.b32.xlu0 %v8271, 32
        %v8743 = vpop.permute.xlu0 %8742
        %8744 = vrot.lane.b32.xlu0 %v8273, 32
        %v8745 = vpop.permute.xlu0 %8744
        %8746 = vrot.lane.b32.xlu0 %v8275, 32
        %v8747 = vpop.permute.xlu0 %8746
        %8748 = vrot.lane.b32.xlu0 %v8277, 32
        %v8749 = vpop.permute.xlu0 %8748
        %8750 = vrot.lane.b32.xlu0 %v8279, 32
        %v8751 = vpop.permute.xlu0 %8750
        %8752 = vrot.lane.b32.xlu0 %v8281, 32
        %v8753 = vpop.permute.xlu0 %8752
        %8754 = vrot.lane.b32.xlu0 %v8691, 32
        %v8755 = vpop.permute.xlu0 %8754
        %8756 = vrot.lane.b32.xlu0 %v8693, 32
        %v8757 = vpop.permute.xlu0 %8756
        %v8823 = vrot.slane %v8124, 2
        %v8824 = vrot.slane %v8125, 2
        %v8825 = vsel %vm2065, %v8823, %v8824
        %v8826 = vrot.slane %v8126, 2
        %v8827 = vsel %vm2065, %v8824, %v8826
        %v8828 = vrot.slane %v8127, 2
        %v8829 = vsel %vm2065, %v8826, %v8828
        %v8830 = vrot.slane %v8128, 2
        %v8831 = vsel %vm2065, %v8828, %v8830
        %v8832 = vrot.slane %v8129, 2
        %v8833 = vsel %vm2065, %v8830, %v8832
        %v8834 = vrot.slane %v8130, 2
        %v8835 = vsel %vm2065, %v8832, %v8834
        %v8836 = vrot.slane %v8131, 2
        %v8837 = vsel %vm2065, %v8834, %v8836
        %v8838 = vrot.slane %v8132, 2
        %v8839 = vsel %vm2065, %v8836, %v8838
        %v8840 = vrot.slane %v8133, 2
        %v8841 = vsel %vm2065, %v8838, %v8840
        %v8842 = vrot.slane %v8134, 2
        %v8843 = vsel %vm2065, %v8840, %v8842
        %v8844 = vrot.slane %v8135, 2
        %v8845 = vsel %vm2065, %v8842, %v8844
        %v8846 = vrot.slane %v8136, 2
        %v8847 = vsel %vm2065, %v8844, %v8846
        %v8848 = vrot.slane %v8137, 2
        %v8849 = vsel %vm2065, %v8846, %v8848
        %v8850 = vrot.slane %v8138, 2
        %v8851 = vsel %vm2065, %v8848, %v8850
        %v8852 = vrot.slane %v8139, 2
        %v8853 = vsel %vm2065, %v8850, %v8852
        %v8854 = vrot.slane %v8140, 2
        %v8855 = vsel %vm2065, %v8852, %v8854
        %v8856 = vrot.slane %v8141, 2
        %v8857 = vsel %vm2065, %v8854, %v8856
        %v8858 = vrot.slane %v8142, 2
        %v8859 = vsel %vm2065, %v8856, %v8858
        %v8860 = vrot.slane %v8143, 2
        %v8861 = vsel %vm2065, %v8858, %v8860
        %v8862 = vrot.slane %v8144, 2
        %v8863 = vsel %vm2065, %v8860, %v8862
        %v8864 = vrot.slane %v8145, 2
        %v8865 = vsel %vm2065, %v8862, %v8864
        %v8866 = vrot.slane %v8146, 2
        %v8867 = vsel %vm2065, %v8864, %v8866
        %v8868 = vrot.slane %v8147, 2
        %v8869 = vsel %vm2065, %v8866, %v8868
        %v8870 = vrot.slane %v8148, 2
        %v8871 = vsel %vm2065, %v8868, %v8870
        %v8872 = vrot.slane %v8149, 2
        %v8873 = vsel %vm2065, %v8870, %v8872
        %v8874 = vrot.slane %v8150, 2
        %v8875 = vsel %vm2065, %v8872, %v8874
        %v8876 = vrot.slane %v8151, 2
        %v8877 = vsel %vm2065, %v8874, %v8876
        %v8878 = vrot.slane %v8152, 2
        %v8879 = vsel %vm2065, %v8876, %v8878
        %v8880 = vrot.slane %v8153, 2
        %v8881 = vsel %vm2065, %v8878, %v8880
        %v8882 = vrot.slane %v8154, 2
        %v8883 = vsel %vm2065, %v8880, %v8882
        %v8884 = vrot.slane %v8155, 2
        %v8885 = vsel %vm2065, %v8882, %v8884
        %v8886 = vrot.slane %v8156, 2
        %v8887 = vsel %vm2065, %v8884, %v8886
        %8888 = vrot.lane.b32.xlu0 %v8825, 40
        %v8889 = vpop.permute.xlu0 %8888
        %8890 = vrot.lane.b32.xlu0 %v8827, 40
        %v8891 = vpop.permute.xlu0 %8890
        %8892 = vrot.lane.b32.xlu0 %v8829, 40
        %v8893 = vpop.permute.xlu0 %8892
        %8894 = vrot.lane.b32.xlu0 %v8831, 40
        %v8895 = vpop.permute.xlu0 %8894
        %8896 = vrot.lane.b32.xlu0 %v8833, 40
        %v8897 = vpop.permute.xlu0 %8896
        %8898 = vrot.lane.b32.xlu0 %v8835, 40
        %v8899 = vpop.permute.xlu0 %8898
        %8900 = vrot.lane.b32.xlu0 %v8837, 40
        %v8901 = vpop.permute.xlu0 %8900
        %8902 = vrot.lane.b32.xlu0 %v8839, 40
        %v8903 = vpop.permute.xlu0 %8902
        %8904 = vrot.lane.b32.xlu0 %v8841, 40
        %v8905 = vpop.permute.xlu0 %8904
        %8906 = vrot.lane.b32.xlu0 %v8843, 40
        %v8907 = vpop.permute.xlu0 %8906
        %8908 = vrot.lane.b32.xlu0 %v8845, 40
        %v8909 = vpop.permute.xlu0 %8908
        %8910 = vrot.lane.b32.xlu0 %v8847, 40
        %v8911 = vpop.permute.xlu0 %8910
        %8912 = vrot.lane.b32.xlu0 %v8849, 40
        %v8913 = vpop.permute.xlu0 %8912
        %8914 = vrot.lane.b32.xlu0 %v8851, 40
        %v8915 = vpop.permute.xlu0 %8914
        %8916 = vrot.lane.b32.xlu0 %v8853, 40
        %v8917 = vpop.permute.xlu0 %8916
        %8918 = vrot.lane.b32.xlu0 %v8855, 40
        %v8919 = vpop.permute.xlu0 %8918
        %8920 = vrot.lane.b32.xlu0 %v8857, 40
        %v8921 = vpop.permute.xlu0 %8920
        %8922 = vrot.lane.b32.xlu0 %v8859, 40
        %v8923 = vpop.permute.xlu0 %8922
        %8924 = vrot.lane.b32.xlu0 %v8861, 40
        %v8925 = vpop.permute.xlu0 %8924
        %8926 = vrot.lane.b32.xlu0 %v8863, 40
        %v8927 = vpop.permute.xlu0 %8926
        %8928 = vrot.lane.b32.xlu0 %v8865, 40
        %v8929 = vpop.permute.xlu0 %8928
        %8930 = vrot.lane.b32.xlu0 %v8867, 40
        %v8931 = vpop.permute.xlu0 %8930
        %8932 = vrot.lane.b32.xlu0 %v8869, 40
        %v8933 = vpop.permute.xlu0 %8932
        %8934 = vrot.lane.b32.xlu0 %v8871, 40
        %v8935 = vpop.permute.xlu0 %8934
        %8936 = vrot.lane.b32.xlu0 %v8873, 40
        %v8937 = vpop.permute.xlu0 %8936
        %8938 = vrot.lane.b32.xlu0 %v8875, 40
        %v8939 = vpop.permute.xlu0 %8938
        %8940 = vrot.lane.b32.xlu0 %v8877, 40
        %v8941 = vpop.permute.xlu0 %8940
        %8942 = vrot.lane.b32.xlu0 %v8879, 40
        %v8943 = vpop.permute.xlu0 %8942
        %8944 = vrot.lane.b32.xlu0 %v8881, 40
        %v8945 = vpop.permute.xlu0 %8944
        %8946 = vrot.lane.b32.xlu0 %v8883, 40
        %v8947 = vpop.permute.xlu0 %8946
        %8948 = vrot.lane.b32.xlu0 %v8885, 40
        %v8949 = vpop.permute.xlu0 %8948
        %8950 = vrot.lane.b32.xlu0 %v8887, 40
        %v8951 = vpop.permute.xlu0 %8950
        %9015 = vrot.lane.b32.xlu0 %v8157, 48
        %v9016 = vpop.permute.xlu0 %9015
        %9017 = vrot.lane.b32.xlu0 %v8158, 48
        %v9018 = vpop.permute.xlu0 %9017
        %9019 = vrot.lane.b32.xlu0 %v8159, 48
        %v9020 = vpop.permute.xlu0 %9019
        %9021 = vrot.lane.b32.xlu0 %v8160, 48
        %v9022 = vpop.permute.xlu0 %9021
        %9023 = vrot.lane.b32.xlu0 %v8161, 48
        %v9024 = vpop.permute.xlu0 %9023
        %9025 = vrot.lane.b32.xlu0 %v8162, 48
        %v9026 = vpop.permute.xlu0 %9025
        %9027 = vrot.lane.b32.xlu0 %v8163, 48
        %v9028 = vpop.permute.xlu0 %9027
        %9029 = vrot.lane.b32.xlu0 %v8164, 48
        %v9030 = vpop.permute.xlu0 %9029
        %9031 = vrot.lane.b32.xlu0 %v8165, 48
        %v9032 = vpop.permute.xlu0 %9031
        %9033 = vrot.lane.b32.xlu0 %v8166, 48
        %v9034 = vpop.permute.xlu0 %9033
        %9035 = vrot.lane.b32.xlu0 %v8167, 48
        %v9036 = vpop.permute.xlu0 %9035
        %9037 = vrot.lane.b32.xlu0 %v8168, 48
        %v9038 = vpop.permute.xlu0 %9037
        %9039 = vrot.lane.b32.xlu0 %v8169, 48
        %v9040 = vpop.permute.xlu0 %9039
        %9041 = vrot.lane.b32.xlu0 %v8170, 48
        %v9042 = vpop.permute.xlu0 %9041
        %9043 = vrot.lane.b32.xlu0 %v8171, 48
        %v9044 = vpop.permute.xlu0 %9043
        %9045 = vrot.lane.b32.xlu0 %v8172, 48
        %v9046 = vpop.permute.xlu0 %9045
        %9047 = vrot.lane.b32.xlu0 %v8173, 48
        %v9048 = vpop.permute.xlu0 %9047
        %9049 = vrot.lane.b32.xlu0 %v8174, 48
        %v9050 = vpop.permute.xlu0 %9049
        %9051 = vrot.lane.b32.xlu0 %v8175, 48
        %v9052 = vpop.permute.xlu0 %9051
        %9053 = vrot.lane.b32.xlu0 %v8176, 48
        %v9054 = vpop.permute.xlu0 %9053
        %9055 = vrot.lane.b32.xlu0 %v8177, 48
        %v9056 = vpop.permute.xlu0 %9055
        %9057 = vrot.lane.b32.xlu0 %v8178, 48
        %v9058 = vpop.permute.xlu0 %9057
        %9059 = vrot.lane.b32.xlu0 %v8179, 48
        %v9060 = vpop.permute.xlu0 %9059
        %9061 = vrot.lane.b32.xlu0 %v8180, 48
        %v9062 = vpop.permute.xlu0 %9061
        %9063 = vrot.lane.b32.xlu0 %v8181, 48
        %v9064 = vpop.permute.xlu0 %9063
        %9065 = vrot.lane.b32.xlu0 %v8182, 48
        %v9066 = vpop.permute.xlu0 %9065
        %9067 = vrot.lane.b32.xlu0 %v8183, 48
        %v9068 = vpop.permute.xlu0 %9067
        %9069 = vrot.lane.b32.xlu0 %v8184, 48
        %v9070 = vpop.permute.xlu0 %9069
        %9071 = vrot.lane.b32.xlu0 %v8185, 48
        %v9072 = vpop.permute.xlu0 %9071
        %9073 = vrot.lane.b32.xlu0 %v8186, 48
        %v9074 = vpop.permute.xlu0 %9073
        %9075 = vrot.lane.b32.xlu0 %v8187, 48
        %v9076 = vpop.permute.xlu0 %9075
        %v9108 = vsel %vm1871, %v8692, %v1872
        %9109 = vrot.lane.b32.xlu0 %v8227, 56
        %v9110 = vpop.permute.xlu0 %9109
        %9111 = vrot.lane.b32.xlu0 %v8229, 56
        %v9112 = vpop.permute.xlu0 %9111
        %9113 = vrot.lane.b32.xlu0 %v8231, 56
        %v9114 = vpop.permute.xlu0 %9113
        %9115 = vrot.lane.b32.xlu0 %v8233, 56
        %v9116 = vpop.permute.xlu0 %9115
        %9117 = vrot.lane.b32.xlu0 %v8235, 56
        %v9118 = vpop.permute.xlu0 %9117
        %9119 = vrot.lane.b32.xlu0 %v8237, 56
        %v9120 = vpop.permute.xlu0 %9119
        %9121 = vrot.lane.b32.xlu0 %v8239, 56
        %v9122 = vpop.permute.xlu0 %9121
        %9123 = vrot.lane.b32.xlu0 %v8241, 56
        %v9124 = vpop.permute.xlu0 %9123
        %9125 = vrot.lane.b32.xlu0 %v8243, 56
        %v9126 = vpop.permute.xlu0 %9125
        %9127 = vrot.lane.b32.xlu0 %v8245, 56
        %v9128 = vpop.permute.xlu0 %9127
        %9129 = vrot.lane.b32.xlu0 %v8247, 56
        %v9130 = vpop.permute.xlu0 %9129
        %9131 = vrot.lane.b32.xlu0 %v8249, 56
        %v9132 = vpop.permute.xlu0 %9131
        %9133 = vrot.lane.b32.xlu0 %v8251, 56
        %v9134 = vpop.permute.xlu0 %9133
        %9135 = vrot.lane.b32.xlu0 %v8253, 56
        %v9136 = vpop.permute.xlu0 %9135
        %9137 = vrot.lane.b32.xlu0 %v8255, 56
        %v9138 = vpop.permute.xlu0 %9137
        %9139 = vrot.lane.b32.xlu0 %v8257, 56
        %v9140 = vpop.permute.xlu0 %9139
        %9141 = vrot.lane.b32.xlu0 %v8259, 56
        %v9142 = vpop.permute.xlu0 %9141
        %9143 = vrot.lane.b32.xlu0 %v8261, 56
        %v9144 = vpop.permute.xlu0 %9143
        %9145 = vrot.lane.b32.xlu0 %v8263, 56
        %v9146 = vpop.permute.xlu0 %9145
        %9147 = vrot.lane.b32.xlu0 %v8265, 56
        %v9148 = vpop.permute.xlu0 %9147
        %9149 = vrot.lane.b32.xlu0 %v8267, 56
        %v9150 = vpop.permute.xlu0 %9149
        %9151 = vrot.lane.b32.xlu0 %v8269, 56
        %v9152 = vpop.permute.xlu0 %9151
        %9153 = vrot.lane.b32.xlu0 %v8271, 56
        %v9154 = vpop.permute.xlu0 %9153
        %9155 = vrot.lane.b32.xlu0 %v8273, 56
        %v9156 = vpop.permute.xlu0 %9155
        %9157 = vrot.lane.b32.xlu0 %v8275, 56
        %v9158 = vpop.permute.xlu0 %9157
        %9159 = vrot.lane.b32.xlu0 %v8277, 56
        %v9160 = vpop.permute.xlu0 %9159
        %9161 = vrot.lane.b32.xlu0 %v8279, 56
        %v9162 = vpop.permute.xlu0 %9161
        %9163 = vrot.lane.b32.xlu0 %v8281, 56
        %v9164 = vpop.permute.xlu0 %9163
        %9165 = vrot.lane.b32.xlu0 %v8691, 56
        %v9166 = vpop.permute.xlu0 %9165
        %9167 = vrot.lane.b32.xlu0 %v8693, 56
        %v9168 = vpop.permute.xlu0 %9167
        %9169 = vrot.lane.b32.xlu0 %v9108, 56
        %v9170 = vpop.permute.xlu0 %9169
        %v9233 = vrot.slane %v8188, 2
        %v9234 = vrot.slane %v8189, 2
        %v9235 = vsel %vm2065, %v9233, %v9234
        %v9236 = vrot.slane %v8190, 2
        %v9237 = vsel %vm2065, %v9234, %v9236
        %v9238 = vrot.slane %v8191, 2
        %v9239 = vsel %vm2065, %v9236, %v9238
        %v9240 = vrot.slane %v8192, 2
        %v9241 = vsel %vm2065, %v9238, %v9240
        %v9242 = vrot.slane %v8193, 2
        %v9243 = vsel %vm2065, %v9240, %v9242
        %v9244 = vrot.slane %v8194, 2
        %v9245 = vsel %vm2065, %v9242, %v9244
        %v9246 = vrot.slane %v8195, 2
        %v9247 = vsel %vm2065, %v9244, %v9246
        %v9248 = vrot.slane %v8196, 2
        %v9249 = vsel %vm2065, %v9246, %v9248
        %v9250 = vrot.slane %v8197, 2
        %v9251 = vsel %vm2065, %v9248, %v9250
        %v9252 = vrot.slane %v8198, 2
        %v9253 = vsel %vm2065, %v9250, %v9252
        %v9254 = vrot.slane %v8199, 2
        %v9255 = vsel %vm2065, %v9252, %v9254
        %v9256 = vrot.slane %v8200, 2
        %v9257 = vsel %vm2065, %v9254, %v9256
        %v9258 = vrot.slane %v8201, 2
        %v9259 = vsel %vm2065, %v9256, %v9258
        %v9260 = vrot.slane %v8202, 2
        %v9261 = vsel %vm2065, %v9258, %v9260
        %v9262 = vrot.slane %v8203, 2
        %v9263 = vsel %vm2065, %v9260, %v9262
        %v9264 = vrot.slane %v8204, 2
        %v9265 = vsel %vm2065, %v9262, %v9264
        %v9266 = vrot.slane %v8205, 2
        %v9267 = vsel %vm2065, %v9264, %v9266
        %v9268 = vrot.slane %v8206, 2
        %v9269 = vsel %vm2065, %v9266, %v9268
        %v9270 = vrot.slane %v8207, 2
        %v9271 = vsel %vm2065, %v9268, %v9270
        %v9272 = vrot.slane %v8208, 2
        %v9273 = vsel %vm2065, %v9270, %v9272
        %v9274 = vrot.slane %v8209, 2
        %v9275 = vsel %vm2065, %v9272, %v9274
        %v9276 = vrot.slane %v8210, 2
        %v9277 = vsel %vm2065, %v9274, %v9276
        %v9278 = vrot.slane %v8211, 2
        %v9279 = vsel %vm2065, %v9276, %v9278
        %v9280 = vrot.slane %v8212, 2
        %v9281 = vsel %vm2065, %v9278, %v9280
        %v9282 = vrot.slane %v8213, 2
        %v9283 = vsel %vm2065, %v9280, %v9282
        %v9284 = vrot.slane %v8214, 2
        %v9285 = vsel %vm2065, %v9282, %v9284
        %v9286 = vrot.slane %v8215, 2
        %v9287 = vsel %vm2065, %v9284, %v9286
        %v9288 = vrot.slane %v8216, 2
        %v9289 = vsel %vm2065, %v9286, %v9288
        %v9290 = vrot.slane %v8217, 2
        %v9291 = vsel %vm2065, %v9288, %v9290
        %v9292 = vrot.slane %v8218, 2
        %v9293 = vsel %vm2065, %v9290, %v9292
        %v9294 = vsel %vm2065, %v9292, %v2969
        %9295 = vrot.lane.b32.xlu0 %v9235, 64
        %v9296 = vpop.permute.xlu0 %9295
        %9297 = vrot.lane.b32.xlu0 %v9237, 64
        %v9298 = vpop.permute.xlu0 %9297
        %9299 = vrot.lane.b32.xlu0 %v9239, 64
        %v9300 = vpop.permute.xlu0 %9299
        %9301 = vrot.lane.b32.xlu0 %v9241, 64
        %v9302 = vpop.permute.xlu0 %9301
        %9303 = vrot.lane.b32.xlu0 %v9243, 64
        %v9304 = vpop.permute.xlu0 %9303
        %9305 = vrot.lane.b32.xlu0 %v9245, 64
        %v9306 = vpop.permute.xlu0 %9305
        %9307 = vrot.lane.b32.xlu0 %v9247, 64
        %v9308 = vpop.permute.xlu0 %9307
        %9309 = vrot.lane.b32.xlu0 %v9249, 64
        %v9310 = vpop.permute.xlu0 %9309
        %9311 = vrot.lane.b32.xlu0 %v9251, 64
        %v9312 = vpop.permute.xlu0 %9311
        %9313 = vrot.lane.b32.xlu0 %v9253, 64
        %v9314 = vpop.permute.xlu0 %9313
        %9315 = vrot.lane.b32.xlu0 %v9255, 64
        %v9316 = vpop.permute.xlu0 %9315
        %9317 = vrot.lane.b32.xlu0 %v9257, 64
        %v9318 = vpop.permute.xlu0 %9317
        %9319 = vrot.lane.b32.xlu0 %v9259, 64
        %v9320 = vpop.permute.xlu0 %9319
        %9321 = vrot.lane.b32.xlu0 %v9261, 64
        %v9322 = vpop.permute.xlu0 %9321
        %9323 = vrot.lane.b32.xlu0 %v9263, 64
        %v9324 = vpop.permute.xlu0 %9323
        %9325 = vrot.lane.b32.xlu0 %v9265, 64
        %v9326 = vpop.permute.xlu0 %9325
        %9327 = vrot.lane.b32.xlu0 %v9267, 64
        %v9328 = vpop.permute.xlu0 %9327
        %9329 = vrot.lane.b32.xlu0 %v9269, 64
        %v9330 = vpop.permute.xlu0 %9329
        %9331 = vrot.lane.b32.xlu0 %v9271, 64
        %v9332 = vpop.permute.xlu0 %9331
        %9333 = vrot.lane.b32.xlu0 %v9273, 64
        %v9334 = vpop.permute.xlu0 %9333
        %9335 = vrot.lane.b32.xlu0 %v9275, 64
        %v9336 = vpop.permute.xlu0 %9335
        %9337 = vrot.lane.b32.xlu0 %v9277, 64
        %v9338 = vpop.permute.xlu0 %9337
        %9339 = vrot.lane.b32.xlu0 %v9279, 64
        %v9340 = vpop.permute.xlu0 %9339
        %9341 = vrot.lane.b32.xlu0 %v9281, 64
        %v9342 = vpop.permute.xlu0 %9341
        %9343 = vrot.lane.b32.xlu0 %v9283, 64
        %v9344 = vpop.permute.xlu0 %9343
        %9345 = vrot.lane.b32.xlu0 %v9285, 64
        %v9346 = vpop.permute.xlu0 %9345
        %9347 = vrot.lane.b32.xlu0 %v9287, 64
        %v9348 = vpop.permute.xlu0 %9347
        %9349 = vrot.lane.b32.xlu0 %v9289, 64
        %v9350 = vpop.permute.xlu0 %9349
        %9351 = vrot.lane.b32.xlu0 %v9291, 64
        %v9352 = vpop.permute.xlu0 %9351
        %9353 = vrot.lane.b32.xlu0 %v9293, 64
        %v9354 = vpop.permute.xlu0 %9353
        %9355 = vrot.lane.b32.xlu0 %v9294, 64
        %v9356 = vpop.permute.xlu0 %9355
        %v9388 = vsel %vm309, %v1546, %v8283
        %v9389 = vsel %vm309, %v8031, %v8285
        %v9390 = vsel %vm309, %v8032, %v8287
        %v9391 = vsel %vm309, %v8033, %v8289
        %v9392 = vsel %vm309, %v8034, %v8291
        %v9393 = vsel %vm309, %v8035, %v8293
        %v9394 = vsel %vm309, %v8036, %v8295
        %v9395 = vsel %vm309, %v8037, %v8297
        %v9396 = vsel %vm309, %v8038, %v8299
        %v9397 = vsel %vm309, %v8039, %v8301
        %v9398 = vsel %vm309, %v8040, %v8303
        %v9399 = vsel %vm309, %v8041, %v8305
        %v9400 = vsel %vm309, %v8042, %v8307
        %v9401 = vsel %vm309, %v8043, %v8309
        %v9402 = vsel %vm309, %v8044, %v8311
        %v9403 = vsel %vm309, %v8045, %v8313
        %v9404 = vsel %vm309, %v8046, %v8315
        %v9405 = vsel %vm309, %v8047, %v8317
        %v9406 = vsel %vm309, %v8048, %v8319
        %v9407 = vsel %vm309, %v8049, %v8321
        %v9408 = vsel %vm309, %v8050, %v8323
        %v9409 = vsel %vm309, %v8051, %v8325
        %v9410 = vsel %vm309, %v8052, %v8327
        %v9411 = vsel %vm309, %v8053, %v8329
        %v9412 = vsel %vm309, %v8054, %v8331
        %v9413 = vsel %vm309, %v8055, %v8333
        %v9414 = vsel %vm309, %v8056, %v8335
        %v9415 = vsel %vm309, %v8057, %v8337
        %v9416 = vsel %vm309, %v8058, %v8339
        %v9417 = vsel %vm309, %v8059, %v8341
        %v9418 = vsel %vm309, %v8060, %v8343
        %v9419 = vsel %vm3101, %v9388, %v8469
        %v9420 = vsel %vm3101, %v9389, %v8471
        %v9421 = vsel %vm3101, %v9390, %v8473
        %v9422 = vsel %vm3101, %v9391, %v8475
        %v9423 = vsel %vm3101, %v9392, %v8477
        %v9424 = vsel %vm3101, %v9393, %v8479
        %v9425 = vsel %vm3101, %v9394, %v8481
        %v9426 = vsel %vm3101, %v9395, %v8483
        %v9427 = vsel %vm3101, %v9396, %v8485
        %v9428 = vsel %vm3101, %v9397, %v8487
        %v9429 = vsel %vm3101, %v9398, %v8489
        %v9430 = vsel %vm3101, %v9399, %v8491
        %v9431 = vsel %vm3101, %v9400, %v8493
        %v9432 = vsel %vm3101, %v9401, %v8495
        %v9433 = vsel %vm3101, %v9402, %v8497
        %v9434 = vsel %vm3101, %v9403, %v8499
        %v9435 = vsel %vm3101, %v9404, %v8501
        %v9436 = vsel %vm3101, %v9405, %v8503
        %v9437 = vsel %vm3101, %v9406, %v8505
        %v9438 = vsel %vm3101, %v9407, %v8507
        %v9439 = vsel %vm3101, %v9408, %v8509
        %v9440 = vsel %vm3101, %v9409, %v8511
        %v9441 = vsel %vm3101, %v9410, %v8513
        %v9442 = vsel %vm3101, %v9411, %v8515
        %v9443 = vsel %vm3101, %v9412, %v8517
        %v9444 = vsel %vm3101, %v9413, %v8519
        %v9445 = vsel %vm3101, %v9414, %v8521
        %v9446 = vsel %vm3101, %v9415, %v8523
        %v9447 = vsel %vm3101, %v9416, %v8525
        %v9448 = vsel %vm3101, %v9417, %v8527
        %v9449 = vsel %vm3101, %v9418, %v8529
        %v9450 = vsel %vm3134, %v3102, %v8594
        %v9451 = vsel %vm3134, %v9419, %v8596
        %v9452 = vsel %vm3134, %v9420, %v8598
        %v9453 = vsel %vm3134, %v9421, %v8600
        %v9454 = vsel %vm3134, %v9422, %v8602
        %v9455 = vsel %vm3134, %v9423, %v8604
        %v9456 = vsel %vm3134, %v9424, %v8606
        %v9457 = vsel %vm3134, %v9425, %v8608
        %v9458 = vsel %vm3134, %v9426, %v8610
        %v9459 = vsel %vm3134, %v9427, %v8612
        %v9460 = vsel %vm3134, %v9428, %v8614
        %v9461 = vsel %vm3134, %v9429, %v8616
        %v9462 = vsel %vm3134, %v9430, %v8618
        %v9463 = vsel %vm3134, %v9431, %v8620
        %v9464 = vsel %vm3134, %v9432, %v8622
        %v9465 = vsel %vm3134, %v9433, %v8624
        %v9466 = vsel %vm3134, %v9434, %v8626
        %v9467 = vsel %vm3134, %v9435, %v8628
        %v9468 = vsel %vm3134, %v9436, %v8630
        %v9469 = vsel %vm3134, %v9437, %v8632
        %v9470 = vsel %vm3134, %v9438, %v8634
        %v9471 = vsel %vm3134, %v9439, %v8636
        %v9472 = vsel %vm3134, %v9440, %v8638
        %v9473 = vsel %vm3134, %v9441, %v8640
        %v9474 = vsel %vm3134, %v9442, %v8642
        %v9475 = vsel %vm3134, %v9443, %v8644
        %v9476 = vsel %vm3134, %v9444, %v8646
        %v9477 = vsel %vm3134, %v9445, %v8648
        %v9478 = vsel %vm3134, %v9446, %v8650
        %v9479 = vsel %vm3134, %v9447, %v8652
        %v9480 = vsel %vm3134, %v9448, %v8654
        %v9481 = vsel %vm3134, %v9449, %v8656
        %v9482 = vsel %vm3167, %v9450, %v8695
        %v9483 = vsel %vm3167, %v9451, %v8697
        %v9484 = vsel %vm3167, %v9452, %v8699
        %v9485 = vsel %vm3167, %v9453, %v8701
        %v9486 = vsel %vm3167, %v9454, %v8703
        %v9487 = vsel %vm3167, %v9455, %v8705
        %v9488 = vsel %vm3167, %v9456, %v8707
        %v9489 = vsel %vm3167, %v9457, %v8709
        %v9490 = vsel %vm3167, %v9458, %v8711
        %v9491 = vsel %vm3167, %v9459, %v8713
        %v9492 = vsel %vm3167, %v9460, %v8715
        %v9493 = vsel %vm3167, %v9461, %v8717
        %v9494 = vsel %vm3167, %v9462, %v8719
        %v9495 = vsel %vm3167, %v9463, %v8721
        %v9496 = vsel %vm3167, %v9464, %v8723
        %v9497 = vsel %vm3167, %v9465, %v8725
        %v9498 = vsel %vm3167, %v9466, %v8727
        %v9499 = vsel %vm3167, %v9467, %v8729
        %v9500 = vsel %vm3167, %v9468, %v8731
        %v9501 = vsel %vm3167, %v9469, %v8733
        %v9502 = vsel %vm3167, %v9470, %v8735
        %v9503 = vsel %vm3167, %v9471, %v8737
        %v9504 = vsel %vm3167, %v9472, %v8739
        %v9505 = vsel %vm3167, %v9473, %v8741
        %v9506 = vsel %vm3167, %v9474, %v8743
        %v9507 = vsel %vm3167, %v9475, %v8745
        %v9508 = vsel %vm3167, %v9476, %v8747
        %v9509 = vsel %vm3167, %v9477, %v8749
        %v9510 = vsel %vm3167, %v9478, %v8751
        %v9511 = vsel %vm3167, %v9479, %v8753
        %v9512 = vsel %vm3167, %v9480, %v8755
        %v9513 = vsel %vm3167, %v9481, %v8757
        %v9514 = vsel %vm3200, %v9482, %v8889
        %v9515 = vsel %vm3200, %v9483, %v8891
        %v9516 = vsel %vm3200, %v9484, %v8893
        %v9517 = vsel %vm3200, %v9485, %v8895
        %v9518 = vsel %vm3200, %v9486, %v8897
        %v9519 = vsel %vm3200, %v9487, %v8899
        %v9520 = vsel %vm3200, %v9488, %v8901
        %v9521 = vsel %vm3200, %v9489, %v8903
        %v9522 = vsel %vm3200, %v9490, %v8905
        %v9523 = vsel %vm3200, %v9491, %v8907
        %v9524 = vsel %vm3200, %v9492, %v8909
        %v9525 = vsel %vm3200, %v9493, %v8911
        %v9526 = vsel %vm3200, %v9494, %v8913
        %v9527 = vsel %vm3200, %v9495, %v8915
        %v9528 = vsel %vm3200, %v9496, %v8917
        %v9529 = vsel %vm3200, %v9497, %v8919
        %v9530 = vsel %vm3200, %v9498, %v8921
        %v9531 = vsel %vm3200, %v9499, %v8923
        %v9532 = vsel %vm3200, %v9500, %v8925
        %v9533 = vsel %vm3200, %v9501, %v8927
        %v9534 = vsel %vm3200, %v9502, %v8929
        %v9535 = vsel %vm3200, %v9503, %v8931
        %v9536 = vsel %vm3200, %v9504, %v8933
        %v9537 = vsel %vm3200, %v9505, %v8935
        %v9538 = vsel %vm3200, %v9506, %v8937
        %v9539 = vsel %vm3200, %v9507, %v8939
        %v9540 = vsel %vm3200, %v9508, %v8941
        %v9541 = vsel %vm3200, %v9509, %v8943
        %v9542 = vsel %vm3200, %v9510, %v8945
        %v9543 = vsel %vm3200, %v9511, %v8947
        %v9544 = vsel %vm3200, %v9512, %v8949
        %v9545 = vsel %vm3200, %v9513, %v8951
        %v9546 = vsel %vm3233, %v9514, %v9016
        %v9547 = vsel %vm3233, %v9515, %v9018
        %v9548 = vsel %vm3233, %v9516, %v9020
        %v9549 = vsel %vm3233, %v9517, %v9022
        %v9550 = vsel %vm3233, %v9518, %v9024
        %v9551 = vsel %vm3233, %v9519, %v9026
        %v9552 = vsel %vm3233, %v9520, %v9028
        %v9553 = vsel %vm3233, %v9521, %v9030
        %v9554 = vsel %vm3233, %v9522, %v9032
        %v9555 = vsel %vm3233, %v9523, %v9034
        %v9556 = vsel %vm3233, %v9524, %v9036
        %v9557 = vsel %vm3233, %v9525, %v9038
        %v9558 = vsel %vm3233, %v9526, %v9040
        %v9559 = vsel %vm3233, %v9527, %v9042
        %v9560 = vsel %vm3233, %v9528, %v9044
        %v9561 = vsel %vm3233, %v9529, %v9046
        %v9562 = vsel %vm3233, %v9530, %v9048
        %v9563 = vsel %vm3233, %v9531, %v9050
        %v9564 = vsel %vm3233, %v9532, %v9052
        %v9565 = vsel %vm3233, %v9533, %v9054
        %v9566 = vsel %vm3233, %v9534, %v9056
        %v9567 = vsel %vm3233, %v9535, %v9058
        %v9568 = vsel %vm3233, %v9536, %v9060
        %v9569 = vsel %vm3233, %v9537, %v9062
        %v9570 = vsel %vm3233, %v9538, %v9064
        %v9571 = vsel %vm3233, %v9539, %v9066
        %v9572 = vsel %vm3233, %v9540, %v9068
        %v9573 = vsel %vm3233, %v9541, %v9070
        %v9574 = vsel %vm3233, %v9542, %v9072
        %v9575 = vsel %vm3233, %v9543, %v9074
        %v9576 = vsel %vm3233, %v9544, %v9076
        %v9577 = vsel %vm3233, %v9545, %v2745
        %v9578 = vsel %vm3266, %v9546, %v9110
        %v9579 = vsel %vm3266, %v9547, %v9112
        %v9580 = vsel %vm3266, %v9548, %v9114
        %v9581 = vsel %vm3266, %v9549, %v9116
        %v9582 = vsel %vm3266, %v9550, %v9118
        %v9583 = vsel %vm3266, %v9551, %v9120
        %v9584 = vsel %vm3266, %v9552, %v9122
        %v9585 = vsel %vm3266, %v9553, %v9124
        %v9586 = vsel %vm3266, %v9554, %v9126
        %v9587 = vsel %vm3266, %v9555, %v9128
        %v9588 = vsel %vm3266, %v9556, %v9130
        %v9589 = vsel %vm3266, %v9557, %v9132
        %v9590 = vsel %vm3266, %v9558, %v9134
        %v9591 = vsel %vm3266, %v9559, %v9136
        %v9592 = vsel %vm3266, %v9560, %v9138
        %v9593 = vsel %vm3266, %v9561, %v9140
        %v9594 = vsel %vm3266, %v9562, %v9142
        %v9595 = vsel %vm3266, %v9563, %v9144
        %v9596 = vsel %vm3266, %v9564, %v9146
        %v9597 = vsel %vm3266, %v9565, %v9148
        %v9598 = vsel %vm3266, %v9566, %v9150
        %v9599 = vsel %vm3266, %v9567, %v9152
        %v9600 = vsel %vm3266, %v9568, %v9154
        %v9601 = vsel %vm3266, %v9569, %v9156
        %v9602 = vsel %vm3266, %v9570, %v9158
        %v9603 = vsel %vm3266, %v9571, %v9160
        %v9604 = vsel %vm3266, %v9572, %v9162
        %v9605 = vsel %vm3266, %v9573, %v9164
        %v9606 = vsel %vm3266, %v9574, %v9166
        %v9607 = vsel %vm3266, %v9575, %v9168
        %v9608 = vsel %vm3266, %v9576, %v9170
        %v9609 = vsel %vm3266, %v9577, %v2842
        %v9610 = vsel %vm3299, %v9578, %v9296
        %v9611 = vsel %vm3299, %v9579, %v9298
        %v9612 = vsel %vm3299, %v9580, %v9300
        %v9613 = vsel %vm3299, %v9581, %v9302
        %v9614 = vsel %vm3299, %v9582, %v9304
        %v9615 = vsel %vm3299, %v9583, %v9306
        %v9616 = vsel %vm3299, %v9584, %v9308
        %v9617 = vsel %vm3299, %v9585, %v9310
        %v9618 = vsel %vm3299, %v9586, %v9312
        %v9619 = vsel %vm3299, %v9587, %v9314
        %v9620 = vsel %vm3299, %v9588, %v9316
        %v9621 = vsel %vm3299, %v9589, %v9318
        %v9622 = vsel %vm3299, %v9590, %v9320
        %v9623 = vsel %vm3299, %v9591, %v9322
        %v9624 = vsel %vm3299, %v9592, %v9324
        %v9625 = vsel %vm3299, %v9593, %v9326
        %v9626 = vsel %vm3299, %v9594, %v9328
        %v9627 = vsel %vm3299, %v9595, %v9330
        %v9628 = vsel %vm3299, %v9596, %v9332
        %v9629 = vsel %vm3299, %v9597, %v9334
        %v9630 = vsel %vm3299, %v9598, %v9336
        %v9631 = vsel %vm3299, %v9599, %v9338
        %v9632 = vsel %vm3299, %v9600, %v9340
        %v9633 = vsel %vm3299, %v9601, %v9342
        %v9634 = vsel %vm3299, %v9602, %v9344
        %v9635 = vsel %vm3299, %v9603, %v9346
        %v9636 = vsel %vm3299, %v9604, %v9348
        %v9637 = vsel %vm3299, %v9605, %v9350
        %v9638 = vsel %vm3299, %v9606, %v9352
        %v9639 = vsel %vm3299, %v9607, %v9354
        %v9640 = vsel %vm3299, %v9608, %v9356
        %v9641 = vsel %vm3299, %v9609, %v3036
        %v9642 = vld [vmem:[%s6] sm:$0xff]
        %v9643 = vld [vmem:[%s6 + $0x8] sm:$0xff]
        %v9644 = vld [vmem:[%s6 + $0x10] sm:$0xff]
        %v9645 = vld [vmem:[%s6 + $0x18] sm:$0xff]
        %v9646 = vld [vmem:[%s6 + $0x20] sm:$0xff]
        %v9647 = vld [vmem:[%s6 + $0x28] sm:$0xff]
        %v9648 = vld [vmem:[%s6 + $0x30] sm:$0xff]
        %v9649 = vld [vmem:[%s6 + $0x38] sm:$0xff]
        %v9650 = vld [vmem:[%s6 + $0x40] sm:$0xff]
        %v9652 = vsel %vm3341, %v9610, 0
        %v9655 = vsel %vm3341, %v9611, 0
        %v9658 = vsel %vm3341, %v9612, 0
        %v9661 = vsel %vm3341, %v9613, 0
        %v9664 = vsel %vm3341, %v9614, 0
        %v9667 = vsel %vm3341, %v9615, 0
        %v9670 = vsel %vm3341, %v9616, 0
        %v9673 = vsel %vm3341, %v9617, 0
        %v9676 = vsel %vm3341, %v9618, 0
        %v9679 = vsel %vm3341, %v9619, 0
        %v9682 = vsel %vm3341, %v9620, 0
        %v9685 = vsel %vm3341, %v9621, 0
        %v9688 = vsel %vm3341, %v9622, 0
        %v9691 = vsel %vm3341, %v9623, 0
        %v9694 = vsel %vm3341, %v9624, 0
        %v9697 = vsel %vm3341, %v9625, 0
        %v9700 = vsel %vm3341, %v9626, 0
        %v9703 = vsel %vm3341, %v9627, 0
        %v9706 = vsel %vm3341, %v9628, 0
        %v9709 = vsel %vm3341, %v9629, 0
        %v9712 = vsel %vm3341, %v9630, 0
        %v9715 = vsel %vm3341, %v9631, 0
        %v9718 = vsel %vm3341, %v9632, 0
        %v9721 = vsel %vm3341, %v9633, 0
        %v9724 = vsel %vm3341, %v9634, 0
        %v9727 = vsel %vm3341, %v9635, 0
        %v9730 = vsel %vm3341, %v9636, 0
        %v9733 = vsel %vm3341, %v9637, 0
        %v9736 = vsel %vm3341, %v9638, 0
        %v9739 = vsel %vm3341, %v9639, 0
        %v9742 = vsel %vm3341, %v9640, 0
        %v9745 = vsel %vm3341, %v9641, 0
        %9747 = vmatprep.subr.mxu0 0.0
        %9748 = vmatpush1.msra.mxu0 %v9642
        %9749 = vmatprep.subr.mxu0 0.0
        %9750 = vmatpush1.msra.mxu0 %v9643
        %9751 = vmatprep.subr.mxu0 0.0
        %9752 = vmatpush1.msra.mxu0 %v9644
        %9753 = vmatprep.subr.mxu0 0.0
        %9754 = vmatpush1.msra.mxu0 %v9645
        %9755 = vmatprep.subr.mxu0 0.0
        %9756 = vmatpush1.msra.mxu0 %v9646
        %9757 = vmatprep.subr.mxu0 0.0
        %9758 = vmatpush1.msra.mxu0 %v9647
        %9759 = vmatprep.subr.mxu0 0.0
        %9760 = vmatpush1.msra.mxu0 %v9648
        %9761 = vmatprep.subr.mxu0 0.0
        %9762 = vmatpush1.msra.mxu0 %v9649
        %9763 = vmatprep.subr.mxu0 0.0
        %9764 = vmatpush1.msra.mxu0 %v9650
        %9765 = vmatprep.subr.mxu0 0.0
        %9766 = vmatpush1.msra.mxu0 0.0
        %9767 = vmatprep.subr.mxu0 0.0
        %9768 = vmatpush1.msra.mxu0 0.0
        %9769 = vmatprep.subr.mxu0 0.0
        %9770 = vmatpush1.msra.mxu0 0.0
        %9771 = vmatprep.subr.mxu0 0.0
        %9772 = vmatpush1.msra.mxu0 0.0
        %9773 = vmatprep.subr.mxu0 0.0
        %9774 = vmatpush1.msra.mxu0 0.0
        %9775 = vmatprep.subr.mxu0 0.0
        %9776 = vmatpush1.msra.mxu0 0.0
        %9777 = vmatprep.subr.mxu0 0.0
        %9778 = vmatpush1.msra.mxu0 0.0
        %9779 = vmatprep.subr.mxu0 0.0
        %9780 = vmatpush1.msra.mxu0 0.0
        %9781 = vmatprep.subr.mxu0 0.0
        %9782 = vmatpush1.msra.mxu0 0.0
        %9783 = vmatprep.subr.mxu0 0.0
        %9784 = vmatpush1.msra.mxu0 0.0
        %9785 = vmatprep.subr.mxu0 0.0
        %9786 = vmatpush1.msra.mxu0 0.0
        %9787 = vmatprep.subr.mxu0 0.0
        %9788 = vmatpush1.msra.mxu0 0.0
        %9789 = vmatprep.subr.mxu0 0.0
        %9790 = vmatpush1.msra.mxu0 0.0
        %9791 = vmatprep.subr.mxu0 0.0
        %9792 = vmatpush1.msra.mxu0 0.0
        %9793 = vmatprep.subr.mxu0 0.0
        %9794 = vmatpush1.msra.mxu0 0.0
        %9795 = vmatprep.subr.mxu0 0.0
        %9796 = vmatpush1.msra.mxu0 0.0
        %9797 = vmatprep.subr.mxu0 0.0
        %9798 = vmatpush1.msra.mxu0 0.0
        %9799 = vmatprep.subr.mxu0 0.0
        %9800 = vmatpush1.msra.mxu0 0.0
        %9801 = vmatprep.subr.mxu0 0.0
        %9802 = vmatpush1.msra.mxu0 0.0
        %9803 = vmatprep.subr.mxu0 0.0
        %9804 = vmatpush1.msra.mxu0 0.0
        %9805 = vmatprep.subr.mxu0 0.0
        %9806 = vmatpush1.msra.mxu0 0.0
        %9807 = vmatprep.subr.mxu0 0.0
        %9808 = vmatpush1.msra.mxu0 0.0
        %9809 = vmatprep.subr.mxu0 0.0
        %9810 = vmatpush1.msra.mxu0 0.0
        %9811 = vmatprep.mubr.f32.mxu0 0.0
        %9812 = vmatmul.mubr.f32.gmra.mrb[0].mxu0 %v9652
        %v9813 = vpop.f32.mrb[0].mxu0
        %v9814 = vadd.f32 0.0, %v9813
        %v9815 = vpop.f32.mrb[0].mxu0
        %9816 = vmatprep.mubr.f32.mxu0 0.0
        %9817 = vmatmul.mubr.f32.gmra.mrb[0].mxu0 %v9655
        %v9818 = vpop.f32.mrb[0].mxu0
        %v9819 = vadd.f32 0.0, %v9818
        %v9820 = vpop.f32.mrb[0].mxu0
        %9821 = vmatprep.mubr.f32.mxu0 0.0
        %9822 = vmatmul.mubr.f32.gmra.mrb[0].mxu0 %v9658
        %v9823 = vpop.f32.mrb[0].mxu0
        %v9824 = vadd.f32 0.0, %v9823
        %v9825 = vpop.f32.mrb[0].mxu0
        %9826 = vmatprep.mubr.f32.mxu0 0.0
        %9827 = vmatmul.mubr.f32.gmra.mrb[0].mxu0 %v9661
        %v9828 = vpop.f32.mrb[0].mxu0
        %v9829 = vadd.f32 0.0, %v9828
        %v9830 = vpop.f32.mrb[0].mxu0
        %9831 = vmatprep.mubr.f32.mxu0 0.0
        %9832 = vmatmul.mubr.f32.gmra.mrb[0].mxu0 %v9664
        %v9833 = vpop.f32.mrb[0].mxu0
        %v9834 = vadd.f32 0.0, %v9833
        %v9835 = vpop.f32.mrb[0].mxu0
        %9836 = vmatprep.mubr.f32.mxu0 0.0
        %9837 = vmatmul.mubr.f32.gmra.mrb[0].mxu0 %v9667
        %v9838 = vpop.f32.mrb[0].mxu0
        %v9839 = vadd.f32 0.0, %v9838
        %v9840 = vpop.f32.mrb[0].mxu0
        %9841 = vmatprep.mubr.f32.mxu0 0.0
        %9842 = vmatmul.mubr.f32.gmra.mrb[0].mxu0 %v9670
        %v9843 = vpop.f32.mrb[0].mxu0
        %v9844 = vadd.f32 0.0, %v9843
        %v9845 = vpop.f32.mrb[0].mxu0
        %9846 = vmatprep.mubr.f32.mxu0 0.0
        %9847 = vmatmul.mubr.f32.gmra.mrb[0].mxu0 %v9673
        %v9848 = vpop.f32.mrb[0].mxu0
        %v9849 = vadd.f32 0.0, %v9848
        %v9850 = vpop.f32.mrb[0].mxu0
        %9851 = vmatprep.mubr.f32.mxu0 0.0
        %9852 = vmatmul.mubr.f32.gmra.mrb[0].mxu0 %v9676
        %v9853 = vpop.f32.mrb[0].mxu0
        %v9854 = vadd.f32 0.0, %v9853
        %v9855 = vpop.f32.mrb[0].mxu0
        %9856 = vmatprep.mubr.f32.mxu0 0.0
        %9857 = vmatmul.mubr.f32.gmra.mrb[0].mxu0 %v9679
        %v9858 = vpop.f32.mrb[0].mxu0
        %v9859 = vadd.f32 0.0, %v9858
        %v9860 = vpop.f32.mrb[0].mxu0
        %9861 = vmatprep.mubr.f32.mxu0 0.0
        %9862 = vmatmul.mubr.f32.gmra.mrb[0].mxu0 %v9682
        %v9863 = vpop.f32.mrb[0].mxu0
        %v9864 = vadd.f32 0.0, %v9863
        %v9865 = vpop.f32.mrb[0].mxu0
        %9866 = vmatprep.mubr.f32.mxu0 0.0
        %9867 = vmatmul.mubr.f32.gmra.mrb[0].mxu0 %v9685
        %v9868 = vpop.f32.mrb[0].mxu0
        %v9869 = vadd.f32 0.0, %v9868
        %v9870 = vpop.f32.mrb[0].mxu0
        %9871 = vmatprep.mubr.f32.mxu0 0.0
        %9872 = vmatmul.mubr.f32.gmra.mrb[0].mxu0 %v9688
        %v9873 = vpop.f32.mrb[0].mxu0
        %v9874 = vadd.f32 0.0, %v9873
        %v9875 = vpop.f32.mrb[0].mxu0
        %9876 = vmatprep.mubr.f32.mxu0 0.0
        %9877 = vmatmul.mubr.f32.gmra.mrb[0].mxu0 %v9691
        %v9878 = vpop.f32.mrb[0].mxu0
        %v9879 = vadd.f32 0.0, %v9878
        %v9880 = vpop.f32.mrb[0].mxu0
        %9881 = vmatprep.mubr.f32.mxu0 0.0
        %9882 = vmatmul.mubr.f32.gmra.mrb[0].mxu0 %v9694
        %v9883 = vpop.f32.mrb[0].mxu0
        %v9884 = vadd.f32 0.0, %v9883
        %v9885 = vpop.f32.mrb[0].mxu0
        %9886 = vmatprep.mubr.f32.mxu0 0.0
        %9887 = vmatmul.mubr.f32.gmra.mrb[0].mxu0 %v9697
        %v9888 = vpop.f32.mrb[0].mxu0
        %v9889 = vadd.f32 0.0, %v9888
        %v9890 = vpop.f32.mrb[0].mxu0
        %9891 = vmatprep.mubr.f32.mxu0 0.0
        %9892 = vmatmul.mubr.f32.gmra.mrb[0].mxu0 %v9700
        %v9893 = vpop.f32.mrb[0].mxu0
        %v9894 = vadd.f32 0.0, %v9893
        %v9895 = vpop.f32.mrb[0].mxu0
        %9896 = vmatprep.mubr.f32.mxu0 0.0
        %9897 = vmatmul.mubr.f32.gmra.mrb[0].mxu0 %v9703
        %v9898 = vpop.f32.mrb[0].mxu0
        %v9899 = vadd.f32 0.0, %v9898
        %v9900 = vpop.f32.mrb[0].mxu0
        %9901 = vmatprep.mubr.f32.mxu0 0.0
        %9902 = vmatmul.mubr.f32.gmra.mrb[0].mxu0 %v9706
        %v9903 = vpop.f32.mrb[0].mxu0
        %v9904 = vadd.f32 0.0, %v9903
        %v9905 = vpop.f32.mrb[0].mxu0
        %9906 = vmatprep.mubr.f32.mxu0 0.0
        %9907 = vmatmul.mubr.f32.gmra.mrb[0].mxu0 %v9709
        %v9908 = vpop.f32.mrb[0].mxu0
        %v9909 = vadd.f32 0.0, %v9908
        %v9910 = vpop.f32.mrb[0].mxu0
        %9911 = vmatprep.mubr.f32.mxu0 0.0
        %9912 = vmatmul.mubr.f32.gmra.mrb[0].mxu0 %v9712
        %v9913 = vpop.f32.mrb[0].mxu0
        %v9914 = vadd.f32 0.0, %v9913
        %v9915 = vpop.f32.mrb[0].mxu0
        %9916 = vmatprep.mubr.f32.mxu0 0.0
        %9917 = vmatmul.mubr.f32.gmra.mrb[0].mxu0 %v9715
        %v9918 = vpop.f32.mrb[0].mxu0
        %v9919 = vadd.f32 0.0, %v9918
        %v9920 = vpop.f32.mrb[0].mxu0
        %9921 = vmatprep.mubr.f32.mxu0 0.0
        %9922 = vmatmul.mubr.f32.gmra.mrb[0].mxu0 %v9718
        %v9923 = vpop.f32.mrb[0].mxu0
        %v9924 = vadd.f32 0.0, %v9923
        %v9925 = vpop.f32.mrb[0].mxu0
        %9926 = vmatprep.mubr.f32.mxu0 0.0
        %9927 = vmatmul.mubr.f32.gmra.mrb[0].mxu0 %v9721
        %v9928 = vpop.f32.mrb[0].mxu0
        %v9929 = vadd.f32 0.0, %v9928
        %v9930 = vpop.f32.mrb[0].mxu0
        %9931 = vmatprep.mubr.f32.mxu0 0.0
        %9932 = vmatmul.mubr.f32.gmra.mrb[0].mxu0 %v9724
        %v9933 = vpop.f32.mrb[0].mxu0
        %v9934 = vadd.f32 0.0, %v9933
        %v9935 = vpop.f32.mrb[0].mxu0
        %9936 = vmatprep.mubr.f32.mxu0 0.0
        %9937 = vmatmul.mubr.f32.gmra.mrb[0].mxu0 %v9727
        %v9938 = vpop.f32.mrb[0].mxu0
        %v9939 = vadd.f32 0.0, %v9938
        %v9940 = vpop.f32.mrb[0].mxu0
        %9941 = vmatprep.mubr.f32.mxu0 0.0
        %9942 = vmatmul.mubr.f32.gmra.mrb[0].mxu0 %v9730
        %v9943 = vpop.f32.mrb[0].mxu0
        %v9944 = vadd.f32 0.0, %v9943
        %v9945 = vpop.f32.mrb[0].mxu0
        %9946 = vmatprep.mubr.f32.mxu0 0.0
        %9947 = vmatmul.mubr.f32.gmra.mrb[0].mxu0 %v9733
        %v9948 = vpop.f32.mrb[0].mxu0
        %v9949 = vadd.f32 0.0, %v9948
        %v9950 = vpop.f32.mrb[0].mxu0
        %9951 = vmatprep.mubr.f32.mxu0 0.0
        %9952 = vmatmul.mubr.f32.gmra.mrb[0].mxu0 %v9736
        %v9953 = vpop.f32.mrb[0].mxu0
        %v9954 = vadd.f32 0.0, %v9953
        %v9955 = vpop.f32.mrb[0].mxu0
        %9956 = vmatprep.mubr.f32.mxu0 0.0
        %9957 = vmatmul.mubr.f32.gmra.mrb[0].mxu0 %v9739
        %v9958 = vpop.f32.mrb[0].mxu0
        %v9959 = vadd.f32 0.0, %v9958
        %v9960 = vpop.f32.mrb[0].mxu0
        %9961 = vmatprep.mubr.f32.mxu0 0.0
        %9962 = vmatmul.mubr.f32.gmra.mrb[0].mxu0 %v9742
        %v9963 = vpop.f32.mrb[0].mxu0
        %v9964 = vadd.f32 0.0, %v9963
        %v9965 = vpop.f32.mrb[0].mxu0
        %9966 = vmatprep.mubr.f32.mxu0 0.0
        %9967 = vmatmul.mubr.f32.gmra.mrb[0].mxu0 %v9745
        %v9968 = vpop.f32.mrb[0].mxu0
        %v9969 = vadd.f32 0.0, %v9968
        %v9970 = vpop.f32.mrb[0].mxu0
        %9971 = vdwg.mxu0
        %v9972 = vxor.u32 %v9814, 2147483648
        %v9973 = vxor.u32 %v9819, 2147483648
        %v9974 = vxor.u32 %v9824, 2147483648
        %v9975 = vxor.u32 %v9829, 2147483648
        %v9976 = vxor.u32 %v9834, 2147483648
        %v9977 = vxor.u32 %v9839, 2147483648
        %v9978 = vxor.u32 %v9844, 2147483648
        %v9979 = vxor.u32 %v9849, 2147483648
        %v9980 = vxor.u32 %v9854, 2147483648
        %v9981 = vxor.u32 %v9859, 2147483648
        %v9982 = vxor.u32 %v9864, 2147483648
        %v9983 = vxor.u32 %v9869, 2147483648
        %v9984 = vxor.u32 %v9874, 2147483648
        %v9985 = vxor.u32 %v9879, 2147483648
        %v9986 = vxor.u32 %v9884, 2147483648
        %v9987 = vxor.u32 %v9889, 2147483648
        %v9988 = vxor.u32 %v9894, 2147483648
        %v9989 = vxor.u32 %v9899, 2147483648
        %v9990 = vxor.u32 %v9904, 2147483648
        %v9991 = vxor.u32 %v9909, 2147483648
        %v9992 = vxor.u32 %v9914, 2147483648
        %v9993 = vxor.u32 %v9919, 2147483648
        %v9994 = vxor.u32 %v9924, 2147483648
        %v9995 = vxor.u32 %v9929, 2147483648
        %v9996 = vxor.u32 %v9934, 2147483648
        %v9997 = vxor.u32 %v9939, 2147483648
        %v9998 = vxor.u32 %v9944, 2147483648
        %v9999 = vxor.u32 %v9949, 2147483648
        %v10000 = vxor.u32 %v9954, 2147483648
        %v10001 = vxor.u32 %v9959, 2147483648
        %v10002 = vxor.u32 %v9964, 2147483648
        %v10003 = vxor.u32 %v9969, 2147483648
        %v10004 = vmul.f32 %v9972, 1.442695
        %v10005 = vpow.pop %v10004
        %v10006 = vmul.f32 %v9973, 1.442695
        %v10007 = vpow.pop %v10006
        %v10008 = vmul.f32 %v9974, 1.442695
        %v10009 = vpow.pop %v10008
        %v10010 = vmul.f32 %v9975, 1.442695
        %v10011 = vpow.pop %v10010
        %v10012 = vmul.f32 %v9976, 1.442695
        %v10013 = vpow.pop %v10012
        %v10014 = vmul.f32 %v9977, 1.442695
        %v10015 = vpow.pop %v10014
        %v10016 = vmul.f32 %v9978, 1.442695
        %v10017 = vpow.pop %v10016
        %v10018 = vmul.f32 %v9979, 1.442695
        %v10019 = vpow.pop %v10018
        %v10020 = vmul.f32 %v9980, 1.442695
        %v10021 = vpow.pop %v10020
        %v10022 = vmul.f32 %v9981, 1.442695
        %v10023 = vpow.pop %v10022
        %v10024 = vmul.f32 %v9982, 1.442695
        %v10025 = vpow.pop %v10024
        %v10026 = vmul.f32 %v9983, 1.442695
        %v10027 = vpow.pop %v10026
        %v10028 = vmul.f32 %v9984, 1.442695
        %v10029 = vpow.pop %v10028
        %v10030 = vmul.f32 %v9985, 1.442695
        %v10031 = vpow.pop %v10030
        %v10032 = vmul.f32 %v9986, 1.442695
        %v10033 = vpow.pop %v10032
        %v10034 = vmul.f32 %v9987, 1.442695
        %v10035 = vpow.pop %v10034
        %v10036 = vmul.f32 %v9988, 1.442695
        %v10037 = vpow.pop %v10036
        %v10038 = vmul.f32 %v9989, 1.442695
        %v10039 = vpow.pop %v10038
        %v10040 = vmul.f32 %v9990, 1.442695
        %v10041 = vpow.pop %v10040
        %v10042 = vmul.f32 %v9991, 1.442695
        %v10043 = vpow.pop %v10042
        %v10044 = vmul.f32 %v9992, 1.442695
        %v10045 = vpow.pop %v10044
        %v10046 = vmul.f32 %v9993, 1.442695
        %v10047 = vpow.pop %v10046
        %v10048 = vmul.f32 %v9994, 1.442695
        %v10049 = vpow.pop %v10048
        %v10050 = vmul.f32 %v9995, 1.442695
        %v10051 = vpow.pop %v10050
        %v10052 = vmul.f32 %v9996, 1.442695
        %v10053 = vpow.pop %v10052
        %v10054 = vmul.f32 %v9997, 1.442695
        %v10055 = vpow.pop %v10054
        %v10056 = vmul.f32 %v9998, 1.442695
        %v10057 = vpow.pop %v10056
        %v10058 = vmul.f32 %v9999, 1.442695
        %v10059 = vpow.pop %v10058
        %v10060 = vmul.f32 %v10000, 1.442695
        %v10061 = vpow.pop %v10060
        %v10062 = vmul.f32 %v10001, 1.442695
        %v10063 = vpow.pop %v10062
        %v10064 = vmul.f32 %v10002, 1.442695
        %v10065 = vpow.pop %v10064
        %v10066 = vmul.f32 %v10003, 1.442695
        %v10067 = vpow.pop %v10066
        %v10068 = vadd.f32 %v10005, 1.0
        %v10069 = vadd.f32 %v10007, 1.0
        %v10070 = vadd.f32 %v10009, 1.0
        %v10071 = vadd.f32 %v10011, 1.0
        %v10072 = vadd.f32 %v10013, 1.0
        %v10073 = vadd.f32 %v10015, 1.0
        %v10074 = vadd.f32 %v10017, 1.0
        %v10075 = vadd.f32 %v10019, 1.0
        %v10076 = vadd.f32 %v10021, 1.0
        %v10077 = vadd.f32 %v10023, 1.0
        %v10078 = vadd.f32 %v10025, 1.0
        %v10079 = vadd.f32 %v10027, 1.0
        %v10080 = vadd.f32 %v10029, 1.0
        %v10081 = vadd.f32 %v10031, 1.0
        %v10082 = vadd.f32 %v10033, 1.0
        %v10083 = vadd.f32 %v10035, 1.0
        %v10084 = vadd.f32 %v10037, 1.0
        %v10085 = vadd.f32 %v10039, 1.0
        %v10086 = vadd.f32 %v10041, 1.0
        %v10087 = vadd.f32 %v10043, 1.0
        %v10088 = vadd.f32 %v10045, 1.0
        %v10089 = vadd.f32 %v10047, 1.0
        %v10090 = vadd.f32 %v10049, 1.0
        %v10091 = vadd.f32 %v10051, 1.0
        %v10092 = vadd.f32 %v10053, 1.0
        %v10093 = vadd.f32 %v10055, 1.0
        %v10094 = vadd.f32 %v10057, 1.0
        %v10095 = vadd.f32 %v10059, 1.0
        %v10096 = vadd.f32 %v10061, 1.0
        %v10097 = vadd.f32 %v10063, 1.0
        %v10098 = vadd.f32 %v10065, 1.0
        %v10099 = vadd.f32 %v10067, 1.0
        %v10100 = vrcp.pop %v10068
        %v10101 = vmul.f32 1.0, %v10100
        %v10102 = vrcp.pop %v10069
        %v10103 = vmul.f32 1.0, %v10102
        %v10104 = vrcp.pop %v10070
        %v10105 = vmul.f32 1.0, %v10104
        %v10106 = vrcp.pop %v10071
        %v10107 = vmul.f32 1.0, %v10106
        %v10108 = vrcp.pop %v10072
        %v10109 = vmul.f32 1.0, %v10108
        %v10110 = vrcp.pop %v10073
        %v10111 = vmul.f32 1.0, %v10110
        %v10112 = vrcp.pop %v10074
        %v10113 = vmul.f32 1.0, %v10112
        %v10114 = vrcp.pop %v10075
        %v10115 = vmul.f32 1.0, %v10114
        %v10116 = vrcp.pop %v10076
        %v10117 = vmul.f32 1.0, %v10116
        %v10118 = vrcp.pop %v10077
        %v10119 = vmul.f32 1.0, %v10118
        %v10120 = vrcp.pop %v10078
        %v10121 = vmul.f32 1.0, %v10120
        %v10122 = vrcp.pop %v10079
        %v10123 = vmul.f32 1.0, %v10122
        %v10124 = vrcp.pop %v10080
        %v10125 = vmul.f32 1.0, %v10124
        %v10126 = vrcp.pop %v10081
        %v10127 = vmul.f32 1.0, %v10126
        %v10128 = vrcp.pop %v10082
        %v10129 = vmul.f32 1.0, %v10128
        %v10130 = vrcp.pop %v10083
        %v10131 = vmul.f32 1.0, %v10130
        %v10132 = vrcp.pop %v10084
        %v10133 = vmul.f32 1.0, %v10132
        %v10134 = vrcp.pop %v10085
        %v10135 = vmul.f32 1.0, %v10134
        %v10136 = vrcp.pop %v10086
        %v10137 = vmul.f32 1.0, %v10136
        %v10138 = vrcp.pop %v10087
        %v10139 = vmul.f32 1.0, %v10138
        %v10140 = vrcp.pop %v10088
        %v10141 = vmul.f32 1.0, %v10140
        %v10142 = vrcp.pop %v10089
        %v10143 = vmul.f32 1.0, %v10142
        %v10144 = vrcp.pop %v10090
        %v10145 = vmul.f32 1.0, %v10144
        %v10146 = vrcp.pop %v10091
        %v10147 = vmul.f32 1.0, %v10146
        %v10148 = vrcp.pop %v10092
        %v10149 = vmul.f32 1.0, %v10148
        %v10150 = vrcp.pop %v10093
        %v10151 = vmul.f32 1.0, %v10150
        %v10152 = vrcp.pop %v10094
        %v10153 = vmul.f32 1.0, %v10152
        %v10154 = vrcp.pop %v10095
        %v10155 = vmul.f32 1.0, %v10154
        %v10156 = vrcp.pop %v10096
        %v10157 = vmul.f32 1.0, %v10156
        %v10158 = vrcp.pop %v10097
        %v10159 = vmul.f32 1.0, %v10158
        %v10160 = vrcp.pop %v10098
        %v10161 = vmul.f32 1.0, %v10160
        %v10162 = vrcp.pop %v10099
        %v10163 = vmul.f32 1.0, %v10162
        %10164 = vxpose.xlu0.b32.start [1/16] %v10101, 128
        %10165 = vxpose.xlu0.b32.cont [2/16] %v10103, 128
        %10166 = vxpose.xlu0.b32.cont [3/16] %v10105, 128
        %10167 = vxpose.xlu0.b32.cont [4/16] %v10107, 128
        %10168 = vxpose.xlu0.b32.cont [5/16] %v10109, 128
        %10169 = vxpose.xlu0.b32.cont [6/16] %v10111, 128
        %10170 = vxpose.xlu0.b32.cont [7/16] %v10113, 128
        %10171 = vxpose.xlu0.b32.cont [8/16] %v10115, 128
        %10172 = vxpose.xlu0.b32.cont [9/16] %v10117, 128
        %10173 = vxpose.xlu0.b32.cont [10/16] %v10119, 128
        %10174 = vxpose.xlu0.b32.cont [11/16] %v10121, 128
        %10175 = vxpose.xlu0.b32.cont [12/16] %v10123, 128
        %10176 = vxpose.xlu0.b32.cont [13/16] %v10125, 128
        %10177 = vxpose.xlu0.b32.cont [14/16] %v10127, 128
        %10178 = vxpose.xlu0.b32.cont [15/16] %v10129, 128
        %10179 = vxpose.xlu0.b32.end [16/16] %v10131, 128
        %v10180 = vpop.trf.xlu0
        %v10181 = vpop.trf.xlu0
        %v10182 = vpop.trf.xlu0
        %v10183 = vpop.trf.xlu0
        %v10184 = vpop.trf.xlu0
        %v10185 = vpop.trf.xlu0
        %v10186 = vpop.trf.xlu0
        %v10187 = vpop.trf.xlu0
        %v10188 = vpop.trf.xlu0
        %v10189 = vpop.trf.xlu0
        %v10190 = vpop.trf.xlu0
        %v10191 = vpop.trf.xlu0
        %v10192 = vpop.trf.xlu0
        %v10193 = vpop.trf.xlu0
        %v10194 = vpop.trf.xlu0
        %v10195 = vpop.trf.xlu0
        %10196 = vxpose.xlu0.b32.start [1/16] %v10133, 128
        %10197 = vxpose.xlu0.b32.cont [2/16] %v10135, 128
        %10198 = vxpose.xlu0.b32.cont [3/16] %v10137, 128
        %10199 = vxpose.xlu0.b32.cont [4/16] %v10139, 128
        %10200 = vxpose.xlu0.b32.cont [5/16] %v10141, 128
        %10201 = vxpose.xlu0.b32.cont [6/16] %v10143, 128
        %10202 = vxpose.xlu0.b32.cont [7/16] %v10145, 128
        %10203 = vxpose.xlu0.b32.cont [8/16] %v10147, 128
        %10204 = vxpose.xlu0.b32.cont [9/16] %v10149, 128
        %10205 = vxpose.xlu0.b32.cont [10/16] %v10151, 128
        %10206 = vxpose.xlu0.b32.cont [11/16] %v10153, 128
        %10207 = vxpose.xlu0.b32.cont [12/16] %v10155, 128
        %10208 = vxpose.xlu0.b32.cont [13/16] %v10157, 128
        %10209 = vxpose.xlu0.b32.cont [14/16] %v10159, 128
        %10210 = vxpose.xlu0.b32.cont [15/16] %v10161, 128
        %10211 = vxpose.xlu0.b32.end [16/16] %v10163, 128
        %v10212 = vpop.trf.xlu0
        %v10213 = vpop.trf.xlu0
        %v10214 = vpop.trf.xlu0
        %v10215 = vpop.trf.xlu0
        %v10216 = vpop.trf.xlu0
        %v10217 = vpop.trf.xlu0
        %v10218 = vpop.trf.xlu0
        %v10219 = vpop.trf.xlu0
        %v10220 = vpop.trf.xlu0
        %v10221 = vpop.trf.xlu0
        %v10222 = vpop.trf.xlu0
        %v10223 = vpop.trf.xlu0
        %v10224 = vpop.trf.xlu0
        %v10225 = vpop.trf.xlu0
        %v10226 = vpop.trf.xlu0
        %v10227 = vpop.trf.xlu0
        %10228 = vmatprep.subr.mxu0 0.0
        %10229 = vmatpush1.msra.mxu0 %v277
        %10230 = vmatprep.subr.mxu0 0.0
        %10231 = vmatpush1.msra.mxu0 %v278
        %10232 = vmatprep.subr.mxu0 0.0
        %10233 = vmatpush1.msra.mxu0 %v279
        %10234 = vmatprep.subr.mxu0 0.0
        %10235 = vmatpush1.msra.mxu0 %v280
        %10236 = vmatprep.subr.mxu0 0.0
        %10237 = vmatpush1.msra.mxu0 %v281
        %10238 = vmatprep.subr.mxu0 0.0
        %10239 = vmatpush1.msra.mxu0 %v282
        %10240 = vmatprep.subr.mxu0 0.0
        %10241 = vmatpush1.msra.mxu0 %v283
        %10242 = vmatprep.subr.mxu0 0.0
        %10243 = vmatpush1.msra.mxu0 %v284
        %10244 = vmatprep.subr.mxu0 0.0
        %10245 = vmatpush1.msra.mxu0 %v285
        %10246 = vmatprep.subr.mxu0 0.0
        %10247 = vmatpush1.msra.mxu0 %v286
        %10248 = vmatprep.subr.mxu0 0.0
        %10249 = vmatpush1.msra.mxu0 %v287
        %10250 = vmatprep.subr.mxu0 0.0
        %10251 = vmatpush1.msra.mxu0 %v288
        %10252 = vmatprep.subr.mxu0 0.0
        %10253 = vmatpush1.msra.mxu0 %v289
        %10254 = vmatprep.subr.mxu0 0.0
        %10255 = vmatpush1.msra.mxu0 %v290
        %10256 = vmatprep.subr.mxu0 0.0
        %10257 = vmatpush1.msra.mxu0 %v291
        %10258 = vmatprep.subr.mxu0 0.0
        %10259 = vmatpush1.msra.mxu0 %v292
        %10260 = vmatprep.subr.mxu0 0.0
        %10261 = vmatpush1.msra.mxu0 %v293
        %10262 = vmatprep.subr.mxu0 0.0
        %10263 = vmatpush1.msra.mxu0 %v294
        %10264 = vmatprep.subr.mxu0 0.0
        %10265 = vmatpush1.msra.mxu0 %v295
        %10266 = vmatprep.subr.mxu0 0.0
        %10267 = vmatpush1.msra.mxu0 %v296
        %10268 = vmatprep.subr.mxu0 0.0
        %10269 = vmatpush1.msra.mxu0 %v297
        %10270 = vmatprep.subr.mxu0 0.0
        %10271 = vmatpush1.msra.mxu0 %v298
        %10272 = vmatprep.subr.mxu0 0.0
        %10273 = vmatpush1.msra.mxu0 %v299
        %10274 = vmatprep.subr.mxu0 0.0
        %10275 = vmatpush1.msra.mxu0 %v300
        %10276 = vmatprep.subr.mxu0 0.0
        %10277 = vmatpush1.msra.mxu0 %v301
        %10278 = vmatprep.subr.mxu0 0.0
        %10279 = vmatpush1.msra.mxu0 %v302
        %10280 = vmatprep.subr.mxu0 0.0
        %10281 = vmatpush1.msra.mxu0 %v303
        %10282 = vmatprep.subr.mxu0 0.0
        %10283 = vmatpush1.msra.mxu0 %v304
        %10284 = vmatprep.subr.mxu0 0.0
        %10285 = vmatpush1.msra.mxu0 %v305
        %10286 = vmatprep.subr.mxu0 0.0
        %10287 = vmatpush1.msra.mxu0 %v306
        %10288 = vmatprep.subr.mxu0 0.0
        %10289 = vmatpush1.msra.mxu0 %v307
        %10290 = vmatprep.subr.mxu0 0.0
        %10291 = vmatpush1.msra.mxu0 %v308
        %10292 = vmatprep.mubr.f32.mxu0 %v10212
        %10293 = vmatmul.mubr.f32.gmra.mrb[0].mxu0 %v10180
        %v10294 = vpop.f32.mrb[0].mxu0
        %v10295 = vadd.f32 0.0, %v10294
        %v10296 = vpop.f32.mrb[0].mxu0
        %10297 = vdwg.mxu0
        %v10298 = vmul.f32 %v10295, 0.00390625
        %10299 = vst.msk [vmem:[%s271] sm:$0xff] %vm309, %v10298
        %s10300 = sand.u32 %s181, 1
        %s10301 = scalar_lea.sflag [#allocation3], %s10300
        %s10302 = sand.u32 %s181, 1
        %s10303 = smul.addr %s10302, 8
        %s10304 = scalar_lea.vmem [#allocation2], %s10303
        // Predicated region
        $region49: #{tpu_custom_call.1} parent=47 // pred_check
          %p10305 = pneg %p191
        $region50: #{tpu_custom_call.1} parent=47 // pred_check_branch
          %10307 = sbr.rel (%p10305) target = $region52
        $region51: #{tpu_custom_call.1} parent=47 // pred_region
          %s10309 = ssub.s32 128, 128
          %10310 = vsyncadd %s10301, %s10309
          %s10311 = smul.addr %s21, 128
          %s10312 = scalar_lea.hbm %s7, %s10311
          %s10314 = sshll.u32 %s10304, 4
          %s10315 = int_to_ptr.vmem [resolvable:$true] %s10314
          %10317 = dma.vmem_to_hbm [thread:$0]  %s10315, 128, %s10312, %s10301
        $region52: #{tpu_custom_call.1} parent=47 // pred_fallthru
          _
      $region48: #{tpu_custom_call.1} parent=5 // pred_fallthru
        _
      %p10318 = scmp.le.s32.totalorder 2, %s16
      // Predicated region
      $region53: #{tpu_custom_call.1} parent=5 // pred_check
        %p10319 = pneg %p10318
      $region54: #{tpu_custom_call.1} parent=5 // pred_check_branch
        %10321 = sbr.rel (%p10319) target = $region56
      $region55: #{tpu_custom_call.1} parent=5 // pred_region
        %s10322 = ssub.s32 %s16, 2
        // Predicated region
        $region57: #{tpu_custom_call.1} parent=55 // pred_check
          %p10323 = pneg %p197
        $region58: #{tpu_custom_call.1} parent=55 // pred_check_branch
          %10325 = sbr.rel (%p10323) target = $region60
        $region59: #{tpu_custom_call.1} parent=55 // pred_region
          %s10326 = sand.u32 %s182, 1
          %s10327 = scalar_lea.sflag [#allocation3], %s10326
          %s10328 = sand.u32 %s182, 1
          %s10329 = smul.addr %s10328, 8
          %s10330 = scalar_lea.vmem [#allocation2], %s10329
          %10331 = dma.done %s10327, 128
        $region60: #{tpu_custom_call.1} parent=55 // pred_fallthru
          _
      $region56: #{tpu_custom_call.1} parent=5 // pred_fallthru
        _
    $region6: #{tpu_custom_call.1} parent=1 // loop_footer
      %s20 = sadd.s32 1, %s16
    $region7: #{tpu_custom_call.1} parent=1 // loop_footer_branch
      %15 = sbr.rel target = $region3
    $region8: #{tpu_custom_call.1} parent=1 // loop_exit
      _
    %10332 = vsyncpa [#allocation3], 1
    %s10333 = scalar_lea.sflag [#allocation3], 1
    %10334 = vsyncpa %s10333, 1

</llo_original>
